<compile_context>
chip_gen: v7x
topology: tpu7x:2x2x1
jax: 0.10.0
libtpu: 0.0.40
codegen_flags: <defaults>
</compile_context>

<pallas_src>
import functools

import numpy as np
import jax
import jax.numpy as jnp
from jax.experimental import pallas as pl
from jax.experimental.pallas import tpu as pltpu


def _round_up(x, m):
    return ((x + m - 1) // m) * m


# ----------------------------------------------------------------------------
# Fused encoder kernel (one grid step == one image)
# ----------------------------------------------------------------------------
def _encoder_kernel(lhs1_ref, w1_ref, b1_ref, w2_ref, b2_ref, p2_ref,
                    w3_ref, b3_ref, p3_ref, w4_ref, b4_ref, wp_ref, bfc_ref,
                    o_ref, x1_ref, x2_ref, x3_ref, l2_ref, l3_ref, l4_ref):
    f32 = jnp.float32

    # ---- conv1: patches prebuilt outside, rows already parity-split ordered --
    y1 = jnp.dot(lhs1_ref[0], w1_ref[...], preferred_element_type=f32)
    x1_ref[...] = jnp.maximum(y1 + b1_ref[...], 0.0)               # (992, 32)

    def build_lhs(x_ref, qi, ho, wo, lhs_ref):
        """Stage the full im2col LHS of a k=4/s=2 layer into VMEM scratch.

        Input rows are laid out as h*(2*qi) + (w % 2)*qi + w//2, so the tap
        (i, j) of output pixel (a, b) sits at row (2a+i)*(2*qi) + (j%2)*qi +
        (j//2 + b) -- i.e. every tap is one contiguous slice of length wo.
        """
        rs = 2 * qi
        for a in range(ho):
            parts = []
            for i in range(4):
                h = 2 * a + i
                row = x_ref[h * rs:(h + 1) * rs, :]                # (2*qi, Cin)
                for pj in range(2):                                # j = 2*jh + pj
                    for jh in range(2):
                        off = pj * qi + jh
                        parts.append(row[off:off + wo, :])         # (wo, Cin)
            lhs_ref[a * wo:(a + 1) * wo, :] = jnp.concatenate(parts, axis=1)

    def conv(lhs_ref, w_ref, b_ref):
        y = jnp.dot(lhs_ref[...], w_ref[...], preferred_element_type=f32)
        return jnp.maximum(y + b_ref[...], 0.0)

    # ---- conv2: 31x31x32 -> 14x14x64 -----------------------------------------
    build_lhs(x1_ref, 16, 14, 14, l2_ref)
    x2_ref[...] = jnp.dot(p2_ref[...], conv(l2_ref, w2_ref, b2_ref),
                          preferred_element_type=f32)              # parity-split rows

    # ---- conv3: 14x14x64 -> 6x6x128 -------------------------------------------
    build_lhs(x2_ref, 7, 6, 6, l3_ref)
    x3_ref[...] = jnp.dot(p3_ref[...], conv(l3_ref, w3_ref, b3_ref),
                          preferred_element_type=f32)

    # ---- conv4: 6x6x128 -> 2x2x256 (row order = h*2 + w) -----------------------
    build_lhs(x3_ref, 3, 2, 2, l4_ref)
    y4 = conv(l4_ref, w4_ref, b4_ref)                               # (4, 256)

    # ---- NCHW flatten + fc_mu | fc_logsigma (merged, lane-dense) ---------------
    acc = bfc_ref[...]                                              # (1, Nfc)
    for r in range(4):                                              # r = h*2 + w
        acc = acc + jnp.dot(y4[r:r + 1, :], wp_ref[r],
                            preferred_element_type=f32)
    o_ref[0] = acc


# ----------------------------------------------------------------------------
# Parameters: synthetic init (HWIO conv weights) + one-time kernel repacking
# ----------------------------------------------------------------------------
def init_encoder_params(key, img_channels, latent_size):
    ks = jax.random.split(key, 12)

    def conv(kw, kb, cin, cout):
        w = jax.random.normal(kw, (4, 4, cin, cout), jnp.float32) * 0.05
        b = jax.random.normal(kb, (cout,), jnp.float32) * 0.01
        return w, b

    p = {}
    p["conv1_w"], p["conv1_b"] = conv(ks[0], ks[1], img_channels, 32)
    p["conv2_w"], p["conv2_b"] = conv(ks[2], ks[3], 32, 64)
    p["conv3_w"], p["conv3_b"] = conv(ks[4], ks[5], 64, 128)
    p["conv4_w"], p["conv4_b"] = conv(ks[6], ks[7], 128, 256)
    feat = 2 * 2 * 256
    p["fc_mu_w"] = jax.random.normal(ks[8], (feat, latent_size), jnp.float32) * 0.02
    p["fc_mu_b"] = jax.random.normal(ks[9], (latent_size,), jnp.float32) * 0.01
    p["fc_ls_w"] = jax.random.normal(ks[10], (feat, latent_size), jnp.float32) * 0.02
    p["fc_ls_b"] = jax.random.normal(ks[11], (latent_size,), jnp.float32) * 0.01
    return p


def _pack_conv_w(w_hwio):
    """(4,4,Cin,Cout) HWIO -> (16*Cin, Cout), rows ordered (i, j%2, j//2, c)
    to match the in-kernel tap concatenation order."""
    kh, kw, cin, cout = w_hwio.shape
    w = w_hwio.reshape(kh, 2, 2, cin, cout)        # (i, j//2, j%2, c, o)
    w = jnp.transpose(w, (0, 2, 1, 3, 4))          # (i, j%2, j//2, c, o)
    return w.reshape(kh * kw * cin, cout)


def _parity_perm(ho, wo):
    """Block-diagonal permutation: natural rows (a*wo + b) -> parity-split rows
    (a*2*qo + (b%2)*qo + b//2).  Applied as one tiny MXU matmul per layer."""
    qo = (wo + 1) // 2
    perm = np.zeros((ho * 2 * qo, ho * wo), np.float32)
    for a in range(ho):
        for b in range(wo):
            perm[a * 2 * qo + (b % 2) * qo + b // 2, a * wo + b] = 1.0
    return jnp.asarray(perm)


def pack_params(p, img_channels, latent_size):
    cin_p = _round_up(img_channels, 8)                 # conv1 contraction K = 128
    w1 = jnp.pad(p["conv1_w"], ((0, 0), (0, 0), (0, cin_p - img_channels), (0, 0)))
    packed = {
        "w1": _pack_conv_w(w1),                        # (128, 32)
        "b1": p["conv1_b"].reshape(1, 32),
        "w2": _pack_conv_w(p["conv2_w"]),              # (512, 64)
        "b2": p["conv2_b"].reshape(1, 64),
        "w3": _pack_conv_w(p["conv3_w"]),              # (1024, 128)
        "b3": p["conv3_b"].reshape(1, 128),
        "w4": _pack_conv_w(p["conv4_w"]),              # (2048, 256)
        "b4": p["conv4_b"].reshape(1, 256),
        "p2": _parity_perm(14, 14),                    # (196, 196)
        "p3": _parity_perm(6, 6),                      # (36, 36)
    }
    # fc_mu / fc_logsigma merged into one lane-dense head; the PyTorch NCHW
    # flatten (index c*4 + h*2 + w) is folded into the weight layout.
    two_l = 2 * latent_size
    nfc = _round_up(two_l, 128)
    wfc = jnp.concatenate([p["fc_mu_w"], p["fc_ls_w"]], axis=1)    # (1024, 2L)
    bfc = jnp.concatenate([p["fc_mu_b"], p["fc_ls_b"]], axis=0)    # (2L,)
    wp = wfc.reshape(256, 4, two_l).transpose(1, 0, 2)             # (hw, c, 2L)
    packed["wp"] = jnp.pad(wp, ((0, 0), (0, 0), (0, nfc - two_l)))
    packed["bfc"] = jnp.pad(bfc, (0, nfc - two_l)).reshape(1, nfc)
    return packed


# ----------------------------------------------------------------------------
# conv1 patch extraction (plain-JAX glue on the small raw image only)
# ----------------------------------------------------------------------------
def _conv1_patches(x_nchw, cin_pad):
    B, C, H, W = x_nchw.shape
    ho, wo = (H - 4) // 2 + 1, (W - 4) // 2 + 1               # 31, 31
    q = (wo + 1) // 2                                         # 16
    x = jnp.transpose(x_nchw, (0, 2, 3, 1))                   # NHWC
    x = jnp.pad(x, ((0, 0), (0, 0), (0, 0), (0, cin_pad - C)))
    taps = []
    for i in range(4):
        for pj in range(2):
            for jh in range(2):
                j = 2 * jh + pj
                taps.append(x[:, i:i + 2 * ho - 1:2, j:j + 2 * wo - 1:2, :])
    patches = jnp.concatenate(taps, axis=-1)                  # (B, 31, 31, 16*cin_pad)
    even = patches[:, :, 0::2, :]                             # w even  (16)
    odd = patches[:, :, 1::2, :]                              # w odd   (15)
    odd = jnp.pad(odd, ((0, 0), (0, 0), (0, q - odd.shape[2]), (0, 0)))
    lhs = jnp.concatenate([even, odd], axis=2)                # (B, 31, 32, 16*cin_pad)
    return lhs.reshape(B, ho * 2 * q, 16 * cin_pad)           # (B, 992, 128)


# ----------------------------------------------------------------------------
# Forward pass (one fused pallas_call)
# ----------------------------------------------------------------------------
def encoder_forward(packed, x_nchw, *, latent_size):
    B = x_nchw.shape[0]
    assert x_nchw.shape[2] == 64 and x_nchw.shape[3] == 64, \
        "fc layers require a 2x2x256 feature map -> 64x64 input"
    cin_pad = packed["w1"].shape[0] // 16
    lhs1 = _conv1_patches(x_nchw, cin_pad)                    # (B, 992, 128)
    nfc = packed["bfc"].shape[1]

    out = pl.pallas_call(
        _encoder_kernel,
        out_shape=jax.ShapeDtypeStruct((B, 1, nfc), jnp.float32),
        grid=(B,),
        in_specs=[
            pl.BlockSpec((1, 992, 128), lambda b: (b, 0, 0)),     # conv1 patches
            pl.BlockSpec((128, 32), lambda b: (0, 0)),            # w1
            pl.BlockSpec((1, 32), lambda b: (0, 0)),              # b1
            pl.BlockSpec((512, 64), lambda b: (0, 0)),            # w2
            pl.BlockSpec((1, 64), lambda b: (0, 0)),              # b2
            pl.BlockSpec((196, 196), lambda b: (0, 0)),           # P2 (parity perm)
            pl.BlockSpec((1024, 128), lambda b: (0, 0)),          # w3
            pl.BlockSpec((1, 128), lambda b: (0, 0)),             # b3
            pl.BlockSpec((36, 36), lambda b: (0, 0)),             # P3 (parity perm)
            pl.BlockSpec((2048, 256), lambda b: (0, 0)),          # w4
            pl.BlockSpec((1, 256), lambda b: (0, 0)),             # b4
            pl.BlockSpec((4, 256, nfc), lambda b: (0, 0, 0)),     # merged fc W
            pl.BlockSpec((1, nfc), lambda b: (0, 0)),             # merged fc b
        ],
        out_specs=pl.BlockSpec((1, 1, nfc), lambda b: (b, 0, 0)),
        scratch_shapes=[
            pltpu.VMEM((992, 32), jnp.float32),    # conv1 output (parity-split)
            pltpu.VMEM((196, 64), jnp.float32),    # conv2 output (parity-split)
            pltpu.VMEM((36, 128), jnp.float32),    # conv3 output (parity-split)
            pltpu.VMEM((196, 512), jnp.float32),   # conv2 im2col staging
            pltpu.VMEM((36, 1024), jnp.float32),   # conv3 im2col staging
            pltpu.VMEM((4, 2048), jnp.float32),    # conv4 im2col staging
        ],
        compiler_params=pltpu.CompilerParams(
            dimension_semantics=("parallel",)),
    )(lhs1, packed["w1"], packed["b1"], packed["w2"], packed["b2"], packed["p2"],
      packed["w3"], packed["b3"], packed["p3"], packed["w4"], packed["b4"],
      packed["wp"], packed["bfc"])

    out = out.reshape(B, nfc)
    return out[:, :latent_size], out[:, latent_size:2 * latent_size]


# ----------------------------------------------------------------------------
# Plain-JAX reference (same math as the PyTorch module)
# ----------------------------------------------------------------------------
def encoder_reference(p, x_nchw, latent_size):
    x = jnp.transpose(x_nchw, (0, 2, 3, 1))
    for name in ("conv1", "conv2", "conv3", "conv4"):
        x = jax.lax.conv_general_dilated(
            x, p[name + "_w"], window_strides=(2, 2), padding="VALID",
            dimension_numbers=("NHWC", "HWIO", "NHWC"))
        x = jax.nn.relu(x + p[name + "_b"])
    feat = jnp.transpose(x, (0, 3, 1, 2)).reshape(x.shape[0], -1)   # NCHW flatten
    mu = feat @ p["fc_mu_w"] + p["fc_mu_b"]
    logsigma = feat @ p["fc_ls_w"] + p["fc_ls_b"]
    return mu, logsigma


if __name__ == "__main__":
    # The fc layers require a 2*2*256 feature map, which pins the spatial input
    # size to 64x64 (kernel 4, stride 2, no padding, four layers).
    batch, img_channels, latent_size = 2, 3, 32

    key = jax.random.PRNGKey(0)
    k_params, k_x = jax.random.split(key)
    raw_params = init_encoder_params(k_params, img_channels, latent_size)
    params = pack_params(raw_params, img_channels, latent_size)
    x = jax.random.normal(k_x, (batch, img_channels, 64, 64), jnp.float32)

    fwd = jax.jit(functools.partial(encoder_forward, latent_size=latent_size))
    mu, logsigma = fwd(params, x)
    mu = jax.block_until_ready(mu)
    logsigma = jax.block_until_ready(logsigma)

    assert mu.shape == (batch, latent_size), mu.shape
    assert logsigma.shape == (batch, latent_size), logsigma.shape
    assert bool(jnp.all(jnp.isfinite(mu))) and bool(jnp.all(jnp.isfinite(logsigma)))

    # Correctness against a plain-JAX reference of the same forward pass
    # (loose tolerance: both paths use the MXU's default f32 matmul precision).
    mu_ref, ls_ref = encoder_reference(raw_params, x, latent_size)
    assert jnp.allclose(mu, mu_ref, atol=1e-2, rtol=1e-1), \
        float(jnp.max(jnp.abs(mu - mu_ref)))
    assert jnp.allclose(logsigma, ls_ref, atol=1e-2, rtol=1e-1), \
        float(jnp.max(jnp.abs(logsigma - ls_ref)))
    print("KERNEL_OK")
</pallas_src>

<mosaic_0001>
module attributes {stable_mosaic.version = 11 : i64} {
  func.func @_encoder_kernel(%arg0: i32, %arg1: memref<1x992x128xf32, #tpu.memory_space<vmem>>, %arg2: memref<128x32xf32, #tpu.memory_space<vmem>>, %arg3: memref<1x32xf32, #tpu.memory_space<vmem>>, %arg4: memref<512x64xf32, #tpu.memory_space<vmem>>, %arg5: memref<1x64xf32, #tpu.memory_space<vmem>>, %arg6: memref<196x196xf32, #tpu.memory_space<vmem>>, %arg7: memref<1024x128xf32, #tpu.memory_space<vmem>>, %arg8: memref<1x128xf32, #tpu.memory_space<vmem>>, %arg9: memref<36x36xf32, #tpu.memory_space<vmem>>, %arg10: memref<2048x256xf32, #tpu.memory_space<vmem>>, %arg11: memref<1x256xf32, #tpu.memory_space<vmem>>, %arg12: memref<4x256x128xf32, #tpu.memory_space<vmem>>, %arg13: memref<1x128xf32, #tpu.memory_space<vmem>>, %arg14: memref<1x1x128xf32, #tpu.memory_space<vmem>>, %arg15: memref<992x32xf32, #tpu.memory_space<vmem>>, %arg16: memref<196x64xf32, #tpu.memory_space<vmem>>, %arg17: memref<36x128xf32, #tpu.memory_space<vmem>>, %arg18: memref<196x512xf32, #tpu.memory_space<vmem>>, %arg19: memref<36x1024xf32, #tpu.memory_space<vmem>>, %arg20: memref<4x2048xf32, #tpu.memory_space<vmem>>) attributes {dimension_semantics = [#tpu.dimension_semantics<parallel>], iteration_bounds = array<i64: 2>, scalar_prefetch = 0 : i64, scratch_operands = 6 : i64, tpu.core_type = #tpu.core_type<tc>, window_params = [{transform_indices = @transform_0, window_bounds = array<i64: 1, 992, 128>}, {pipeline_mode = #tpu.pipeline_mode<synchronous>, transform_indices = @transform_1, window_bounds = array<i64: 128, 32>}, {pipeline_mode = #tpu.pipeline_mode<synchronous>, transform_indices = @transform_2, window_bounds = array<i64: 1, 32>}, {pipeline_mode = #tpu.pipeline_mode<synchronous>, transform_indices = @transform_3, window_bounds = array<i64: 512, 64>}, {pipeline_mode = #tpu.pipeline_mode<synchronous>, transform_indices = @transform_4, window_bounds = array<i64: 1, 64>}, {pipeline_mode = #tpu.pipeline_mode<synchronous>, transform_indices = @transform_5, window_bounds = array<i64: 196, 196>}, {pipeline_mode = #tpu.pipeline_mode<synchronous>, transform_indices = @transform_6, window_bounds = array<i64: 1024, 128>}, {pipeline_mode = #tpu.pipeline_mode<synchronous>, transform_indices = @transform_7, window_bounds = array<i64: 1, 128>}, {pipeline_mode = #tpu.pipeline_mode<synchronous>, transform_indices = @transform_8, window_bounds = array<i64: 36, 36>}, {pipeline_mode = #tpu.pipeline_mode<synchronous>, transform_indices = @transform_9, window_bounds = array<i64: 2048, 256>}, {pipeline_mode = #tpu.pipeline_mode<synchronous>, transform_indices = @transform_10, window_bounds = array<i64: 1, 256>}, {pipeline_mode = #tpu.pipeline_mode<synchronous>, transform_indices = @transform_11, window_bounds = array<i64: 4, 256, 128>}, {pipeline_mode = #tpu.pipeline_mode<synchronous>, transform_indices = @transform_12, window_bounds = array<i64: 1, 128>}, {transform_indices = @transform_13, window_bounds = array<i64: 1, 1, 128>}]} {
    %c0 = arith.constant 0 : index
    %c0_0 = arith.constant 0 : index
    %c0_1 = arith.constant 0 : index
    %0 = vector.load %arg1[%c0, %c0_0, %c0_1] : memref<1x992x128xf32, #tpu.memory_space<vmem>>, vector<1x992x128xf32>
    %1 = vector.shape_cast %0 : vector<1x992x128xf32> to vector<992x128xf32>
    %c0_2 = arith.constant 0 : index
    %c0_3 = arith.constant 0 : index
    %2 = vector.load %arg2[%c0_2, %c0_3] : memref<128x32xf32, #tpu.memory_space<vmem>>, vector<128x32xf32>
    %cst = arith.constant dense<0.000000e+00> : vector<992x32xf32>
    %3 = tpu.matmul %1, %2, %cst {dimension_numbers = #tpu.dot_dimension_numbers<[1], [0], [0], [1], [0, 0, 1, 1], [], []>} : vector<992x128xf32>, vector<128x32xf32>, vector<992x32xf32> -> vector<992x32xf32>
    %c0_4 = arith.constant 0 : index
    %c0_5 = arith.constant 0 : index
    %4 = vector.load %arg3[%c0_4, %c0_5] : memref<1x32xf32, #tpu.memory_space<vmem>>, vector<1x32xf32>
    %5 = vector.broadcast %4 : vector<1x32xf32> to vector<992x32xf32>
    %6 = arith.addf %3, %5 : vector<992x32xf32>
    %cst_6 = arith.constant 0.000000e+00 : f32
    %7 = vector.broadcast %cst_6 : f32 to vector<992x32xf32>
    %8 = arith.maximumf %6, %7 : vector<992x32xf32>
    %c0_7 = arith.constant 0 : index
    %c0_8 = arith.constant 0 : index
    %9 = vector.load %arg15[%c0_7, %c0_8] : memref<992x32xf32, #tpu.memory_space<vmem>>, vector<992x32xf32>
    tpu.vector_store %arg15[%c0_7, %c0_8], %8 {strides = array<i32>} : memref<992x32xf32, #tpu.memory_space<vmem>>, vector<992x32xf32>,
    %c0_9 = arith.constant 0 : index
    %c0_10 = arith.constant 0 : index
    %10 = vector.load %arg15[%c0_9, %c0_10] : memref<992x32xf32, #tpu.memory_space<vmem>>, vector<32x32xf32>
    %11 = vector.extract_strided_slice %10 {offsets = [0, 0], sizes = [14, 32], strides = [1, 1]} : vector<32x32xf32> to vector<14x32xf32>
    %12 = vector.extract_strided_slice %10 {offsets = [1, 0], sizes = [14, 32], strides = [1, 1]} : vector<32x32xf32> to vector<14x32xf32>
    %13 = vector.extract_strided_slice %10 {offsets = [16, 0], sizes = [14, 32], strides = [1, 1]} : vector<32x32xf32> to vector<14x32xf32>
    %14 = vector.extract_strided_slice %10 {offsets = [17, 0], sizes = [14, 32], strides = [1, 1]} : vector<32x32xf32> to vector<14x32xf32>
    %c32 = arith.constant 32 : index
    %c0_11 = arith.constant 0 : index
    %15 = vector.load %arg15[%c32, %c0_11] : memref<992x32xf32, #tpu.memory_space<vmem>>, vector<32x32xf32>
    %16 = vector.extract_strided_slice %15 {offsets = [0, 0], sizes = [14, 32], strides = [1, 1]} : vector<32x32xf32> to vector<14x32xf32>
    %17 = vector.extract_strided_slice %15 {offsets = [1, 0], sizes = [14, 32], strides = [1, 1]} : vector<32x32xf32> to vector<14x32xf32>
    %18 = vector.extract_strided_slice %15 {offsets = [16, 0], sizes = [14, 32], strides = [1, 1]} : vector<32x32xf32> to vector<14x32xf32>
    %19 = vector.extract_strided_slice %15 {offsets = [17, 0], sizes = [14, 32], strides = [1, 1]} : vector<32x32xf32> to vector<14x32xf32>
    %c64 = arith.constant 64 : index
    %c0_12 = arith.constant 0 : index
    %20 = vector.load %arg15[%c64, %c0_12] : memref<992x32xf32, #tpu.memory_space<vmem>>, vector<32x32xf32>
    %21 = vector.extract_strided_slice %20 {offsets = [0, 0], sizes = [14, 32], strides = [1, 1]} : vector<32x32xf32> to vector<14x32xf32>
    %22 = vector.extract_strided_slice %20 {offsets = [1, 0], sizes = [14, 32], strides = [1, 1]} : vector<32x32xf32> to vector<14x32xf32>
    %23 = vector.extract_strided_slice %20 {offsets = [16, 0], sizes = [14, 32], strides = [1, 1]} : vector<32x32xf32> to vector<14x32xf32>
    %24 = vector.extract_strided_slice %20 {offsets = [17, 0], sizes = [14, 32], strides = [1, 1]} : vector<32x32xf32> to vector<14x32xf32>
    %c96 = arith.constant 96 : index
    %c0_13 = arith.constant 0 : index
    %25 = vector.load %arg15[%c96, %c0_13] : memref<992x32xf32, #tpu.memory_space<vmem>>, vector<32x32xf32>
    %26 = vector.extract_strided_slice %25 {offsets = [0, 0], sizes = [14, 32], strides = [1, 1]} : vector<32x32xf32> to vector<14x32xf32>
    %27 = vector.extract_strided_slice %25 {offsets = [1, 0], sizes = [14, 32], strides = [1, 1]} : vector<32x32xf32> to vector<14x32xf32>
    %28 = vector.extract_strided_slice %25 {offsets = [16, 0], sizes = [14, 32], strides = [1, 1]} : vector<32x32xf32> to vector<14x32xf32>
    %29 = vector.extract_strided_slice %25 {offsets = [17, 0], sizes = [14, 32], strides = [1, 1]} : vector<32x32xf32> to vector<14x32xf32>
    %30 = tpu.concatenate %11, %12, %13, %14, %16, %17, %18, %19, %21, %22, %23, %24, %26, %27, %28, %29 in 1 : vector<14x32xf32>, vector<14x32xf32>, vector<14x32xf32>, vector<14x32xf32>, vector<14x32xf32>, vector<14x32xf32>, vector<14x32xf32>, vector<14x32xf32>, vector<14x32xf32>, vector<14x32xf32>, vector<14x32xf32>, vector<14x32xf32>, vector<14x32xf32>, vector<14x32xf32>, vector<14x32xf32>, vector<14x32xf32> -> vector<14x512xf32>
    %c0_14 = arith.constant 0 : index
    %c0_15 = arith.constant 0 : index
    %31 = vector.load %arg18[%c0_14, %c0_15] : memref<196x512xf32, #tpu.memory_space<vmem>>, vector<14x512xf32>
    tpu.vector_store %arg18[%c0_14, %c0_15], %30 {strides = array<i32>} : memref<196x512xf32, #tpu.memory_space<vmem>>, vector<14x512xf32>,
    %c64_16 = arith.constant 64 : index
    %c0_17 = arith.constant 0 : index
    %32 = vector.load %arg15[%c64_16, %c0_17] : memref<992x32xf32, #tpu.memory_space<vmem>>, vector<32x32xf32>
    %33 = vector.extract_strided_slice %32 {offsets = [0, 0], sizes = [14, 32], strides = [1, 1]} : vector<32x32xf32> to vector<14x32xf32>
    %34 = vector.extract_strided_slice %32 {offsets = [1, 0], sizes = [14, 32], strides = [1, 1]} : vector<32x32xf32> to vector<14x32xf32>
    %35 = vector.extract_strided_slice %32 {offsets = [16, 0], sizes = [14, 32], strides = [1, 1]} : vector<32x32xf32> to vector<14x32xf32>
    %36 = vector.extract_strided_slice %32 {offsets = [17, 0], sizes = [14, 32], strides = [1, 1]} : vector<32x32xf32> to vector<14x32xf32>
    %c96_18 = arith.constant 96 : index
    %c0_19 = arith.constant 0 : index
    %37 = vector.load %arg15[%c96_18, %c0_19] : memref<992x32xf32, #tpu.memory_space<vmem>>, vector<32x32xf32>
    %38 = vector.extract_strided_slice %37 {offsets = [0, 0], sizes = [14, 32], strides = [1, 1]} : vector<32x32xf32> to vector<14x32xf32>
    %39 = vector.extract_strided_slice %37 {offsets = [1, 0], sizes = [14, 32], strides = [1, 1]} : vector<32x32xf32> to vector<14x32xf32>
    %40 = vector.extract_strided_slice %37 {offsets = [16, 0], sizes = [14, 32], strides = [1, 1]} : vector<32x32xf32> to vector<14x32xf32>
    %41 = vector.extract_strided_slice %37 {offsets = [17, 0], sizes = [14, 32], strides = [1, 1]} : vector<32x32xf32> to vector<14x32xf32>
    %c128 = arith.constant 128 : index
    %c0_20 = arith.constant 0 : index
    %42 = vector.load %arg15[%c128, %c0_20] : memref<992x32xf32, #tpu.memory_space<vmem>>, vector<32x32xf32>
    %43 = vector.extract_strided_slice %42 {offsets = [0, 0], sizes = [14, 32], strides = [1, 1]} : vector<32x32xf32> to vector<14x32xf32>
    %44 = vector.extract_strided_slice %42 {offsets = [1, 0], sizes = [14, 32], strides = [1, 1]} : vector<32x32xf32> to vector<14x32xf32>
    %45 = vector.extract_strided_slice %42 {offsets = [16, 0], sizes = [14, 32], strides = [1, 1]} : vector<32x32xf32> to vector<14x32xf32>
    %46 = vector.extract_strided_slice %42 {offsets = [17, 0], sizes = [14, 32], strides = [1, 1]} : vector<32x32xf32> to vector<14x32xf32>
    %c160 = arith.constant 160 : index
    %c0_21 = arith.constant 0 : index
    %47 = vector.load %arg15[%c160, %c0_21] : memref<992x32xf32, #tpu.memory_space<vmem>>, vector<32x32xf32>
    %48 = vector.extract_strided_slice %47 {offsets = [0, 0], sizes = [14, 32], strides = [1, 1]} : vector<32x32xf32> to vector<14x32xf32>
    %49 = vector.extract_strided_slice %47 {offsets = [1, 0], sizes = [14, 32], strides = [1, 1]} : vector<32x32xf32> to vector<14x32xf32>
    %50 = vector.extract_strided_slice %47 {offsets = [16, 0], sizes = [14, 32], strides = [1, 1]} : vector<32x32xf32> to vector<14x32xf32>
    %51 = vector.extract_strided_slice %47 {offsets = [17, 0], sizes = [14, 32], strides = [1, 1]} : vector<32x32xf32> to vector<14x32xf32>
    %52 = tpu.concatenate %33, %34, %35, %36, %38, %39, %40, %41, %43, %44, %45, %46, %48, %49, %50, %51 in 1 : vector<14x32xf32>, vector<14x32xf32>, vector<14x32xf32>, vector<14x32xf32>, vector<14x32xf32>, vector<14x32xf32>, vector<14x32xf32>, vector<14x32xf32>, vector<14x32xf32>, vector<14x32xf32>, vector<14x32xf32>, vector<14x32xf32>, vector<14x32xf32>, vector<14x32xf32>, vector<14x32xf32>, vector<14x32xf32> -> vector<14x512xf32>
    %c14 = arith.constant 14 : index
    %c0_22 = arith.constant 0 : index
    %53 = vector.load %arg18[%c14, %c0_22] : memref<196x512xf32, #tpu.memory_space<vmem>>, vector<14x512xf32>
    tpu.vector_store %arg18[%c14, %c0_22], %52 {strides = array<i32>} : memref<196x512xf32, #tpu.memory_space<vmem>>, vector<14x512xf32>,
    %c128_23 = arith.constant 128 : index
    %c0_24 = arith.constant 0 : index
    %54 = vector.load %arg15[%c128_23, %c0_24] : memref<992x32xf32, #tpu.memory_space<vmem>>, vector<32x32xf32>
    %55 = vector.extract_strided_slice %54 {offsets = [0, 0], sizes = [14, 32], strides = [1, 1]} : vector<32x32xf32> to vector<14x32xf32>
    %56 = vector.extract_strided_slice %54 {offsets = [1, 0], sizes = [14, 32], strides = [1, 1]} : vector<32x32xf32> to vector<14x32xf32>
    %57 = vector.extract_strided_slice %54 {offsets = [16, 0], sizes = [14, 32], strides = [1, 1]} : vector<32x32xf32> to vector<14x32xf32>
    %58 = vector.extract_strided_slice %54 {offsets = [17, 0], sizes = [14, 32], strides = [1, 1]} : vector<32x32xf32> to vector<14x32xf32>
    %c160_25 = arith.constant 160 : index
    %c0_26 = arith.constant 0 : index
    %59 = vector.load %arg15[%c160_25, %c0_26] : memref<992x32xf32, #tpu.memory_space<vmem>>, vector<32x32xf32>
    %60 = vector.extract_strided_slice %59 {offsets = [0, 0], sizes = [14, 32], strides = [1, 1]} : vector<32x32xf32> to vector<14x32xf32>
    %61 = vector.extract_strided_slice %59 {offsets = [1, 0], sizes = [14, 32], strides = [1, 1]} : vector<32x32xf32> to vector<14x32xf32>
    %62 = vector.extract_strided_slice %59 {offsets = [16, 0], sizes = [14, 32], strides = [1, 1]} : vector<32x32xf32> to vector<14x32xf32>
    %63 = vector.extract_strided_slice %59 {offsets = [17, 0], sizes = [14, 32], strides = [1, 1]} : vector<32x32xf32> to vector<14x32xf32>
    %c192 = arith.constant 192 : index
    %c0_27 = arith.constant 0 : index
    %64 = vector.load %arg15[%c192, %c0_27] : memref<992x32xf32, #tpu.memory_space<vmem>>, vector<32x32xf32>
    %65 = vector.extract_strided_slice %64 {offsets = [0, 0], sizes = [14, 32], strides = [1, 1]} : vector<32x32xf32> to vector<14x32xf32>
    %66 = vector.extract_strided_slice %64 {offsets = [1, 0], sizes = [14, 32], strides = [1, 1]} : vector<32x32xf32> to vector<14x32xf32>
    %67 = vector.extract_strided_slice %64 {offsets = [16, 0], sizes = [14, 32], strides = [1, 1]} : vector<32x32xf32> to vector<14x32xf32>
    %68 = vector.extract_strided_slice %64 {offsets = [17, 0], sizes = [14, 32], strides = [1, 1]} : vector<32x32xf32> to vector<14x32xf32>
    %c224 = arith.constant 224 : index
    %c0_28 = arith.constant 0 : index
    %69 = vector.load %arg15[%c224, %c0_28] : memref<992x32xf32, #tpu.memory_space<vmem>>, vector<32x32xf32>
    %70 = vector.extract_strided_slice %69 {offsets = [0, 0], sizes = [14, 32], strides = [1, 1]} : vector<32x32xf32> to vector<14x32xf32>
    %71 = vector.extract_strided_slice %69 {offsets = [1, 0], sizes = [14, 32], strides = [1, 1]} : vector<32x32xf32> to vector<14x32xf32>
    %72 = vector.extract_strided_slice %69 {offsets = [16, 0], sizes = [14, 32], strides = [1, 1]} : vector<32x32xf32> to vector<14x32xf32>
    %73 = vector.extract_strided_slice %69 {offsets = [17, 0], sizes = [14, 32], strides = [1, 1]} : vector<32x32xf32> to vector<14x32xf32>
    %74 = tpu.concatenate %55, %56, %57, %58, %60, %61, %62, %63, %65, %66, %67, %68, %70, %71, %72, %73 in 1 : vector<14x32xf32>, vector<14x32xf32>, vector<14x32xf32>, vector<14x32xf32>, vector<14x32xf32>, vector<14x32xf32>, vector<14x32xf32>, vector<14x32xf32>, vector<14x32xf32>, vector<14x32xf32>, vector<14x32xf32>, vector<14x32xf32>, vector<14x32xf32>, vector<14x32xf32>, vector<14x32xf32>, vector<14x32xf32> -> vector<14x512xf32>
    %c28 = arith.constant 28 : index
    %c0_29 = arith.constant 0 : index
    %75 = vector.load %arg18[%c28, %c0_29] : memref<196x512xf32, #tpu.memory_space<vmem>>, vector<14x512xf32>
    tpu.vector_store %arg18[%c28, %c0_29], %74 {strides = array<i32>} : memref<196x512xf32, #tpu.memory_space<vmem>>, vector<14x512xf32>,
    %c192_30 = arith.constant 192 : index
    %c0_31 = arith.constant 0 : index
    %76 = vector.load %arg15[%c192_30, %c0_31] : memref<992x32xf32, #tpu.memory_space<vmem>>, vector<32x32xf32>
    %77 = vector.extract_strided_slice %76 {offsets = [0, 0], sizes = [14, 32], strides = [1, 1]} : vector<32x32xf32> to vector<14x32xf32>
    %78 = vector.extract_strided_slice %76 {offsets = [1, 0], sizes = [14, 32], strides = [1, 1]} : vector<32x32xf32> to vector<14x32xf32>
    %79 = vector.extract_strided_slice %76 {offsets = [16, 0], sizes = [14, 32], strides = [1, 1]} : vector<32x32xf32> to vector<14x32xf32>
    %80 = vector.extract_strided_slice %76 {offsets = [17, 0], sizes = [14, 32], strides = [1, 1]} : vector<32x32xf32> to vector<14x32xf32>
    %c224_32 = arith.constant 224 : index
    %c0_33 = arith.constant 0 : index
    %81 = vector.load %arg15[%c224_32, %c0_33] : memref<992x32xf32, #tpu.memory_space<vmem>>, vector<32x32xf32>
    %82 = vector.extract_strided_slice %81 {offsets = [0, 0], sizes = [14, 32], strides = [1, 1]} : vector<32x32xf32> to vector<14x32xf32>
    %83 = vector.extract_strided_slice %81 {offsets = [1, 0], sizes = [14, 32], strides = [1, 1]} : vector<32x32xf32> to vector<14x32xf32>
    %84 = vector.extract_strided_slice %81 {offsets = [16, 0], sizes = [14, 32], strides = [1, 1]} : vector<32x32xf32> to vector<14x32xf32>
    %85 = vector.extract_strided_slice %81 {offsets = [17, 0], sizes = [14, 32], strides = [1, 1]} : vector<32x32xf32> to vector<14x32xf32>
    %c256 = arith.constant 256 : index
    %c0_34 = arith.constant 0 : index
    %86 = vector.load %arg15[%c256, %c0_34] : memref<992x32xf32, #tpu.memory_space<vmem>>, vector<32x32xf32>
    %87 = vector.extract_strided_slice %86 {offsets = [0, 0], sizes = [14, 32], strides = [1, 1]} : vector<32x32xf32> to vector<14x32xf32>
    %88 = vector.extract_strided_slice %86 {offsets = [1, 0], sizes = [14, 32], strides = [1, 1]} : vector<32x32xf32> to vector<14x32xf32>
    %89 = vector.extract_strided_slice %86 {offsets = [16, 0], sizes = [14, 32], strides = [1, 1]} : vector<32x32xf32> to vector<14x32xf32>
    %90 = vector.extract_strided_slice %86 {offsets = [17, 0], sizes = [14, 32], strides = [1, 1]} : vector<32x32xf32> to vector<14x32xf32>
    %c288 = arith.constant 288 : index
    %c0_35 = arith.constant 0 : index
    %91 = vector.load %arg15[%c288, %c0_35] : memref<992x32xf32, #tpu.memory_space<vmem>>, vector<32x32xf32>
    %92 = vector.extract_strided_slice %91 {offsets = [0, 0], sizes = [14, 32], strides = [1, 1]} : vector<32x32xf32> to vector<14x32xf32>
    %93 = vector.extract_strided_slice %91 {offsets = [1, 0], sizes = [14, 32], strides = [1, 1]} : vector<32x32xf32> to vector<14x32xf32>
    %94 = vector.extract_strided_slice %91 {offsets = [16, 0], sizes = [14, 32], strides = [1, 1]} : vector<32x32xf32> to vector<14x32xf32>
    %95 = vector.extract_strided_slice %91 {offsets = [17, 0], sizes = [14, 32], strides = [1, 1]} : vector<32x32xf32> to vector<14x32xf32>
    %96 = tpu.concatenate %77, %78, %79, %80, %82, %83, %84, %85, %87, %88, %89, %90, %92, %93, %94, %95 in 1 : vector<14x32xf32>, vector<14x32xf32>, vector<14x32xf32>, vector<14x32xf32>, vector<14x32xf32>, vector<14x32xf32>, vector<14x32xf32>, vector<14x32xf32>, vector<14x32xf32>, vector<14x32xf32>, vector<14x32xf32>, vector<14x32xf32>, vector<14x32xf32>, vector<14x32xf32>, vector<14x32xf32>, vector<14x32xf32> -> vector<14x512xf32>
    %c42 = arith.constant 42 : index
    %c0_36 = arith.constant 0 : index
    %97 = vector.load %arg18[%c42, %c0_36] : memref<196x512xf32, #tpu.memory_space<vmem>>, vector<14x512xf32>
    tpu.vector_store %arg18[%c42, %c0_36], %96 {strides = array<i32>} : memref<196x512xf32, #tpu.memory_space<vmem>>, vector<14x512xf32>,
    %c256_37 = arith.constant 256 : index
    %c0_38 = arith.constant 0 : index
    %98 = vector.load %arg15[%c256_37, %c0_38] : memref<992x32xf32, #tpu.memory_space<vmem>>, vector<32x32xf32>
    %99 = vector.extract_strided_slice %98 {offsets = [0, 0], sizes = [14, 32], strides = [1, 1]} : vector<32x32xf32> to vector<14x32xf32>
    %100 = vector.extract_strided_slice %98 {offsets = [1, 0], sizes = [14, 32], strides = [1, 1]} : vector<32x32xf32> to vector<14x32xf32>
    %101 = vector.extract_strided_slice %98 {offsets = [16, 0], sizes = [14, 32], strides = [1, 1]} : vector<32x32xf32> to vector<14x32xf32>
    %102 = vector.extract_strided_slice %98 {offsets = [17, 0], sizes = [14, 32], strides = [1, 1]} : vector<32x32xf32> to vector<14x32xf32>
    %c288_39 = arith.constant 288 : index
    %c0_40 = arith.constant 0 : index
    %103 = vector.load %arg15[%c288_39, %c0_40] : memref<992x32xf32, #tpu.memory_space<vmem>>, vector<32x32xf32>
    %104 = vector.extract_strided_slice %103 {offsets = [0, 0], sizes = [14, 32], strides = [1, 1]} : vector<32x32xf32> to vector<14x32xf32>
    %105 = vector.extract_strided_slice %103 {offsets = [1, 0], sizes = [14, 32], strides = [1, 1]} : vector<32x32xf32> to vector<14x32xf32>
    %106 = vector.extract_strided_slice %103 {offsets = [16, 0], sizes = [14, 32], strides = [1, 1]} : vector<32x32xf32> to vector<14x32xf32>
    %107 = vector.extract_strided_slice %103 {offsets = [17, 0], sizes = [14, 32], strides = [1, 1]} : vector<32x32xf32> to vector<14x32xf32>
    %c320 = arith.constant 320 : index
    %c0_41 = arith.constant 0 : index
    %108 = vector.load %arg15[%c320, %c0_41] : memref<992x32xf32, #tpu.memory_space<vmem>>, vector<32x32xf32>
    %109 = vector.extract_strided_slice %108 {offsets = [0, 0], sizes = [14, 32], strides = [1, 1]} : vector<32x32xf32> to vector<14x32xf32>
    %110 = vector.extract_strided_slice %108 {offsets = [1, 0], sizes = [14, 32], strides = [1, 1]} : vector<32x32xf32> to vector<14x32xf32>
    %111 = vector.extract_strided_slice %108 {offsets = [16, 0], sizes = [14, 32], strides = [1, 1]} : vector<32x32xf32> to vector<14x32xf32>
    %112 = vector.extract_strided_slice %108 {offsets = [17, 0], sizes = [14, 32], strides = [1, 1]} : vector<32x32xf32> to vector<14x32xf32>
    %c352 = arith.constant 352 : index
    %c0_42 = arith.constant 0 : index
    %113 = vector.load %arg15[%c352, %c0_42] : memref<992x32xf32, #tpu.memory_space<vmem>>, vector<32x32xf32>
    %114 = vector.extract_strided_slice %113 {offsets = [0, 0], sizes = [14, 32], strides = [1, 1]} : vector<32x32xf32> to vector<14x32xf32>
    %115 = vector.extract_strided_slice %113 {offsets = [1, 0], sizes = [14, 32], strides = [1, 1]} : vector<32x32xf32> to vector<14x32xf32>
    %116 = vector.extract_strided_slice %113 {offsets = [16, 0], sizes = [14, 32], strides = [1, 1]} : vector<32x32xf32> to vector<14x32xf32>
    %117 = vector.extract_strided_slice %113 {offsets = [17, 0], sizes = [14, 32], strides = [1, 1]} : vector<32x32xf32> to vector<14x32xf32>
    %118 = tpu.concatenate %99, %100, %101, %102, %104, %105, %106, %107, %109, %110, %111, %112, %114, %115, %116, %117 in 1 : vector<14x32xf32>, vector<14x32xf32>, vector<14x32xf32>, vector<14x32xf32>, vector<14x32xf32>, vector<14x32xf32>, vector<14x32xf32>, vector<14x32xf32>, vector<14x32xf32>, vector<14x32xf32>, vector<14x32xf32>, vector<14x32xf32>, vector<14x32xf32>, vector<14x32xf32>, vector<14x32xf32>, vector<14x32xf32> -> vector<14x512xf32>
    %c56 = arith.constant 56 : index
    %c0_43 = arith.constant 0 : index
    %119 = vector.load %arg18[%c56, %c0_43] : memref<196x512xf32, #tpu.memory_space<vmem>>, vector<14x512xf32>
    tpu.vector_store %arg18[%c56, %c0_43], %118 {strides = array<i32>} : memref<196x512xf32, #tpu.memory_space<vmem>>, vector<14x512xf32>,
    %c320_44 = arith.constant 320 : index
    %c0_45 = arith.constant 0 : index
    %120 = vector.load %arg15[%c320_44, %c0_45] : memref<992x32xf32, #tpu.memory_space<vmem>>, vector<32x32xf32>
    %121 = vector.extract_strided_slice %120 {offsets = [0, 0], sizes = [14, 32], strides = [1, 1]} : vector<32x32xf32> to vector<14x32xf32>
    %122 = vector.extract_strided_slice %120 {offsets = [1, 0], sizes = [14, 32], strides = [1, 1]} : vector<32x32xf32> to vector<14x32xf32>
    %123 = vector.extract_strided_slice %120 {offsets = [16, 0], sizes = [14, 32], strides = [1, 1]} : vector<32x32xf32> to vector<14x32xf32>
    %124 = vector.extract_strided_slice %120 {offsets = [17, 0], sizes = [14, 32], strides = [1, 1]} : vector<32x32xf32> to vector<14x32xf32>
    %c352_46 = arith.constant 352 : index
    %c0_47 = arith.constant 0 : index
    %125 = vector.load %arg15[%c352_46, %c0_47] : memref<992x32xf32, #tpu.memory_space<vmem>>, vector<32x32xf32>
    %126 = vector.extract_strided_slice %125 {offsets = [0, 0], sizes = [14, 32], strides = [1, 1]} : vector<32x32xf32> to vector<14x32xf32>
    %127 = vector.extract_strided_slice %125 {offsets = [1, 0], sizes = [14, 32], strides = [1, 1]} : vector<32x32xf32> to vector<14x32xf32>
    %128 = vector.extract_strided_slice %125 {offsets = [16, 0], sizes = [14, 32], strides = [1, 1]} : vector<32x32xf32> to vector<14x32xf32>
    %129 = vector.extract_strided_slice %125 {offsets = [17, 0], sizes = [14, 32], strides = [1, 1]} : vector<32x32xf32> to vector<14x32xf32>
    %c384 = arith.constant 384 : index
    %c0_48 = arith.constant 0 : index
    %130 = vector.load %arg15[%c384, %c0_48] : memref<992x32xf32, #tpu.memory_space<vmem>>, vector<32x32xf32>
    %131 = vector.extract_strided_slice %130 {offsets = [0, 0], sizes = [14, 32], strides = [1, 1]} : vector<32x32xf32> to vector<14x32xf32>
    %132 = vector.extract_strided_slice %130 {offsets = [1, 0], sizes = [14, 32], strides = [1, 1]} : vector<32x32xf32> to vector<14x32xf32>
    %133 = vector.extract_strided_slice %130 {offsets = [16, 0], sizes = [14, 32], strides = [1, 1]} : vector<32x32xf32> to vector<14x32xf32>
    %134 = vector.extract_strided_slice %130 {offsets = [17, 0], sizes = [14, 32], strides = [1, 1]} : vector<32x32xf32> to vector<14x32xf32>
    %c416 = arith.constant 416 : index
    %c0_49 = arith.constant 0 : index
    %135 = vector.load %arg15[%c416, %c0_49] : memref<992x32xf32, #tpu.memory_space<vmem>>, vector<32x32xf32>
    %136 = vector.extract_strided_slice %135 {offsets = [0, 0], sizes = [14, 32], strides = [1, 1]} : vector<32x32xf32> to vector<14x32xf32>
    %137 = vector.extract_strided_slice %135 {offsets = [1, 0], sizes = [14, 32], strides = [1, 1]} : vector<32x32xf32> to vector<14x32xf32>
    %138 = vector.extract_strided_slice %135 {offsets = [16, 0], sizes = [14, 32], strides = [1, 1]} : vector<32x32xf32> to vector<14x32xf32>
    %139 = vector.extract_strided_slice %135 {offsets = [17, 0], sizes = [14, 32], strides = [1, 1]} : vector<32x32xf32> to vector<14x32xf32>
    %140 = tpu.concatenate %121, %122, %123, %124, %126, %127, %128, %129, %131, %132, %133, %134, %136, %137, %138, %139 in 1 : vector<14x32xf32>, vector<14x32xf32>, vector<14x32xf32>, vector<14x32xf32>, vector<14x32xf32>, vector<14x32xf32>, vector<14x32xf32>, vector<14x32xf32>, vector<14x32xf32>, vector<14x32xf32>, vector<14x32xf32>, vector<14x32xf32>, vector<14x32xf32>, vector<14x32xf32>, vector<14x32xf32>, vector<14x32xf32> -> vector<14x512xf32>
    %c70 = arith.constant 70 : index
    %c0_50 = arith.constant 0 : index
    %141 = vector.load %arg18[%c70, %c0_50] : memref<196x512xf32, #tpu.memory_space<vmem>>, vector<14x512xf32>
    tpu.vector_store %arg18[%c70, %c0_50], %140 {strides = array<i32>} : memref<196x512xf32, #tpu.memory_space<vmem>>, vector<14x512xf32>,
    %c384_51 = arith.constant 384 : index
    %c0_52 = arith.constant 0 : index
    %142 = vector.load %arg15[%c384_51, %c0_52] : memref<992x32xf32, #tpu.memory_space<vmem>>, vector<32x32xf32>
    %143 = vector.extract_strided_slice %142 {offsets = [0, 0], sizes = [14, 32], strides = [1, 1]} : vector<32x32xf32> to vector<14x32xf32>
    %144 = vector.extract_strided_slice %142 {offsets = [1, 0], sizes = [14, 32], strides = [1, 1]} : vector<32x32xf32> to vector<14x32xf32>
    %145 = vector.extract_strided_slice %142 {offsets = [16, 0], sizes = [14, 32], strides = [1, 1]} : vector<32x32xf32> to vector<14x32xf32>
    %146 = vector.extract_strided_slice %142 {offsets = [17, 0], sizes = [14, 32], strides = [1, 1]} : vector<32x32xf32> to vector<14x32xf32>
    %c416_53 = arith.constant 416 : index
    %c0_54 = arith.constant 0 : index
    %147 = vector.load %arg15[%c416_53, %c0_54] : memref<992x32xf32, #tpu.memory_space<vmem>>, vector<32x32xf32>
    %148 = vector.extract_strided_slice %147 {offsets = [0, 0], sizes = [14, 32], strides = [1, 1]} : vector<32x32xf32> to vector<14x32xf32>
    %149 = vector.extract_strided_slice %147 {offsets = [1, 0], sizes = [14, 32], strides = [1, 1]} : vector<32x32xf32> to vector<14x32xf32>
    %150 = vector.extract_strided_slice %147 {offsets = [16, 0], sizes = [14, 32], strides = [1, 1]} : vector<32x32xf32> to vector<14x32xf32>
    %151 = vector.extract_strided_slice %147 {offsets = [17, 0], sizes = [14, 32], strides = [1, 1]} : vector<32x32xf32> to vector<14x32xf32>
    %c448 = arith.constant 448 : index
    %c0_55 = arith.constant 0 : index
    %152 = vector.load %arg15[%c448, %c0_55] : memref<992x32xf32, #tpu.memory_space<vmem>>, vector<32x32xf32>
    %153 = vector.extract_strided_slice %152 {offsets = [0, 0], sizes = [14, 32], strides = [1, 1]} : vector<32x32xf32> to vector<14x32xf32>
    %154 = vector.extract_strided_slice %152 {offsets = [1, 0], sizes = [14, 32], strides = [1, 1]} : vector<32x32xf32> to vector<14x32xf32>
    %155 = vector.extract_strided_slice %152 {offsets = [16, 0], sizes = [14, 32], strides = [1, 1]} : vector<32x32xf32> to vector<14x32xf32>
    %156 = vector.extract_strided_slice %152 {offsets = [17, 0], sizes = [14, 32], strides = [1, 1]} : vector<32x32xf32> to vector<14x32xf32>
    %c480 = arith.constant 480 : index
    %c0_56 = arith.constant 0 : index
    %157 = vector.load %arg15[%c480, %c0_56] : memref<992x32xf32, #tpu.memory_space<vmem>>, vector<32x32xf32>
    %158 = vector.extract_strided_slice %157 {offsets = [0, 0], sizes = [14, 32], strides = [1, 1]} : vector<32x32xf32> to vector<14x32xf32>
    %159 = vector.extract_strided_slice %157 {offsets = [1, 0], sizes = [14, 32], strides = [1, 1]} : vector<32x32xf32> to vector<14x32xf32>
    %160 = vector.extract_strided_slice %157 {offsets = [16, 0], sizes = [14, 32], strides = [1, 1]} : vector<32x32xf32> to vector<14x32xf32>
    %161 = vector.extract_strided_slice %157 {offsets = [17, 0], sizes = [14, 32], strides = [1, 1]} : vector<32x32xf32> to vector<14x32xf32>
    %162 = tpu.concatenate %143, %144, %145, %146, %148, %149, %150, %151, %153, %154, %155, %156, %158, %159, %160, %161 in 1 : vector<14x32xf32>, vector<14x32xf32>, vector<14x32xf32>, vector<14x32xf32>, vector<14x32xf32>, vector<14x32xf32>, vector<14x32xf32>, vector<14x32xf32>, vector<14x32xf32>, vector<14x32xf32>, vector<14x32xf32>, vector<14x32xf32>, vector<14x32xf32>, vector<14x32xf32>, vector<14x32xf32>, vector<14x32xf32> -> vector<14x512xf32>
    %c84 = arith.constant 84 : index
    %c0_57 = arith.constant 0 : index
    %163 = vector.load %arg18[%c84, %c0_57] : memref<196x512xf32, #tpu.memory_space<vmem>>, vector<14x512xf32>
    tpu.vector_store %arg18[%c84, %c0_57], %162 {strides = array<i32>} : memref<196x512xf32, #tpu.memory_space<vmem>>, vector<14x512xf32>,
    %c448_58 = arith.constant 448 : index
    %c0_59 = arith.constant 0 : index
    %164 = vector.load %arg15[%c448_58, %c0_59] : memref<992x32xf32, #tpu.memory_space<vmem>>, vector<32x32xf32>
    %165 = vector.extract_strided_slice %164 {offsets = [0, 0], sizes = [14, 32], strides = [1, 1]} : vector<32x32xf32> to vector<14x32xf32>
    %166 = vector.extract_strided_slice %164 {offsets = [1, 0], sizes = [14, 32], strides = [1, 1]} : vector<32x32xf32> to vector<14x32xf32>
    %167 = vector.extract_strided_slice %164 {offsets = [16, 0], sizes = [14, 32], strides = [1, 1]} : vector<32x32xf32> to vector<14x32xf32>
    %168 = vector.extract_strided_slice %164 {offsets = [17, 0], sizes = [14, 32], strides = [1, 1]} : vector<32x32xf32> to vector<14x32xf32>
    %c480_60 = arith.constant 480 : index
    %c0_61 = arith.constant 0 : index
    %169 = vector.load %arg15[%c480_60, %c0_61] : memref<992x32xf32, #tpu.memory_space<vmem>>, vector<32x32xf32>
    %170 = vector.extract_strided_slice %169 {offsets = [0, 0], sizes = [14, 32], strides = [1, 1]} : vector<32x32xf32> to vector<14x32xf32>
    %171 = vector.extract_strided_slice %169 {offsets = [1, 0], sizes = [14, 32], strides = [1, 1]} : vector<32x32xf32> to vector<14x32xf32>
    %172 = vector.extract_strided_slice %169 {offsets = [16, 0], sizes = [14, 32], strides = [1, 1]} : vector<32x32xf32> to vector<14x32xf32>
    %173 = vector.extract_strided_slice %169 {offsets = [17, 0], sizes = [14, 32], strides = [1, 1]} : vector<32x32xf32> to vector<14x32xf32>
    %c512 = arith.constant 512 : index
    %c0_62 = arith.constant 0 : index
    %174 = vector.load %arg15[%c512, %c0_62] : memref<992x32xf32, #tpu.memory_space<vmem>>, vector<32x32xf32>
    %175 = vector.extract_strided_slice %174 {offsets = [0, 0], sizes = [14, 32], strides = [1, 1]} : vector<32x32xf32> to vector<14x32xf32>
    %176 = vector.extract_strided_slice %174 {offsets = [1, 0], sizes = [14, 32], strides = [1, 1]} : vector<32x32xf32> to vector<14x32xf32>
    %177 = vector.extract_strided_slice %174 {offsets = [16, 0], sizes = [14, 32], strides = [1, 1]} : vector<32x32xf32> to vector<14x32xf32>
    %178 = vector.extract_strided_slice %174 {offsets = [17, 0], sizes = [14, 32], strides = [1, 1]} : vector<32x32xf32> to vector<14x32xf32>
    %c544 = arith.constant 544 : index
    %c0_63 = arith.constant 0 : index
    %179 = vector.load %arg15[%c544, %c0_63] : memref<992x32xf32, #tpu.memory_space<vmem>>, vector<32x32xf32>
    %180 = vector.extract_strided_slice %179 {offsets = [0, 0], sizes = [14, 32], strides = [1, 1]} : vector<32x32xf32> to vector<14x32xf32>
    %181 = vector.extract_strided_slice %179 {offsets = [1, 0], sizes = [14, 32], strides = [1, 1]} : vector<32x32xf32> to vector<14x32xf32>
    %182 = vector.extract_strided_slice %179 {offsets = [16, 0], sizes = [14, 32], strides = [1, 1]} : vector<32x32xf32> to vector<14x32xf32>
    %183 = vector.extract_strided_slice %179 {offsets = [17, 0], sizes = [14, 32], strides = [1, 1]} : vector<32x32xf32> to vector<14x32xf32>
    %184 = tpu.concatenate %165, %166, %167, %168, %170, %171, %172, %173, %175, %176, %177, %178, %180, %181, %182, %183 in 1 : vector<14x32xf32>, vector<14x32xf32>, vector<14x32xf32>, vector<14x32xf32>, vector<14x32xf32>, vector<14x32xf32>, vector<14x32xf32>, vector<14x32xf32>, vector<14x32xf32>, vector<14x32xf32>, vector<14x32xf32>, vector<14x32xf32>, vector<14x32xf32>, vector<14x32xf32>, vector<14x32xf32>, vector<14x32xf32> -> vector<14x512xf32>
    %c98 = arith.constant 98 : index
    %c0_64 = arith.constant 0 : index
    %185 = vector.load %arg18[%c98, %c0_64] : memref<196x512xf32, #tpu.memory_space<vmem>>, vector<14x512xf32>
    tpu.vector_store %arg18[%c98, %c0_64], %184 {strides = array<i32>} : memref<196x512xf32, #tpu.memory_space<vmem>>, vector<14x512xf32>,
    %c512_65 = arith.constant 512 : index
    %c0_66 = arith.constant 0 : index
    %186 = vector.load %arg15[%c512_65, %c0_66] : memref<992x32xf32, #tpu.memory_space<vmem>>, vector<32x32xf32>
    %187 = vector.extract_strided_slice %186 {offsets = [0, 0], sizes = [14, 32], strides = [1, 1]} : vector<32x32xf32> to vector<14x32xf32>
    %188 = vector.extract_strided_slice %186 {offsets = [1, 0], sizes = [14, 32], strides = [1, 1]} : vector<32x32xf32> to vector<14x32xf32>
    %189 = vector.extract_strided_slice %186 {offsets = [16, 0], sizes = [14, 32], strides = [1, 1]} : vector<32x32xf32> to vector<14x32xf32>
    %190 = vector.extract_strided_slice %186 {offsets = [17, 0], sizes = [14, 32], strides = [1, 1]} : vector<32x32xf32> to vector<14x32xf32>
    %c544_67 = arith.constant 544 : index
    %c0_68 = arith.constant 0 : index
    %191 = vector.load %arg15[%c544_67, %c0_68] : memref<992x32xf32, #tpu.memory_space<vmem>>, vector<32x32xf32>
    %192 = vector.extract_strided_slice %191 {offsets = [0, 0], sizes = [14, 32], strides = [1, 1]} : vector<32x32xf32> to vector<14x32xf32>
    %193 = vector.extract_strided_slice %191 {offsets = [1, 0], sizes = [14, 32], strides = [1, 1]} : vector<32x32xf32> to vector<14x32xf32>
    %194 = vector.extract_strided_slice %191 {offsets = [16, 0], sizes = [14, 32], strides = [1, 1]} : vector<32x32xf32> to vector<14x32xf32>
    %195 = vector.extract_strided_slice %191 {offsets = [17, 0], sizes = [14, 32], strides = [1, 1]} : vector<32x32xf32> to vector<14x32xf32>
    %c576 = arith.constant 576 : index
    %c0_69 = arith.constant 0 : index
    %196 = vector.load %arg15[%c576, %c0_69] : memref<992x32xf32, #tpu.memory_space<vmem>>, vector<32x32xf32>
    %197 = vector.extract_strided_slice %196 {offsets = [0, 0], sizes = [14, 32], strides = [1, 1]} : vector<32x32xf32> to vector<14x32xf32>
    %198 = vector.extract_strided_slice %196 {offsets = [1, 0], sizes = [14, 32], strides = [1, 1]} : vector<32x32xf32> to vector<14x32xf32>
    %199 = vector.extract_strided_slice %196 {offsets = [16, 0], sizes = [14, 32], strides = [1, 1]} : vector<32x32xf32> to vector<14x32xf32>
    %200 = vector.extract_strided_slice %196 {offsets = [17, 0], sizes = [14, 32], strides = [1, 1]} : vector<32x32xf32> to vector<14x32xf32>
    %c608 = arith.constant 608 : index
    %c0_70 = arith.constant 0 : index
    %201 = vector.load %arg15[%c608, %c0_70] : memref<992x32xf32, #tpu.memory_space<vmem>>, vector<32x32xf32>
    %202 = vector.extract_strided_slice %201 {offsets = [0, 0], sizes = [14, 32], strides = [1, 1]} : vector<32x32xf32> to vector<14x32xf32>
    %203 = vector.extract_strided_slice %201 {offsets = [1, 0], sizes = [14, 32], strides = [1, 1]} : vector<32x32xf32> to vector<14x32xf32>
    %204 = vector.extract_strided_slice %201 {offsets = [16, 0], sizes = [14, 32], strides = [1, 1]} : vector<32x32xf32> to vector<14x32xf32>
    %205 = vector.extract_strided_slice %201 {offsets = [17, 0], sizes = [14, 32], strides = [1, 1]} : vector<32x32xf32> to vector<14x32xf32>
    %206 = tpu.concatenate %187, %188, %189, %190, %192, %193, %194, %195, %197, %198, %199, %200, %202, %203, %204, %205 in 1 : vector<14x32xf32>, vector<14x32xf32>, vector<14x32xf32>, vector<14x32xf32>, vector<14x32xf32>, vector<14x32xf32>, vector<14x32xf32>, vector<14x32xf32>, vector<14x32xf32>, vector<14x32xf32>, vector<14x32xf32>, vector<14x32xf32>, vector<14x32xf32>, vector<14x32xf32>, vector<14x32xf32>, vector<14x32xf32> -> vector<14x512xf32>
    %c112 = arith.constant 112 : index
    %c0_71 = arith.constant 0 : index
    %207 = vector.load %arg18[%c112, %c0_71] : memref<196x512xf32, #tpu.memory_space<vmem>>, vector<14x512xf32>
    tpu.vector_store %arg18[%c112, %c0_71], %206 {strides = array<i32>} : memref<196x512xf32, #tpu.memory_space<vmem>>, vector<14x512xf32>,
    %c576_72 = arith.constant 576 : index
    %c0_73 = arith.constant 0 : index
    %208 = vector.load %arg15[%c576_72, %c0_73] : memref<992x32xf32, #tpu.memory_space<vmem>>, vector<32x32xf32>
    %209 = vector.extract_strided_slice %208 {offsets = [0, 0], sizes = [14, 32], strides = [1, 1]} : vector<32x32xf32> to vector<14x32xf32>
    %210 = vector.extract_strided_slice %208 {offsets = [1, 0], sizes = [14, 32], strides = [1, 1]} : vector<32x32xf32> to vector<14x32xf32>
    %211 = vector.extract_strided_slice %208 {offsets = [16, 0], sizes = [14, 32], strides = [1, 1]} : vector<32x32xf32> to vector<14x32xf32>
    %212 = vector.extract_strided_slice %208 {offsets = [17, 0], sizes = [14, 32], strides = [1, 1]} : vector<32x32xf32> to vector<14x32xf32>
    %c608_74 = arith.constant 608 : index
    %c0_75 = arith.constant 0 : index
    %213 = vector.load %arg15[%c608_74, %c0_75] : memref<992x32xf32, #tpu.memory_space<vmem>>, vector<32x32xf32>
    %214 = vector.extract_strided_slice %213 {offsets = [0, 0], sizes = [14, 32], strides = [1, 1]} : vector<32x32xf32> to vector<14x32xf32>
    %215 = vector.extract_strided_slice %213 {offsets = [1, 0], sizes = [14, 32], strides = [1, 1]} : vector<32x32xf32> to vector<14x32xf32>
    %216 = vector.extract_strided_slice %213 {offsets = [16, 0], sizes = [14, 32], strides = [1, 1]} : vector<32x32xf32> to vector<14x32xf32>
    %217 = vector.extract_strided_slice %213 {offsets = [17, 0], sizes = [14, 32], strides = [1, 1]} : vector<32x32xf32> to vector<14x32xf32>
    %c640 = arith.constant 640 : index
    %c0_76 = arith.constant 0 : index
    %218 = vector.load %arg15[%c640, %c0_76] : memref<992x32xf32, #tpu.memory_space<vmem>>, vector<32x32xf32>
    %219 = vector.extract_strided_slice %218 {offsets = [0, 0], sizes = [14, 32], strides = [1, 1]} : vector<32x32xf32> to vector<14x32xf32>
    %220 = vector.extract_strided_slice %218 {offsets = [1, 0], sizes = [14, 32], strides = [1, 1]} : vector<32x32xf32> to vector<14x32xf32>
    %221 = vector.extract_strided_slice %218 {offsets = [16, 0], sizes = [14, 32], strides = [1, 1]} : vector<32x32xf32> to vector<14x32xf32>
    %222 = vector.extract_strided_slice %218 {offsets = [17, 0], sizes = [14, 32], strides = [1, 1]} : vector<32x32xf32> to vector<14x32xf32>
    %c672 = arith.constant 672 : index
    %c0_77 = arith.constant 0 : index
    %223 = vector.load %arg15[%c672, %c0_77] : memref<992x32xf32, #tpu.memory_space<vmem>>, vector<32x32xf32>
    %224 = vector.extract_strided_slice %223 {offsets = [0, 0], sizes = [14, 32], strides = [1, 1]} : vector<32x32xf32> to vector<14x32xf32>
    %225 = vector.extract_strided_slice %223 {offsets = [1, 0], sizes = [14, 32], strides = [1, 1]} : vector<32x32xf32> to vector<14x32xf32>
    %226 = vector.extract_strided_slice %223 {offsets = [16, 0], sizes = [14, 32], strides = [1, 1]} : vector<32x32xf32> to vector<14x32xf32>
    %227 = vector.extract_strided_slice %223 {offsets = [17, 0], sizes = [14, 32], strides = [1, 1]} : vector<32x32xf32> to vector<14x32xf32>
    %228 = tpu.concatenate %209, %210, %211, %212, %214, %215, %216, %217, %219, %220, %221, %222, %224, %225, %226, %227 in 1 : vector<14x32xf32>, vector<14x32xf32>, vector<14x32xf32>, vector<14x32xf32>, vector<14x32xf32>, vector<14x32xf32>, vector<14x32xf32>, vector<14x32xf32>, vector<14x32xf32>, vector<14x32xf32>, vector<14x32xf32>, vector<14x32xf32>, vector<14x32xf32>, vector<14x32xf32>, vector<14x32xf32>, vector<14x32xf32> -> vector<14x512xf32>
    %c126 = arith.constant 126 : index
    %c0_78 = arith.constant 0 : index
    %229 = vector.load %arg18[%c126, %c0_78] : memref<196x512xf32, #tpu.memory_space<vmem>>, vector<14x512xf32>
    tpu.vector_store %arg18[%c126, %c0_78], %228 {strides = array<i32>} : memref<196x512xf32, #tpu.memory_space<vmem>>, vector<14x512xf32>,
    %c640_79 = arith.constant 640 : index
    %c0_80 = arith.constant 0 : index
    %230 = vector.load %arg15[%c640_79, %c0_80] : memref<992x32xf32, #tpu.memory_space<vmem>>, vector<32x32xf32>
    %231 = vector.extract_strided_slice %230 {offsets = [0, 0], sizes = [14, 32], strides = [1, 1]} : vector<32x32xf32> to vector<14x32xf32>
    %232 = vector.extract_strided_slice %230 {offsets = [1, 0], sizes = [14, 32], strides = [1, 1]} : vector<32x32xf32> to vector<14x32xf32>
    %233 = vector.extract_strided_slice %230 {offsets = [16, 0], sizes = [14, 32], strides = [1, 1]} : vector<32x32xf32> to vector<14x32xf32>
    %234 = vector.extract_strided_slice %230 {offsets = [17, 0], sizes = [14, 32], strides = [1, 1]} : vector<32x32xf32> to vector<14x32xf32>
    %c672_81 = arith.constant 672 : index
    %c0_82 = arith.constant 0 : index
    %235 = vector.load %arg15[%c672_81, %c0_82] : memref<992x32xf32, #tpu.memory_space<vmem>>, vector<32x32xf32>
    %236 = vector.extract_strided_slice %235 {offsets = [0, 0], sizes = [14, 32], strides = [1, 1]} : vector<32x32xf32> to vector<14x32xf32>
    %237 = vector.extract_strided_slice %235 {offsets = [1, 0], sizes = [14, 32], strides = [1, 1]} : vector<32x32xf32> to vector<14x32xf32>
    %238 = vector.extract_strided_slice %235 {offsets = [16, 0], sizes = [14, 32], strides = [1, 1]} : vector<32x32xf32> to vector<14x32xf32>
    %239 = vector.extract_strided_slice %235 {offsets = [17, 0], sizes = [14, 32], strides = [1, 1]} : vector<32x32xf32> to vector<14x32xf32>
    %c704 = arith.constant 704 : index
    %c0_83 = arith.constant 0 : index
    %240 = vector.load %arg15[%c704, %c0_83] : memref<992x32xf32, #tpu.memory_space<vmem>>, vector<32x32xf32>
    %241 = vector.extract_strided_slice %240 {offsets = [0, 0], sizes = [14, 32], strides = [1, 1]} : vector<32x32xf32> to vector<14x32xf32>
    %242 = vector.extract_strided_slice %240 {offsets = [1, 0], sizes = [14, 32], strides = [1, 1]} : vector<32x32xf32> to vector<14x32xf32>
    %243 = vector.extract_strided_slice %240 {offsets = [16, 0], sizes = [14, 32], strides = [1, 1]} : vector<32x32xf32> to vector<14x32xf32>
    %244 = vector.extract_strided_slice %240 {offsets = [17, 0], sizes = [14, 32], strides = [1, 1]} : vector<32x32xf32> to vector<14x32xf32>
    %c736 = arith.constant 736 : index
    %c0_84 = arith.constant 0 : index
    %245 = vector.load %arg15[%c736, %c0_84] : memref<992x32xf32, #tpu.memory_space<vmem>>, vector<32x32xf32>
    %246 = vector.extract_strided_slice %245 {offsets = [0, 0], sizes = [14, 32], strides = [1, 1]} : vector<32x32xf32> to vector<14x32xf32>
    %247 = vector.extract_strided_slice %245 {offsets = [1, 0], sizes = [14, 32], strides = [1, 1]} : vector<32x32xf32> to vector<14x32xf32>
    %248 = vector.extract_strided_slice %245 {offsets = [16, 0], sizes = [14, 32], strides = [1, 1]} : vector<32x32xf32> to vector<14x32xf32>
    %249 = vector.extract_strided_slice %245 {offsets = [17, 0], sizes = [14, 32], strides = [1, 1]} : vector<32x32xf32> to vector<14x32xf32>
    %250 = tpu.concatenate %231, %232, %233, %234, %236, %237, %238, %239, %241, %242, %243, %244, %246, %247, %248, %249 in 1 : vector<14x32xf32>, vector<14x32xf32>, vector<14x32xf32>, vector<14x32xf32>, vector<14x32xf32>, vector<14x32xf32>, vector<14x32xf32>, vector<14x32xf32>, vector<14x32xf32>, vector<14x32xf32>, vector<14x32xf32>, vector<14x32xf32>, vector<14x32xf32>, vector<14x32xf32>, vector<14x32xf32>, vector<14x32xf32> -> vector<14x512xf32>
    %c140 = arith.constant 140 : index
    %c0_85 = arith.constant 0 : index
    %251 = vector.load %arg18[%c140, %c0_85] : memref<196x512xf32, #tpu.memory_space<vmem>>, vector<14x512xf32>
    tpu.vector_store %arg18[%c140, %c0_85], %250 {strides = array<i32>} : memref<196x512xf32, #tpu.memory_space<vmem>>, vector<14x512xf32>,
    %c704_86 = arith.constant 704 : index
    %c0_87 = arith.constant 0 : index
    %252 = vector.load %arg15[%c704_86, %c0_87] : memref<992x32xf32, #tpu.memory_space<vmem>>, vector<32x32xf32>
    %253 = vector.extract_strided_slice %252 {offsets = [0, 0], sizes = [14, 32], strides = [1, 1]} : vector<32x32xf32> to vector<14x32xf32>
    %254 = vector.extract_strided_slice %252 {offsets = [1, 0], sizes = [14, 32], strides = [1, 1]} : vector<32x32xf32> to vector<14x32xf32>
    %255 = vector.extract_strided_slice %252 {offsets = [16, 0], sizes = [14, 32], strides = [1, 1]} : vector<32x32xf32> to vector<14x32xf32>
    %256 = vector.extract_strided_slice %252 {offsets = [17, 0], sizes = [14, 32], strides = [1, 1]} : vector<32x32xf32> to vector<14x32xf32>
    %c736_88 = arith.constant 736 : index
    %c0_89 = arith.constant 0 : index
    %257 = vector.load %arg15[%c736_88, %c0_89] : memref<992x32xf32, #tpu.memory_space<vmem>>, vector<32x32xf32>
    %258 = vector.extract_strided_slice %257 {offsets = [0, 0], sizes = [14, 32], strides = [1, 1]} : vector<32x32xf32> to vector<14x32xf32>
    %259 = vector.extract_strided_slice %257 {offsets = [1, 0], sizes = [14, 32], strides = [1, 1]} : vector<32x32xf32> to vector<14x32xf32>
    %260 = vector.extract_strided_slice %257 {offsets = [16, 0], sizes = [14, 32], strides = [1, 1]} : vector<32x32xf32> to vector<14x32xf32>
    %261 = vector.extract_strided_slice %257 {offsets = [17, 0], sizes = [14, 32], strides = [1, 1]} : vector<32x32xf32> to vector<14x32xf32>
    %c768 = arith.constant 768 : index
    %c0_90 = arith.constant 0 : index
    %262 = vector.load %arg15[%c768, %c0_90] : memref<992x32xf32, #tpu.memory_space<vmem>>, vector<32x32xf32>
    %263 = vector.extract_strided_slice %262 {offsets = [0, 0], sizes = [14, 32], strides = [1, 1]} : vector<32x32xf32> to vector<14x32xf32>
    %264 = vector.extract_strided_slice %262 {offsets = [1, 0], sizes = [14, 32], strides = [1, 1]} : vector<32x32xf32> to vector<14x32xf32>
    %265 = vector.extract_strided_slice %262 {offsets = [16, 0], sizes = [14, 32], strides = [1, 1]} : vector<32x32xf32> to vector<14x32xf32>
    %266 = vector.extract_strided_slice %262 {offsets = [17, 0], sizes = [14, 32], strides = [1, 1]} : vector<32x32xf32> to vector<14x32xf32>
    %c800 = arith.constant 800 : index
    %c0_91 = arith.constant 0 : index
    %267 = vector.load %arg15[%c800, %c0_91] : memref<992x32xf32, #tpu.memory_space<vmem>>, vector<32x32xf32>
    %268 = vector.extract_strided_slice %267 {offsets = [0, 0], sizes = [14, 32], strides = [1, 1]} : vector<32x32xf32> to vector<14x32xf32>
    %269 = vector.extract_strided_slice %267 {offsets = [1, 0], sizes = [14, 32], strides = [1, 1]} : vector<32x32xf32> to vector<14x32xf32>
    %270 = vector.extract_strided_slice %267 {offsets = [16, 0], sizes = [14, 32], strides = [1, 1]} : vector<32x32xf32> to vector<14x32xf32>
    %271 = vector.extract_strided_slice %267 {offsets = [17, 0], sizes = [14, 32], strides = [1, 1]} : vector<32x32xf32> to vector<14x32xf32>
    %272 = tpu.concatenate %253, %254, %255, %256, %258, %259, %260, %261, %263, %264, %265, %266, %268, %269, %270, %271 in 1 : vector<14x32xf32>, vector<14x32xf32>, vector<14x32xf32>, vector<14x32xf32>, vector<14x32xf32>, vector<14x32xf32>, vector<14x32xf32>, vector<14x32xf32>, vector<14x32xf32>, vector<14x32xf32>, vector<14x32xf32>, vector<14x32xf32>, vector<14x32xf32>, vector<14x32xf32>, vector<14x32xf32>, vector<14x32xf32> -> vector<14x512xf32>
    %c154 = arith.constant 154 : index
    %c0_92 = arith.constant 0 : index
    %273 = vector.load %arg18[%c154, %c0_92] : memref<196x512xf32, #tpu.memory_space<vmem>>, vector<14x512xf32>
    tpu.vector_store %arg18[%c154, %c0_92], %272 {strides = array<i32>} : memref<196x512xf32, #tpu.memory_space<vmem>>, vector<14x512xf32>,
    %c768_93 = arith.constant 768 : index
    %c0_94 = arith.constant 0 : index
    %274 = vector.load %arg15[%c768_93, %c0_94] : memref<992x32xf32, #tpu.memory_space<vmem>>, vector<32x32xf32>
    %275 = vector.extract_strided_slice %274 {offsets = [0, 0], sizes = [14, 32], strides = [1, 1]} : vector<32x32xf32> to vector<14x32xf32>
    %276 = vector.extract_strided_slice %274 {offsets = [1, 0], sizes = [14, 32], strides = [1, 1]} : vector<32x32xf32> to vector<14x32xf32>
    %277 = vector.extract_strided_slice %274 {offsets = [16, 0], sizes = [14, 32], strides = [1, 1]} : vector<32x32xf32> to vector<14x32xf32>
    %278 = vector.extract_strided_slice %274 {offsets = [17, 0], sizes = [14, 32], strides = [1, 1]} : vector<32x32xf32> to vector<14x32xf32>
    %c800_95 = arith.constant 800 : index
    %c0_96 = arith.constant 0 : index
    %279 = vector.load %arg15[%c800_95, %c0_96] : memref<992x32xf32, #tpu.memory_space<vmem>>, vector<32x32xf32>
    %280 = vector.extract_strided_slice %279 {offsets = [0, 0], sizes = [14, 32], strides = [1, 1]} : vector<32x32xf32> to vector<14x32xf32>
    %281 = vector.extract_strided_slice %279 {offsets = [1, 0], sizes = [14, 32], strides = [1, 1]} : vector<32x32xf32> to vector<14x32xf32>
    %282 = vector.extract_strided_slice %279 {offsets = [16, 0], sizes = [14, 32], strides = [1, 1]} : vector<32x32xf32> to vector<14x32xf32>
    %283 = vector.extract_strided_slice %279 {offsets = [17, 0], sizes = [14, 32], strides = [1, 1]} : vector<32x32xf32> to vector<14x32xf32>
    %c832 = arith.constant 832 : index
    %c0_97 = arith.constant 0 : index
    %284 = vector.load %arg15[%c832, %c0_97] : memref<992x32xf32, #tpu.memory_space<vmem>>, vector<32x32xf32>
    %285 = vector.extract_strided_slice %284 {offsets = [0, 0], sizes = [14, 32], strides = [1, 1]} : vector<32x32xf32> to vector<14x32xf32>
    %286 = vector.extract_strided_slice %284 {offsets = [1, 0], sizes = [14, 32], strides = [1, 1]} : vector<32x32xf32> to vector<14x32xf32>
    %287 = vector.extract_strided_slice %284 {offsets = [16, 0], sizes = [14, 32], strides = [1, 1]} : vector<32x32xf32> to vector<14x32xf32>
    %288 = vector.extract_strided_slice %284 {offsets = [17, 0], sizes = [14, 32], strides = [1, 1]} : vector<32x32xf32> to vector<14x32xf32>
    %c864 = arith.constant 864 : index
    %c0_98 = arith.constant 0 : index
    %289 = vector.load %arg15[%c864, %c0_98] : memref<992x32xf32, #tpu.memory_space<vmem>>, vector<32x32xf32>
    %290 = vector.extract_strided_slice %289 {offsets = [0, 0], sizes = [14, 32], strides = [1, 1]} : vector<32x32xf32> to vector<14x32xf32>
    %291 = vector.extract_strided_slice %289 {offsets = [1, 0], sizes = [14, 32], strides = [1, 1]} : vector<32x32xf32> to vector<14x32xf32>
    %292 = vector.extract_strided_slice %289 {offsets = [16, 0], sizes = [14, 32], strides = [1, 1]} : vector<32x32xf32> to vector<14x32xf32>
    %293 = vector.extract_strided_slice %289 {offsets = [17, 0], sizes = [14, 32], strides = [1, 1]} : vector<32x32xf32> to vector<14x32xf32>
    %294 = tpu.concatenate %275, %276, %277, %278, %280, %281, %282, %283, %285, %286, %287, %288, %290, %291, %292, %293 in 1 : vector<14x32xf32>, vector<14x32xf32>, vector<14x32xf32>, vector<14x32xf32>, vector<14x32xf32>, vector<14x32xf32>, vector<14x32xf32>, vector<14x32xf32>, vector<14x32xf32>, vector<14x32xf32>, vector<14x32xf32>, vector<14x32xf32>, vector<14x32xf32>, vector<14x32xf32>, vector<14x32xf32>, vector<14x32xf32> -> vector<14x512xf32>
    %c168 = arith.constant 168 : index
    %c0_99 = arith.constant 0 : index
    %295 = vector.load %arg18[%c168, %c0_99] : memref<196x512xf32, #tpu.memory_space<vmem>>, vector<14x512xf32>
    tpu.vector_store %arg18[%c168, %c0_99], %294 {strides = array<i32>} : memref<196x512xf32, #tpu.memory_space<vmem>>, vector<14x512xf32>,
    %c832_100 = arith.constant 832 : index
    %c0_101 = arith.constant 0 : index
    %296 = vector.load %arg15[%c832_100, %c0_101] : memref<992x32xf32, #tpu.memory_space<vmem>>, vector<32x32xf32>
    %297 = vector.extract_strided_slice %296 {offsets = [0, 0], sizes = [14, 32], strides = [1, 1]} : vector<32x32xf32> to vector<14x32xf32>
    %298 = vector.extract_strided_slice %296 {offsets = [1, 0], sizes = [14, 32], strides = [1, 1]} : vector<32x32xf32> to vector<14x32xf32>
    %299 = vector.extract_strided_slice %296 {offsets = [16, 0], sizes = [14, 32], strides = [1, 1]} : vector<32x32xf32> to vector<14x32xf32>
    %300 = vector.extract_strided_slice %296 {offsets = [17, 0], sizes = [14, 32], strides = [1, 1]} : vector<32x32xf32> to vector<14x32xf32>
    %c864_102 = arith.constant 864 : index
    %c0_103 = arith.constant 0 : index
    %301 = vector.load %arg15[%c864_102, %c0_103] : memref<992x32xf32, #tpu.memory_space<vmem>>, vector<32x32xf32>
    %302 = vector.extract_strided_slice %301 {offsets = [0, 0], sizes = [14, 32], strides = [1, 1]} : vector<32x32xf32> to vector<14x32xf32>
    %303 = vector.extract_strided_slice %301 {offsets = [1, 0], sizes = [14, 32], strides = [1, 1]} : vector<32x32xf32> to vector<14x32xf32>
    %304 = vector.extract_strided_slice %301 {offsets = [16, 0], sizes = [14, 32], strides = [1, 1]} : vector<32x32xf32> to vector<14x32xf32>
    %305 = vector.extract_strided_slice %301 {offsets = [17, 0], sizes = [14, 32], strides = [1, 1]} : vector<32x32xf32> to vector<14x32xf32>
    %c896 = arith.constant 896 : index
    %c0_104 = arith.constant 0 : index
    %306 = vector.load %arg15[%c896, %c0_104] : memref<992x32xf32, #tpu.memory_space<vmem>>, vector<32x32xf32>
    %307 = vector.extract_strided_slice %306 {offsets = [0, 0], sizes = [14, 32], strides = [1, 1]} : vector<32x32xf32> to vector<14x32xf32>
    %308 = vector.extract_strided_slice %306 {offsets = [1, 0], sizes = [14, 32], strides = [1, 1]} : vector<32x32xf32> to vector<14x32xf32>
    %309 = vector.extract_strided_slice %306 {offsets = [16, 0], sizes = [14, 32], strides = [1, 1]} : vector<32x32xf32> to vector<14x32xf32>
    %310 = vector.extract_strided_slice %306 {offsets = [17, 0], sizes = [14, 32], strides = [1, 1]} : vector<32x32xf32> to vector<14x32xf32>
    %c928 = arith.constant 928 : index
    %c0_105 = arith.constant 0 : index
    %311 = vector.load %arg15[%c928, %c0_105] : memref<992x32xf32, #tpu.memory_space<vmem>>, vector<32x32xf32>
    %312 = vector.extract_strided_slice %311 {offsets = [0, 0], sizes = [14, 32], strides = [1, 1]} : vector<32x32xf32> to vector<14x32xf32>
    %313 = vector.extract_strided_slice %311 {offsets = [1, 0], sizes = [14, 32], strides = [1, 1]} : vector<32x32xf32> to vector<14x32xf32>
    %314 = vector.extract_strided_slice %311 {offsets = [16, 0], sizes = [14, 32], strides = [1, 1]} : vector<32x32xf32> to vector<14x32xf32>
    %315 = vector.extract_strided_slice %311 {offsets = [17, 0], sizes = [14, 32], strides = [1, 1]} : vector<32x32xf32> to vector<14x32xf32>
    %316 = tpu.concatenate %297, %298, %299, %300, %302, %303, %304, %305, %307, %308, %309, %310, %312, %313, %314, %315 in 1 : vector<14x32xf32>, vector<14x32xf32>, vector<14x32xf32>, vector<14x32xf32>, vector<14x32xf32>, vector<14x32xf32>, vector<14x32xf32>, vector<14x32xf32>, vector<14x32xf32>, vector<14x32xf32>, vector<14x32xf32>, vector<14x32xf32>, vector<14x32xf32>, vector<14x32xf32>, vector<14x32xf32>, vector<14x32xf32> -> vector<14x512xf32>
    %c182 = arith.constant 182 : index
    %c0_106 = arith.constant 0 : index
    %317 = vector.load %arg18[%c182, %c0_106] : memref<196x512xf32, #tpu.memory_space<vmem>>, vector<14x512xf32>
    tpu.vector_store %arg18[%c182, %c0_106], %316 {strides = array<i32>} : memref<196x512xf32, #tpu.memory_space<vmem>>, vector<14x512xf32>,
    %c0_107 = arith.constant 0 : index
    %c0_108 = arith.constant 0 : index
    %318 = vector.load %arg6[%c0_107, %c0_108] : memref<196x196xf32, #tpu.memory_space<vmem>>, vector<196x196xf32>
    %c0_109 = arith.constant 0 : index
    %c0_110 = arith.constant 0 : index
    %319 = vector.load %arg18[%c0_109, %c0_110] : memref<196x512xf32, #tpu.memory_space<vmem>>, vector<196x512xf32>
    %c0_111 = arith.constant 0 : index
    %c0_112 = arith.constant 0 : index
    %320 = vector.load %arg4[%c0_111, %c0_112] : memref<512x64xf32, #tpu.memory_space<vmem>>, vector<512x64xf32>
    %cst_113 = arith.constant dense<0.000000e+00> : vector<196x64xf32>
    %321 = tpu.matmul %319, %320, %cst_113 {dimension_numbers = #tpu.dot_dimension_numbers<[1], [0], [0], [1], [0, 0, 1, 1], [], []>} : vector<196x512xf32>, vector<512x64xf32>, vector<196x64xf32> -> vector<196x64xf32>
    %c0_114 = arith.constant 0 : index
    %c0_115 = arith.constant 0 : index
    %322 = vector.load %arg5[%c0_114, %c0_115] : memref<1x64xf32, #tpu.memory_space<vmem>>, vector<1x64xf32>
    %323 = vector.broadcast %322 : vector<1x64xf32> to vector<196x64xf32>
    %324 = arith.addf %321, %323 : vector<196x64xf32>
    %cst_116 = arith.constant 0.000000e+00 : f32
    %325 = vector.broadcast %cst_116 : f32 to vector<196x64xf32>
    %326 = arith.maximumf %324, %325 : vector<196x64xf32>
    %cst_117 = arith.constant dense<0.000000e+00> : vector<196x64xf32>
    %327 = tpu.matmul %318, %326, %cst_117 {dimension_numbers = #tpu.dot_dimension_numbers<[1], [0], [0], [1], [0, 0, 1, 1], [], []>} : vector<196x196xf32>, vector<196x64xf32>, vector<196x64xf32> -> vector<196x64xf32>
    %c0_118 = arith.constant 0 : index
    %c0_119 = arith.constant 0 : index
    %328 = vector.load %arg16[%c0_118, %c0_119] : memref<196x64xf32, #tpu.memory_space<vmem>>, vector<196x64xf32>
    tpu.vector_store %arg16[%c0_118, %c0_119], %327 {strides = array<i32>} : memref<196x64xf32, #tpu.memory_space<vmem>>, vector<196x64xf32>,
    %c0_120 = arith.constant 0 : index
    %c0_121 = arith.constant 0 : index
    %329 = vector.load %arg16[%c0_120, %c0_121] : memref<196x64xf32, #tpu.memory_space<vmem>>, vector<14x64xf32>
    %330 = vector.extract_strided_slice %329 {offsets = [0, 0], sizes = [6, 64], strides = [1, 1]} : vector<14x64xf32> to vector<6x64xf32>
    %331 = vector.extract_strided_slice %329 {offsets = [1, 0], sizes = [6, 64], strides = [1, 1]} : vector<14x64xf32> to vector<6x64xf32>
    %332 = vector.extract_strided_slice %329 {offsets = [7, 0], sizes = [6, 64], strides = [1, 1]} : vector<14x64xf32> to vector<6x64xf32>
    %333 = vector.extract_strided_slice %329 {offsets = [8, 0], sizes = [6, 64], strides = [1, 1]} : vector<14x64xf32> to vector<6x64xf32>
    %c14_122 = arith.constant 14 : index
    %c0_123 = arith.constant 0 : index
    %334 = vector.load %arg16[%c14_122, %c0_123] : memref<196x64xf32, #tpu.memory_space<vmem>>, vector<14x64xf32>
    %335 = vector.extract_strided_slice %334 {offsets = [0, 0], sizes = [6, 64], strides = [1, 1]} : vector<14x64xf32> to vector<6x64xf32>
    %336 = vector.extract_strided_slice %334 {offsets = [1, 0], sizes = [6, 64], strides = [1, 1]} : vector<14x64xf32> to vector<6x64xf32>
    %337 = vector.extract_strided_slice %334 {offsets = [7, 0], sizes = [6, 64], strides = [1, 1]} : vector<14x64xf32> to vector<6x64xf32>
    %338 = vector.extract_strided_slice %334 {offsets = [8, 0], sizes = [6, 64], strides = [1, 1]} : vector<14x64xf32> to vector<6x64xf32>
    %c28_124 = arith.constant 28 : index
    %c0_125 = arith.constant 0 : index
    %339 = vector.load %arg16[%c28_124, %c0_125] : memref<196x64xf32, #tpu.memory_space<vmem>>, vector<14x64xf32>
    %340 = vector.extract_strided_slice %339 {offsets = [0, 0], sizes = [6, 64], strides = [1, 1]} : vector<14x64xf32> to vector<6x64xf32>
    %341 = vector.extract_strided_slice %339 {offsets = [1, 0], sizes = [6, 64], strides = [1, 1]} : vector<14x64xf32> to vector<6x64xf32>
    %342 = vector.extract_strided_slice %339 {offsets = [7, 0], sizes = [6, 64], strides = [1, 1]} : vector<14x64xf32> to vector<6x64xf32>
    %343 = vector.extract_strided_slice %339 {offsets = [8, 0], sizes = [6, 64], strides = [1, 1]} : vector<14x64xf32> to vector<6x64xf32>
    %c42_126 = arith.constant 42 : index
    %c0_127 = arith.constant 0 : index
    %344 = vector.load %arg16[%c42_126, %c0_127] : memref<196x64xf32, #tpu.memory_space<vmem>>, vector<14x64xf32>
    %345 = vector.extract_strided_slice %344 {offsets = [0, 0], sizes = [6, 64], strides = [1, 1]} : vector<14x64xf32> to vector<6x64xf32>
    %346 = vector.extract_strided_slice %344 {offsets = [1, 0], sizes = [6, 64], strides = [1, 1]} : vector<14x64xf32> to vector<6x64xf32>
    %347 = vector.extract_strided_slice %344 {offsets = [7, 0], sizes = [6, 64], strides = [1, 1]} : vector<14x64xf32> to vector<6x64xf32>
    %348 = vector.extract_strided_slice %344 {offsets = [8, 0], sizes = [6, 64], strides = [1, 1]} : vector<14x64xf32> to vector<6x64xf32>
    %349 = tpu.concatenate %330, %331, %332, %333, %335, %336, %337, %338, %340, %341, %342, %343, %345, %346, %347, %348 in 1 : vector<6x64xf32>, vector<6x64xf32>, vector<6x64xf32>, vector<6x64xf32>, vector<6x64xf32>, vector<6x64xf32>, vector<6x64xf32>, vector<6x64xf32>, vector<6x64xf32>, vector<6x64xf32>, vector<6x64xf32>, vector<6x64xf32>, vector<6x64xf32>, vector<6x64xf32>, vector<6x64xf32>, vector<6x64xf32> -> vector<6x1024xf32>
    %c0_128 = arith.constant 0 : index
    %c0_129 = arith.constant 0 : index
    %350 = vector.load %arg19[%c0_128, %c0_129] : memref<36x1024xf32, #tpu.memory_space<vmem>>, vector<6x1024xf32>
    tpu.vector_store %arg19[%c0_128, %c0_129], %349 {strides = array<i32>} : memref<36x1024xf32, #tpu.memory_space<vmem>>, vector<6x1024xf32>,
    %c28_130 = arith.constant 28 : index
    %c0_131 = arith.constant 0 : index
    %351 = vector.load %arg16[%c28_130, %c0_131] : memref<196x64xf32, #tpu.memory_space<vmem>>, vector<14x64xf32>
    %352 = vector.extract_strided_slice %351 {offsets = [0, 0], sizes = [6, 64], strides = [1, 1]} : vector<14x64xf32> to vector<6x64xf32>
    %353 = vector.extract_strided_slice %351 {offsets = [1, 0], sizes = [6, 64], strides = [1, 1]} : vector<14x64xf32> to vector<6x64xf32>
    %354 = vector.extract_strided_slice %351 {offsets = [7, 0], sizes = [6, 64], strides = [1, 1]} : vector<14x64xf32> to vector<6x64xf32>
    %355 = vector.extract_strided_slice %351 {offsets = [8, 0], sizes = [6, 64], strides = [1, 1]} : vector<14x64xf32> to vector<6x64xf32>
    %c42_132 = arith.constant 42 : index
    %c0_133 = arith.constant 0 : index
    %356 = vector.load %arg16[%c42_132, %c0_133] : memref<196x64xf32, #tpu.memory_space<vmem>>, vector<14x64xf32>
    %357 = vector.extract_strided_slice %356 {offsets = [0, 0], sizes = [6, 64], strides = [1, 1]} : vector<14x64xf32> to vector<6x64xf32>
    %358 = vector.extract_strided_slice %356 {offsets = [1, 0], sizes = [6, 64], strides = [1, 1]} : vector<14x64xf32> to vector<6x64xf32>
    %359 = vector.extract_strided_slice %356 {offsets = [7, 0], sizes = [6, 64], strides = [1, 1]} : vector<14x64xf32> to vector<6x64xf32>
    %360 = vector.extract_strided_slice %356 {offsets = [8, 0], sizes = [6, 64], strides = [1, 1]} : vector<14x64xf32> to vector<6x64xf32>
    %c56_134 = arith.constant 56 : index
    %c0_135 = arith.constant 0 : index
    %361 = vector.load %arg16[%c56_134, %c0_135] : memref<196x64xf32, #tpu.memory_space<vmem>>, vector<14x64xf32>
    %362 = vector.extract_strided_slice %361 {offsets = [0, 0], sizes = [6, 64], strides = [1, 1]} : vector<14x64xf32> to vector<6x64xf32>
    %363 = vector.extract_strided_slice %361 {offsets = [1, 0], sizes = [6, 64], strides = [1, 1]} : vector<14x64xf32> to vector<6x64xf32>
    %364 = vector.extract_strided_slice %361 {offsets = [7, 0], sizes = [6, 64], strides = [1, 1]} : vector<14x64xf32> to vector<6x64xf32>
    %365 = vector.extract_strided_slice %361 {offsets = [8, 0], sizes = [6, 64], strides = [1, 1]} : vector<14x64xf32> to vector<6x64xf32>
    %c70_136 = arith.constant 70 : index
    %c0_137 = arith.constant 0 : index
    %366 = vector.load %arg16[%c70_136, %c0_137] : memref<196x64xf32, #tpu.memory_space<vmem>>, vector<14x64xf32>
    %367 = vector.extract_strided_slice %366 {offsets = [0, 0], sizes = [6, 64], strides = [1, 1]} : vector<14x64xf32> to vector<6x64xf32>
    %368 = vector.extract_strided_slice %366 {offsets = [1, 0], sizes = [6, 64], strides = [1, 1]} : vector<14x64xf32> to vector<6x64xf32>
    %369 = vector.extract_strided_slice %366 {offsets = [7, 0], sizes = [6, 64], strides = [1, 1]} : vector<14x64xf32> to vector<6x64xf32>
    %370 = vector.extract_strided_slice %366 {offsets = [8, 0], sizes = [6, 64], strides = [1, 1]} : vector<14x64xf32> to vector<6x64xf32>
    %371 = tpu.concatenate %352, %353, %354, %355, %357, %358, %359, %360, %362, %363, %364, %365, %367, %368, %369, %370 in 1 : vector<6x64xf32>, vector<6x64xf32>, vector<6x64xf32>, vector<6x64xf32>, vector<6x64xf32>, vector<6x64xf32>, vector<6x64xf32>, vector<6x64xf32>, vector<6x64xf32>, vector<6x64xf32>, vector<6x64xf32>, vector<6x64xf32>, vector<6x64xf32>, vector<6x64xf32>, vector<6x64xf32>, vector<6x64xf32> -> vector<6x1024xf32>
    %c6 = arith.constant 6 : index
    %c0_138 = arith.constant 0 : index
    %372 = vector.load %arg19[%c6, %c0_138] : memref<36x1024xf32, #tpu.memory_space<vmem>>, vector<6x1024xf32>
    tpu.vector_store %arg19[%c6, %c0_138], %371 {strides = array<i32>} : memref<36x1024xf32, #tpu.memory_space<vmem>>, vector<6x1024xf32>,
    %c56_139 = arith.constant 56 : index
    %c0_140 = arith.constant 0 : index
    %373 = vector.load %arg16[%c56_139, %c0_140] : memref<196x64xf32, #tpu.memory_space<vmem>>, vector<14x64xf32>
    %374 = vector.extract_strided_slice %373 {offsets = [0, 0], sizes = [6, 64], strides = [1, 1]} : vector<14x64xf32> to vector<6x64xf32>
    %375 = vector.extract_strided_slice %373 {offsets = [1, 0], sizes = [6, 64], strides = [1, 1]} : vector<14x64xf32> to vector<6x64xf32>
    %376 = vector.extract_strided_slice %373 {offsets = [7, 0], sizes = [6, 64], strides = [1, 1]} : vector<14x64xf32> to vector<6x64xf32>
    %377 = vector.extract_strided_slice %373 {offsets = [8, 0], sizes = [6, 64], strides = [1, 1]} : vector<14x64xf32> to vector<6x64xf32>
    %c70_141 = arith.constant 70 : index
    %c0_142 = arith.constant 0 : index
    %378 = vector.load %arg16[%c70_141, %c0_142] : memref<196x64xf32, #tpu.memory_space<vmem>>, vector<14x64xf32>
    %379 = vector.extract_strided_slice %378 {offsets = [0, 0], sizes = [6, 64], strides = [1, 1]} : vector<14x64xf32> to vector<6x64xf32>
    %380 = vector.extract_strided_slice %378 {offsets = [1, 0], sizes = [6, 64], strides = [1, 1]} : vector<14x64xf32> to vector<6x64xf32>
    %381 = vector.extract_strided_slice %378 {offsets = [7, 0], sizes = [6, 64], strides = [1, 1]} : vector<14x64xf32> to vector<6x64xf32>
    %382 = vector.extract_strided_slice %378 {offsets = [8, 0], sizes = [6, 64], strides = [1, 1]} : vector<14x64xf32> to vector<6x64xf32>
    %c84_143 = arith.constant 84 : index
    %c0_144 = arith.constant 0 : index
    %383 = vector.load %arg16[%c84_143, %c0_144] : memref<196x64xf32, #tpu.memory_space<vmem>>, vector<14x64xf32>
    %384 = vector.extract_strided_slice %383 {offsets = [0, 0], sizes = [6, 64], strides = [1, 1]} : vector<14x64xf32> to vector<6x64xf32>
    %385 = vector.extract_strided_slice %383 {offsets = [1, 0], sizes = [6, 64], strides = [1, 1]} : vector<14x64xf32> to vector<6x64xf32>
    %386 = vector.extract_strided_slice %383 {offsets = [7, 0], sizes = [6, 64], strides = [1, 1]} : vector<14x64xf32> to vector<6x64xf32>
    %387 = vector.extract_strided_slice %383 {offsets = [8, 0], sizes = [6, 64], strides = [1, 1]} : vector<14x64xf32> to vector<6x64xf32>
    %c98_145 = arith.constant 98 : index
    %c0_146 = arith.constant 0 : index
    %388 = vector.load %arg16[%c98_145, %c0_146] : memref<196x64xf32, #tpu.memory_space<vmem>>, vector<14x64xf32>
    %389 = vector.extract_strided_slice %388 {offsets = [0, 0], sizes = [6, 64], strides = [1, 1]} : vector<14x64xf32> to vector<6x64xf32>
    %390 = vector.extract_strided_slice %388 {offsets = [1, 0], sizes = [6, 64], strides = [1, 1]} : vector<14x64xf32> to vector<6x64xf32>
    %391 = vector.extract_strided_slice %388 {offsets = [7, 0], sizes = [6, 64], strides = [1, 1]} : vector<14x64xf32> to vector<6x64xf32>
    %392 = vector.extract_strided_slice %388 {offsets = [8, 0], sizes = [6, 64], strides = [1, 1]} : vector<14x64xf32> to vector<6x64xf32>
    %393 = tpu.concatenate %374, %375, %376, %377, %379, %380, %381, %382, %384, %385, %386, %387, %389, %390, %391, %392 in 1 : vector<6x64xf32>, vector<6x64xf32>, vector<6x64xf32>, vector<6x64xf32>, vector<6x64xf32>, vector<6x64xf32>, vector<6x64xf32>, vector<6x64xf32>, vector<6x64xf32>, vector<6x64xf32>, vector<6x64xf32>, vector<6x64xf32>, vector<6x64xf32>, vector<6x64xf32>, vector<6x64xf32>, vector<6x64xf32> -> vector<6x1024xf32>
    %c12 = arith.constant 12 : index
    %c0_147 = arith.constant 0 : index
    %394 = vector.load %arg19[%c12, %c0_147] : memref<36x1024xf32, #tpu.memory_space<vmem>>, vector<6x1024xf32>
    tpu.vector_store %arg19[%c12, %c0_147], %393 {strides = array<i32>} : memref<36x1024xf32, #tpu.memory_space<vmem>>, vector<6x1024xf32>,
    %c84_148 = arith.constant 84 : index
    %c0_149 = arith.constant 0 : index
    %395 = vector.load %arg16[%c84_148, %c0_149] : memref<196x64xf32, #tpu.memory_space<vmem>>, vector<14x64xf32>
    %396 = vector.extract_strided_slice %395 {offsets = [0, 0], sizes = [6, 64], strides = [1, 1]} : vector<14x64xf32> to vector<6x64xf32>
    %397 = vector.extract_strided_slice %395 {offsets = [1, 0], sizes = [6, 64], strides = [1, 1]} : vector<14x64xf32> to vector<6x64xf32>
    %398 = vector.extract_strided_slice %395 {offsets = [7, 0], sizes = [6, 64], strides = [1, 1]} : vector<14x64xf32> to vector<6x64xf32>
    %399 = vector.extract_strided_slice %395 {offsets = [8, 0], sizes = [6, 64], strides = [1, 1]} : vector<14x64xf32> to vector<6x64xf32>
    %c98_150 = arith.constant 98 : index
    %c0_151 = arith.constant 0 : index
    %400 = vector.load %arg16[%c98_150, %c0_151] : memref<196x64xf32, #tpu.memory_space<vmem>>, vector<14x64xf32>
    %401 = vector.extract_strided_slice %400 {offsets = [0, 0], sizes = [6, 64], strides = [1, 1]} : vector<14x64xf32> to vector<6x64xf32>
    %402 = vector.extract_strided_slice %400 {offsets = [1, 0], sizes = [6, 64], strides = [1, 1]} : vector<14x64xf32> to vector<6x64xf32>
    %403 = vector.extract_strided_slice %400 {offsets = [7, 0], sizes = [6, 64], strides = [1, 1]} : vector<14x64xf32> to vector<6x64xf32>
    %404 = vector.extract_strided_slice %400 {offsets = [8, 0], sizes = [6, 64], strides = [1, 1]} : vector<14x64xf32> to vector<6x64xf32>
    %c112_152 = arith.constant 112 : index
    %c0_153 = arith.constant 0 : index
    %405 = vector.load %arg16[%c112_152, %c0_153] : memref<196x64xf32, #tpu.memory_space<vmem>>, vector<14x64xf32>
    %406 = vector.extract_strided_slice %405 {offsets = [0, 0], sizes = [6, 64], strides = [1, 1]} : vector<14x64xf32> to vector<6x64xf32>
    %407 = vector.extract_strided_slice %405 {offsets = [1, 0], sizes = [6, 64], strides = [1, 1]} : vector<14x64xf32> to vector<6x64xf32>
    %408 = vector.extract_strided_slice %405 {offsets = [7, 0], sizes = [6, 64], strides = [1, 1]} : vector<14x64xf32> to vector<6x64xf32>
    %409 = vector.extract_strided_slice %405 {offsets = [8, 0], sizes = [6, 64], strides = [1, 1]} : vector<14x64xf32> to vector<6x64xf32>
    %c126_154 = arith.constant 126 : index
    %c0_155 = arith.constant 0 : index
    %410 = vector.load %arg16[%c126_154, %c0_155] : memref<196x64xf32, #tpu.memory_space<vmem>>, vector<14x64xf32>
    %411 = vector.extract_strided_slice %410 {offsets = [0, 0], sizes = [6, 64], strides = [1, 1]} : vector<14x64xf32> to vector<6x64xf32>
    %412 = vector.extract_strided_slice %410 {offsets = [1, 0], sizes = [6, 64], strides = [1, 1]} : vector<14x64xf32> to vector<6x64xf32>
    %413 = vector.extract_strided_slice %410 {offsets = [7, 0], sizes = [6, 64], strides = [1, 1]} : vector<14x64xf32> to vector<6x64xf32>
    %414 = vector.extract_strided_slice %410 {offsets = [8, 0], sizes = [6, 64], strides = [1, 1]} : vector<14x64xf32> to vector<6x64xf32>
    %415 = tpu.concatenate %396, %397, %398, %399, %401, %402, %403, %404, %406, %407, %408, %409, %411, %412, %413, %414 in 1 : vector<6x64xf32>, vector<6x64xf32>, vector<6x64xf32>, vector<6x64xf32>, vector<6x64xf32>, vector<6x64xf32>, vector<6x64xf32>, vector<6x64xf32>, vector<6x64xf32>, vector<6x64xf32>, vector<6x64xf32>, vector<6x64xf32>, vector<6x64xf32>, vector<6x64xf32>, vector<6x64xf32>, vector<6x64xf32> -> vector<6x1024xf32>
    %c18 = arith.constant 18 : index
    %c0_156 = arith.constant 0 : index
    %416 = vector.load %arg19[%c18, %c0_156] : memref<36x1024xf32, #tpu.memory_space<vmem>>, vector<6x1024xf32>
    tpu.vector_store %arg19[%c18, %c0_156], %415 {strides = array<i32>} : memref<36x1024xf32, #tpu.memory_space<vmem>>, vector<6x1024xf32>,
    %c112_157 = arith.constant 112 : index
    %c0_158 = arith.constant 0 : index
    %417 = vector.load %arg16[%c112_157, %c0_158] : memref<196x64xf32, #tpu.memory_space<vmem>>, vector<14x64xf32>
    %418 = vector.extract_strided_slice %417 {offsets = [0, 0], sizes = [6, 64], strides = [1, 1]} : vector<14x64xf32> to vector<6x64xf32>
    %419 = vector.extract_strided_slice %417 {offsets = [1, 0], sizes = [6, 64], strides = [1, 1]} : vector<14x64xf32> to vector<6x64xf32>
    %420 = vector.extract_strided_slice %417 {offsets = [7, 0], sizes = [6, 64], strides = [1, 1]} : vector<14x64xf32> to vector<6x64xf32>
    %421 = vector.extract_strided_slice %417 {offsets = [8, 0], sizes = [6, 64], strides = [1, 1]} : vector<14x64xf32> to vector<6x64xf32>
    %c126_159 = arith.constant 126 : index
    %c0_160 = arith.constant 0 : index
    %422 = vector.load %arg16[%c126_159, %c0_160] : memref<196x64xf32, #tpu.memory_space<vmem>>, vector<14x64xf32>
    %423 = vector.extract_strided_slice %422 {offsets = [0, 0], sizes = [6, 64], strides = [1, 1]} : vector<14x64xf32> to vector<6x64xf32>
    %424 = vector.extract_strided_slice %422 {offsets = [1, 0], sizes = [6, 64], strides = [1, 1]} : vector<14x64xf32> to vector<6x64xf32>
    %425 = vector.extract_strided_slice %422 {offsets = [7, 0], sizes = [6, 64], strides = [1, 1]} : vector<14x64xf32> to vector<6x64xf32>
    %426 = vector.extract_strided_slice %422 {offsets = [8, 0], sizes = [6, 64], strides = [1, 1]} : vector<14x64xf32> to vector<6x64xf32>
    %c140_161 = arith.constant 140 : index
    %c0_162 = arith.constant 0 : index
    %427 = vector.load %arg16[%c140_161, %c0_162] : memref<196x64xf32, #tpu.memory_space<vmem>>, vector<14x64xf32>
    %428 = vector.extract_strided_slice %427 {offsets = [0, 0], sizes = [6, 64], strides = [1, 1]} : vector<14x64xf32> to vector<6x64xf32>
    %429 = vector.extract_strided_slice %427 {offsets = [1, 0], sizes = [6, 64], strides = [1, 1]} : vector<14x64xf32> to vector<6x64xf32>
    %430 = vector.extract_strided_slice %427 {offsets = [7, 0], sizes = [6, 64], strides = [1, 1]} : vector<14x64xf32> to vector<6x64xf32>
    %431 = vector.extract_strided_slice %427 {offsets = [8, 0], sizes = [6, 64], strides = [1, 1]} : vector<14x64xf32> to vector<6x64xf32>
    %c154_163 = arith.constant 154 : index
    %c0_164 = arith.constant 0 : index
    %432 = vector.load %arg16[%c154_163, %c0_164] : memref<196x64xf32, #tpu.memory_space<vmem>>, vector<14x64xf32>
    %433 = vector.extract_strided_slice %432 {offsets = [0, 0], sizes = [6, 64], strides = [1, 1]} : vector<14x64xf32> to vector<6x64xf32>
    %434 = vector.extract_strided_slice %432 {offsets = [1, 0], sizes = [6, 64], strides = [1, 1]} : vector<14x64xf32> to vector<6x64xf32>
    %435 = vector.extract_strided_slice %432 {offsets = [7, 0], sizes = [6, 64], strides = [1, 1]} : vector<14x64xf32> to vector<6x64xf32>
    %436 = vector.extract_strided_slice %432 {offsets = [8, 0], sizes = [6, 64], strides = [1, 1]} : vector<14x64xf32> to vector<6x64xf32>
    %437 = tpu.concatenate %418, %419, %420, %421, %423, %424, %425, %426, %428, %429, %430, %431, %433, %434, %435, %436 in 1 : vector<6x64xf32>, vector<6x64xf32>, vector<6x64xf32>, vector<6x64xf32>, vector<6x64xf32>, vector<6x64xf32>, vector<6x64xf32>, vector<6x64xf32>, vector<6x64xf32>, vector<6x64xf32>, vector<6x64xf32>, vector<6x64xf32>, vector<6x64xf32>, vector<6x64xf32>, vector<6x64xf32>, vector<6x64xf32> -> vector<6x1024xf32>
    %c24 = arith.constant 24 : index
    %c0_165 = arith.constant 0 : index
    %438 = vector.load %arg19[%c24, %c0_165] : memref<36x1024xf32, #tpu.memory_space<vmem>>, vector<6x1024xf32>
    tpu.vector_store %arg19[%c24, %c0_165], %437 {strides = array<i32>} : memref<36x1024xf32, #tpu.memory_space<vmem>>, vector<6x1024xf32>,
    %c140_166 = arith.constant 140 : index
    %c0_167 = arith.constant 0 : index
    %439 = vector.load %arg16[%c140_166, %c0_167] : memref<196x64xf32, #tpu.memory_space<vmem>>, vector<14x64xf32>
    %440 = vector.extract_strided_slice %439 {offsets = [0, 0], sizes = [6, 64], strides = [1, 1]} : vector<14x64xf32> to vector<6x64xf32>
    %441 = vector.extract_strided_slice %439 {offsets = [1, 0], sizes = [6, 64], strides = [1, 1]} : vector<14x64xf32> to vector<6x64xf32>
    %442 = vector.extract_strided_slice %439 {offsets = [7, 0], sizes = [6, 64], strides = [1, 1]} : vector<14x64xf32> to vector<6x64xf32>
    %443 = vector.extract_strided_slice %439 {offsets = [8, 0], sizes = [6, 64], strides = [1, 1]} : vector<14x64xf32> to vector<6x64xf32>
    %c154_168 = arith.constant 154 : index
    %c0_169 = arith.constant 0 : index
    %444 = vector.load %arg16[%c154_168, %c0_169] : memref<196x64xf32, #tpu.memory_space<vmem>>, vector<14x64xf32>
    %445 = vector.extract_strided_slice %444 {offsets = [0, 0], sizes = [6, 64], strides = [1, 1]} : vector<14x64xf32> to vector<6x64xf32>
    %446 = vector.extract_strided_slice %444 {offsets = [1, 0], sizes = [6, 64], strides = [1, 1]} : vector<14x64xf32> to vector<6x64xf32>
    %447 = vector.extract_strided_slice %444 {offsets = [7, 0], sizes = [6, 64], strides = [1, 1]} : vector<14x64xf32> to vector<6x64xf32>
    %448 = vector.extract_strided_slice %444 {offsets = [8, 0], sizes = [6, 64], strides = [1, 1]} : vector<14x64xf32> to vector<6x64xf32>
    %c168_170 = arith.constant 168 : index
    %c0_171 = arith.constant 0 : index
    %449 = vector.load %arg16[%c168_170, %c0_171] : memref<196x64xf32, #tpu.memory_space<vmem>>, vector<14x64xf32>
    %450 = vector.extract_strided_slice %449 {offsets = [0, 0], sizes = [6, 64], strides = [1, 1]} : vector<14x64xf32> to vector<6x64xf32>
    %451 = vector.extract_strided_slice %449 {offsets = [1, 0], sizes = [6, 64], strides = [1, 1]} : vector<14x64xf32> to vector<6x64xf32>
    %452 = vector.extract_strided_slice %449 {offsets = [7, 0], sizes = [6, 64], strides = [1, 1]} : vector<14x64xf32> to vector<6x64xf32>
    %453 = vector.extract_strided_slice %449 {offsets = [8, 0], sizes = [6, 64], strides = [1, 1]} : vector<14x64xf32> to vector<6x64xf32>
    %c182_172 = arith.constant 182 : index
    %c0_173 = arith.constant 0 : index
    %454 = vector.load %arg16[%c182_172, %c0_173] : memref<196x64xf32, #tpu.memory_space<vmem>>, vector<14x64xf32>
    %455 = vector.extract_strided_slice %454 {offsets = [0, 0], sizes = [6, 64], strides = [1, 1]} : vector<14x64xf32> to vector<6x64xf32>
    %456 = vector.extract_strided_slice %454 {offsets = [1, 0], sizes = [6, 64], strides = [1, 1]} : vector<14x64xf32> to vector<6x64xf32>
    %457 = vector.extract_strided_slice %454 {offsets = [7, 0], sizes = [6, 64], strides = [1, 1]} : vector<14x64xf32> to vector<6x64xf32>
    %458 = vector.extract_strided_slice %454 {offsets = [8, 0], sizes = [6, 64], strides = [1, 1]} : vector<14x64xf32> to vector<6x64xf32>
    %459 = tpu.concatenate %440, %441, %442, %443, %445, %446, %447, %448, %450, %451, %452, %453, %455, %456, %457, %458 in 1 : vector<6x64xf32>, vector<6x64xf32>, vector<6x64xf32>, vector<6x64xf32>, vector<6x64xf32>, vector<6x64xf32>, vector<6x64xf32>, vector<6x64xf32>, vector<6x64xf32>, vector<6x64xf32>, vector<6x64xf32>, vector<6x64xf32>, vector<6x64xf32>, vector<6x64xf32>, vector<6x64xf32>, vector<6x64xf32> -> vector<6x1024xf32>
    %c30 = arith.constant 30 : index
    %c0_174 = arith.constant 0 : index
    %460 = vector.load %arg19[%c30, %c0_174] : memref<36x1024xf32, #tpu.memory_space<vmem>>, vector<6x1024xf32>
    tpu.vector_store %arg19[%c30, %c0_174], %459 {strides = array<i32>} : memref<36x1024xf32, #tpu.memory_space<vmem>>, vector<6x1024xf32>,
    %c0_175 = arith.constant 0 : index
    %c0_176 = arith.constant 0 : index
    %461 = vector.load %arg9[%c0_175, %c0_176] : memref<36x36xf32, #tpu.memory_space<vmem>>, vector<36x36xf32>
    %c0_177 = arith.constant 0 : index
    %c0_178 = arith.constant 0 : index
    %462 = vector.load %arg19[%c0_177, %c0_178] : memref<36x1024xf32, #tpu.memory_space<vmem>>, vector<36x1024xf32>
    %c0_179 = arith.constant 0 : index
    %c0_180 = arith.constant 0 : index
    %463 = vector.load %arg7[%c0_179, %c0_180] : memref<1024x128xf32, #tpu.memory_space<vmem>>, vector<1024x128xf32>
    %cst_181 = arith.constant dense<0.000000e+00> : vector<36x128xf32>
    %464 = tpu.matmul %462, %463, %cst_181 {dimension_numbers = #tpu.dot_dimension_numbers<[1], [0], [0], [1], [0, 0, 1, 1], [], []>} : vector<36x1024xf32>, vector<1024x128xf32>, vector<36x128xf32> -> vector<36x128xf32>
    %c0_182 = arith.constant 0 : index
    %c0_183 = arith.constant 0 : index
    %465 = vector.load %arg8[%c0_182, %c0_183] : memref<1x128xf32, #tpu.memory_space<vmem>>, vector<1x128xf32>
    %466 = vector.broadcast %465 : vector<1x128xf32> to vector<36x128xf32>
    %467 = arith.addf %464, %466 : vector<36x128xf32>
    %cst_184 = arith.constant 0.000000e+00 : f32
    %468 = vector.broadcast %cst_184 : f32 to vector<36x128xf32>
    %469 = arith.maximumf %467, %468 : vector<36x128xf32>
    %cst_185 = arith.constant dense<0.000000e+00> : vector<36x128xf32>
    %470 = tpu.matmul %461, %469, %cst_185 {dimension_numbers = #tpu.dot_dimension_numbers<[1], [0], [0], [1], [0, 0, 1, 1], [], []>} : vector<36x36xf32>, vector<36x128xf32>, vector<36x128xf32> -> vector<36x128xf32>
    %c0_186 = arith.constant 0 : index
    %c0_187 = arith.constant 0 : index
    %471 = vector.load %arg17[%c0_186, %c0_187] : memref<36x128xf32, #tpu.memory_space<vmem>>, vector<36x128xf32>
    tpu.vector_store %arg17[%c0_186, %c0_187], %470 {strides = array<i32>} : memref<36x128xf32, #tpu.memory_space<vmem>>, vector<36x128xf32>,
    %c0_188 = arith.constant 0 : index
    %c0_189 = arith.constant 0 : index
    %472 = vector.load %arg17[%c0_188, %c0_189] : memref<36x128xf32, #tpu.memory_space<vmem>>, vector<6x128xf32>
    %473 = vector.extract_strided_slice %472 {offsets = [0, 0], sizes = [2, 128], strides = [1, 1]} : vector<6x128xf32> to vector<2x128xf32>
    %474 = vector.extract_strided_slice %472 {offsets = [1, 0], sizes = [2, 128], strides = [1, 1]} : vector<6x128xf32> to vector<2x128xf32>
    %475 = vector.extract_strided_slice %472 {offsets = [3, 0], sizes = [2, 128], strides = [1, 1]} : vector<6x128xf32> to vector<2x128xf32>
    %476 = vector.extract_strided_slice %472 {offsets = [4, 0], sizes = [2, 128], strides = [1, 1]} : vector<6x128xf32> to vector<2x128xf32>
    %c6_190 = arith.constant 6 : index
    %c0_191 = arith.constant 0 : index
    %477 = vector.load %arg17[%c6_190, %c0_191] : memref<36x128xf32, #tpu.memory_space<vmem>>, vector<6x128xf32>
    %478 = vector.extract_strided_slice %477 {offsets = [0, 0], sizes = [2, 128], strides = [1, 1]} : vector<6x128xf32> to vector<2x128xf32>
    %479 = vector.extract_strided_slice %477 {offsets = [1, 0], sizes = [2, 128], strides = [1, 1]} : vector<6x128xf32> to vector<2x128xf32>
    %480 = vector.extract_strided_slice %477 {offsets = [3, 0], sizes = [2, 128], strides = [1, 1]} : vector<6x128xf32> to vector<2x128xf32>
    %481 = vector.extract_strided_slice %477 {offsets = [4, 0], sizes = [2, 128], strides = [1, 1]} : vector<6x128xf32> to vector<2x128xf32>
    %c12_192 = arith.constant 12 : index
    %c0_193 = arith.constant 0 : index
    %482 = vector.load %arg17[%c12_192, %c0_193] : memref<36x128xf32, #tpu.memory_space<vmem>>, vector<6x128xf32>
    %483 = vector.extract_strided_slice %482 {offsets = [0, 0], sizes = [2, 128], strides = [1, 1]} : vector<6x128xf32> to vector<2x128xf32>
    %484 = vector.extract_strided_slice %482 {offsets = [1, 0], sizes = [2, 128], strides = [1, 1]} : vector<6x128xf32> to vector<2x128xf32>
    %485 = vector.extract_strided_slice %482 {offsets = [3, 0], sizes = [2, 128], strides = [1, 1]} : vector<6x128xf32> to vector<2x128xf32>
    %486 = vector.extract_strided_slice %482 {offsets = [4, 0], sizes = [2, 128], strides = [1, 1]} : vector<6x128xf32> to vector<2x128xf32>
    %c18_194 = arith.constant 18 : index
    %c0_195 = arith.constant 0 : index
    %487 = vector.load %arg17[%c18_194, %c0_195] : memref<36x128xf32, #tpu.memory_space<vmem>>, vector<6x128xf32>
    %488 = vector.extract_strided_slice %487 {offsets = [0, 0], sizes = [2, 128], strides = [1, 1]} : vector<6x128xf32> to vector<2x128xf32>
    %489 = vector.extract_strided_slice %487 {offsets = [1, 0], sizes = [2, 128], strides = [1, 1]} : vector<6x128xf32> to vector<2x128xf32>
    %490 = vector.extract_strided_slice %487 {offsets = [3, 0], sizes = [2, 128], strides = [1, 1]} : vector<6x128xf32> to vector<2x128xf32>
    %491 = vector.extract_strided_slice %487 {offsets = [4, 0], sizes = [2, 128], strides = [1, 1]} : vector<6x128xf32> to vector<2x128xf32>
    %492 = tpu.concatenate %473, %474, %475, %476, %478, %479, %480, %481, %483, %484, %485, %486, %488, %489, %490, %491 in 1 : vector<2x128xf32>, vector<2x128xf32>, vector<2x128xf32>, vector<2x128xf32>, vector<2x128xf32>, vector<2x128xf32>, vector<2x128xf32>, vector<2x128xf32>, vector<2x128xf32>, vector<2x128xf32>, vector<2x128xf32>, vector<2x128xf32>, vector<2x128xf32>, vector<2x128xf32>, vector<2x128xf32>, vector<2x128xf32> -> vector<2x2048xf32>
    %c0_196 = arith.constant 0 : index
    %c0_197 = arith.constant 0 : index
    %493 = vector.load %arg20[%c0_196, %c0_197] : memref<4x2048xf32, #tpu.memory_space<vmem>>, vector<2x2048xf32>
    tpu.vector_store %arg20[%c0_196, %c0_197], %492 {strides = array<i32>} : memref<4x2048xf32, #tpu.memory_space<vmem>>, vector<2x2048xf32>,
    %c12_198 = arith.constant 12 : index
    %c0_199 = arith.constant 0 : index
    %494 = vector.load %arg17[%c12_198, %c0_199] : memref<36x128xf32, #tpu.memory_space<vmem>>, vector<6x128xf32>
    %495 = vector.extract_strided_slice %494 {offsets = [0, 0], sizes = [2, 128], strides = [1, 1]} : vector<6x128xf32> to vector<2x128xf32>
    %496 = vector.extract_strided_slice %494 {offsets = [1, 0], sizes = [2, 128], strides = [1, 1]} : vector<6x128xf32> to vector<2x128xf32>
    %497 = vector.extract_strided_slice %494 {offsets = [3, 0], sizes = [2, 128], strides = [1, 1]} : vector<6x128xf32> to vector<2x128xf32>
    %498 = vector.extract_strided_slice %494 {offsets = [4, 0], sizes = [2, 128], strides = [1, 1]} : vector<6x128xf32> to vector<2x128xf32>
    %c18_200 = arith.constant 18 : index
    %c0_201 = arith.constant 0 : index
    %499 = vector.load %arg17[%c18_200, %c0_201] : memref<36x128xf32, #tpu.memory_space<vmem>>, vector<6x128xf32>
    %500 = vector.extract_strided_slice %499 {offsets = [0, 0], sizes = [2, 128], strides = [1, 1]} : vector<6x128xf32> to vector<2x128xf32>
    %501 = vector.extract_strided_slice %499 {offsets = [1, 0], sizes = [2, 128], strides = [1, 1]} : vector<6x128xf32> to vector<2x128xf32>
    %502 = vector.extract_strided_slice %499 {offsets = [3, 0], sizes = [2, 128], strides = [1, 1]} : vector<6x128xf32> to vector<2x128xf32>
    %503 = vector.extract_strided_slice %499 {offsets = [4, 0], sizes = [2, 128], strides = [1, 1]} : vector<6x128xf32> to vector<2x128xf32>
    %c24_202 = arith.constant 24 : index
    %c0_203 = arith.constant 0 : index
    %504 = vector.load %arg17[%c24_202, %c0_203] : memref<36x128xf32, #tpu.memory_space<vmem>>, vector<6x128xf32>
    %505 = vector.extract_strided_slice %504 {offsets = [0, 0], sizes = [2, 128], strides = [1, 1]} : vector<6x128xf32> to vector<2x128xf32>
    %506 = vector.extract_strided_slice %504 {offsets = [1, 0], sizes = [2, 128], strides = [1, 1]} : vector<6x128xf32> to vector<2x128xf32>
    %507 = vector.extract_strided_slice %504 {offsets = [3, 0], sizes = [2, 128], strides = [1, 1]} : vector<6x128xf32> to vector<2x128xf32>
    %508 = vector.extract_strided_slice %504 {offsets = [4, 0], sizes = [2, 128], strides = [1, 1]} : vector<6x128xf32> to vector<2x128xf32>
    %c30_204 = arith.constant 30 : index
    %c0_205 = arith.constant 0 : index
    %509 = vector.load %arg17[%c30_204, %c0_205] : memref<36x128xf32, #tpu.memory_space<vmem>>, vector<6x128xf32>
    %510 = vector.extract_strided_slice %509 {offsets = [0, 0], sizes = [2, 128], strides = [1, 1]} : vector<6x128xf32> to vector<2x128xf32>
    %511 = vector.extract_strided_slice %509 {offsets = [1, 0], sizes = [2, 128], strides = [1, 1]} : vector<6x128xf32> to vector<2x128xf32>
    %512 = vector.extract_strided_slice %509 {offsets = [3, 0], sizes = [2, 128], strides = [1, 1]} : vector<6x128xf32> to vector<2x128xf32>
    %513 = vector.extract_strided_slice %509 {offsets = [4, 0], sizes = [2, 128], strides = [1, 1]} : vector<6x128xf32> to vector<2x128xf32>
    %514 = tpu.concatenate %495, %496, %497, %498, %500, %501, %502, %503, %505, %506, %507, %508, %510, %511, %512, %513 in 1 : vector<2x128xf32>, vector<2x128xf32>, vector<2x128xf32>, vector<2x128xf32>, vector<2x128xf32>, vector<2x128xf32>, vector<2x128xf32>, vector<2x128xf32>, vector<2x128xf32>, vector<2x128xf32>, vector<2x128xf32>, vector<2x128xf32>, vector<2x128xf32>, vector<2x128xf32>, vector<2x128xf32>, vector<2x128xf32> -> vector<2x2048xf32>
    %c2 = arith.constant 2 : index
    %c0_206 = arith.constant 0 : index
    %515 = vector.load %arg20[%c2, %c0_206] : memref<4x2048xf32, #tpu.memory_space<vmem>>, vector<2x2048xf32>
    tpu.vector_store %arg20[%c2, %c0_206], %514 {strides = array<i32>} : memref<4x2048xf32, #tpu.memory_space<vmem>>, vector<2x2048xf32>,
    %c0_207 = arith.constant 0 : index
    %c0_208 = arith.constant 0 : index
    %516 = vector.load %arg20[%c0_207, %c0_208] : memref<4x2048xf32, #tpu.memory_space<vmem>>, vector<4x2048xf32>
    %c0_209 = arith.constant 0 : index
    %c0_210 = arith.constant 0 : index
    %517 = vector.load %arg10[%c0_209, %c0_210] : memref<2048x256xf32, #tpu.memory_space<vmem>>, vector<2048x256xf32>
    %cst_211 = arith.constant dense<0.000000e+00> : vector<4x256xf32>
    %518 = tpu.matmul %516, %517, %cst_211 {dimension_numbers = #tpu.dot_dimension_numbers<[1], [0], [0], [1], [0, 0, 1, 1], [], []>} : vector<4x2048xf32>, vector<2048x256xf32>, vector<4x256xf32> -> vector<4x256xf32>
    %c0_212 = arith.constant 0 : index
    %c0_213 = arith.constant 0 : index
    %519 = vector.load %arg11[%c0_212, %c0_213] : memref<1x256xf32, #tpu.memory_space<vmem>>, vector<1x256xf32>
    %520 = vector.broadcast %519 : vector<1x256xf32> to vector<4x256xf32>
    %521 = arith.addf %518, %520 : vector<4x256xf32>
    %cst_214 = arith.constant 0.000000e+00 : f32
    %522 = vector.broadcast %cst_214 : f32 to vector<4x256xf32>
    %523 = arith.maximumf %521, %522 : vector<4x256xf32>
    %c0_215 = arith.constant 0 : index
    %c0_216 = arith.constant 0 : index
    %524 = vector.load %arg13[%c0_215, %c0_216] : memref<1x128xf32, #tpu.memory_space<vmem>>, vector<1x128xf32>
    %525 = vector.extract_strided_slice %523 {offsets = [0, 0], sizes = [1, 256], strides = [1, 1]} : vector<4x256xf32> to vector<1x256xf32>
    %c0_217 = arith.constant 0 : index
    %c0_218 = arith.constant 0 : index
    %c0_219 = arith.constant 0 : index
    %526 = vector.load %arg12[%c0_217, %c0_218, %c0_219] : memref<4x256x128xf32, #tpu.memory_space<vmem>>, vector<1x256x128xf32>
    %527 = vector.shape_cast %526 : vector<1x256x128xf32> to vector<256x128xf32>
    %cst_220 = arith.constant dense<0.000000e+00> : vector<1x128xf32>
    %528 = tpu.matmul %525, %527, %cst_220 {dimension_numbers = #tpu.dot_dimension_numbers<[1], [0], [0], [1], [0, 0, 1, 1], [], []>} : vector<1x256xf32>, vector<256x128xf32>, vector<1x128xf32> -> vector<1x128xf32>
    %529 = arith.addf %524, %528 : vector<1x128xf32>
    %530 = vector.extract_strided_slice %523 {offsets = [1, 0], sizes = [1, 256], strides = [1, 1]} : vector<4x256xf32> to vector<1x256xf32>
    %c1 = arith.constant 1 : index
    %c0_221 = arith.constant 0 : index
    %c0_222 = arith.constant 0 : index
    %531 = vector.load %arg12[%c1, %c0_221, %c0_222] : memref<4x256x128xf32, #tpu.memory_space<vmem>>, vector<1x256x128xf32>
    %532 = vector.shape_cast %531 : vector<1x256x128xf32> to vector<256x128xf32>
    %cst_223 = arith.constant dense<0.000000e+00> : vector<1x128xf32>
    %533 = tpu.matmul %530, %532, %cst_223 {dimension_numbers = #tpu.dot_dimension_numbers<[1], [0], [0], [1], [0, 0, 1, 1], [], []>} : vector<1x256xf32>, vector<256x128xf32>, vector<1x128xf32> -> vector<1x128xf32>
    %534 = arith.addf %529, %533 : vector<1x128xf32>
    %535 = vector.extract_strided_slice %523 {offsets = [2, 0], sizes = [1, 256], strides = [1, 1]} : vector<4x256xf32> to vector<1x256xf32>
    %c2_224 = arith.constant 2 : index
    %c0_225 = arith.constant 0 : index
    %c0_226 = arith.constant 0 : index
    %536 = vector.load %arg12[%c2_224, %c0_225, %c0_226] : memref<4x256x128xf32, #tpu.memory_space<vmem>>, vector<1x256x128xf32>
    %537 = vector.shape_cast %536 : vector<1x256x128xf32> to vector<256x128xf32>
    %cst_227 = arith.constant dense<0.000000e+00> : vector<1x128xf32>
    %538 = tpu.matmul %535, %537, %cst_227 {dimension_numbers = #tpu.dot_dimension_numbers<[1], [0], [0], [1], [0, 0, 1, 1], [], []>} : vector<1x256xf32>, vector<256x128xf32>, vector<1x128xf32> -> vector<1x128xf32>
    %539 = arith.addf %534, %538 : vector<1x128xf32>
    %540 = vector.extract_strided_slice %523 {offsets = [3, 0], sizes = [1, 256], strides = [1, 1]} : vector<4x256xf32> to vector<1x256xf32>
    %c3 = arith.constant 3 : index
    %c0_228 = arith.constant 0 : index
    %c0_229 = arith.constant 0 : index
    %541 = vector.load %arg12[%c3, %c0_228, %c0_229] : memref<4x256x128xf32, #tpu.memory_space<vmem>>, vector<1x256x128xf32>
    %542 = vector.shape_cast %541 : vector<1x256x128xf32> to vector<256x128xf32>
    %cst_230 = arith.constant dense<0.000000e+00> : vector<1x128xf32>
    %543 = tpu.matmul %540, %542, %cst_230 {dimension_numbers = #tpu.dot_dimension_numbers<[1], [0], [0], [1], [0, 0, 1, 1], [], []>} : vector<1x256xf32>, vector<256x128xf32>, vector<1x128xf32> -> vector<1x128xf32>
    %544 = arith.addf %539, %543 : vector<1x128xf32>
    %c0_231 = arith.constant 0 : index
    %c0_232 = arith.constant 0 : index
    %c0_233 = arith.constant 0 : index
    %545 = vector.load %arg14[%c0_231, %c0_232, %c0_233] : memref<1x1x128xf32, #tpu.memory_space<vmem>>, vector<1x1x128xf32>
    %546 = vector.shape_cast %545 : vector<1x1x128xf32> to vector<1x128xf32>
    %547 = vector.shape_cast %544 : vector<1x128xf32> to vector<1x1x128xf32>
    tpu.vector_store %arg14[%c0_231, %c0_232, %c0_233], %547 {strides = array<i32>} : memref<1x1x128xf32, #tpu.memory_space<vmem>>, vector<1x1x128xf32>,
    return
  }
  func.func @transform_0(%arg0: i32) -> (i32, i32, i32) {
    %c0_i32 = arith.constant 0 : i32
    %c0_i32_0 = arith.constant 0 : i32
    %c0_i32_1 = arith.constant 0 : i32
    return %arg0, %c0_i32, %c0_i32_0 : i32, i32, i32
  }
  func.func @transform_1(%arg0: i32) -> (i32, i32) {
    %c0_i32 = arith.constant 0 : i32
    %c0_i32_0 = arith.constant 0 : i32
    %c0_i32_1 = arith.constant 0 : i32
    return %c0_i32, %c0_i32_0 : i32, i32
  }
  func.func @transform_2(%arg0: i32) -> (i32, i32) {
    %c0_i32 = arith.constant 0 : i32
    %c0_i32_0 = arith.constant 0 : i32
    %c0_i32_1 = arith.constant 0 : i32
    return %c0_i32, %c0_i32_0 : i32, i32
  }
  func.func @transform_3(%arg0: i32) -> (i32, i32) {
    %c0_i32 = arith.constant 0 : i32
    %c0_i32_0 = arith.constant 0 : i32
    %c0_i32_1 = arith.constant 0 : i32
    return %c0_i32, %c0_i32_0 : i32, i32
  }
  func.func @transform_4(%arg0: i32) -> (i32, i32) {
    %c0_i32 = arith.constant 0 : i32
    %c0_i32_0 = arith.constant 0 : i32
    %c0_i32_1 = arith.constant 0 : i32
    return %c0_i32, %c0_i32_0 : i32, i32
  }
  func.func @transform_5(%arg0: i32) -> (i32, i32) {
    %c0_i32 = arith.constant 0 : i32
    %c0_i32_0 = arith.constant 0 : i32
    %c0_i32_1 = arith.constant 0 : i32
    return %c0_i32, %c0_i32_0 : i32, i32
  }
  func.func @transform_6(%arg0: i32) -> (i32, i32) {
    %c0_i32 = arith.constant 0 : i32
    %c0_i32_0 = arith.constant 0 : i32
    %c0_i32_1 = arith.constant 0 : i32
    return %c0_i32, %c0_i32_0 : i32, i32
  }
  func.func @transform_7(%arg0: i32) -> (i32, i32) {
    %c0_i32 = arith.constant 0 : i32
    %c0_i32_0 = arith.constant 0 : i32
    %c0_i32_1 = arith.constant 0 : i32
    return %c0_i32, %c0_i32_0 : i32, i32
  }
  func.func @transform_8(%arg0: i32) -> (i32, i32) {
    %c0_i32 = arith.constant 0 : i32
    %c0_i32_0 = arith.constant 0 : i32
    %c0_i32_1 = arith.constant 0 : i32
    return %c0_i32, %c0_i32_0 : i32, i32
  }
  func.func @transform_9(%arg0: i32) -> (i32, i32) {
    %c0_i32 = arith.constant 0 : i32
    %c0_i32_0 = arith.constant 0 : i32
    %c0_i32_1 = arith.constant 0 : i32
    return %c0_i32, %c0_i32_0 : i32, i32
  }
  func.func @transform_10(%arg0: i32) -> (i32, i32) {
    %c0_i32 = arith.constant 0 : i32
    %c0_i32_0 = arith.constant 0 : i32
    %c0_i32_1 = arith.constant 0 : i32
    return %c0_i32, %c0_i32_0 : i32, i32
  }
  func.func @transform_11(%arg0: i32) -> (i32, i32, i32) {
    %c0_i32 = arith.constant 0 : i32
    %c0_i32_0 = arith.constant 0 : i32
    %c0_i32_1 = arith.constant 0 : i32
    %c0_i32_2 = arith.constant 0 : i32
    return %c0_i32, %c0_i32_0, %c0_i32_1 : i32, i32, i32
  }
  func.func @transform_12(%arg0: i32) -> (i32, i32) {
    %c0_i32 = arith.constant 0 : i32
    %c0_i32_0 = arith.constant 0 : i32
    %c0_i32_1 = arith.constant 0 : i32
    return %c0_i32, %c0_i32_0 : i32, i32
  }
  func.func @transform_13(%arg0: i32) -> (i32, i32, i32) {
    %c0_i32 = arith.constant 0 : i32
    %c0_i32_0 = arith.constant 0 : i32
    %c0_i32_1 = arith.constant 0 : i32
    return %arg0, %c0_i32, %c0_i32_0 : i32, i32, i32
  }
}

</mosaic_0001>

<llo_original>
// kernel: encoder_forward.1
$region0: #{encoder_forward.1}
  #allocation0 [shape = 'u32[]', space=smem, size = 0x4, offset = 0x4, fixed_abs, tag = 'smem constant byte address 0x4 - core index']
  #allocation1 [shape = 'u32[144,128]{1,0:T(1,128)}', space=vmem, size = 0x12000, scoped, tag = 'internal scratch']
  #allocation2 [shape = 'f32[992,32]{1,0:T(8,128)}', space=vmem, size = 0x7c000, scoped, tag = 'scratch operand']
  #allocation3 [shape = 'f32[196,64]{1,0:T(8,128)}', space=vmem, size = 0x19000, scoped, tag = 'scratch operand']
  #allocation4 [shape = 'f32[36,128]{1,0:T(8,128)}', space=vmem, size = 0x5000, scoped, tag = 'scratch operand']
  #allocation5 [shape = 'f32[196,512]{1,0:T(8,128)}', space=vmem, size = 0x64000, scoped, tag = 'scratch operand']
  #allocation6 [shape = 'f32[36,1024]{1,0:T(8,128)}', space=vmem, size = 0x28000, scoped, tag = 'scratch operand']
  #allocation7 [shape = 'f32[4,2048]{1,0:T(4,128)}', space=vmem, size = 0x8000, scoped, tag = 'scratch operand']
  %s0 = inlined_call_operand.vmem [shape: f32[2,992,128], index: 0, kind: input, shape index: {}]
  %s1 = inlined_call_operand.vmem [shape: f32[128,32], index: 1, kind: input, shape index: {}]
  %s2 = inlined_call_operand.vmem [shape: f32[1,32], index: 2, kind: input, shape index: {}]
  %s3 = inlined_call_operand.vmem [shape: f32[512,64], index: 3, kind: input, shape index: {}]
  %s4 = inlined_call_operand.vmem [shape: f32[1,64], index: 4, kind: input, shape index: {}]
  %s5 = inlined_call_operand.vmem [shape: f32[196,196], index: 5, kind: input, shape index: {}]
  %s6 = inlined_call_operand.vmem [shape: f32[1024,128], index: 6, kind: input, shape index: {}]
  %s7 = inlined_call_operand.vmem [shape: f32[1,128], index: 7, kind: input, shape index: {}]
  %s8 = inlined_call_operand.vmem [shape: f32[36,36], index: 8, kind: input, shape index: {}]
  %s9 = inlined_call_operand.vmem [shape: f32[2048,256], index: 9, kind: input, shape index: {}]
  %s10 = inlined_call_operand.vmem [shape: f32[1,256], index: 10, kind: input, shape index: {}]
  %s11 = inlined_call_operand.vmem [shape: f32[4,256,128], index: 11, kind: input, shape index: {}]
  %s12 = inlined_call_operand.vmem [shape: f32[1,128], index: 12, kind: input, shape index: {}]
  %s13 = inlined_call_operand.vmem [shape: f32[2,1,128], index: 13, kind: output, shape index: {}]
  %s14 = sld [smem:[#allocation0]]
  $region85: #{encoder_forward.1} parent=0
    _
  %s16 = ssub.s32 1, %s14
  %s17 = scalar_select 0, %s16, %s14
  loop: start=0, step=1, limit=4
  $region2: #{encoder_forward.1} parent=0 // loop_pre_header
    _
  $region3: #{encoder_forward.1} parent=0 // loop_header
    %s19 = sphi 0, %s23
    %p20 = scmp.ge.s32.totalorder %s19, 4
    %s29 = sphi 0, %s31
    %s32 = sphi 0, %s29
    %s33 = sphi 0, %s32
    %s49 = sphi 0, %s33
    %s53 = sphi 0, %s53
    %s55 = sphi 0, %s53
    %s56 = sphi 0, %s55
    %s70 = sphi 0, %s56
    %s74 = sphi 0, %s74
    %s76 = sphi 0, %s74
    %s77 = sphi 0, %s76
    %s91 = sphi 0, %s77
    %s95 = sphi 0, %s95
    %s97 = sphi 0, %s95
    %s98 = sphi 0, %s97
    %s112 = sphi 0, %s98
    %s116 = sphi 0, %s116
    %s118 = sphi 0, %s116
    %s119 = sphi 0, %s118
    %s133 = sphi 0, %s119
    %s137 = sphi 0, %s137
    %s139 = sphi 0, %s137
    %s140 = sphi 0, %s139
    %s154 = sphi 0, %s140
    %s158 = sphi 0, %s158
    %s160 = sphi 0, %s158
    %s161 = sphi 0, %s160
    %s175 = sphi 0, %s161
    %s179 = sphi 0, %s179
    %s181 = sphi 0, %s179
    %s182 = sphi 0, %s181
    %s196 = sphi 0, %s182
    %s200 = sphi 0, %s200
    %s202 = sphi 0, %s200
    %s203 = sphi 0, %s202
    %s217 = sphi 0, %s203
    %s221 = sphi 0, %s221
    %s223 = sphi 0, %s221
    %s224 = sphi 0, %s223
    %s238 = sphi 0, %s224
    %s242 = sphi 0, %s242
    %s244 = sphi 0, %s242
    %s245 = sphi 0, %s244
    %s259 = sphi 0, %s245
    %s263 = sphi 0, %s263
    %s265 = sphi 0, %s263
    %s266 = sphi 0, %s265
    %s280 = sphi 0, %s266
    %s284 = sphi 0, %s284
    %s286 = sphi 0, %s284
    %s287 = sphi 0, %s286
    %s301 = sphi 0, %s287
    %s307 = sphi 0, %s309
    %s310 = sphi 0, %s307
    %s311 = sphi 0, %s310
    %s327 = sphi 0, %s311
  $region4: #{encoder_forward.1} parent=0 // loop_header_branch
    %22 = sbr.rel (%p20) target = $region8
  $region5: #{encoder_forward.1} parent=0 // loop_body
    %s24 = ssub.s32 %s19, 1
    %s25 = ssub.s32 %s19, 2
    %s26 = sadd.s32 %s19, 1
    %s27 = ssub.s32 %s19, %s26
    %p28 = scmp.eq.s32.totalorder %s27, 0
    %s30 = sadd.s32 %s29, 1
    %s31 = scalar_select %p28, %s29, %s30
    %p34 = pneg %p28
    %p35 = scmp.eq.s32.totalorder %s19, 1
    %p36 = por %p34, %p35
    %p37 = scmp.ne.s32.totalorder %s29, %s32
    %p38 = scmp.eq.s32.totalorder %s19, 0
    %p39 = por %p37, %p38
    %p40 = scmp.ne.s32.totalorder %s29, %s32
    %p41 = scmp.eq.s32.totalorder %s24, 1
    %p42 = por %p40, %p41
    %p43 = scmp.ne.s32.totalorder %s32, %s33
    %p44 = scmp.eq.s32.totalorder %s24, 0
    %p45 = por %p43, %p44
    %p46 = scmp.ne.s32.totalorder %s32, %s33
    %p47 = scmp.eq.s32.totalorder %s25, 1
    %p48 = por %p46, %p47
    %p50 = scmp.ne.s32.totalorder %s33, %s49
    %p51 = scmp.eq.s32.totalorder %s25, 0
    %p52 = por %p50, %p51
    %s54 = sadd.s32 %s53, 1
    %p57 = scmp.eq.s32.totalorder %s19, 1
    %p58 = scmp.ne.s32.totalorder %s53, %s55
    %p59 = scmp.eq.s32.totalorder %s19, 0
    %p60 = por %p58, %p59
    %p61 = scmp.ne.s32.totalorder %s53, %s55
    %p62 = scmp.eq.s32.totalorder %s24, 1
    %p63 = por %p61, %p62
    %p64 = scmp.ne.s32.totalorder %s55, %s56
    %p65 = scmp.eq.s32.totalorder %s24, 0
    %p66 = por %p64, %p65
    %p67 = scmp.ne.s32.totalorder %s55, %s56
    %p68 = scmp.eq.s32.totalorder %s25, 1
    %p69 = por %p67, %p68
    %p71 = scmp.ne.s32.totalorder %s56, %s70
    %p72 = scmp.eq.s32.totalorder %s25, 0
    %p73 = por %p71, %p72
    %s75 = sadd.s32 %s74, 1
    %p78 = scmp.eq.s32.totalorder %s19, 1
    %p79 = scmp.ne.s32.totalorder %s74, %s76
    %p80 = scmp.eq.s32.totalorder %s19, 0
    %p81 = por %p79, %p80
    %p82 = scmp.ne.s32.totalorder %s74, %s76
    %p83 = scmp.eq.s32.totalorder %s24, 1
    %p84 = por %p82, %p83
    %p85 = scmp.ne.s32.totalorder %s76, %s77
    %p86 = scmp.eq.s32.totalorder %s24, 0
    %p87 = por %p85, %p86
    %p88 = scmp.ne.s32.totalorder %s76, %s77
    %p89 = scmp.eq.s32.totalorder %s25, 1
    %p90 = por %p88, %p89
    %p92 = scmp.ne.s32.totalorder %s77, %s91
    %p93 = scmp.eq.s32.totalorder %s25, 0
    %p94 = por %p92, %p93
    %s96 = sadd.s32 %s95, 1
    %p99 = scmp.eq.s32.totalorder %s19, 1
    %p100 = scmp.ne.s32.totalorder %s95, %s97
    %p101 = scmp.eq.s32.totalorder %s19, 0
    %p102 = por %p100, %p101
    %p103 = scmp.ne.s32.totalorder %s95, %s97
    %p104 = scmp.eq.s32.totalorder %s24, 1
    %p105 = por %p103, %p104
    %p106 = scmp.ne.s32.totalorder %s97, %s98
    %p107 = scmp.eq.s32.totalorder %s24, 0
    %p108 = por %p106, %p107
    %p109 = scmp.ne.s32.totalorder %s97, %s98
    %p110 = scmp.eq.s32.totalorder %s25, 1
    %p111 = por %p109, %p110
    %p113 = scmp.ne.s32.totalorder %s98, %s112
    %p114 = scmp.eq.s32.totalorder %s25, 0
    %p115 = por %p113, %p114
    %s117 = sadd.s32 %s116, 1
    %p120 = scmp.eq.s32.totalorder %s19, 1
    %p121 = scmp.ne.s32.totalorder %s116, %s118
    %p122 = scmp.eq.s32.totalorder %s19, 0
    %p123 = por %p121, %p122
    %p124 = scmp.ne.s32.totalorder %s116, %s118
    %p125 = scmp.eq.s32.totalorder %s24, 1
    %p126 = por %p124, %p125
    %p127 = scmp.ne.s32.totalorder %s118, %s119
    %p128 = scmp.eq.s32.totalorder %s24, 0
    %p129 = por %p127, %p128
    %p130 = scmp.ne.s32.totalorder %s118, %s119
    %p131 = scmp.eq.s32.totalorder %s25, 1
    %p132 = por %p130, %p131
    %p134 = scmp.ne.s32.totalorder %s119, %s133
    %p135 = scmp.eq.s32.totalorder %s25, 0
    %p136 = por %p134, %p135
    %s138 = sadd.s32 %s137, 1
    %p141 = scmp.eq.s32.totalorder %s19, 1
    %p142 = scmp.ne.s32.totalorder %s137, %s139
    %p143 = scmp.eq.s32.totalorder %s19, 0
    %p144 = por %p142, %p143
    %p145 = scmp.ne.s32.totalorder %s137, %s139
    %p146 = scmp.eq.s32.totalorder %s24, 1
    %p147 = por %p145, %p146
    %p148 = scmp.ne.s32.totalorder %s139, %s140
    %p149 = scmp.eq.s32.totalorder %s24, 0
    %p150 = por %p148, %p149
    %p151 = scmp.ne.s32.totalorder %s139, %s140
    %p152 = scmp.eq.s32.totalorder %s25, 1
    %p153 = por %p151, %p152
    %p155 = scmp.ne.s32.totalorder %s140, %s154
    %p156 = scmp.eq.s32.totalorder %s25, 0
    %p157 = por %p155, %p156
    %s159 = sadd.s32 %s158, 1
    %p162 = scmp.eq.s32.totalorder %s19, 1
    %p163 = scmp.ne.s32.totalorder %s158, %s160
    %p164 = scmp.eq.s32.totalorder %s19, 0
    %p165 = por %p163, %p164
    %p166 = scmp.ne.s32.totalorder %s158, %s160
    %p167 = scmp.eq.s32.totalorder %s24, 1
    %p168 = por %p166, %p167
    %p169 = scmp.ne.s32.totalorder %s160, %s161
    %p170 = scmp.eq.s32.totalorder %s24, 0
    %p171 = por %p169, %p170
    %p172 = scmp.ne.s32.totalorder %s160, %s161
    %p173 = scmp.eq.s32.totalorder %s25, 1
    %p174 = por %p172, %p173
    %p176 = scmp.ne.s32.totalorder %s161, %s175
    %p177 = scmp.eq.s32.totalorder %s25, 0
    %p178 = por %p176, %p177
    %s180 = sadd.s32 %s179, 1
    %p183 = scmp.eq.s32.totalorder %s19, 1
    %p184 = scmp.ne.s32.totalorder %s179, %s181
    %p185 = scmp.eq.s32.totalorder %s19, 0
    %p186 = por %p184, %p185
    %p187 = scmp.ne.s32.totalorder %s179, %s181
    %p188 = scmp.eq.s32.totalorder %s24, 1
    %p189 = por %p187, %p188
    %p190 = scmp.ne.s32.totalorder %s181, %s182
    %p191 = scmp.eq.s32.totalorder %s24, 0
    %p192 = por %p190, %p191
    %p193 = scmp.ne.s32.totalorder %s181, %s182
    %p194 = scmp.eq.s32.totalorder %s25, 1
    %p195 = por %p193, %p194
    %p197 = scmp.ne.s32.totalorder %s182, %s196
    %p198 = scmp.eq.s32.totalorder %s25, 0
    %p199 = por %p197, %p198
    %s201 = sadd.s32 %s200, 1
    %p204 = scmp.eq.s32.totalorder %s19, 1
    %p205 = scmp.ne.s32.totalorder %s200, %s202
    %p206 = scmp.eq.s32.totalorder %s19, 0
    %p207 = por %p205, %p206
    %p208 = scmp.ne.s32.totalorder %s200, %s202
    %p209 = scmp.eq.s32.totalorder %s24, 1
    %p210 = por %p208, %p209
    %p211 = scmp.ne.s32.totalorder %s202, %s203
    %p212 = scmp.eq.s32.totalorder %s24, 0
    %p213 = por %p211, %p212
    %p214 = scmp.ne.s32.totalorder %s202, %s203
    %p215 = scmp.eq.s32.totalorder %s25, 1
    %p216 = por %p214, %p215
    %p218 = scmp.ne.s32.totalorder %s203, %s217
    %p219 = scmp.eq.s32.totalorder %s25, 0
    %p220 = por %p218, %p219
    %s222 = sadd.s32 %s221, 1
    %p225 = scmp.eq.s32.totalorder %s19, 1
    %p226 = scmp.ne.s32.totalorder %s221, %s223
    %p227 = scmp.eq.s32.totalorder %s19, 0
    %p228 = por %p226, %p227
    %p229 = scmp.ne.s32.totalorder %s221, %s223
    %p230 = scmp.eq.s32.totalorder %s24, 1
    %p231 = por %p229, %p230
    %p232 = scmp.ne.s32.totalorder %s223, %s224
    %p233 = scmp.eq.s32.totalorder %s24, 0
    %p234 = por %p232, %p233
    %p235 = scmp.ne.s32.totalorder %s223, %s224
    %p236 = scmp.eq.s32.totalorder %s25, 1
    %p237 = por %p235, %p236
    %p239 = scmp.ne.s32.totalorder %s224, %s238
    %p240 = scmp.eq.s32.totalorder %s25, 0
    %p241 = por %p239, %p240
    %s243 = sadd.s32 %s242, 1
    %p246 = scmp.eq.s32.totalorder %s19, 1
    %p247 = scmp.ne.s32.totalorder %s242, %s244
    %p248 = scmp.eq.s32.totalorder %s19, 0
    %p249 = por %p247, %p248
    %p250 = scmp.ne.s32.totalorder %s242, %s244
    %p251 = scmp.eq.s32.totalorder %s24, 1
    %p252 = por %p250, %p251
    %p253 = scmp.ne.s32.totalorder %s244, %s245
    %p254 = scmp.eq.s32.totalorder %s24, 0
    %p255 = por %p253, %p254
    %p256 = scmp.ne.s32.totalorder %s244, %s245
    %p257 = scmp.eq.s32.totalorder %s25, 1
    %p258 = por %p256, %p257
    %p260 = scmp.ne.s32.totalorder %s245, %s259
    %p261 = scmp.eq.s32.totalorder %s25, 0
    %p262 = por %p260, %p261
    %s264 = sadd.s32 %s263, 1
    %p267 = scmp.eq.s32.totalorder %s19, 1
    %p268 = scmp.ne.s32.totalorder %s263, %s265
    %p269 = scmp.eq.s32.totalorder %s19, 0
    %p270 = por %p268, %p269
    %p271 = scmp.ne.s32.totalorder %s263, %s265
    %p272 = scmp.eq.s32.totalorder %s24, 1
    %p273 = por %p271, %p272
    %p274 = scmp.ne.s32.totalorder %s265, %s266
    %p275 = scmp.eq.s32.totalorder %s24, 0
    %p276 = por %p274, %p275
    %p277 = scmp.ne.s32.totalorder %s265, %s266
    %p278 = scmp.eq.s32.totalorder %s25, 1
    %p279 = por %p277, %p278
    %p281 = scmp.ne.s32.totalorder %s266, %s280
    %p282 = scmp.eq.s32.totalorder %s25, 0
    %p283 = por %p281, %p282
    %s285 = sadd.s32 %s284, 1
    %p288 = scmp.eq.s32.totalorder %s19, 1
    %p289 = scmp.ne.s32.totalorder %s284, %s286
    %p290 = scmp.eq.s32.totalorder %s19, 0
    %p291 = por %p289, %p290
    %p292 = scmp.ne.s32.totalorder %s284, %s286
    %p293 = scmp.eq.s32.totalorder %s24, 1
    %p294 = por %p292, %p293
    %p295 = scmp.ne.s32.totalorder %s286, %s287
    %p296 = scmp.eq.s32.totalorder %s24, 0
    %p297 = por %p295, %p296
    %p298 = scmp.ne.s32.totalorder %s286, %s287
    %p299 = scmp.eq.s32.totalorder %s25, 1
    %p300 = por %p298, %p299
    %p302 = scmp.ne.s32.totalorder %s287, %s301
    %p303 = scmp.eq.s32.totalorder %s25, 0
    %p304 = por %p302, %p303
    %s305 = ssub.s32 %s19, %s26
    %p306 = scmp.eq.s32.totalorder %s305, 0
    %s308 = sadd.s32 %s307, 1
    %s309 = scalar_select %p306, %s307, %s308
    %p312 = pneg %p306
    %p313 = scmp.eq.s32.totalorder %s19, 1
    %p314 = por %p312, %p313
    %p315 = scmp.ne.s32.totalorder %s307, %s310
    %p316 = scmp.eq.s32.totalorder %s19, 0
    %p317 = por %p315, %p316
    %p318 = scmp.ne.s32.totalorder %s307, %s310
    %p319 = scmp.eq.s32.totalorder %s24, 1
    %p320 = por %p318, %p319
    %p321 = scmp.ne.s32.totalorder %s310, %s311
    %p322 = scmp.eq.s32.totalorder %s24, 0
    %p323 = por %p321, %p322
    %p324 = scmp.ne.s32.totalorder %s310, %s311
    %p325 = scmp.eq.s32.totalorder %s25, 1
    %p326 = por %p324, %p325
    %p328 = scmp.ne.s32.totalorder %s311, %s327
    %p329 = scmp.eq.s32.totalorder %s25, 0
    %p330 = por %p328, %p329
    %p331 = scmp.le.s32.totalorder 1, %s19
    %p332 = scmp.lt.s32.totalorder %s19, 3
    %p333 = pnand %p331, %p332
    %p334 = pneg %p333
    // Predicated region
    $region9: #{encoder_forward.1} parent=5 // pred_check
      _
    $region10: #{encoder_forward.1} parent=5 // pred_check_branch
      %336 = sbr.rel (%p333) target = $region12
    $region11: #{encoder_forward.1} parent=5 // pred_region
      %s337 = ssub.s32 %s19, 1
      // Predicated region
      $region13: #{encoder_forward.1} parent=11 // pred_check
        %p338 = pneg %p66
      $region14: #{encoder_forward.1} parent=11 // pred_check_branch
        %340 = sbr.rel (%p338) target = $region16
      $region15: #{encoder_forward.1} parent=11 // pred_region
        _
      $region16: #{encoder_forward.1} parent=11 // pred_fallthru
        _
      // Predicated region
      $region17: #{encoder_forward.1} parent=11 // pred_check
        %p341 = pneg %p87
      $region18: #{encoder_forward.1} parent=11 // pred_check_branch
        %343 = sbr.rel (%p341) target = $region20
      $region19: #{encoder_forward.1} parent=11 // pred_region
        _
      $region20: #{encoder_forward.1} parent=11 // pred_fallthru
        _
      // Predicated region
      $region21: #{encoder_forward.1} parent=11 // pred_check
        %p344 = pneg %p108
      $region22: #{encoder_forward.1} parent=11 // pred_check_branch
        %346 = sbr.rel (%p344) target = $region24
      $region23: #{encoder_forward.1} parent=11 // pred_region
        _
      $region24: #{encoder_forward.1} parent=11 // pred_fallthru
        _
      // Predicated region
      $region25: #{encoder_forward.1} parent=11 // pred_check
        %p347 = pneg %p129
      $region26: #{encoder_forward.1} parent=11 // pred_check_branch
        %349 = sbr.rel (%p347) target = $region28
      $region27: #{encoder_forward.1} parent=11 // pred_region
        _
      $region28: #{encoder_forward.1} parent=11 // pred_fallthru
        _
      // Predicated region
      $region29: #{encoder_forward.1} parent=11 // pred_check
        %p350 = pneg %p150
      $region30: #{encoder_forward.1} parent=11 // pred_check_branch
        %352 = sbr.rel (%p350) target = $region32
      $region31: #{encoder_forward.1} parent=11 // pred_region
        _
      $region32: #{encoder_forward.1} parent=11 // pred_fallthru
        _
      // Predicated region
      $region33: #{encoder_forward.1} parent=11 // pred_check
        %p353 = pneg %p171
      $region34: #{encoder_forward.1} parent=11 // pred_check_branch
        %355 = sbr.rel (%p353) target = $region36
      $region35: #{encoder_forward.1} parent=11 // pred_region
        _
      $region36: #{encoder_forward.1} parent=11 // pred_fallthru
        _
      // Predicated region
      $region37: #{encoder_forward.1} parent=11 // pred_check
        %p356 = pneg %p192
      $region38: #{encoder_forward.1} parent=11 // pred_check_branch
        %358 = sbr.rel (%p356) target = $region40
      $region39: #{encoder_forward.1} parent=11 // pred_region
        _
      $region40: #{encoder_forward.1} parent=11 // pred_fallthru
        _
      // Predicated region
      $region41: #{encoder_forward.1} parent=11 // pred_check
        %p359 = pneg %p213
      $region42: #{encoder_forward.1} parent=11 // pred_check_branch
        %361 = sbr.rel (%p359) target = $region44
      $region43: #{encoder_forward.1} parent=11 // pred_region
        _
      $region44: #{encoder_forward.1} parent=11 // pred_fallthru
        _
      // Predicated region
      $region45: #{encoder_forward.1} parent=11 // pred_check
        %p362 = pneg %p234
      $region46: #{encoder_forward.1} parent=11 // pred_check_branch
        %364 = sbr.rel (%p362) target = $region48
      $region47: #{encoder_forward.1} parent=11 // pred_region
        _
      $region48: #{encoder_forward.1} parent=11 // pred_fallthru
        _
      // Predicated region
      $region49: #{encoder_forward.1} parent=11 // pred_check
        %p365 = pneg %p255
      $region50: #{encoder_forward.1} parent=11 // pred_check_branch
        %367 = sbr.rel (%p365) target = $region52
      $region51: #{encoder_forward.1} parent=11 // pred_region
        _
      $region52: #{encoder_forward.1} parent=11 // pred_fallthru
        _
      // Predicated region
      $region53: #{encoder_forward.1} parent=11 // pred_check
        %p368 = pneg %p276
      $region54: #{encoder_forward.1} parent=11 // pred_check_branch
        %370 = sbr.rel (%p368) target = $region56
      $region55: #{encoder_forward.1} parent=11 // pred_region
        _
      $region56: #{encoder_forward.1} parent=11 // pred_fallthru
        _
      // Predicated region
      $region57: #{encoder_forward.1} parent=11 // pred_check
        %p371 = pneg %p297
      $region58: #{encoder_forward.1} parent=11 // pred_check_branch
        %373 = sbr.rel (%p371) target = $region60
      $region59: #{encoder_forward.1} parent=11 // pred_region
        _
      $region60: #{encoder_forward.1} parent=11 // pred_fallthru
        _
    $region12: #{encoder_forward.1} parent=5 // pred_fallthru
      _
    %p374 = scmp.lt.s32.totalorder %s19, 2
    // Predicated region
    $region61: #{encoder_forward.1} parent=5 // pred_check
      %p375 = pneg %p374
    $region62: #{encoder_forward.1} parent=5 // pred_check_branch
      %377 = sbr.rel (%p375) target = $region64
    $region63: #{encoder_forward.1} parent=5 // pred_region
      // Predicated region
      $region65: #{encoder_forward.1} parent=63 // pred_check
        %p378 = pneg %p39
      $region66: #{encoder_forward.1} parent=63 // pred_check_branch
        %380 = sbr.rel (%p378) target = $region68
      $region67: #{encoder_forward.1} parent=63 // pred_region
        %p381 = scmp.lt.s32.totalorder %s19, 1
        %s382 = scalar_select %p381, %s19, 1
        %s383 = smul.addr %s382, 124
        %s384 = smul.addr %s383, 8
        %s385 = scalar_lea.vmem %s0, %s384
      $region68: #{encoder_forward.1} parent=63 // pred_fallthru
        _
    $region64: #{encoder_forward.1} parent=5 // pred_fallthru
      _
    %p386 = scmp.le.s32.totalorder 1, %s19
    %p387 = scmp.lt.s32.totalorder %s19, 3
    %p388 = pnand %p386, %p387
    %p389 = pneg %p388
    // Predicated region
    $region69: #{encoder_forward.1} parent=5 // pred_check
      _
    $region70: #{encoder_forward.1} parent=5 // pred_check_branch
      %391 = sbr.rel (%p388) target = $region72
    $region71: #{encoder_forward.1} parent=5 // pred_region
      %s392 = ssub.s32 %s19, 1
      %p393 = scmp.lt.s32.totalorder %s24, 1
      %s394 = scalar_select %p393, %s24, 1
      %s395 = smul.addr %s394, 124
      %s396 = smul.addr %s395, 8
      %s397 = scalar_lea.vmem %s0, %s396
      %p398 = pneg %p45
      %p399 = pneg %p42
      %p400 = pneg %p66
      %p401 = pneg %p63
      %p402 = pneg %p87
      %p403 = pneg %p84
      %p404 = pneg %p108
      %p405 = pneg %p105
      %p406 = pneg %p129
      %p407 = pneg %p126
      %p408 = pneg %p150
      %p409 = pneg %p147
      %p410 = pneg %p171
      %p411 = pneg %p168
      %p412 = pneg %p192
      %p413 = pneg %p189
      %p414 = pneg %p213
      %p415 = pneg %p210
      %p416 = pneg %p234
      %p417 = pneg %p231
      %p418 = pneg %p255
      %p419 = pneg %p252
      %p420 = pneg %p276
      %p421 = pneg %p273
      %p422 = pneg %p297
      %p423 = pneg %p294
      %p424 = pneg %p323
      %p425 = pneg %p320
      %p426 = scmp.lt.s32.totalorder %s24, 1
      %s427 = scalar_select %p426, %s24, 1
      %s428 = scalar_lea.vmem %s13, %s427
      %p429 = scmp.lt.s32.totalorder %s24, 1
      %s430 = scalar_select %p429, %s24, 1
      %s431 = smul.addr %s430, 124
      %s432 = smul.addr %s431, 8
      %s433 = scalar_lea.vmem %s0, %s432
      %p434 = scmp.lt.s32.totalorder %s24, 1
      %s435 = scalar_select %p434, %s24, 1
      %s436 = scalar_lea.vmem %s13, %s435
      %v437 = vld [vmem:[%s433] sm:$0xff]
      %v438 = vld [vmem:[%s433 + $0x8] sm:$0xff]
      %v439 = vld [vmem:[%s433 + $0x10] sm:$0xff]
      %v440 = vld [vmem:[%s433 + $0x18] sm:$0xff]
      %v441 = vld [vmem:[%s433 + $0x20] sm:$0xff]
      %v442 = vld [vmem:[%s433 + $0x28] sm:$0xff]
      %v443 = vld [vmem:[%s433 + $0x30] sm:$0xff]
      %v444 = vld [vmem:[%s433 + $0x38] sm:$0xff]
      %v445 = vld [vmem:[%s433 + $0x40] sm:$0xff]
      %v446 = vld [vmem:[%s433 + $0x48] sm:$0xff]
      %v447 = vld [vmem:[%s433 + $0x50] sm:$0xff]
      %v448 = vld [vmem:[%s433 + $0x58] sm:$0xff]
      %v449 = vld [vmem:[%s433 + $0x60] sm:$0xff]
      %v450 = vld [vmem:[%s433 + $0x68] sm:$0xff]
      %v451 = vld [vmem:[%s433 + $0x70] sm:$0xff]
      %v452 = vld [vmem:[%s433 + $0x78] sm:$0xff]
      %v453 = vld [vmem:[%s433 + $0x80] sm:$0xff]
      %v454 = vld [vmem:[%s433 + $0x88] sm:$0xff]
      %v455 = vld [vmem:[%s433 + $0x90] sm:$0xff]
      %v456 = vld [vmem:[%s433 + $0x98] sm:$0xff]
      %v457 = vld [vmem:[%s433 + $0xa0] sm:$0xff]
      %v458 = vld [vmem:[%s433 + $0xa8] sm:$0xff]
      %v459 = vld [vmem:[%s433 + $0xb0] sm:$0xff]
      %v460 = vld [vmem:[%s433 + $0xb8] sm:$0xff]
      %v461 = vld [vmem:[%s433 + $0xc0] sm:$0xff]
      %v462 = vld [vmem:[%s433 + $0xc8] sm:$0xff]
      %v463 = vld [vmem:[%s433 + $0xd0] sm:$0xff]
      %v464 = vld [vmem:[%s433 + $0xd8] sm:$0xff]
      %v465 = vld [vmem:[%s433 + $0xe0] sm:$0xff]
      %v466 = vld [vmem:[%s433 + $0xe8] sm:$0xff]
      %v467 = vld [vmem:[%s433 + $0xf0] sm:$0xff]
      %v468 = vld [vmem:[%s433 + $0xf8] sm:$0xff]
      %v469 = vld [vmem:[%s433 + $0x100] sm:$0xff]
      %v470 = vld [vmem:[%s433 + $0x108] sm:$0xff]
      %v471 = vld [vmem:[%s433 + $0x110] sm:$0xff]
      %v472 = vld [vmem:[%s433 + $0x118] sm:$0xff]
      %v473 = vld [vmem:[%s433 + $0x120] sm:$0xff]
      %v474 = vld [vmem:[%s433 + $0x128] sm:$0xff]
      %v475 = vld [vmem:[%s433 + $0x130] sm:$0xff]
      %v476 = vld [vmem:[%s433 + $0x138] sm:$0xff]
      %v477 = vld [vmem:[%s433 + $0x140] sm:$0xff]
      %v478 = vld [vmem:[%s433 + $0x148] sm:$0xff]
      %v479 = vld [vmem:[%s433 + $0x150] sm:$0xff]
      %v480 = vld [vmem:[%s433 + $0x158] sm:$0xff]
      %v481 = vld [vmem:[%s433 + $0x160] sm:$0xff]
      %v482 = vld [vmem:[%s433 + $0x168] sm:$0xff]
      %v483 = vld [vmem:[%s433 + $0x170] sm:$0xff]
      %v484 = vld [vmem:[%s433 + $0x178] sm:$0xff]
      %v485 = vld [vmem:[%s433 + $0x180] sm:$0xff]
      %v486 = vld [vmem:[%s433 + $0x188] sm:$0xff]
      %v487 = vld [vmem:[%s433 + $0x190] sm:$0xff]
      %v488 = vld [vmem:[%s433 + $0x198] sm:$0xff]
      %v489 = vld [vmem:[%s433 + $0x1a0] sm:$0xff]
      %v490 = vld [vmem:[%s433 + $0x1a8] sm:$0xff]
      %v491 = vld [vmem:[%s433 + $0x1b0] sm:$0xff]
      %v492 = vld [vmem:[%s433 + $0x1b8] sm:$0xff]
      %v493 = vld [vmem:[%s433 + $0x1c0] sm:$0xff]
      %v494 = vld [vmem:[%s433 + $0x1c8] sm:$0xff]
      %v495 = vld [vmem:[%s433 + $0x1d0] sm:$0xff]
      %v496 = vld [vmem:[%s433 + $0x1d8] sm:$0xff]
      %v497 = vld [vmem:[%s433 + $0x1e0] sm:$0xff]
      %v498 = vld [vmem:[%s433 + $0x1e8] sm:$0xff]
      %v499 = vld [vmem:[%s433 + $0x1f0] sm:$0xff]
      %v500 = vld [vmem:[%s433 + $0x1f8] sm:$0xff]
      %v501 = vld [vmem:[%s433 + $0x200] sm:$0xff]
      %v502 = vld [vmem:[%s433 + $0x208] sm:$0xff]
      %v503 = vld [vmem:[%s433 + $0x210] sm:$0xff]
      %v504 = vld [vmem:[%s433 + $0x218] sm:$0xff]
      %v505 = vld [vmem:[%s433 + $0x220] sm:$0xff]
      %v506 = vld [vmem:[%s433 + $0x228] sm:$0xff]
      %v507 = vld [vmem:[%s433 + $0x230] sm:$0xff]
      %v508 = vld [vmem:[%s433 + $0x238] sm:$0xff]
      %v509 = vld [vmem:[%s433 + $0x240] sm:$0xff]
      %v510 = vld [vmem:[%s433 + $0x248] sm:$0xff]
      %v511 = vld [vmem:[%s433 + $0x250] sm:$0xff]
      %v512 = vld [vmem:[%s433 + $0x258] sm:$0xff]
      %v513 = vld [vmem:[%s433 + $0x260] sm:$0xff]
      %v514 = vld [vmem:[%s433 + $0x268] sm:$0xff]
      %v515 = vld [vmem:[%s433 + $0x270] sm:$0xff]
      %v516 = vld [vmem:[%s433 + $0x278] sm:$0xff]
      %v517 = vld [vmem:[%s433 + $0x280] sm:$0xff]
      %v518 = vld [vmem:[%s433 + $0x288] sm:$0xff]
      %v519 = vld [vmem:[%s433 + $0x290] sm:$0xff]
      %v520 = vld [vmem:[%s433 + $0x298] sm:$0xff]
      %v521 = vld [vmem:[%s433 + $0x2a0] sm:$0xff]
      %v522 = vld [vmem:[%s433 + $0x2a8] sm:$0xff]
      %v523 = vld [vmem:[%s433 + $0x2b0] sm:$0xff]
      %v524 = vld [vmem:[%s433 + $0x2b8] sm:$0xff]
      %v525 = vld [vmem:[%s433 + $0x2c0] sm:$0xff]
      %v526 = vld [vmem:[%s433 + $0x2c8] sm:$0xff]
      %v527 = vld [vmem:[%s433 + $0x2d0] sm:$0xff]
      %v528 = vld [vmem:[%s433 + $0x2d8] sm:$0xff]
      %v529 = vld [vmem:[%s433 + $0x2e0] sm:$0xff]
      %v530 = vld [vmem:[%s433 + $0x2e8] sm:$0xff]
      %v531 = vld [vmem:[%s433 + $0x2f0] sm:$0xff]
      %v532 = vld [vmem:[%s433 + $0x2f8] sm:$0xff]
      %v533 = vld [vmem:[%s433 + $0x300] sm:$0xff]
      %v534 = vld [vmem:[%s433 + $0x308] sm:$0xff]
      %v535 = vld [vmem:[%s433 + $0x310] sm:$0xff]
      %v536 = vld [vmem:[%s433 + $0x318] sm:$0xff]
      %v537 = vld [vmem:[%s433 + $0x320] sm:$0xff]
      %v538 = vld [vmem:[%s433 + $0x328] sm:$0xff]
      %v539 = vld [vmem:[%s433 + $0x330] sm:$0xff]
      %v540 = vld [vmem:[%s433 + $0x338] sm:$0xff]
      %v541 = vld [vmem:[%s433 + $0x340] sm:$0xff]
      %v542 = vld [vmem:[%s433 + $0x348] sm:$0xff]
      %v543 = vld [vmem:[%s433 + $0x350] sm:$0xff]
      %v544 = vld [vmem:[%s433 + $0x358] sm:$0xff]
      %v545 = vld [vmem:[%s433 + $0x360] sm:$0xff]
      %v546 = vld [vmem:[%s433 + $0x368] sm:$0xff]
      %v547 = vld [vmem:[%s433 + $0x370] sm:$0xff]
      %v548 = vld [vmem:[%s433 + $0x378] sm:$0xff]
      %v549 = vld [vmem:[%s433 + $0x380] sm:$0xff]
      %v550 = vld [vmem:[%s433 + $0x388] sm:$0xff]
      %v551 = vld [vmem:[%s433 + $0x390] sm:$0xff]
      %v552 = vld [vmem:[%s433 + $0x398] sm:$0xff]
      %v553 = vld [vmem:[%s433 + $0x3a0] sm:$0xff]
      %v554 = vld [vmem:[%s433 + $0x3a8] sm:$0xff]
      %v555 = vld [vmem:[%s433 + $0x3b0] sm:$0xff]
      %v556 = vld [vmem:[%s433 + $0x3b8] sm:$0xff]
      %v557 = vld [vmem:[%s433 + $0x3c0] sm:$0xff]
      %v558 = vld [vmem:[%s433 + $0x3c8] sm:$0xff]
      %v559 = vld [vmem:[%s433 + $0x3d0] sm:$0xff]
      %v560 = vld [vmem:[%s433 + $0x3d8] sm:$0xff]
      %v561 = vld [vmem:[%s1] sm:$0xff]
      %v562 = vld [vmem:[%s1 + $0x8] sm:$0xff]
      %v563 = vld [vmem:[%s1 + $0x10] sm:$0xff]
      %v564 = vld [vmem:[%s1 + $0x18] sm:$0xff]
      %v565 = vld [vmem:[%s1 + $0x20] sm:$0xff]
      %v566 = vld [vmem:[%s1 + $0x28] sm:$0xff]
      %v567 = vld [vmem:[%s1 + $0x30] sm:$0xff]
      %v568 = vld [vmem:[%s1 + $0x38] sm:$0xff]
      %v569 = vld [vmem:[%s1 + $0x40] sm:$0xff]
      %v570 = vld [vmem:[%s1 + $0x48] sm:$0xff]
      %v571 = vld [vmem:[%s1 + $0x50] sm:$0xff]
      %v572 = vld [vmem:[%s1 + $0x58] sm:$0xff]
      %v573 = vld [vmem:[%s1 + $0x60] sm:$0xff]
      %v574 = vld [vmem:[%s1 + $0x68] sm:$0xff]
      %v575 = vld [vmem:[%s1 + $0x70] sm:$0xff]
      %v576 = vld [vmem:[%s1 + $0x78] sm:$0xff]
      %v577 = vld [vmem:[%s2] sm:$0x1]
      %v579 = vlaneseq
      %v580 = vshrl.u32 %v579, 7
      %v581 = vsub.s32 0, %v580
      %v582 = vrot.slane %v577, %v581
      %584 = vmatprep.subr.mxu0 0.0
      %585 = vmatpush1.msra.mxu0 %v561
      %586 = vmatprep.subr.mxu0 0.0
      %587 = vmatpush1.msra.mxu0 %v562
      %588 = vmatprep.subr.mxu0 0.0
      %589 = vmatpush1.msra.mxu0 %v563
      %590 = vmatprep.subr.mxu0 0.0
      %591 = vmatpush1.msra.mxu0 %v564
      %592 = vmatprep.subr.mxu0 0.0
      %593 = vmatpush1.msra.mxu0 %v565
      %594 = vmatprep.subr.mxu0 0.0
      %595 = vmatpush1.msra.mxu0 %v566
      %596 = vmatprep.subr.mxu0 0.0
      %597 = vmatpush1.msra.mxu0 %v567
      %598 = vmatprep.subr.mxu0 0.0
      %599 = vmatpush1.msra.mxu0 %v568
      %600 = vmatprep.subr.mxu0 0.0
      %601 = vmatpush1.msra.mxu0 %v569
      %602 = vmatprep.subr.mxu0 0.0
      %603 = vmatpush1.msra.mxu0 %v570
      %604 = vmatprep.subr.mxu0 0.0
      %605 = vmatpush1.msra.mxu0 %v571
      %606 = vmatprep.subr.mxu0 0.0
      %607 = vmatpush1.msra.mxu0 %v572
      %608 = vmatprep.subr.mxu0 0.0
      %609 = vmatpush1.msra.mxu0 %v573
      %610 = vmatprep.subr.mxu0 0.0
      %611 = vmatpush1.msra.mxu0 %v574
      %612 = vmatprep.subr.mxu0 0.0
      %613 = vmatpush1.msra.mxu0 %v575
      %614 = vmatprep.subr.mxu0 0.0
      %615 = vmatpush1.msra.mxu0 %v576
      %616 = vmatprep.subr.mxu0 0.0
      %617 = vmatpush1.msra.mxu0 0.0
      %618 = vmatprep.subr.mxu0 0.0
      %619 = vmatpush1.msra.mxu0 0.0
      %620 = vmatprep.subr.mxu0 0.0
      %621 = vmatpush1.msra.mxu0 0.0
      %622 = vmatprep.subr.mxu0 0.0
      %623 = vmatpush1.msra.mxu0 0.0
      %624 = vmatprep.subr.mxu0 0.0
      %625 = vmatpush1.msra.mxu0 0.0
      %626 = vmatprep.subr.mxu0 0.0
      %627 = vmatpush1.msra.mxu0 0.0
      %628 = vmatprep.subr.mxu0 0.0
      %629 = vmatpush1.msra.mxu0 0.0
      %630 = vmatprep.subr.mxu0 0.0
      %631 = vmatpush1.msra.mxu0 0.0
      %632 = vmatprep.subr.mxu0 0.0
      %633 = vmatpush1.msra.mxu0 0.0
      %634 = vmatprep.subr.mxu0 0.0
      %635 = vmatpush1.msra.mxu0 0.0
      %636 = vmatprep.subr.mxu0 0.0
      %637 = vmatpush1.msra.mxu0 0.0
      %638 = vmatprep.subr.mxu0 0.0
      %639 = vmatpush1.msra.mxu0 0.0
      %640 = vmatprep.subr.mxu0 0.0
      %641 = vmatpush1.msra.mxu0 0.0
      %642 = vmatprep.subr.mxu0 0.0
      %643 = vmatpush1.msra.mxu0 0.0
      %644 = vmatprep.subr.mxu0 0.0
      %645 = vmatpush1.msra.mxu0 0.0
      %646 = vmatprep.subr.mxu0 0.0
      %647 = vmatpush1.msra.mxu0 0.0
      %648 = vmatprep.mubr.f32.mxu0 0.0
      %649 = vmatmul.mubr.f32.gmra.mrb[0].mxu0 %v437
      %v650 = vpop.f32.mrb[0].mxu0
      %v651 = vadd.f32 %v582, %v650
      %v652 = vpop.f32.mrb[0].mxu0
      %653 = vmatprep.mubr.f32.mxu0 0.0
      %654 = vmatmul.mubr.f32.gmra.mrb[0].mxu0 %v438
      %v655 = vpop.f32.mrb[0].mxu0
      %v656 = vadd.f32 %v582, %v655
      %v657 = vpop.f32.mrb[0].mxu0
      %658 = vmatprep.mubr.f32.mxu0 0.0
      %659 = vmatmul.mubr.f32.gmra.mrb[0].mxu0 %v439
      %v660 = vpop.f32.mrb[0].mxu0
      %v661 = vadd.f32 %v582, %v660
      %v662 = vpop.f32.mrb[0].mxu0
      %663 = vmatprep.mubr.f32.mxu0 0.0
      %664 = vmatmul.mubr.f32.gmra.mrb[0].mxu0 %v440
      %v665 = vpop.f32.mrb[0].mxu0
      %v666 = vadd.f32 %v582, %v665
      %v667 = vpop.f32.mrb[0].mxu0
      %668 = vmatprep.mubr.f32.mxu0 0.0
      %669 = vmatmul.mubr.f32.gmra.mrb[0].mxu0 %v441
      %v670 = vpop.f32.mrb[0].mxu0
      %v671 = vadd.f32 %v582, %v670
      %v672 = vpop.f32.mrb[0].mxu0
      %673 = vmatprep.mubr.f32.mxu0 0.0
      %674 = vmatmul.mubr.f32.gmra.mrb[0].mxu0 %v442
      %v675 = vpop.f32.mrb[0].mxu0
      %v676 = vadd.f32 %v582, %v675
      %v677 = vpop.f32.mrb[0].mxu0
      %678 = vmatprep.mubr.f32.mxu0 0.0
      %679 = vmatmul.mubr.f32.gmra.mrb[0].mxu0 %v443
      %v680 = vpop.f32.mrb[0].mxu0
      %v681 = vadd.f32 %v582, %v680
      %v682 = vpop.f32.mrb[0].mxu0
      %683 = vmatprep.mubr.f32.mxu0 0.0
      %684 = vmatmul.mubr.f32.gmra.mrb[0].mxu0 %v444
      %v685 = vpop.f32.mrb[0].mxu0
      %v686 = vadd.f32 %v582, %v685
      %v687 = vpop.f32.mrb[0].mxu0
      %688 = vmatprep.mubr.f32.mxu0 0.0
      %689 = vmatmul.mubr.f32.gmra.mrb[0].mxu0 %v445
      %v690 = vpop.f32.mrb[0].mxu0
      %v691 = vadd.f32 %v582, %v690
      %v692 = vpop.f32.mrb[0].mxu0
      %693 = vmatprep.mubr.f32.mxu0 0.0
      %694 = vmatmul.mubr.f32.gmra.mrb[0].mxu0 %v446
      %v695 = vpop.f32.mrb[0].mxu0
      %v696 = vadd.f32 %v582, %v695
      %v697 = vpop.f32.mrb[0].mxu0
      %698 = vmatprep.mubr.f32.mxu0 0.0
      %699 = vmatmul.mubr.f32.gmra.mrb[0].mxu0 %v447
      %v700 = vpop.f32.mrb[0].mxu0
      %v701 = vadd.f32 %v582, %v700
      %v702 = vpop.f32.mrb[0].mxu0
      %703 = vmatprep.mubr.f32.mxu0 0.0
      %704 = vmatmul.mubr.f32.gmra.mrb[0].mxu0 %v448
      %v705 = vpop.f32.mrb[0].mxu0
      %v706 = vadd.f32 %v582, %v705
      %v707 = vpop.f32.mrb[0].mxu0
      %708 = vmatprep.mubr.f32.mxu0 0.0
      %709 = vmatmul.mubr.f32.gmra.mrb[0].mxu0 %v449
      %v710 = vpop.f32.mrb[0].mxu0
      %v711 = vadd.f32 %v582, %v710
      %v712 = vpop.f32.mrb[0].mxu0
      %713 = vmatprep.mubr.f32.mxu0 0.0
      %714 = vmatmul.mubr.f32.gmra.mrb[0].mxu0 %v450
      %v715 = vpop.f32.mrb[0].mxu0
      %v716 = vadd.f32 %v582, %v715
      %v717 = vpop.f32.mrb[0].mxu0
      %718 = vmatprep.mubr.f32.mxu0 0.0
      %719 = vmatmul.mubr.f32.gmra.mrb[0].mxu0 %v451
      %v720 = vpop.f32.mrb[0].mxu0
      %v721 = vadd.f32 %v582, %v720
      %v722 = vpop.f32.mrb[0].mxu0
      %723 = vmatprep.mubr.f32.mxu0 0.0
      %724 = vmatmul.mubr.f32.gmra.mrb[0].mxu0 %v452
      %v725 = vpop.f32.mrb[0].mxu0
      %v726 = vadd.f32 %v582, %v725
      %v727 = vpop.f32.mrb[0].mxu0
      %728 = vmatprep.mubr.f32.mxu0 0.0
      %729 = vmatmul.mubr.f32.gmra.mrb[0].mxu0 %v453
      %v730 = vpop.f32.mrb[0].mxu0
      %v731 = vadd.f32 %v582, %v730
      %v732 = vpop.f32.mrb[0].mxu0
      %733 = vmatprep.mubr.f32.mxu0 0.0
      %734 = vmatmul.mubr.f32.gmra.mrb[0].mxu0 %v454
      %v735 = vpop.f32.mrb[0].mxu0
      %v736 = vadd.f32 %v582, %v735
      %v737 = vpop.f32.mrb[0].mxu0
      %738 = vmatprep.mubr.f32.mxu0 0.0
      %739 = vmatmul.mubr.f32.gmra.mrb[0].mxu0 %v455
      %v740 = vpop.f32.mrb[0].mxu0
      %v741 = vadd.f32 %v582, %v740
      %v742 = vpop.f32.mrb[0].mxu0
      %743 = vmatprep.mubr.f32.mxu0 0.0
      %744 = vmatmul.mubr.f32.gmra.mrb[0].mxu0 %v456
      %v745 = vpop.f32.mrb[0].mxu0
      %v746 = vadd.f32 %v582, %v745
      %v747 = vpop.f32.mrb[0].mxu0
      %748 = vmatprep.mubr.f32.mxu0 0.0
      %749 = vmatmul.mubr.f32.gmra.mrb[0].mxu0 %v457
      %v750 = vpop.f32.mrb[0].mxu0
      %v751 = vadd.f32 %v582, %v750
      %v752 = vpop.f32.mrb[0].mxu0
      %753 = vmatprep.mubr.f32.mxu0 0.0
      %754 = vmatmul.mubr.f32.gmra.mrb[0].mxu0 %v458
      %v755 = vpop.f32.mrb[0].mxu0
      %v756 = vadd.f32 %v582, %v755
      %v757 = vpop.f32.mrb[0].mxu0
      %758 = vmatprep.mubr.f32.mxu0 0.0
      %759 = vmatmul.mubr.f32.gmra.mrb[0].mxu0 %v459
      %v760 = vpop.f32.mrb[0].mxu0
      %v761 = vadd.f32 %v582, %v760
      %v762 = vpop.f32.mrb[0].mxu0
      %763 = vmatprep.mubr.f32.mxu0 0.0
      %764 = vmatmul.mubr.f32.gmra.mrb[0].mxu0 %v460
      %v765 = vpop.f32.mrb[0].mxu0
      %v766 = vadd.f32 %v582, %v765
      %v767 = vpop.f32.mrb[0].mxu0
      %768 = vmatprep.mubr.f32.mxu0 0.0
      %769 = vmatmul.mubr.f32.gmra.mrb[0].mxu0 %v461
      %v770 = vpop.f32.mrb[0].mxu0
      %v771 = vadd.f32 %v582, %v770
      %v772 = vpop.f32.mrb[0].mxu0
      %773 = vmatprep.mubr.f32.mxu0 0.0
      %774 = vmatmul.mubr.f32.gmra.mrb[0].mxu0 %v462
      %v775 = vpop.f32.mrb[0].mxu0
      %v776 = vadd.f32 %v582, %v775
      %v777 = vpop.f32.mrb[0].mxu0
      %778 = vmatprep.mubr.f32.mxu0 0.0
      %779 = vmatmul.mubr.f32.gmra.mrb[0].mxu0 %v463
      %v780 = vpop.f32.mrb[0].mxu0
      %v781 = vadd.f32 %v582, %v780
      %v782 = vpop.f32.mrb[0].mxu0
      %783 = vmatprep.mubr.f32.mxu0 0.0
      %784 = vmatmul.mubr.f32.gmra.mrb[0].mxu0 %v464
      %v785 = vpop.f32.mrb[0].mxu0
      %v786 = vadd.f32 %v582, %v785
      %v787 = vpop.f32.mrb[0].mxu0
      %788 = vmatprep.mubr.f32.mxu0 0.0
      %789 = vmatmul.mubr.f32.gmra.mrb[0].mxu0 %v465
      %v790 = vpop.f32.mrb[0].mxu0
      %v791 = vadd.f32 %v582, %v790
      %v792 = vpop.f32.mrb[0].mxu0
      %793 = vmatprep.mubr.f32.mxu0 0.0
      %794 = vmatmul.mubr.f32.gmra.mrb[0].mxu0 %v466
      %v795 = vpop.f32.mrb[0].mxu0
      %v796 = vadd.f32 %v582, %v795
      %v797 = vpop.f32.mrb[0].mxu0
      %798 = vmatprep.mubr.f32.mxu0 0.0
      %799 = vmatmul.mubr.f32.gmra.mrb[0].mxu0 %v467
      %v800 = vpop.f32.mrb[0].mxu0
      %v801 = vadd.f32 %v582, %v800
      %v802 = vpop.f32.mrb[0].mxu0
      %803 = vmatprep.mubr.f32.mxu0 0.0
      %804 = vmatmul.mubr.f32.gmra.mrb[0].mxu0 %v468
      %v805 = vpop.f32.mrb[0].mxu0
      %v806 = vadd.f32 %v582, %v805
      %v807 = vpop.f32.mrb[0].mxu0
      %808 = vmatprep.mubr.f32.mxu0 0.0
      %809 = vmatmul.mubr.f32.gmra.mrb[0].mxu0 %v469
      %v810 = vpop.f32.mrb[0].mxu0
      %v811 = vadd.f32 %v582, %v810
      %v812 = vpop.f32.mrb[0].mxu0
      %813 = vmatprep.mubr.f32.mxu0 0.0
      %814 = vmatmul.mubr.f32.gmra.mrb[0].mxu0 %v470
      %v815 = vpop.f32.mrb[0].mxu0
      %v816 = vadd.f32 %v582, %v815
      %v817 = vpop.f32.mrb[0].mxu0
      %818 = vmatprep.mubr.f32.mxu0 0.0
      %819 = vmatmul.mubr.f32.gmra.mrb[0].mxu0 %v471
      %v820 = vpop.f32.mrb[0].mxu0
      %v821 = vadd.f32 %v582, %v820
      %v822 = vpop.f32.mrb[0].mxu0
      %823 = vmatprep.mubr.f32.mxu0 0.0
      %824 = vmatmul.mubr.f32.gmra.mrb[0].mxu0 %v472
      %v825 = vpop.f32.mrb[0].mxu0
      %v826 = vadd.f32 %v582, %v825
      %v827 = vpop.f32.mrb[0].mxu0
      %828 = vmatprep.mubr.f32.mxu0 0.0
      %829 = vmatmul.mubr.f32.gmra.mrb[0].mxu0 %v473
      %v830 = vpop.f32.mrb[0].mxu0
      %v831 = vadd.f32 %v582, %v830
      %v832 = vpop.f32.mrb[0].mxu0
      %833 = vmatprep.mubr.f32.mxu0 0.0
      %834 = vmatmul.mubr.f32.gmra.mrb[0].mxu0 %v474
      %v835 = vpop.f32.mrb[0].mxu0
      %v836 = vadd.f32 %v582, %v835
      %v837 = vpop.f32.mrb[0].mxu0
      %838 = vmatprep.mubr.f32.mxu0 0.0
      %839 = vmatmul.mubr.f32.gmra.mrb[0].mxu0 %v475
      %v840 = vpop.f32.mrb[0].mxu0
      %v841 = vadd.f32 %v582, %v840
      %v842 = vpop.f32.mrb[0].mxu0
      %843 = vmatprep.mubr.f32.mxu0 0.0
      %844 = vmatmul.mubr.f32.gmra.mrb[0].mxu0 %v476
      %v845 = vpop.f32.mrb[0].mxu0
      %v846 = vadd.f32 %v582, %v845
      %v847 = vpop.f32.mrb[0].mxu0
      %848 = vmatprep.mubr.f32.mxu0 0.0
      %849 = vmatmul.mubr.f32.gmra.mrb[0].mxu0 %v477
      %v850 = vpop.f32.mrb[0].mxu0
      %v851 = vadd.f32 %v582, %v850
      %v852 = vpop.f32.mrb[0].mxu0
      %853 = vmatprep.mubr.f32.mxu0 0.0
      %854 = vmatmul.mubr.f32.gmra.mrb[0].mxu0 %v478
      %v855 = vpop.f32.mrb[0].mxu0
      %v856 = vadd.f32 %v582, %v855
      %v857 = vpop.f32.mrb[0].mxu0
      %858 = vmatprep.mubr.f32.mxu0 0.0
      %859 = vmatmul.mubr.f32.gmra.mrb[0].mxu0 %v479
      %v860 = vpop.f32.mrb[0].mxu0
      %v861 = vadd.f32 %v582, %v860
      %v862 = vpop.f32.mrb[0].mxu0
      %863 = vmatprep.mubr.f32.mxu0 0.0
      %864 = vmatmul.mubr.f32.gmra.mrb[0].mxu0 %v480
      %v865 = vpop.f32.mrb[0].mxu0
      %v866 = vadd.f32 %v582, %v865
      %v867 = vpop.f32.mrb[0].mxu0
      %868 = vmatprep.mubr.f32.mxu0 0.0
      %869 = vmatmul.mubr.f32.gmra.mrb[0].mxu0 %v481
      %v870 = vpop.f32.mrb[0].mxu0
      %v871 = vadd.f32 %v582, %v870
      %v872 = vpop.f32.mrb[0].mxu0
      %873 = vmatprep.mubr.f32.mxu0 0.0
      %874 = vmatmul.mubr.f32.gmra.mrb[0].mxu0 %v482
      %v875 = vpop.f32.mrb[0].mxu0
      %v876 = vadd.f32 %v582, %v875
      %v877 = vpop.f32.mrb[0].mxu0
      %878 = vmatprep.mubr.f32.mxu0 0.0
      %879 = vmatmul.mubr.f32.gmra.mrb[0].mxu0 %v483
      %v880 = vpop.f32.mrb[0].mxu0
      %v881 = vadd.f32 %v582, %v880
      %v882 = vpop.f32.mrb[0].mxu0
      %883 = vmatprep.mubr.f32.mxu0 0.0
      %884 = vmatmul.mubr.f32.gmra.mrb[0].mxu0 %v484
      %v885 = vpop.f32.mrb[0].mxu0
      %v886 = vadd.f32 %v582, %v885
      %v887 = vpop.f32.mrb[0].mxu0
      %888 = vmatprep.mubr.f32.mxu0 0.0
      %889 = vmatmul.mubr.f32.gmra.mrb[0].mxu0 %v485
      %v890 = vpop.f32.mrb[0].mxu0
      %v891 = vadd.f32 %v582, %v890
      %v892 = vpop.f32.mrb[0].mxu0
      %893 = vmatprep.mubr.f32.mxu0 0.0
      %894 = vmatmul.mubr.f32.gmra.mrb[0].mxu0 %v486
      %v895 = vpop.f32.mrb[0].mxu0
      %v896 = vadd.f32 %v582, %v895
      %v897 = vpop.f32.mrb[0].mxu0
      %898 = vmatprep.mubr.f32.mxu0 0.0
      %899 = vmatmul.mubr.f32.gmra.mrb[0].mxu0 %v487
      %v900 = vpop.f32.mrb[0].mxu0
      %v901 = vadd.f32 %v582, %v900
      %v902 = vpop.f32.mrb[0].mxu0
      %903 = vmatprep.mubr.f32.mxu0 0.0
      %904 = vmatmul.mubr.f32.gmra.mrb[0].mxu0 %v488
      %v905 = vpop.f32.mrb[0].mxu0
      %v906 = vadd.f32 %v582, %v905
      %v907 = vpop.f32.mrb[0].mxu0
      %908 = vmatprep.mubr.f32.mxu0 0.0
      %909 = vmatmul.mubr.f32.gmra.mrb[0].mxu0 %v489
      %v910 = vpop.f32.mrb[0].mxu0
      %v911 = vadd.f32 %v582, %v910
      %v912 = vpop.f32.mrb[0].mxu0
      %913 = vmatprep.mubr.f32.mxu0 0.0
      %914 = vmatmul.mubr.f32.gmra.mrb[0].mxu0 %v490
      %v915 = vpop.f32.mrb[0].mxu0
      %v916 = vadd.f32 %v582, %v915
      %v917 = vpop.f32.mrb[0].mxu0
      %918 = vmatprep.mubr.f32.mxu0 0.0
      %919 = vmatmul.mubr.f32.gmra.mrb[0].mxu0 %v491
      %v920 = vpop.f32.mrb[0].mxu0
      %v921 = vadd.f32 %v582, %v920
      %v922 = vpop.f32.mrb[0].mxu0
      %923 = vmatprep.mubr.f32.mxu0 0.0
      %924 = vmatmul.mubr.f32.gmra.mrb[0].mxu0 %v492
      %v925 = vpop.f32.mrb[0].mxu0
      %v926 = vadd.f32 %v582, %v925
      %v927 = vpop.f32.mrb[0].mxu0
      %928 = vmatprep.mubr.f32.mxu0 0.0
      %929 = vmatmul.mubr.f32.gmra.mrb[0].mxu0 %v493
      %v930 = vpop.f32.mrb[0].mxu0
      %v931 = vadd.f32 %v582, %v930
      %v932 = vpop.f32.mrb[0].mxu0
      %933 = vmatprep.mubr.f32.mxu0 0.0
      %934 = vmatmul.mubr.f32.gmra.mrb[0].mxu0 %v494
      %v935 = vpop.f32.mrb[0].mxu0
      %v936 = vadd.f32 %v582, %v935
      %v937 = vpop.f32.mrb[0].mxu0
      %938 = vmatprep.mubr.f32.mxu0 0.0
      %939 = vmatmul.mubr.f32.gmra.mrb[0].mxu0 %v495
      %v940 = vpop.f32.mrb[0].mxu0
      %v941 = vadd.f32 %v582, %v940
      %v942 = vpop.f32.mrb[0].mxu0
      %943 = vmatprep.mubr.f32.mxu0 0.0
      %944 = vmatmul.mubr.f32.gmra.mrb[0].mxu0 %v496
      %v945 = vpop.f32.mrb[0].mxu0
      %v946 = vadd.f32 %v582, %v945
      %v947 = vpop.f32.mrb[0].mxu0
      %948 = vmatprep.mubr.f32.mxu0 0.0
      %949 = vmatmul.mubr.f32.gmra.mrb[0].mxu0 %v497
      %v950 = vpop.f32.mrb[0].mxu0
      %v951 = vadd.f32 %v582, %v950
      %v952 = vpop.f32.mrb[0].mxu0
      %953 = vmatprep.mubr.f32.mxu0 0.0
      %954 = vmatmul.mubr.f32.gmra.mrb[0].mxu0 %v498
      %v955 = vpop.f32.mrb[0].mxu0
      %v956 = vadd.f32 %v582, %v955
      %v957 = vpop.f32.mrb[0].mxu0
      %958 = vmatprep.mubr.f32.mxu0 0.0
      %959 = vmatmul.mubr.f32.gmra.mrb[0].mxu0 %v499
      %v960 = vpop.f32.mrb[0].mxu0
      %v961 = vadd.f32 %v582, %v960
      %v962 = vpop.f32.mrb[0].mxu0
      %963 = vmatprep.mubr.f32.mxu0 0.0
      %964 = vmatmul.mubr.f32.gmra.mrb[0].mxu0 %v500
      %v965 = vpop.f32.mrb[0].mxu0
      %v966 = vadd.f32 %v582, %v965
      %v967 = vpop.f32.mrb[0].mxu0
      %968 = vmatprep.mubr.f32.mxu0 0.0
      %969 = vmatmul.mubr.f32.gmra.mrb[0].mxu0 %v501
      %v970 = vpop.f32.mrb[0].mxu0
      %v971 = vadd.f32 %v582, %v970
      %v972 = vpop.f32.mrb[0].mxu0
      %973 = vmatprep.mubr.f32.mxu0 0.0
      %974 = vmatmul.mubr.f32.gmra.mrb[0].mxu0 %v502
      %v975 = vpop.f32.mrb[0].mxu0
      %v976 = vadd.f32 %v582, %v975
      %v977 = vpop.f32.mrb[0].mxu0
      %978 = vmatprep.mubr.f32.mxu0 0.0
      %979 = vmatmul.mubr.f32.gmra.mrb[0].mxu0 %v503
      %v980 = vpop.f32.mrb[0].mxu0
      %v981 = vadd.f32 %v582, %v980
      %v982 = vpop.f32.mrb[0].mxu0
      %983 = vmatprep.mubr.f32.mxu0 0.0
      %984 = vmatmul.mubr.f32.gmra.mrb[0].mxu0 %v504
      %v985 = vpop.f32.mrb[0].mxu0
      %v986 = vadd.f32 %v582, %v985
      %v987 = vpop.f32.mrb[0].mxu0
      %988 = vmatprep.mubr.f32.mxu0 0.0
      %989 = vmatmul.mubr.f32.gmra.mrb[0].mxu0 %v505
      %v990 = vpop.f32.mrb[0].mxu0
      %v991 = vadd.f32 %v582, %v990
      %v992 = vpop.f32.mrb[0].mxu0
      %993 = vmatprep.mubr.f32.mxu0 0.0
      %994 = vmatmul.mubr.f32.gmra.mrb[0].mxu0 %v506
      %v995 = vpop.f32.mrb[0].mxu0
      %v996 = vadd.f32 %v582, %v995
      %v997 = vpop.f32.mrb[0].mxu0
      %998 = vmatprep.mubr.f32.mxu0 0.0
      %999 = vmatmul.mubr.f32.gmra.mrb[0].mxu0 %v507
      %v1000 = vpop.f32.mrb[0].mxu0
      %v1001 = vadd.f32 %v582, %v1000
      %v1002 = vpop.f32.mrb[0].mxu0
      %1003 = vmatprep.mubr.f32.mxu0 0.0
      %1004 = vmatmul.mubr.f32.gmra.mrb[0].mxu0 %v508
      %v1005 = vpop.f32.mrb[0].mxu0
      %v1006 = vadd.f32 %v582, %v1005
      %v1007 = vpop.f32.mrb[0].mxu0
      %1008 = vmatprep.mubr.f32.mxu0 0.0
      %1009 = vmatmul.mubr.f32.gmra.mrb[0].mxu0 %v509
      %v1010 = vpop.f32.mrb[0].mxu0
      %v1011 = vadd.f32 %v582, %v1010
      %v1012 = vpop.f32.mrb[0].mxu0
      %1013 = vmatprep.mubr.f32.mxu0 0.0
      %1014 = vmatmul.mubr.f32.gmra.mrb[0].mxu0 %v510
      %v1015 = vpop.f32.mrb[0].mxu0
      %v1016 = vadd.f32 %v582, %v1015
      %v1017 = vpop.f32.mrb[0].mxu0
      %1018 = vmatprep.mubr.f32.mxu0 0.0
      %1019 = vmatmul.mubr.f32.gmra.mrb[0].mxu0 %v511
      %v1020 = vpop.f32.mrb[0].mxu0
      %v1021 = vadd.f32 %v582, %v1020
      %v1022 = vpop.f32.mrb[0].mxu0
      %1023 = vmatprep.mubr.f32.mxu0 0.0
      %1024 = vmatmul.mubr.f32.gmra.mrb[0].mxu0 %v512
      %v1025 = vpop.f32.mrb[0].mxu0
      %v1026 = vadd.f32 %v582, %v1025
      %v1027 = vpop.f32.mrb[0].mxu0
      %1028 = vmatprep.mubr.f32.mxu0 0.0
      %1029 = vmatmul.mubr.f32.gmra.mrb[0].mxu0 %v513
      %v1030 = vpop.f32.mrb[0].mxu0
      %v1031 = vadd.f32 %v582, %v1030
      %v1032 = vpop.f32.mrb[0].mxu0
      %1033 = vmatprep.mubr.f32.mxu0 0.0
      %1034 = vmatmul.mubr.f32.gmra.mrb[0].mxu0 %v514
      %v1035 = vpop.f32.mrb[0].mxu0
      %v1036 = vadd.f32 %v582, %v1035
      %v1037 = vpop.f32.mrb[0].mxu0
      %1038 = vmatprep.mubr.f32.mxu0 0.0
      %1039 = vmatmul.mubr.f32.gmra.mrb[0].mxu0 %v515
      %v1040 = vpop.f32.mrb[0].mxu0
      %v1041 = vadd.f32 %v582, %v1040
      %v1042 = vpop.f32.mrb[0].mxu0
      %1043 = vmatprep.mubr.f32.mxu0 0.0
      %1044 = vmatmul.mubr.f32.gmra.mrb[0].mxu0 %v516
      %v1045 = vpop.f32.mrb[0].mxu0
      %v1046 = vadd.f32 %v582, %v1045
      %v1047 = vpop.f32.mrb[0].mxu0
      %1048 = vmatprep.mubr.f32.mxu0 0.0
      %1049 = vmatmul.mubr.f32.gmra.mrb[0].mxu0 %v517
      %v1050 = vpop.f32.mrb[0].mxu0
      %v1051 = vadd.f32 %v582, %v1050
      %v1052 = vpop.f32.mrb[0].mxu0
      %1053 = vmatprep.mubr.f32.mxu0 0.0
      %1054 = vmatmul.mubr.f32.gmra.mrb[0].mxu0 %v518
      %v1055 = vpop.f32.mrb[0].mxu0
      %v1056 = vadd.f32 %v582, %v1055
      %v1057 = vpop.f32.mrb[0].mxu0
      %1058 = vmatprep.mubr.f32.mxu0 0.0
      %1059 = vmatmul.mubr.f32.gmra.mrb[0].mxu0 %v519
      %v1060 = vpop.f32.mrb[0].mxu0
      %v1061 = vadd.f32 %v582, %v1060
      %v1062 = vpop.f32.mrb[0].mxu0
      %1063 = vmatprep.mubr.f32.mxu0 0.0
      %1064 = vmatmul.mubr.f32.gmra.mrb[0].mxu0 %v520
      %v1065 = vpop.f32.mrb[0].mxu0
      %v1066 = vadd.f32 %v582, %v1065
      %v1067 = vpop.f32.mrb[0].mxu0
      %1068 = vmatprep.mubr.f32.mxu0 0.0
      %1069 = vmatmul.mubr.f32.gmra.mrb[0].mxu0 %v521
      %v1070 = vpop.f32.mrb[0].mxu0
      %v1071 = vadd.f32 %v582, %v1070
      %v1072 = vpop.f32.mrb[0].mxu0
      %1073 = vmatprep.mubr.f32.mxu0 0.0
      %1074 = vmatmul.mubr.f32.gmra.mrb[0].mxu0 %v522
      %v1075 = vpop.f32.mrb[0].mxu0
      %v1076 = vadd.f32 %v582, %v1075
      %v1077 = vpop.f32.mrb[0].mxu0
      %1078 = vmatprep.mubr.f32.mxu0 0.0
      %1079 = vmatmul.mubr.f32.gmra.mrb[0].mxu0 %v523
      %v1080 = vpop.f32.mrb[0].mxu0
      %v1081 = vadd.f32 %v582, %v1080
      %v1082 = vpop.f32.mrb[0].mxu0
      %1083 = vmatprep.mubr.f32.mxu0 0.0
      %1084 = vmatmul.mubr.f32.gmra.mrb[0].mxu0 %v524
      %v1085 = vpop.f32.mrb[0].mxu0
      %v1086 = vadd.f32 %v582, %v1085
      %v1087 = vpop.f32.mrb[0].mxu0
      %1088 = vmatprep.mubr.f32.mxu0 0.0
      %1089 = vmatmul.mubr.f32.gmra.mrb[0].mxu0 %v525
      %v1090 = vpop.f32.mrb[0].mxu0
      %v1091 = vadd.f32 %v582, %v1090
      %v1092 = vpop.f32.mrb[0].mxu0
      %1093 = vmatprep.mubr.f32.mxu0 0.0
      %1094 = vmatmul.mubr.f32.gmra.mrb[0].mxu0 %v526
      %v1095 = vpop.f32.mrb[0].mxu0
      %v1096 = vadd.f32 %v582, %v1095
      %v1097 = vpop.f32.mrb[0].mxu0
      %1098 = vmatprep.mubr.f32.mxu0 0.0
      %1099 = vmatmul.mubr.f32.gmra.mrb[0].mxu0 %v527
      %v1100 = vpop.f32.mrb[0].mxu0
      %v1101 = vadd.f32 %v582, %v1100
      %v1102 = vpop.f32.mrb[0].mxu0
      %1103 = vmatprep.mubr.f32.mxu0 0.0
      %1104 = vmatmul.mubr.f32.gmra.mrb[0].mxu0 %v528
      %v1105 = vpop.f32.mrb[0].mxu0
      %v1106 = vadd.f32 %v582, %v1105
      %v1107 = vpop.f32.mrb[0].mxu0
      %1108 = vmatprep.mubr.f32.mxu0 0.0
      %1109 = vmatmul.mubr.f32.gmra.mrb[0].mxu0 %v529
      %v1110 = vpop.f32.mrb[0].mxu0
      %v1111 = vadd.f32 %v582, %v1110
      %v1112 = vpop.f32.mrb[0].mxu0
      %1113 = vmatprep.mubr.f32.mxu0 0.0
      %1114 = vmatmul.mubr.f32.gmra.mrb[0].mxu0 %v530
      %v1115 = vpop.f32.mrb[0].mxu0
      %v1116 = vadd.f32 %v582, %v1115
      %v1117 = vpop.f32.mrb[0].mxu0
      %1118 = vmatprep.mubr.f32.mxu0 0.0
      %1119 = vmatmul.mubr.f32.gmra.mrb[0].mxu0 %v531
      %v1120 = vpop.f32.mrb[0].mxu0
      %v1121 = vadd.f32 %v582, %v1120
      %v1122 = vpop.f32.mrb[0].mxu0
      %1123 = vmatprep.mubr.f32.mxu0 0.0
      %1124 = vmatmul.mubr.f32.gmra.mrb[0].mxu0 %v532
      %v1125 = vpop.f32.mrb[0].mxu0
      %v1126 = vadd.f32 %v582, %v1125
      %v1127 = vpop.f32.mrb[0].mxu0
      %1128 = vmatprep.mubr.f32.mxu0 0.0
      %1129 = vmatmul.mubr.f32.gmra.mrb[0].mxu0 %v533
      %v1130 = vpop.f32.mrb[0].mxu0
      %v1131 = vadd.f32 %v582, %v1130
      %v1132 = vpop.f32.mrb[0].mxu0
      %1133 = vmatprep.mubr.f32.mxu0 0.0
      %1134 = vmatmul.mubr.f32.gmra.mrb[0].mxu0 %v534
      %v1135 = vpop.f32.mrb[0].mxu0
      %v1136 = vadd.f32 %v582, %v1135
      %v1137 = vpop.f32.mrb[0].mxu0
      %1138 = vmatprep.mubr.f32.mxu0 0.0
      %1139 = vmatmul.mubr.f32.gmra.mrb[0].mxu0 %v535
      %v1140 = vpop.f32.mrb[0].mxu0
      %v1141 = vadd.f32 %v582, %v1140
      %v1142 = vpop.f32.mrb[0].mxu0
      %1143 = vmatprep.mubr.f32.mxu0 0.0
      %1144 = vmatmul.mubr.f32.gmra.mrb[0].mxu0 %v536
      %v1145 = vpop.f32.mrb[0].mxu0
      %v1146 = vadd.f32 %v582, %v1145
      %v1147 = vpop.f32.mrb[0].mxu0
      %1148 = vmatprep.mubr.f32.mxu0 0.0
      %1149 = vmatmul.mubr.f32.gmra.mrb[0].mxu0 %v537
      %v1150 = vpop.f32.mrb[0].mxu0
      %v1151 = vadd.f32 %v582, %v1150
      %v1152 = vpop.f32.mrb[0].mxu0
      %1153 = vmatprep.mubr.f32.mxu0 0.0
      %1154 = vmatmul.mubr.f32.gmra.mrb[0].mxu0 %v538
      %v1155 = vpop.f32.mrb[0].mxu0
      %v1156 = vadd.f32 %v582, %v1155
      %v1157 = vpop.f32.mrb[0].mxu0
      %1158 = vmatprep.mubr.f32.mxu0 0.0
      %1159 = vmatmul.mubr.f32.gmra.mrb[0].mxu0 %v539
      %v1160 = vpop.f32.mrb[0].mxu0
      %v1161 = vadd.f32 %v582, %v1160
      %v1162 = vpop.f32.mrb[0].mxu0
      %1163 = vmatprep.mubr.f32.mxu0 0.0
      %1164 = vmatmul.mubr.f32.gmra.mrb[0].mxu0 %v540
      %v1165 = vpop.f32.mrb[0].mxu0
      %v1166 = vadd.f32 %v582, %v1165
      %v1167 = vpop.f32.mrb[0].mxu0
      %1168 = vmatprep.mubr.f32.mxu0 0.0
      %1169 = vmatmul.mubr.f32.gmra.mrb[0].mxu0 %v541
      %v1170 = vpop.f32.mrb[0].mxu0
      %v1171 = vadd.f32 %v582, %v1170
      %v1172 = vpop.f32.mrb[0].mxu0
      %1173 = vmatprep.mubr.f32.mxu0 0.0
      %1174 = vmatmul.mubr.f32.gmra.mrb[0].mxu0 %v542
      %v1175 = vpop.f32.mrb[0].mxu0
      %v1176 = vadd.f32 %v582, %v1175
      %v1177 = vpop.f32.mrb[0].mxu0
      %1178 = vmatprep.mubr.f32.mxu0 0.0
      %1179 = vmatmul.mubr.f32.gmra.mrb[0].mxu0 %v543
      %v1180 = vpop.f32.mrb[0].mxu0
      %v1181 = vadd.f32 %v582, %v1180
      %v1182 = vpop.f32.mrb[0].mxu0
      %1183 = vmatprep.mubr.f32.mxu0 0.0
      %1184 = vmatmul.mubr.f32.gmra.mrb[0].mxu0 %v544
      %v1185 = vpop.f32.mrb[0].mxu0
      %v1186 = vadd.f32 %v582, %v1185
      %v1187 = vpop.f32.mrb[0].mxu0
      %1188 = vmatprep.mubr.f32.mxu0 0.0
      %1189 = vmatmul.mubr.f32.gmra.mrb[0].mxu0 %v545
      %v1190 = vpop.f32.mrb[0].mxu0
      %v1191 = vadd.f32 %v582, %v1190
      %v1192 = vpop.f32.mrb[0].mxu0
      %1193 = vmatprep.mubr.f32.mxu0 0.0
      %1194 = vmatmul.mubr.f32.gmra.mrb[0].mxu0 %v546
      %v1195 = vpop.f32.mrb[0].mxu0
      %v1196 = vadd.f32 %v582, %v1195
      %v1197 = vpop.f32.mrb[0].mxu0
      %1198 = vmatprep.mubr.f32.mxu0 0.0
      %1199 = vmatmul.mubr.f32.gmra.mrb[0].mxu0 %v547
      %v1200 = vpop.f32.mrb[0].mxu0
      %v1201 = vadd.f32 %v582, %v1200
      %v1202 = vpop.f32.mrb[0].mxu0
      %1203 = vmatprep.mubr.f32.mxu0 0.0
      %1204 = vmatmul.mubr.f32.gmra.mrb[0].mxu0 %v548
      %v1205 = vpop.f32.mrb[0].mxu0
      %v1206 = vadd.f32 %v582, %v1205
      %v1207 = vpop.f32.mrb[0].mxu0
      %1208 = vmatprep.mubr.f32.mxu0 0.0
      %1209 = vmatmul.mubr.f32.gmra.mrb[0].mxu0 %v549
      %v1210 = vpop.f32.mrb[0].mxu0
      %v1211 = vadd.f32 %v582, %v1210
      %v1212 = vpop.f32.mrb[0].mxu0
      %1213 = vmatprep.mubr.f32.mxu0 0.0
      %1214 = vmatmul.mubr.f32.gmra.mrb[0].mxu0 %v550
      %v1215 = vpop.f32.mrb[0].mxu0
      %v1216 = vadd.f32 %v582, %v1215
      %v1217 = vpop.f32.mrb[0].mxu0
      %1218 = vmatprep.mubr.f32.mxu0 0.0
      %1219 = vmatmul.mubr.f32.gmra.mrb[0].mxu0 %v551
      %v1220 = vpop.f32.mrb[0].mxu0
      %v1221 = vadd.f32 %v582, %v1220
      %v1222 = vpop.f32.mrb[0].mxu0
      %1223 = vmatprep.mubr.f32.mxu0 0.0
      %1224 = vmatmul.mubr.f32.gmra.mrb[0].mxu0 %v552
      %v1225 = vpop.f32.mrb[0].mxu0
      %v1226 = vadd.f32 %v582, %v1225
      %v1227 = vpop.f32.mrb[0].mxu0
      %1228 = vmatprep.mubr.f32.mxu0 0.0
      %1229 = vmatmul.mubr.f32.gmra.mrb[0].mxu0 %v553
      %v1230 = vpop.f32.mrb[0].mxu0
      %v1231 = vadd.f32 %v582, %v1230
      %v1232 = vpop.f32.mrb[0].mxu0
      %1233 = vmatprep.mubr.f32.mxu0 0.0
      %1234 = vmatmul.mubr.f32.gmra.mrb[0].mxu0 %v554
      %v1235 = vpop.f32.mrb[0].mxu0
      %v1236 = vadd.f32 %v582, %v1235
      %v1237 = vpop.f32.mrb[0].mxu0
      %1238 = vmatprep.mubr.f32.mxu0 0.0
      %1239 = vmatmul.mubr.f32.gmra.mrb[0].mxu0 %v555
      %v1240 = vpop.f32.mrb[0].mxu0
      %v1241 = vadd.f32 %v582, %v1240
      %v1242 = vpop.f32.mrb[0].mxu0
      %1243 = vmatprep.mubr.f32.mxu0 0.0
      %1244 = vmatmul.mubr.f32.gmra.mrb[0].mxu0 %v556
      %v1245 = vpop.f32.mrb[0].mxu0
      %v1246 = vadd.f32 %v582, %v1245
      %v1247 = vpop.f32.mrb[0].mxu0
      %1248 = vmatprep.mubr.f32.mxu0 0.0
      %1249 = vmatmul.mubr.f32.gmra.mrb[0].mxu0 %v557
      %v1250 = vpop.f32.mrb[0].mxu0
      %v1251 = vadd.f32 %v582, %v1250
      %v1252 = vpop.f32.mrb[0].mxu0
      %1253 = vmatprep.mubr.f32.mxu0 0.0
      %1254 = vmatmul.mubr.f32.gmra.mrb[0].mxu0 %v558
      %v1255 = vpop.f32.mrb[0].mxu0
      %v1256 = vadd.f32 %v582, %v1255
      %v1257 = vpop.f32.mrb[0].mxu0
      %1258 = vmatprep.mubr.f32.mxu0 0.0
      %1259 = vmatmul.mubr.f32.gmra.mrb[0].mxu0 %v559
      %v1260 = vpop.f32.mrb[0].mxu0
      %v1261 = vadd.f32 %v582, %v1260
      %v1262 = vpop.f32.mrb[0].mxu0
      %1263 = vmatprep.mubr.f32.mxu0 0.0
      %1264 = vmatmul.mubr.f32.gmra.mrb[0].mxu0 %v560
      %v1265 = vpop.f32.mrb[0].mxu0
      %v1266 = vadd.f32 %v582, %v1265
      %v1267 = vpop.f32.mrb[0].mxu0
      %1268 = vdwg.mxu0
      %v1269 = vmax.f32 %v651, 0.0
      %v1270 = vmax.f32 %v656, 0.0
      %v1271 = vmax.f32 %v661, 0.0
      %v1272 = vmax.f32 %v666, 0.0
      %v1273 = vmax.f32 %v671, 0.0
      %v1274 = vmax.f32 %v676, 0.0
      %v1275 = vmax.f32 %v681, 0.0
      %v1276 = vmax.f32 %v686, 0.0
      %v1277 = vmax.f32 %v691, 0.0
      %v1278 = vmax.f32 %v696, 0.0
      %v1279 = vmax.f32 %v701, 0.0
      %v1280 = vmax.f32 %v706, 0.0
      %v1281 = vmax.f32 %v711, 0.0
      %v1282 = vmax.f32 %v716, 0.0
      %v1283 = vmax.f32 %v721, 0.0
      %v1284 = vmax.f32 %v726, 0.0
      %v1285 = vmax.f32 %v731, 0.0
      %v1286 = vmax.f32 %v736, 0.0
      %v1287 = vmax.f32 %v741, 0.0
      %v1288 = vmax.f32 %v746, 0.0
      %v1289 = vmax.f32 %v751, 0.0
      %v1290 = vmax.f32 %v756, 0.0
      %v1291 = vmax.f32 %v761, 0.0
      %v1292 = vmax.f32 %v766, 0.0
      %v1293 = vmax.f32 %v771, 0.0
      %v1294 = vmax.f32 %v776, 0.0
      %v1295 = vmax.f32 %v781, 0.0
      %v1296 = vmax.f32 %v786, 0.0
      %v1297 = vmax.f32 %v791, 0.0
      %v1298 = vmax.f32 %v796, 0.0
      %v1299 = vmax.f32 %v801, 0.0
      %v1300 = vmax.f32 %v806, 0.0
      %v1301 = vmax.f32 %v811, 0.0
      %v1302 = vmax.f32 %v816, 0.0
      %v1303 = vmax.f32 %v821, 0.0
      %v1304 = vmax.f32 %v826, 0.0
      %v1305 = vmax.f32 %v831, 0.0
      %v1306 = vmax.f32 %v836, 0.0
      %v1307 = vmax.f32 %v841, 0.0
      %v1308 = vmax.f32 %v846, 0.0
      %v1309 = vmax.f32 %v851, 0.0
      %v1310 = vmax.f32 %v856, 0.0
      %v1311 = vmax.f32 %v861, 0.0
      %v1312 = vmax.f32 %v866, 0.0
      %v1313 = vmax.f32 %v871, 0.0
      %v1314 = vmax.f32 %v876, 0.0
      %v1315 = vmax.f32 %v881, 0.0
      %v1316 = vmax.f32 %v886, 0.0
      %v1317 = vmax.f32 %v891, 0.0
      %v1318 = vmax.f32 %v896, 0.0
      %v1319 = vmax.f32 %v901, 0.0
      %v1320 = vmax.f32 %v906, 0.0
      %v1321 = vmax.f32 %v911, 0.0
      %v1322 = vmax.f32 %v916, 0.0
      %v1323 = vmax.f32 %v921, 0.0
      %v1324 = vmax.f32 %v926, 0.0
      %v1325 = vmax.f32 %v931, 0.0
      %v1326 = vmax.f32 %v936, 0.0
      %v1327 = vmax.f32 %v941, 0.0
      %v1328 = vmax.f32 %v946, 0.0
      %v1329 = vmax.f32 %v951, 0.0
      %v1330 = vmax.f32 %v956, 0.0
      %v1331 = vmax.f32 %v961, 0.0
      %v1332 = vmax.f32 %v966, 0.0
      %v1333 = vmax.f32 %v971, 0.0
      %v1334 = vmax.f32 %v976, 0.0
      %v1335 = vmax.f32 %v981, 0.0
      %v1336 = vmax.f32 %v986, 0.0
      %v1337 = vmax.f32 %v991, 0.0
      %v1338 = vmax.f32 %v996, 0.0
      %v1339 = vmax.f32 %v1001, 0.0
      %v1340 = vmax.f32 %v1006, 0.0
      %v1341 = vmax.f32 %v1011, 0.0
      %v1342 = vmax.f32 %v1016, 0.0
      %v1343 = vmax.f32 %v1021, 0.0
      %v1344 = vmax.f32 %v1026, 0.0
      %v1345 = vmax.f32 %v1031, 0.0
      %v1346 = vmax.f32 %v1036, 0.0
      %v1347 = vmax.f32 %v1041, 0.0
      %v1348 = vmax.f32 %v1046, 0.0
      %v1349 = vmax.f32 %v1051, 0.0
      %v1350 = vmax.f32 %v1056, 0.0
      %v1351 = vmax.f32 %v1061, 0.0
      %v1352 = vmax.f32 %v1066, 0.0
      %v1353 = vmax.f32 %v1071, 0.0
      %v1354 = vmax.f32 %v1076, 0.0
      %v1355 = vmax.f32 %v1081, 0.0
      %v1356 = vmax.f32 %v1086, 0.0
      %v1357 = vmax.f32 %v1091, 0.0
      %v1358 = vmax.f32 %v1096, 0.0
      %v1359 = vmax.f32 %v1101, 0.0
      %v1360 = vmax.f32 %v1106, 0.0
      %v1361 = vmax.f32 %v1111, 0.0
      %v1362 = vmax.f32 %v1116, 0.0
      %v1363 = vmax.f32 %v1121, 0.0
      %v1364 = vmax.f32 %v1126, 0.0
      %v1365 = vmax.f32 %v1131, 0.0
      %v1366 = vmax.f32 %v1136, 0.0
      %v1367 = vmax.f32 %v1141, 0.0
      %v1368 = vmax.f32 %v1146, 0.0
      %v1369 = vmax.f32 %v1151, 0.0
      %v1370 = vmax.f32 %v1156, 0.0
      %v1371 = vmax.f32 %v1161, 0.0
      %v1372 = vmax.f32 %v1166, 0.0
      %v1373 = vmax.f32 %v1171, 0.0
      %v1374 = vmax.f32 %v1176, 0.0
      %v1375 = vmax.f32 %v1181, 0.0
      %v1376 = vmax.f32 %v1186, 0.0
      %v1377 = vmax.f32 %v1191, 0.0
      %v1378 = vmax.f32 %v1196, 0.0
      %v1379 = vmax.f32 %v1201, 0.0
      %v1380 = vmax.f32 %v1206, 0.0
      %v1381 = vmax.f32 %v1211, 0.0
      %v1382 = vmax.f32 %v1216, 0.0
      %v1383 = vmax.f32 %v1221, 0.0
      %v1384 = vmax.f32 %v1226, 0.0
      %v1385 = vmax.f32 %v1231, 0.0
      %v1386 = vmax.f32 %v1236, 0.0
      %v1387 = vmax.f32 %v1241, 0.0
      %v1388 = vmax.f32 %v1246, 0.0
      %v1389 = vmax.f32 %v1251, 0.0
      %v1390 = vmax.f32 %v1256, 0.0
      %v1391 = vmax.f32 %v1261, 0.0
      %v1392 = vmax.f32 %v1266, 0.0
      %vm1393 = vcmask 261120
      %1394 = vst.msk [vmem:[#allocation2] sm:$0xff] %vm1393, %v1269
      %1395 = vst.msk [vmem:[#allocation2 + $0x8] sm:$0xff] %vm1393, %v1270
      %1396 = vst.msk [vmem:[#allocation2 + $0x10] sm:$0xff] %vm1393, %v1271
      %1397 = vst.msk [vmem:[#allocation2 + $0x18] sm:$0xff] %vm1393, %v1272
      %1398 = vst.msk [vmem:[#allocation2 + $0x20] sm:$0xff] %vm1393, %v1273
      %1399 = vst.msk [vmem:[#allocation2 + $0x28] sm:$0xff] %vm1393, %v1274
      %1400 = vst.msk [vmem:[#allocation2 + $0x30] sm:$0xff] %vm1393, %v1275
      %1401 = vst.msk [vmem:[#allocation2 + $0x38] sm:$0xff] %vm1393, %v1276
      %1402 = vst.msk [vmem:[#allocation2 + $0x40] sm:$0xff] %vm1393, %v1277
      %1403 = vst.msk [vmem:[#allocation2 + $0x48] sm:$0xff] %vm1393, %v1278
      %1404 = vst.msk [vmem:[#allocation2 + $0x50] sm:$0xff] %vm1393, %v1279
      %1405 = vst.msk [vmem:[#allocation2 + $0x58] sm:$0xff] %vm1393, %v1280
      %1406 = vst.msk [vmem:[#allocation2 + $0x60] sm:$0xff] %vm1393, %v1281
      %1407 = vst.msk [vmem:[#allocation2 + $0x68] sm:$0xff] %vm1393, %v1282
      %1408 = vst.msk [vmem:[#allocation2 + $0x70] sm:$0xff] %vm1393, %v1283
      %1409 = vst.msk [vmem:[#allocation2 + $0x78] sm:$0xff] %vm1393, %v1284
      %1410 = vst.msk [vmem:[#allocation2 + $0x80] sm:$0xff] %vm1393, %v1285
      %1411 = vst.msk [vmem:[#allocation2 + $0x88] sm:$0xff] %vm1393, %v1286
      %1412 = vst.msk [vmem:[#allocation2 + $0x90] sm:$0xff] %vm1393, %v1287
      %1413 = vst.msk [vmem:[#allocation2 + $0x98] sm:$0xff] %vm1393, %v1288
      %1414 = vst.msk [vmem:[#allocation2 + $0xa0] sm:$0xff] %vm1393, %v1289
      %1415 = vst.msk [vmem:[#allocation2 + $0xa8] sm:$0xff] %vm1393, %v1290
      %1416 = vst.msk [vmem:[#allocation2 + $0xb0] sm:$0xff] %vm1393, %v1291
      %1417 = vst.msk [vmem:[#allocation2 + $0xb8] sm:$0xff] %vm1393, %v1292
      %1418 = vst.msk [vmem:[#allocation2 + $0xc0] sm:$0xff] %vm1393, %v1293
      %1419 = vst.msk [vmem:[#allocation2 + $0xc8] sm:$0xff] %vm1393, %v1294
      %1420 = vst.msk [vmem:[#allocation2 + $0xd0] sm:$0xff] %vm1393, %v1295
      %1421 = vst.msk [vmem:[#allocation2 + $0xd8] sm:$0xff] %vm1393, %v1296
      %1422 = vst.msk [vmem:[#allocation2 + $0xe0] sm:$0xff] %vm1393, %v1297
      %1423 = vst.msk [vmem:[#allocation2 + $0xe8] sm:$0xff] %vm1393, %v1298
      %1424 = vst.msk [vmem:[#allocation2 + $0xf0] sm:$0xff] %vm1393, %v1299
      %1425 = vst.msk [vmem:[#allocation2 + $0xf8] sm:$0xff] %vm1393, %v1300
      %1426 = vst.msk [vmem:[#allocation2 + $0x100] sm:$0xff] %vm1393, %v1301
      %1427 = vst.msk [vmem:[#allocation2 + $0x108] sm:$0xff] %vm1393, %v1302
      %1428 = vst.msk [vmem:[#allocation2 + $0x110] sm:$0xff] %vm1393, %v1303
      %1429 = vst.msk [vmem:[#allocation2 + $0x118] sm:$0xff] %vm1393, %v1304
      %1430 = vst.msk [vmem:[#allocation2 + $0x120] sm:$0xff] %vm1393, %v1305
      %1431 = vst.msk [vmem:[#allocation2 + $0x128] sm:$0xff] %vm1393, %v1306
      %1432 = vst.msk [vmem:[#allocation2 + $0x130] sm:$0xff] %vm1393, %v1307
      %1433 = vst.msk [vmem:[#allocation2 + $0x138] sm:$0xff] %vm1393, %v1308
      %1434 = vst.msk [vmem:[#allocation2 + $0x140] sm:$0xff] %vm1393, %v1309
      %1435 = vst.msk [vmem:[#allocation2 + $0x148] sm:$0xff] %vm1393, %v1310
      %1436 = vst.msk [vmem:[#allocation2 + $0x150] sm:$0xff] %vm1393, %v1311
      %1437 = vst.msk [vmem:[#allocation2 + $0x158] sm:$0xff] %vm1393, %v1312
      %1438 = vst.msk [vmem:[#allocation2 + $0x160] sm:$0xff] %vm1393, %v1313
      %1439 = vst.msk [vmem:[#allocation2 + $0x168] sm:$0xff] %vm1393, %v1314
      %1440 = vst.msk [vmem:[#allocation2 + $0x170] sm:$0xff] %vm1393, %v1315
      %1441 = vst.msk [vmem:[#allocation2 + $0x178] sm:$0xff] %vm1393, %v1316
      %1442 = vst.msk [vmem:[#allocation2 + $0x180] sm:$0xff] %vm1393, %v1317
      %1443 = vst.msk [vmem:[#allocation2 + $0x188] sm:$0xff] %vm1393, %v1318
      %1444 = vst.msk [vmem:[#allocation2 + $0x190] sm:$0xff] %vm1393, %v1319
      %1445 = vst.msk [vmem:[#allocation2 + $0x198] sm:$0xff] %vm1393, %v1320
      %1446 = vst.msk [vmem:[#allocation2 + $0x1a0] sm:$0xff] %vm1393, %v1321
      %1447 = vst.msk [vmem:[#allocation2 + $0x1a8] sm:$0xff] %vm1393, %v1322
      %1448 = vst.msk [vmem:[#allocation2 + $0x1b0] sm:$0xff] %vm1393, %v1323
      %1449 = vst.msk [vmem:[#allocation2 + $0x1b8] sm:$0xff] %vm1393, %v1324
      %1450 = vst.msk [vmem:[#allocation2 + $0x1c0] sm:$0xff] %vm1393, %v1325
      %1451 = vst.msk [vmem:[#allocation2 + $0x1c8] sm:$0xff] %vm1393, %v1326
      %1452 = vst.msk [vmem:[#allocation2 + $0x1d0] sm:$0xff] %vm1393, %v1327
      %1453 = vst.msk [vmem:[#allocation2 + $0x1d8] sm:$0xff] %vm1393, %v1328
      %1454 = vst.msk [vmem:[#allocation2 + $0x1e0] sm:$0xff] %vm1393, %v1329
      %1455 = vst.msk [vmem:[#allocation2 + $0x1e8] sm:$0xff] %vm1393, %v1330
      %1456 = vst.msk [vmem:[#allocation2 + $0x1f0] sm:$0xff] %vm1393, %v1331
      %1457 = vst.msk [vmem:[#allocation2 + $0x1f8] sm:$0xff] %vm1393, %v1332
      %1458 = vst.msk [vmem:[#allocation2 + $0x200] sm:$0xff] %vm1393, %v1333
      %1459 = vst.msk [vmem:[#allocation2 + $0x208] sm:$0xff] %vm1393, %v1334
      %1460 = vst.msk [vmem:[#allocation2 + $0x210] sm:$0xff] %vm1393, %v1335
      %1461 = vst.msk [vmem:[#allocation2 + $0x218] sm:$0xff] %vm1393, %v1336
      %1462 = vst.msk [vmem:[#allocation2 + $0x220] sm:$0xff] %vm1393, %v1337
      %1463 = vst.msk [vmem:[#allocation2 + $0x228] sm:$0xff] %vm1393, %v1338
      %1464 = vst.msk [vmem:[#allocation2 + $0x230] sm:$0xff] %vm1393, %v1339
      %1465 = vst.msk [vmem:[#allocation2 + $0x238] sm:$0xff] %vm1393, %v1340
      %1466 = vst.msk [vmem:[#allocation2 + $0x240] sm:$0xff] %vm1393, %v1341
      %1467 = vst.msk [vmem:[#allocation2 + $0x248] sm:$0xff] %vm1393, %v1342
      %1468 = vst.msk [vmem:[#allocation2 + $0x250] sm:$0xff] %vm1393, %v1343
      %1469 = vst.msk [vmem:[#allocation2 + $0x258] sm:$0xff] %vm1393, %v1344
      %1470 = vst.msk [vmem:[#allocation2 + $0x260] sm:$0xff] %vm1393, %v1345
      %1471 = vst.msk [vmem:[#allocation2 + $0x268] sm:$0xff] %vm1393, %v1346
      %1472 = vst.msk [vmem:[#allocation2 + $0x270] sm:$0xff] %vm1393, %v1347
      %1473 = vst.msk [vmem:[#allocation2 + $0x278] sm:$0xff] %vm1393, %v1348
      %1474 = vst.msk [vmem:[#allocation2 + $0x280] sm:$0xff] %vm1393, %v1349
      %1475 = vst.msk [vmem:[#allocation2 + $0x288] sm:$0xff] %vm1393, %v1350
      %1476 = vst.msk [vmem:[#allocation2 + $0x290] sm:$0xff] %vm1393, %v1351
      %1477 = vst.msk [vmem:[#allocation2 + $0x298] sm:$0xff] %vm1393, %v1352
      %1478 = vst.msk [vmem:[#allocation2 + $0x2a0] sm:$0xff] %vm1393, %v1353
      %1479 = vst.msk [vmem:[#allocation2 + $0x2a8] sm:$0xff] %vm1393, %v1354
      %1480 = vst.msk [vmem:[#allocation2 + $0x2b0] sm:$0xff] %vm1393, %v1355
      %1481 = vst.msk [vmem:[#allocation2 + $0x2b8] sm:$0xff] %vm1393, %v1356
      %1482 = vst.msk [vmem:[#allocation2 + $0x2c0] sm:$0xff] %vm1393, %v1357
      %1483 = vst.msk [vmem:[#allocation2 + $0x2c8] sm:$0xff] %vm1393, %v1358
      %1484 = vst.msk [vmem:[#allocation2 + $0x2d0] sm:$0xff] %vm1393, %v1359
      %1485 = vst.msk [vmem:[#allocation2 + $0x2d8] sm:$0xff] %vm1393, %v1360
      %1486 = vst.msk [vmem:[#allocation2 + $0x2e0] sm:$0xff] %vm1393, %v1361
      %1487 = vst.msk [vmem:[#allocation2 + $0x2e8] sm:$0xff] %vm1393, %v1362
      %1488 = vst.msk [vmem:[#allocation2 + $0x2f0] sm:$0xff] %vm1393, %v1363
      %1489 = vst.msk [vmem:[#allocation2 + $0x2f8] sm:$0xff] %vm1393, %v1364
      %1490 = vst.msk [vmem:[#allocation2 + $0x300] sm:$0xff] %vm1393, %v1365
      %1491 = vst.msk [vmem:[#allocation2 + $0x308] sm:$0xff] %vm1393, %v1366
      %1492 = vst.msk [vmem:[#allocation2 + $0x310] sm:$0xff] %vm1393, %v1367
      %1493 = vst.msk [vmem:[#allocation2 + $0x318] sm:$0xff] %vm1393, %v1368
      %1494 = vst.msk [vmem:[#allocation2 + $0x320] sm:$0xff] %vm1393, %v1369
      %1495 = vst.msk [vmem:[#allocation2 + $0x328] sm:$0xff] %vm1393, %v1370
      %1496 = vst.msk [vmem:[#allocation2 + $0x330] sm:$0xff] %vm1393, %v1371
      %1497 = vst.msk [vmem:[#allocation2 + $0x338] sm:$0xff] %vm1393, %v1372
      %1498 = vst.msk [vmem:[#allocation2 + $0x340] sm:$0xff] %vm1393, %v1373
      %1499 = vst.msk [vmem:[#allocation2 + $0x348] sm:$0xff] %vm1393, %v1374
      %1500 = vst.msk [vmem:[#allocation2 + $0x350] sm:$0xff] %vm1393, %v1375
      %1501 = vst.msk [vmem:[#allocation2 + $0x358] sm:$0xff] %vm1393, %v1376
      %1502 = vst.msk [vmem:[#allocation2 + $0x360] sm:$0xff] %vm1393, %v1377
      %1503 = vst.msk [vmem:[#allocation2 + $0x368] sm:$0xff] %vm1393, %v1378
      %1504 = vst.msk [vmem:[#allocation2 + $0x370] sm:$0xff] %vm1393, %v1379
      %1505 = vst.msk [vmem:[#allocation2 + $0x378] sm:$0xff] %vm1393, %v1380
      %1506 = vst.msk [vmem:[#allocation2 + $0x380] sm:$0xff] %vm1393, %v1381
      %1507 = vst.msk [vmem:[#allocation2 + $0x388] sm:$0xff] %vm1393, %v1382
      %1508 = vst.msk [vmem:[#allocation2 + $0x390] sm:$0xff] %vm1393, %v1383
      %1509 = vst.msk [vmem:[#allocation2 + $0x398] sm:$0xff] %vm1393, %v1384
      %1510 = vst.msk [vmem:[#allocation2 + $0x3a0] sm:$0xff] %vm1393, %v1385
      %1511 = vst.msk [vmem:[#allocation2 + $0x3a8] sm:$0xff] %vm1393, %v1386
      %1512 = vst.msk [vmem:[#allocation2 + $0x3b0] sm:$0xff] %vm1393, %v1387
      %1513 = vst.msk [vmem:[#allocation2 + $0x3b8] sm:$0xff] %vm1393, %v1388
      %1514 = vst.msk [vmem:[#allocation2 + $0x3c0] sm:$0xff] %vm1393, %v1389
      %1515 = vst.msk [vmem:[#allocation2 + $0x3c8] sm:$0xff] %vm1393, %v1390
      %1516 = vst.msk [vmem:[#allocation2 + $0x3d0] sm:$0xff] %vm1393, %v1391
      %1517 = vst.msk [vmem:[#allocation2 + $0x3d8] sm:$0xff] %vm1393, %v1392
      %v1518 = vld [vmem:[#allocation2] sm:$0xff]
      %v1519 = vld [vmem:[#allocation2 + $0x8] sm:$0xff]
      %v1520 = vld [vmem:[#allocation2 + $0x10] sm:$0xff]
      %v1521 = vld [vmem:[#allocation2 + $0x18] sm:$0xff]
      %v1522 = vld [vmem:[#allocation2 + $0x20] sm:$0xff]
      %v1523 = vld [vmem:[#allocation2 + $0x28] sm:$0xff]
      %v1524 = vld [vmem:[#allocation2 + $0x30] sm:$0xff]
      %v1525 = vld [vmem:[#allocation2 + $0x38] sm:$0xff]
      %v1526 = vld [vmem:[#allocation2 + $0x40] sm:$0xff]
      %v1527 = vld [vmem:[#allocation2 + $0x48] sm:$0xff]
      %v1528 = vld [vmem:[#allocation2 + $0x50] sm:$0xff]
      %v1529 = vld [vmem:[#allocation2 + $0x58] sm:$0xff]
      %v1530 = vld [vmem:[#allocation2 + $0x60] sm:$0xff]
      %v1531 = vld [vmem:[#allocation2 + $0x68] sm:$0xff]
      %v1532 = vld [vmem:[#allocation2 + $0x70] sm:$0xff]
      %v1533 = vld [vmem:[#allocation2 + $0x78] sm:$0xff]
      %vm1536 = vcmask 1046528
      %v1537 = vrot.slane %v1518, 1
      %v1538 = vrot.slane %v1519, 1
      %v1539 = vsel %vm1536, %v1537, %v1538
      %1540 = vrot.lane.b32.xlu0 %v1539, 32
      %v1541 = vpop.permute.xlu0 %1540
      %1542 = vrot.lane.b32.xlu0 %v1538, 32
      %v1543 = vpop.permute.xlu0 %1542
      %1548 = vrot.lane.b32.xlu0 %v1520, 64
      %v1549 = vpop.permute.xlu0 %1548
      %1550 = vrot.lane.b32.xlu0 %v1521, 64
      %v1551 = vpop.permute.xlu0 %1550
      %v1554 = vrot.slane %v1520, 1
      %v1555 = vrot.slane %v1521, 1
      %v1556 = vsel %vm1536, %v1554, %v1555
      %1557 = vrot.lane.b32.xlu0 %v1556, 96
      %v1558 = vpop.permute.xlu0 %1557
      %1559 = vrot.lane.b32.xlu0 %v1555, 96
      %v1560 = vpop.permute.xlu0 %1559
      %v1565 = vrot.slane %v1522, 1
      %v1566 = vrot.slane %v1523, 1
      %v1567 = vsel %vm1536, %v1565, %v1566
      %1568 = vrot.lane.b32.xlu0 %v1567, 32
      %v1569 = vpop.permute.xlu0 %1568
      %1570 = vrot.lane.b32.xlu0 %v1566, 32
      %v1571 = vpop.permute.xlu0 %1570
      %1576 = vrot.lane.b32.xlu0 %v1524, 64
      %v1577 = vpop.permute.xlu0 %1576
      %1578 = vrot.lane.b32.xlu0 %v1525, 64
      %v1579 = vpop.permute.xlu0 %1578
      %v1582 = vrot.slane %v1524, 1
      %v1583 = vrot.slane %v1525, 1
      %v1584 = vsel %vm1536, %v1582, %v1583
      %1585 = vrot.lane.b32.xlu0 %v1584, 96
      %v1586 = vpop.permute.xlu0 %1585
      %1587 = vrot.lane.b32.xlu0 %v1583, 96
      %v1588 = vpop.permute.xlu0 %1587
      %v1593 = vrot.slane %v1526, 1
      %v1594 = vrot.slane %v1527, 1
      %v1595 = vsel %vm1536, %v1593, %v1594
      %1596 = vrot.lane.b32.xlu0 %v1595, 32
      %v1597 = vpop.permute.xlu0 %1596
      %1598 = vrot.lane.b32.xlu0 %v1594, 32
      %v1599 = vpop.permute.xlu0 %1598
      %1604 = vrot.lane.b32.xlu0 %v1528, 64
      %v1605 = vpop.permute.xlu0 %1604
      %1606 = vrot.lane.b32.xlu0 %v1529, 64
      %v1607 = vpop.permute.xlu0 %1606
      %v1610 = vrot.slane %v1528, 1
      %v1611 = vrot.slane %v1529, 1
      %v1612 = vsel %vm1536, %v1610, %v1611
      %1613 = vrot.lane.b32.xlu0 %v1612, 96
      %v1614 = vpop.permute.xlu0 %1613
      %1615 = vrot.lane.b32.xlu0 %v1611, 96
      %v1616 = vpop.permute.xlu0 %1615
      %v1621 = vrot.slane %v1530, 1
      %v1622 = vrot.slane %v1531, 1
      %v1623 = vsel %vm1536, %v1621, %v1622
      %1624 = vrot.lane.b32.xlu0 %v1623, 32
      %v1625 = vpop.permute.xlu0 %1624
      %1626 = vrot.lane.b32.xlu0 %v1622, 32
      %v1627 = vpop.permute.xlu0 %1626
      %1632 = vrot.lane.b32.xlu0 %v1532, 64
      %v1633 = vpop.permute.xlu0 %1632
      %1634 = vrot.lane.b32.xlu0 %v1533, 64
      %v1635 = vpop.permute.xlu0 %1634
      %v1638 = vrot.slane %v1532, 1
      %v1639 = vrot.slane %v1533, 1
      %v1640 = vsel %vm1536, %v1638, %v1639
      %1641 = vrot.lane.b32.xlu0 %v1640, 96
      %v1642 = vpop.permute.xlu0 %1641
      %1643 = vrot.lane.b32.xlu0 %v1639, 96
      %v1644 = vpop.permute.xlu0 %1643
      %v1647 = vsel %vm1393, %v1518, %v1541
      %v1648 = vsel %vm1393, %v1519, %v1543
      %vm1649 = vcmask 523264
      %v1650 = vsel %vm1649, %v1647, %v1549
      %v1651 = vsel %vm1649, %v1648, %v1551
      %vm1652 = vcmask 785408
      %v1653 = vsel %vm1652, %v1650, %v1558
      %v1654 = vsel %vm1652, %v1651, %v1560
      %v1655 = vsel %vm1393, %v1522, %v1569
      %v1656 = vsel %vm1393, %v1523, %v1571
      %v1657 = vsel %vm1649, %v1655, %v1577
      %v1658 = vsel %vm1649, %v1656, %v1579
      %v1659 = vsel %vm1652, %v1657, %v1586
      %v1660 = vsel %vm1652, %v1658, %v1588
      %v1661 = vsel %vm1393, %v1526, %v1597
      %v1662 = vsel %vm1393, %v1527, %v1599
      %v1663 = vsel %vm1649, %v1661, %v1605
      %v1664 = vsel %vm1649, %v1662, %v1607
      %v1665 = vsel %vm1652, %v1663, %v1614
      %v1666 = vsel %vm1652, %v1664, %v1616
      %v1667 = vsel %vm1393, %v1530, %v1625
      %v1668 = vsel %vm1393, %v1531, %v1627
      %v1669 = vsel %vm1649, %v1667, %v1633
      %v1670 = vsel %vm1649, %v1668, %v1635
      %v1671 = vsel %vm1652, %v1669, %v1642
      %v1672 = vsel %vm1652, %v1670, %v1644
      %1673 = vst [vmem:[#allocation5] sm:$0xff] %v1653
      %1674 = vst [vmem:[#allocation5 + $0x8] sm:$0xff] %v1659
      %1675 = vst [vmem:[#allocation5 + $0x10] sm:$0xff] %v1665
      %1676 = vst [vmem:[#allocation5 + $0x18] sm:$0xff] %v1671
      %1677 = vst [vmem:[#allocation5 + $0x20] sm:$0x3f] %v1654
      %1678 = vst [vmem:[#allocation5 + $0x28] sm:$0x3f] %v1660
      %1679 = vst [vmem:[#allocation5 + $0x30] sm:$0x3f] %v1666
      %1680 = vst [vmem:[#allocation5 + $0x38] sm:$0x3f] %v1672
      %v1681 = vld [vmem:[#allocation2 + $0x40] sm:$0xff]
      %v1682 = vld [vmem:[#allocation2 + $0x48] sm:$0xff]
      %v1683 = vld [vmem:[#allocation2 + $0x50] sm:$0xff]
      %v1684 = vld [vmem:[#allocation2 + $0x58] sm:$0xff]
      %v1685 = vld [vmem:[#allocation2 + $0x60] sm:$0xff]
      %v1686 = vld [vmem:[#allocation2 + $0x68] sm:$0xff]
      %v1687 = vld [vmem:[#allocation2 + $0x70] sm:$0xff]
      %v1688 = vld [vmem:[#allocation2 + $0x78] sm:$0xff]
      %v1689 = vld [vmem:[#allocation2 + $0x80] sm:$0xff]
      %v1690 = vld [vmem:[#allocation2 + $0x88] sm:$0xff]
      %v1691 = vld [vmem:[#allocation2 + $0x90] sm:$0xff]
      %v1692 = vld [vmem:[#allocation2 + $0x98] sm:$0xff]
      %v1693 = vld [vmem:[#allocation2 + $0xa0] sm:$0xff]
      %v1694 = vld [vmem:[#allocation2 + $0xa8] sm:$0xff]
      %v1695 = vld [vmem:[#allocation2 + $0xb0] sm:$0xff]
      %v1696 = vld [vmem:[#allocation2 + $0xb8] sm:$0xff]
      %v1699 = vrot.slane %v1681, 1
      %v1700 = vrot.slane %v1682, 1
      %v1701 = vsel %vm1536, %v1699, %v1700
      %1702 = vrot.lane.b32.xlu0 %v1701, 32
      %v1703 = vpop.permute.xlu0 %1702
      %1704 = vrot.lane.b32.xlu0 %v1700, 32
      %v1705 = vpop.permute.xlu0 %1704
      %1710 = vrot.lane.b32.xlu0 %v1683, 64
      %v1711 = vpop.permute.xlu0 %1710
      %1712 = vrot.lane.b32.xlu0 %v1684, 64
      %v1713 = vpop.permute.xlu0 %1712
      %v1716 = vrot.slane %v1683, 1
      %v1717 = vrot.slane %v1684, 1
      %v1718 = vsel %vm1536, %v1716, %v1717
      %1719 = vrot.lane.b32.xlu0 %v1718, 96
      %v1720 = vpop.permute.xlu0 %1719
      %1721 = vrot.lane.b32.xlu0 %v1717, 96
      %v1722 = vpop.permute.xlu0 %1721
      %v1727 = vrot.slane %v1685, 1
      %v1728 = vrot.slane %v1686, 1
      %v1729 = vsel %vm1536, %v1727, %v1728
      %1730 = vrot.lane.b32.xlu0 %v1729, 32
      %v1731 = vpop.permute.xlu0 %1730
      %1732 = vrot.lane.b32.xlu0 %v1728, 32
      %v1733 = vpop.permute.xlu0 %1732
      %1738 = vrot.lane.b32.xlu0 %v1687, 64
      %v1739 = vpop.permute.xlu0 %1738
      %1740 = vrot.lane.b32.xlu0 %v1688, 64
      %v1741 = vpop.permute.xlu0 %1740
      %v1744 = vrot.slane %v1687, 1
      %v1745 = vrot.slane %v1688, 1
      %v1746 = vsel %vm1536, %v1744, %v1745
      %1747 = vrot.lane.b32.xlu0 %v1746, 96
      %v1748 = vpop.permute.xlu0 %1747
      %1749 = vrot.lane.b32.xlu0 %v1745, 96
      %v1750 = vpop.permute.xlu0 %1749
      %v1755 = vrot.slane %v1689, 1
      %v1756 = vrot.slane %v1690, 1
      %v1757 = vsel %vm1536, %v1755, %v1756
      %1758 = vrot.lane.b32.xlu0 %v1757, 32
      %v1759 = vpop.permute.xlu0 %1758
      %1760 = vrot.lane.b32.xlu0 %v1756, 32
      %v1761 = vpop.permute.xlu0 %1760
      %1766 = vrot.lane.b32.xlu0 %v1691, 64
      %v1767 = vpop.permute.xlu0 %1766
      %1768 = vrot.lane.b32.xlu0 %v1692, 64
      %v1769 = vpop.permute.xlu0 %1768
      %v1772 = vrot.slane %v1691, 1
      %v1773 = vrot.slane %v1692, 1
      %v1774 = vsel %vm1536, %v1772, %v1773
      %1775 = vrot.lane.b32.xlu0 %v1774, 96
      %v1776 = vpop.permute.xlu0 %1775
      %1777 = vrot.lane.b32.xlu0 %v1773, 96
      %v1778 = vpop.permute.xlu0 %1777
      %v1783 = vrot.slane %v1693, 1
      %v1784 = vrot.slane %v1694, 1
      %v1785 = vsel %vm1536, %v1783, %v1784
      %1786 = vrot.lane.b32.xlu0 %v1785, 32
      %v1787 = vpop.permute.xlu0 %1786
      %1788 = vrot.lane.b32.xlu0 %v1784, 32
      %v1789 = vpop.permute.xlu0 %1788
      %1794 = vrot.lane.b32.xlu0 %v1695, 64
      %v1795 = vpop.permute.xlu0 %1794
      %1796 = vrot.lane.b32.xlu0 %v1696, 64
      %v1797 = vpop.permute.xlu0 %1796
      %v1800 = vrot.slane %v1695, 1
      %v1801 = vrot.slane %v1696, 1
      %v1802 = vsel %vm1536, %v1800, %v1801
      %1803 = vrot.lane.b32.xlu0 %v1802, 96
      %v1804 = vpop.permute.xlu0 %1803
      %1805 = vrot.lane.b32.xlu0 %v1801, 96
      %v1806 = vpop.permute.xlu0 %1805
      %v1809 = vsel %vm1393, %v1681, %v1703
      %v1810 = vsel %vm1393, %v1682, %v1705
      %v1811 = vsel %vm1649, %v1809, %v1711
      %v1812 = vsel %vm1649, %v1810, %v1713
      %v1813 = vsel %vm1652, %v1811, %v1720
      %v1814 = vsel %vm1652, %v1812, %v1722
      %v1815 = vsel %vm1393, %v1685, %v1731
      %v1816 = vsel %vm1393, %v1686, %v1733
      %v1817 = vsel %vm1649, %v1815, %v1739
      %v1818 = vsel %vm1649, %v1816, %v1741
      %v1819 = vsel %vm1652, %v1817, %v1748
      %v1820 = vsel %vm1652, %v1818, %v1750
      %v1821 = vsel %vm1393, %v1689, %v1759
      %v1822 = vsel %vm1393, %v1690, %v1761
      %v1823 = vsel %vm1649, %v1821, %v1767
      %v1824 = vsel %vm1649, %v1822, %v1769
      %v1825 = vsel %vm1652, %v1823, %v1776
      %v1826 = vsel %vm1652, %v1824, %v1778
      %v1827 = vsel %vm1393, %v1693, %v1787
      %v1828 = vsel %vm1393, %v1694, %v1789
      %v1829 = vsel %vm1649, %v1827, %v1795
      %v1830 = vsel %vm1649, %v1828, %v1797
      %v1831 = vsel %vm1652, %v1829, %v1804
      %v1832 = vsel %vm1652, %v1830, %v1806
      %vm1841 = vcmask 1045504
      %v1842 = vrot.slane %v1813, 2
      %v1843 = vrot.slane %v1819, 2
      %v1844 = vrot.slane %v1825, 2
      %v1845 = vrot.slane %v1831, 2
      %v1846 = vrot.slane %v1814, 2
      %v1847 = vsel %vm1841, %v1842, %v1846
      %v1848 = vrot.slane %v1820, 2
      %v1849 = vsel %vm1841, %v1843, %v1848
      %v1850 = vrot.slane %v1826, 2
      %v1851 = vsel %vm1841, %v1844, %v1850
      %v1852 = vrot.slane %v1832, 2
      %v1853 = vsel %vm1841, %v1845, %v1852
      %1866 = vst [vmem:[#allocation5 + $0x20] sm:$0xc0] %v1842
      %1867 = vst [vmem:[#allocation5 + $0x28] sm:$0xc0] %v1843
      %1868 = vst [vmem:[#allocation5 + $0x30] sm:$0xc0] %v1844
      %1869 = vst [vmem:[#allocation5 + $0x38] sm:$0xc0] %v1845
      %1870 = vst [vmem:[#allocation5 + $0x40] sm:$0xff] %v1847
      %1871 = vst [vmem:[#allocation5 + $0x48] sm:$0xff] %v1849
      %1872 = vst [vmem:[#allocation5 + $0x50] sm:$0xff] %v1851
      %1873 = vst [vmem:[#allocation5 + $0x58] sm:$0xff] %v1853
      %1874 = vst [vmem:[#allocation5 + $0x60] sm:$0xf] %v1846
      %1875 = vst [vmem:[#allocation5 + $0x68] sm:$0xf] %v1848
      %1876 = vst [vmem:[#allocation5 + $0x70] sm:$0xf] %v1850
      %1877 = vst [vmem:[#allocation5 + $0x78] sm:$0xf] %v1852
      %v1878 = vld [vmem:[#allocation2 + $0x80] sm:$0xff]
      %v1879 = vld [vmem:[#allocation2 + $0x88] sm:$0xff]
      %v1880 = vld [vmem:[#allocation2 + $0x90] sm:$0xff]
      %v1881 = vld [vmem:[#allocation2 + $0x98] sm:$0xff]
      %v1882 = vld [vmem:[#allocation2 + $0xa0] sm:$0xff]
      %v1883 = vld [vmem:[#allocation2 + $0xa8] sm:$0xff]
      %v1884 = vld [vmem:[#allocation2 + $0xb0] sm:$0xff]
      %v1885 = vld [vmem:[#allocation2 + $0xb8] sm:$0xff]
      %v1886 = vld [vmem:[#allocation2 + $0xc0] sm:$0xff]
      %v1887 = vld [vmem:[#allocation2 + $0xc8] sm:$0xff]
      %v1888 = vld [vmem:[#allocation2 + $0xd0] sm:$0xff]
      %v1889 = vld [vmem:[#allocation2 + $0xd8] sm:$0xff]
      %v1890 = vld [vmem:[#allocation2 + $0xe0] sm:$0xff]
      %v1891 = vld [vmem:[#allocation2 + $0xe8] sm:$0xff]
      %v1892 = vld [vmem:[#allocation2 + $0xf0] sm:$0xff]
      %v1893 = vld [vmem:[#allocation2 + $0xf8] sm:$0xff]
      %v1896 = vrot.slane %v1878, 1
      %v1897 = vrot.slane %v1879, 1
      %v1898 = vsel %vm1536, %v1896, %v1897
      %1899 = vrot.lane.b32.xlu0 %v1898, 32
      %v1900 = vpop.permute.xlu0 %1899
      %1901 = vrot.lane.b32.xlu0 %v1897, 32
      %v1902 = vpop.permute.xlu0 %1901
      %1907 = vrot.lane.b32.xlu0 %v1880, 64
      %v1908 = vpop.permute.xlu0 %1907
      %1909 = vrot.lane.b32.xlu0 %v1881, 64
      %v1910 = vpop.permute.xlu0 %1909
      %v1913 = vrot.slane %v1880, 1
      %v1914 = vrot.slane %v1881, 1
      %v1915 = vsel %vm1536, %v1913, %v1914
      %1916 = vrot.lane.b32.xlu0 %v1915, 96
      %v1917 = vpop.permute.xlu0 %1916
      %1918 = vrot.lane.b32.xlu0 %v1914, 96
      %v1919 = vpop.permute.xlu0 %1918
      %v1924 = vrot.slane %v1882, 1
      %v1925 = vrot.slane %v1883, 1
      %v1926 = vsel %vm1536, %v1924, %v1925
      %1927 = vrot.lane.b32.xlu0 %v1926, 32
      %v1928 = vpop.permute.xlu0 %1927
      %1929 = vrot.lane.b32.xlu0 %v1925, 32
      %v1930 = vpop.permute.xlu0 %1929
      %1935 = vrot.lane.b32.xlu0 %v1884, 64
      %v1936 = vpop.permute.xlu0 %1935
      %1937 = vrot.lane.b32.xlu0 %v1885, 64
      %v1938 = vpop.permute.xlu0 %1937
      %v1941 = vrot.slane %v1884, 1
      %v1942 = vrot.slane %v1885, 1
      %v1943 = vsel %vm1536, %v1941, %v1942
      %1944 = vrot.lane.b32.xlu0 %v1943, 96
      %v1945 = vpop.permute.xlu0 %1944
      %1946 = vrot.lane.b32.xlu0 %v1942, 96
      %v1947 = vpop.permute.xlu0 %1946
      %v1952 = vrot.slane %v1886, 1
      %v1953 = vrot.slane %v1887, 1
      %v1954 = vsel %vm1536, %v1952, %v1953
      %1955 = vrot.lane.b32.xlu0 %v1954, 32
      %v1956 = vpop.permute.xlu0 %1955
      %1957 = vrot.lane.b32.xlu0 %v1953, 32
      %v1958 = vpop.permute.xlu0 %1957
      %1963 = vrot.lane.b32.xlu0 %v1888, 64
      %v1964 = vpop.permute.xlu0 %1963
      %1965 = vrot.lane.b32.xlu0 %v1889, 64
      %v1966 = vpop.permute.xlu0 %1965
      %v1969 = vrot.slane %v1888, 1
      %v1970 = vrot.slane %v1889, 1
      %v1971 = vsel %vm1536, %v1969, %v1970
      %1972 = vrot.lane.b32.xlu0 %v1971, 96
      %v1973 = vpop.permute.xlu0 %1972
      %1974 = vrot.lane.b32.xlu0 %v1970, 96
      %v1975 = vpop.permute.xlu0 %1974
      %v1980 = vrot.slane %v1890, 1
      %v1981 = vrot.slane %v1891, 1
      %v1982 = vsel %vm1536, %v1980, %v1981
      %1983 = vrot.lane.b32.xlu0 %v1982, 32
      %v1984 = vpop.permute.xlu0 %1983
      %1985 = vrot.lane.b32.xlu0 %v1981, 32
      %v1986 = vpop.permute.xlu0 %1985
      %1991 = vrot.lane.b32.xlu0 %v1892, 64
      %v1992 = vpop.permute.xlu0 %1991
      %1993 = vrot.lane.b32.xlu0 %v1893, 64
      %v1994 = vpop.permute.xlu0 %1993
      %v1997 = vrot.slane %v1892, 1
      %v1998 = vrot.slane %v1893, 1
      %v1999 = vsel %vm1536, %v1997, %v1998
      %2000 = vrot.lane.b32.xlu0 %v1999, 96
      %v2001 = vpop.permute.xlu0 %2000
      %2002 = vrot.lane.b32.xlu0 %v1998, 96
      %v2003 = vpop.permute.xlu0 %2002
      %v2006 = vsel %vm1393, %v1878, %v1900
      %v2007 = vsel %vm1393, %v1879, %v1902
      %v2008 = vsel %vm1649, %v2006, %v1908
      %v2009 = vsel %vm1649, %v2007, %v1910
      %v2010 = vsel %vm1652, %v2008, %v1917
      %v2011 = vsel %vm1652, %v2009, %v1919
      %v2012 = vsel %vm1393, %v1882, %v1928
      %v2013 = vsel %vm1393, %v1883, %v1930
      %v2014 = vsel %vm1649, %v2012, %v1936
      %v2015 = vsel %vm1649, %v2013, %v1938
      %v2016 = vsel %vm1652, %v2014, %v1945
      %v2017 = vsel %vm1652, %v2015, %v1947
      %v2018 = vsel %vm1393, %v1886, %v1956
      %v2019 = vsel %vm1393, %v1887, %v1958
      %v2020 = vsel %vm1649, %v2018, %v1964
      %v2021 = vsel %vm1649, %v2019, %v1966
      %v2022 = vsel %vm1652, %v2020, %v1973
      %v2023 = vsel %vm1652, %v2021, %v1975
      %v2024 = vsel %vm1393, %v1890, %v1984
      %v2025 = vsel %vm1393, %v1891, %v1986
      %v2026 = vsel %vm1649, %v2024, %v1992
      %v2027 = vsel %vm1649, %v2025, %v1994
      %v2028 = vsel %vm1652, %v2026, %v2001
      %v2029 = vsel %vm1652, %v2027, %v2003
      %vm2038 = vcmask 1043456
      %v2039 = vrot.slane %v2010, 4
      %v2040 = vrot.slane %v2016, 4
      %v2041 = vrot.slane %v2022, 4
      %v2042 = vrot.slane %v2028, 4
      %v2043 = vrot.slane %v2011, 4
      %v2044 = vsel %vm2038, %v2039, %v2043
      %v2045 = vrot.slane %v2017, 4
      %v2046 = vsel %vm2038, %v2040, %v2045
      %v2047 = vrot.slane %v2023, 4
      %v2048 = vsel %vm2038, %v2041, %v2047
      %v2049 = vrot.slane %v2029, 4
      %v2050 = vsel %vm2038, %v2042, %v2049
      %2063 = vst [vmem:[#allocation5 + $0x60] sm:$0xf0] %v2039
      %2064 = vst [vmem:[#allocation5 + $0x68] sm:$0xf0] %v2040
      %2065 = vst [vmem:[#allocation5 + $0x70] sm:$0xf0] %v2041
      %2066 = vst [vmem:[#allocation5 + $0x78] sm:$0xf0] %v2042
      %2067 = vst [vmem:[#allocation5 + $0x80] sm:$0xff] %v2044
      %2068 = vst [vmem:[#allocation5 + $0x88] sm:$0xff] %v2046
      %2069 = vst [vmem:[#allocation5 + $0x90] sm:$0xff] %v2048
      %2070 = vst [vmem:[#allocation5 + $0x98] sm:$0xff] %v2050
      %2071 = vst [vmem:[#allocation5 + $0xa0] sm:$0x3] %v2043
      %2072 = vst [vmem:[#allocation5 + $0xa8] sm:$0x3] %v2045
      %2073 = vst [vmem:[#allocation5 + $0xb0] sm:$0x3] %v2047
      %2074 = vst [vmem:[#allocation5 + $0xb8] sm:$0x3] %v2049
      %v2075 = vld [vmem:[#allocation2 + $0xc0] sm:$0xff]
      %v2076 = vld [vmem:[#allocation2 + $0xc8] sm:$0xff]
      %v2077 = vld [vmem:[#allocation2 + $0xd0] sm:$0xff]
      %v2078 = vld [vmem:[#allocation2 + $0xd8] sm:$0xff]
      %v2079 = vld [vmem:[#allocation2 + $0xe0] sm:$0xff]
      %v2080 = vld [vmem:[#allocation2 + $0xe8] sm:$0xff]
      %v2081 = vld [vmem:[#allocation2 + $0xf0] sm:$0xff]
      %v2082 = vld [vmem:[#allocation2 + $0xf8] sm:$0xff]
      %v2083 = vld [vmem:[#allocation2 + $0x100] sm:$0xff]
      %v2084 = vld [vmem:[#allocation2 + $0x108] sm:$0xff]
      %v2085 = vld [vmem:[#allocation2 + $0x110] sm:$0xff]
      %v2086 = vld [vmem:[#allocation2 + $0x118] sm:$0xff]
      %v2087 = vld [vmem:[#allocation2 + $0x120] sm:$0xff]
      %v2088 = vld [vmem:[#allocation2 + $0x128] sm:$0xff]
      %v2089 = vld [vmem:[#allocation2 + $0x130] sm:$0xff]
      %v2090 = vld [vmem:[#allocation2 + $0x138] sm:$0xff]
      %v2093 = vrot.slane %v2075, 1
      %v2094 = vrot.slane %v2076, 1
      %v2095 = vsel %vm1536, %v2093, %v2094
      %2096 = vrot.lane.b32.xlu0 %v2095, 32
      %v2097 = vpop.permute.xlu0 %2096
      %2098 = vrot.lane.b32.xlu0 %v2094, 32
      %v2099 = vpop.permute.xlu0 %2098
      %2104 = vrot.lane.b32.xlu0 %v2077, 64
      %v2105 = vpop.permute.xlu0 %2104
      %2106 = vrot.lane.b32.xlu0 %v2078, 64
      %v2107 = vpop.permute.xlu0 %2106
      %v2110 = vrot.slane %v2077, 1
      %v2111 = vrot.slane %v2078, 1
      %v2112 = vsel %vm1536, %v2110, %v2111
      %2113 = vrot.lane.b32.xlu0 %v2112, 96
      %v2114 = vpop.permute.xlu0 %2113
      %2115 = vrot.lane.b32.xlu0 %v2111, 96
      %v2116 = vpop.permute.xlu0 %2115
      %v2121 = vrot.slane %v2079, 1
      %v2122 = vrot.slane %v2080, 1
      %v2123 = vsel %vm1536, %v2121, %v2122
      %2124 = vrot.lane.b32.xlu0 %v2123, 32
      %v2125 = vpop.permute.xlu0 %2124
      %2126 = vrot.lane.b32.xlu0 %v2122, 32
      %v2127 = vpop.permute.xlu0 %2126
      %2132 = vrot.lane.b32.xlu0 %v2081, 64
      %v2133 = vpop.permute.xlu0 %2132
      %2134 = vrot.lane.b32.xlu0 %v2082, 64
      %v2135 = vpop.permute.xlu0 %2134
      %v2138 = vrot.slane %v2081, 1
      %v2139 = vrot.slane %v2082, 1
      %v2140 = vsel %vm1536, %v2138, %v2139
      %2141 = vrot.lane.b32.xlu0 %v2140, 96
      %v2142 = vpop.permute.xlu0 %2141
      %2143 = vrot.lane.b32.xlu0 %v2139, 96
      %v2144 = vpop.permute.xlu0 %2143
      %v2149 = vrot.slane %v2083, 1
      %v2150 = vrot.slane %v2084, 1
      %v2151 = vsel %vm1536, %v2149, %v2150
      %2152 = vrot.lane.b32.xlu0 %v2151, 32
      %v2153 = vpop.permute.xlu0 %2152
      %2154 = vrot.lane.b32.xlu0 %v2150, 32
      %v2155 = vpop.permute.xlu0 %2154
      %2160 = vrot.lane.b32.xlu0 %v2085, 64
      %v2161 = vpop.permute.xlu0 %2160
      %2162 = vrot.lane.b32.xlu0 %v2086, 64
      %v2163 = vpop.permute.xlu0 %2162
      %v2166 = vrot.slane %v2085, 1
      %v2167 = vrot.slane %v2086, 1
      %v2168 = vsel %vm1536, %v2166, %v2167
      %2169 = vrot.lane.b32.xlu0 %v2168, 96
      %v2170 = vpop.permute.xlu0 %2169
      %2171 = vrot.lane.b32.xlu0 %v2167, 96
      %v2172 = vpop.permute.xlu0 %2171
      %v2177 = vrot.slane %v2087, 1
      %v2178 = vrot.slane %v2088, 1
      %v2179 = vsel %vm1536, %v2177, %v2178
      %2180 = vrot.lane.b32.xlu0 %v2179, 32
      %v2181 = vpop.permute.xlu0 %2180
      %2182 = vrot.lane.b32.xlu0 %v2178, 32
      %v2183 = vpop.permute.xlu0 %2182
      %2188 = vrot.lane.b32.xlu0 %v2089, 64
      %v2189 = vpop.permute.xlu0 %2188
      %2190 = vrot.lane.b32.xlu0 %v2090, 64
      %v2191 = vpop.permute.xlu0 %2190
      %v2194 = vrot.slane %v2089, 1
      %v2195 = vrot.slane %v2090, 1
      %v2196 = vsel %vm1536, %v2194, %v2195
      %2197 = vrot.lane.b32.xlu0 %v2196, 96
      %v2198 = vpop.permute.xlu0 %2197
      %2199 = vrot.lane.b32.xlu0 %v2195, 96
      %v2200 = vpop.permute.xlu0 %2199
      %v2203 = vsel %vm1393, %v2075, %v2097
      %v2204 = vsel %vm1393, %v2076, %v2099
      %v2205 = vsel %vm1649, %v2203, %v2105
      %v2206 = vsel %vm1649, %v2204, %v2107
      %v2207 = vsel %vm1652, %v2205, %v2114
      %v2208 = vsel %vm1652, %v2206, %v2116
      %v2209 = vsel %vm1393, %v2079, %v2125
      %v2210 = vsel %vm1393, %v2080, %v2127
      %v2211 = vsel %vm1649, %v2209, %v2133
      %v2212 = vsel %vm1649, %v2210, %v2135
      %v2213 = vsel %vm1652, %v2211, %v2142
      %v2214 = vsel %vm1652, %v2212, %v2144
      %v2215 = vsel %vm1393, %v2083, %v2153
      %v2216 = vsel %vm1393, %v2084, %v2155
      %v2217 = vsel %vm1649, %v2215, %v2161
      %v2218 = vsel %vm1649, %v2216, %v2163
      %v2219 = vsel %vm1652, %v2217, %v2170
      %v2220 = vsel %vm1652, %v2218, %v2172
      %v2221 = vsel %vm1393, %v2087, %v2181
      %v2222 = vsel %vm1393, %v2088, %v2183
      %v2223 = vsel %vm1649, %v2221, %v2189
      %v2224 = vsel %vm1649, %v2222, %v2191
      %v2225 = vsel %vm1652, %v2223, %v2198
      %v2226 = vsel %vm1652, %v2224, %v2200
      %vm2235 = vcmask 1041408
      %v2236 = vrot.slane %v2207, 6
      %v2237 = vrot.slane %v2213, 6
      %v2238 = vrot.slane %v2219, 6
      %v2239 = vrot.slane %v2225, 6
      %v2240 = vrot.slane %v2208, 6
      %v2241 = vsel %vm2235, %v2236, %v2240
      %v2242 = vrot.slane %v2214, 6
      %v2243 = vsel %vm2235, %v2237, %v2242
      %v2244 = vrot.slane %v2220, 6
      %v2245 = vsel %vm2235, %v2238, %v2244
      %v2246 = vrot.slane %v2226, 6
      %v2247 = vsel %vm2235, %v2239, %v2246
      %2256 = vst [vmem:[#allocation5 + $0xa0] sm:$0xfc] %v2236
      %2257 = vst [vmem:[#allocation5 + $0xa8] sm:$0xfc] %v2237
      %2258 = vst [vmem:[#allocation5 + $0xb0] sm:$0xfc] %v2238
      %2259 = vst [vmem:[#allocation5 + $0xb8] sm:$0xfc] %v2239
      %2260 = vst [vmem:[#allocation5 + $0xc0] sm:$0xff] %v2241
      %2261 = vst [vmem:[#allocation5 + $0xc8] sm:$0xff] %v2243
      %2262 = vst [vmem:[#allocation5 + $0xd0] sm:$0xff] %v2245
      %2263 = vst [vmem:[#allocation5 + $0xd8] sm:$0xff] %v2247
      %v2264 = vld [vmem:[#allocation2 + $0x100] sm:$0xff]
      %v2265 = vld [vmem:[#allocation2 + $0x108] sm:$0xff]
      %v2266 = vld [vmem:[#allocation2 + $0x110] sm:$0xff]
      %v2267 = vld [vmem:[#allocation2 + $0x118] sm:$0xff]
      %v2268 = vld [vmem:[#allocation2 + $0x120] sm:$0xff]
      %v2269 = vld [vmem:[#allocation2 + $0x128] sm:$0xff]
      %v2270 = vld [vmem:[#allocation2 + $0x130] sm:$0xff]
      %v2271 = vld [vmem:[#allocation2 + $0x138] sm:$0xff]
      %v2272 = vld [vmem:[#allocation2 + $0x140] sm:$0xff]
      %v2273 = vld [vmem:[#allocation2 + $0x148] sm:$0xff]
      %v2274 = vld [vmem:[#allocation2 + $0x150] sm:$0xff]
      %v2275 = vld [vmem:[#allocation2 + $0x158] sm:$0xff]
      %v2276 = vld [vmem:[#allocation2 + $0x160] sm:$0xff]
      %v2277 = vld [vmem:[#allocation2 + $0x168] sm:$0xff]
      %v2278 = vld [vmem:[#allocation2 + $0x170] sm:$0xff]
      %v2279 = vld [vmem:[#allocation2 + $0x178] sm:$0xff]
      %v2282 = vrot.slane %v2264, 1
      %v2283 = vrot.slane %v2265, 1
      %v2284 = vsel %vm1536, %v2282, %v2283
      %2285 = vrot.lane.b32.xlu0 %v2284, 32
      %v2286 = vpop.permute.xlu0 %2285
      %2287 = vrot.lane.b32.xlu0 %v2283, 32
      %v2288 = vpop.permute.xlu0 %2287
      %2293 = vrot.lane.b32.xlu0 %v2266, 64
      %v2294 = vpop.permute.xlu0 %2293
      %2295 = vrot.lane.b32.xlu0 %v2267, 64
      %v2296 = vpop.permute.xlu0 %2295
      %v2299 = vrot.slane %v2266, 1
      %v2300 = vrot.slane %v2267, 1
      %v2301 = vsel %vm1536, %v2299, %v2300
      %2302 = vrot.lane.b32.xlu0 %v2301, 96
      %v2303 = vpop.permute.xlu0 %2302
      %2304 = vrot.lane.b32.xlu0 %v2300, 96
      %v2305 = vpop.permute.xlu0 %2304
      %v2310 = vrot.slane %v2268, 1
      %v2311 = vrot.slane %v2269, 1
      %v2312 = vsel %vm1536, %v2310, %v2311
      %2313 = vrot.lane.b32.xlu0 %v2312, 32
      %v2314 = vpop.permute.xlu0 %2313
      %2315 = vrot.lane.b32.xlu0 %v2311, 32
      %v2316 = vpop.permute.xlu0 %2315
      %2321 = vrot.lane.b32.xlu0 %v2270, 64
      %v2322 = vpop.permute.xlu0 %2321
      %2323 = vrot.lane.b32.xlu0 %v2271, 64
      %v2324 = vpop.permute.xlu0 %2323
      %v2327 = vrot.slane %v2270, 1
      %v2328 = vrot.slane %v2271, 1
      %v2329 = vsel %vm1536, %v2327, %v2328
      %2330 = vrot.lane.b32.xlu0 %v2329, 96
      %v2331 = vpop.permute.xlu0 %2330
      %2332 = vrot.lane.b32.xlu0 %v2328, 96
      %v2333 = vpop.permute.xlu0 %2332
      %v2338 = vrot.slane %v2272, 1
      %v2339 = vrot.slane %v2273, 1
      %v2340 = vsel %vm1536, %v2338, %v2339
      %2341 = vrot.lane.b32.xlu0 %v2340, 32
      %v2342 = vpop.permute.xlu0 %2341
      %2343 = vrot.lane.b32.xlu0 %v2339, 32
      %v2344 = vpop.permute.xlu0 %2343
      %2349 = vrot.lane.b32.xlu0 %v2274, 64
      %v2350 = vpop.permute.xlu0 %2349
      %2351 = vrot.lane.b32.xlu0 %v2275, 64
      %v2352 = vpop.permute.xlu0 %2351
      %v2355 = vrot.slane %v2274, 1
      %v2356 = vrot.slane %v2275, 1
      %v2357 = vsel %vm1536, %v2355, %v2356
      %2358 = vrot.lane.b32.xlu0 %v2357, 96
      %v2359 = vpop.permute.xlu0 %2358
      %2360 = vrot.lane.b32.xlu0 %v2356, 96
      %v2361 = vpop.permute.xlu0 %2360
      %v2366 = vrot.slane %v2276, 1
      %v2367 = vrot.slane %v2277, 1
      %v2368 = vsel %vm1536, %v2366, %v2367
      %2369 = vrot.lane.b32.xlu0 %v2368, 32
      %v2370 = vpop.permute.xlu0 %2369
      %2371 = vrot.lane.b32.xlu0 %v2367, 32
      %v2372 = vpop.permute.xlu0 %2371
      %2377 = vrot.lane.b32.xlu0 %v2278, 64
      %v2378 = vpop.permute.xlu0 %2377
      %2379 = vrot.lane.b32.xlu0 %v2279, 64
      %v2380 = vpop.permute.xlu0 %2379
      %v2383 = vrot.slane %v2278, 1
      %v2384 = vrot.slane %v2279, 1
      %v2385 = vsel %vm1536, %v2383, %v2384
      %2386 = vrot.lane.b32.xlu0 %v2385, 96
      %v2387 = vpop.permute.xlu0 %2386
      %2388 = vrot.lane.b32.xlu0 %v2384, 96
      %v2389 = vpop.permute.xlu0 %2388
      %v2392 = vsel %vm1393, %v2264, %v2286
      %v2393 = vsel %vm1393, %v2265, %v2288
      %v2394 = vsel %vm1649, %v2392, %v2294
      %v2395 = vsel %vm1649, %v2393, %v2296
      %v2396 = vsel %vm1652, %v2394, %v2303
      %v2397 = vsel %vm1652, %v2395, %v2305
      %v2398 = vsel %vm1393, %v2268, %v2314
      %v2399 = vsel %vm1393, %v2269, %v2316
      %v2400 = vsel %vm1649, %v2398, %v2322
      %v2401 = vsel %vm1649, %v2399, %v2324
      %v2402 = vsel %vm1652, %v2400, %v2331
      %v2403 = vsel %vm1652, %v2401, %v2333
      %v2404 = vsel %vm1393, %v2272, %v2342
      %v2405 = vsel %vm1393, %v2273, %v2344
      %v2406 = vsel %vm1649, %v2404, %v2350
      %v2407 = vsel %vm1649, %v2405, %v2352
      %v2408 = vsel %vm1652, %v2406, %v2359
      %v2409 = vsel %vm1652, %v2407, %v2361
      %v2410 = vsel %vm1393, %v2276, %v2370
      %v2411 = vsel %vm1393, %v2277, %v2372
      %v2412 = vsel %vm1649, %v2410, %v2378
      %v2413 = vsel %vm1649, %v2411, %v2380
      %v2414 = vsel %vm1652, %v2412, %v2387
      %v2415 = vsel %vm1652, %v2413, %v2389
      %2416 = vst [vmem:[#allocation5 + $0xe0] sm:$0xff] %v2396
      %2417 = vst [vmem:[#allocation5 + $0xe8] sm:$0xff] %v2402
      %2418 = vst [vmem:[#allocation5 + $0xf0] sm:$0xff] %v2408
      %2419 = vst [vmem:[#allocation5 + $0xf8] sm:$0xff] %v2414
      %2420 = vst [vmem:[#allocation5 + $0x100] sm:$0x3f] %v2397
      %2421 = vst [vmem:[#allocation5 + $0x108] sm:$0x3f] %v2403
      %2422 = vst [vmem:[#allocation5 + $0x110] sm:$0x3f] %v2409
      %2423 = vst [vmem:[#allocation5 + $0x118] sm:$0x3f] %v2415
      %v2424 = vld [vmem:[#allocation2 + $0x140] sm:$0xff]
      %v2425 = vld [vmem:[#allocation2 + $0x148] sm:$0xff]
      %v2426 = vld [vmem:[#allocation2 + $0x150] sm:$0xff]
      %v2427 = vld [vmem:[#allocation2 + $0x158] sm:$0xff]
      %v2428 = vld [vmem:[#allocation2 + $0x160] sm:$0xff]
      %v2429 = vld [vmem:[#allocation2 + $0x168] sm:$0xff]
      %v2430 = vld [vmem:[#allocation2 + $0x170] sm:$0xff]
      %v2431 = vld [vmem:[#allocation2 + $0x178] sm:$0xff]
      %v2432 = vld [vmem:[#allocation2 + $0x180] sm:$0xff]
      %v2433 = vld [vmem:[#allocation2 + $0x188] sm:$0xff]
      %v2434 = vld [vmem:[#allocation2 + $0x190] sm:$0xff]
      %v2435 = vld [vmem:[#allocation2 + $0x198] sm:$0xff]
      %v2436 = vld [vmem:[#allocation2 + $0x1a0] sm:$0xff]
      %v2437 = vld [vmem:[#allocation2 + $0x1a8] sm:$0xff]
      %v2438 = vld [vmem:[#allocation2 + $0x1b0] sm:$0xff]
      %v2439 = vld [vmem:[#allocation2 + $0x1b8] sm:$0xff]
      %v2442 = vrot.slane %v2424, 1
      %v2443 = vrot.slane %v2425, 1
      %v2444 = vsel %vm1536, %v2442, %v2443
      %2445 = vrot.lane.b32.xlu0 %v2444, 32
      %v2446 = vpop.permute.xlu0 %2445
      %2447 = vrot.lane.b32.xlu0 %v2443, 32
      %v2448 = vpop.permute.xlu0 %2447
      %2453 = vrot.lane.b32.xlu0 %v2426, 64
      %v2454 = vpop.permute.xlu0 %2453
      %2455 = vrot.lane.b32.xlu0 %v2427, 64
      %v2456 = vpop.permute.xlu0 %2455
      %v2459 = vrot.slane %v2426, 1
      %v2460 = vrot.slane %v2427, 1
      %v2461 = vsel %vm1536, %v2459, %v2460
      %2462 = vrot.lane.b32.xlu0 %v2461, 96
      %v2463 = vpop.permute.xlu0 %2462
      %2464 = vrot.lane.b32.xlu0 %v2460, 96
      %v2465 = vpop.permute.xlu0 %2464
      %v2470 = vrot.slane %v2428, 1
      %v2471 = vrot.slane %v2429, 1
      %v2472 = vsel %vm1536, %v2470, %v2471
      %2473 = vrot.lane.b32.xlu0 %v2472, 32
      %v2474 = vpop.permute.xlu0 %2473
      %2475 = vrot.lane.b32.xlu0 %v2471, 32
      %v2476 = vpop.permute.xlu0 %2475
      %2481 = vrot.lane.b32.xlu0 %v2430, 64
      %v2482 = vpop.permute.xlu0 %2481
      %2483 = vrot.lane.b32.xlu0 %v2431, 64
      %v2484 = vpop.permute.xlu0 %2483
      %v2487 = vrot.slane %v2430, 1
      %v2488 = vrot.slane %v2431, 1
      %v2489 = vsel %vm1536, %v2487, %v2488
      %2490 = vrot.lane.b32.xlu0 %v2489, 96
      %v2491 = vpop.permute.xlu0 %2490
      %2492 = vrot.lane.b32.xlu0 %v2488, 96
      %v2493 = vpop.permute.xlu0 %2492
      %v2498 = vrot.slane %v2432, 1
      %v2499 = vrot.slane %v2433, 1
      %v2500 = vsel %vm1536, %v2498, %v2499
      %2501 = vrot.lane.b32.xlu0 %v2500, 32
      %v2502 = vpop.permute.xlu0 %2501
      %2503 = vrot.lane.b32.xlu0 %v2499, 32
      %v2504 = vpop.permute.xlu0 %2503
      %2509 = vrot.lane.b32.xlu0 %v2434, 64
      %v2510 = vpop.permute.xlu0 %2509
      %2511 = vrot.lane.b32.xlu0 %v2435, 64
      %v2512 = vpop.permute.xlu0 %2511
      %v2515 = vrot.slane %v2434, 1
      %v2516 = vrot.slane %v2435, 1
      %v2517 = vsel %vm1536, %v2515, %v2516
      %2518 = vrot.lane.b32.xlu0 %v2517, 96
      %v2519 = vpop.permute.xlu0 %2518
      %2520 = vrot.lane.b32.xlu0 %v2516, 96
      %v2521 = vpop.permute.xlu0 %2520
      %v2526 = vrot.slane %v2436, 1
      %v2527 = vrot.slane %v2437, 1
      %v2528 = vsel %vm1536, %v2526, %v2527
      %2529 = vrot.lane.b32.xlu0 %v2528, 32
      %v2530 = vpop.permute.xlu0 %2529
      %2531 = vrot.lane.b32.xlu0 %v2527, 32
      %v2532 = vpop.permute.xlu0 %2531
      %2537 = vrot.lane.b32.xlu0 %v2438, 64
      %v2538 = vpop.permute.xlu0 %2537
      %2539 = vrot.lane.b32.xlu0 %v2439, 64
      %v2540 = vpop.permute.xlu0 %2539
      %v2543 = vrot.slane %v2438, 1
      %v2544 = vrot.slane %v2439, 1
      %v2545 = vsel %vm1536, %v2543, %v2544
      %2546 = vrot.lane.b32.xlu0 %v2545, 96
      %v2547 = vpop.permute.xlu0 %2546
      %2548 = vrot.lane.b32.xlu0 %v2544, 96
      %v2549 = vpop.permute.xlu0 %2548
      %v2552 = vsel %vm1393, %v2424, %v2446
      %v2553 = vsel %vm1393, %v2425, %v2448
      %v2554 = vsel %vm1649, %v2552, %v2454
      %v2555 = vsel %vm1649, %v2553, %v2456
      %v2556 = vsel %vm1652, %v2554, %v2463
      %v2557 = vsel %vm1652, %v2555, %v2465
      %v2558 = vsel %vm1393, %v2428, %v2474
      %v2559 = vsel %vm1393, %v2429, %v2476
      %v2560 = vsel %vm1649, %v2558, %v2482
      %v2561 = vsel %vm1649, %v2559, %v2484
      %v2562 = vsel %vm1652, %v2560, %v2491
      %v2563 = vsel %vm1652, %v2561, %v2493
      %v2564 = vsel %vm1393, %v2432, %v2502
      %v2565 = vsel %vm1393, %v2433, %v2504
      %v2566 = vsel %vm1649, %v2564, %v2510
      %v2567 = vsel %vm1649, %v2565, %v2512
      %v2568 = vsel %vm1652, %v2566, %v2519
      %v2569 = vsel %vm1652, %v2567, %v2521
      %v2570 = vsel %vm1393, %v2436, %v2530
      %v2571 = vsel %vm1393, %v2437, %v2532
      %v2572 = vsel %vm1649, %v2570, %v2538
      %v2573 = vsel %vm1649, %v2571, %v2540
      %v2574 = vsel %vm1652, %v2572, %v2547
      %v2575 = vsel %vm1652, %v2573, %v2549
      %v2584 = vrot.slane %v2556, 2
      %v2585 = vrot.slane %v2562, 2
      %v2586 = vrot.slane %v2568, 2
      %v2587 = vrot.slane %v2574, 2
      %v2588 = vrot.slane %v2557, 2
      %v2589 = vsel %vm1841, %v2584, %v2588
      %v2590 = vrot.slane %v2563, 2
      %v2591 = vsel %vm1841, %v2585, %v2590
      %v2592 = vrot.slane %v2569, 2
      %v2593 = vsel %vm1841, %v2586, %v2592
      %v2594 = vrot.slane %v2575, 2
      %v2595 = vsel %vm1841, %v2587, %v2594
      %2608 = vst [vmem:[#allocation5 + $0x100] sm:$0xc0] %v2584
      %2609 = vst [vmem:[#allocation5 + $0x108] sm:$0xc0] %v2585
      %2610 = vst [vmem:[#allocation5 + $0x110] sm:$0xc0] %v2586
      %2611 = vst [vmem:[#allocation5 + $0x118] sm:$0xc0] %v2587
      %2612 = vst [vmem:[#allocation5 + $0x120] sm:$0xff] %v2589
      %2613 = vst [vmem:[#allocation5 + $0x128] sm:$0xff] %v2591
      %2614 = vst [vmem:[#allocation5 + $0x130] sm:$0xff] %v2593
      %2615 = vst [vmem:[#allocation5 + $0x138] sm:$0xff] %v2595
      %2616 = vst [vmem:[#allocation5 + $0x140] sm:$0xf] %v2588
      %2617 = vst [vmem:[#allocation5 + $0x148] sm:$0xf] %v2590
      %2618 = vst [vmem:[#allocation5 + $0x150] sm:$0xf] %v2592
      %2619 = vst [vmem:[#allocation5 + $0x158] sm:$0xf] %v2594
      %v2620 = vld [vmem:[#allocation2 + $0x180] sm:$0xff]
      %v2621 = vld [vmem:[#allocation2 + $0x188] sm:$0xff]
      %v2622 = vld [vmem:[#allocation2 + $0x190] sm:$0xff]
      %v2623 = vld [vmem:[#allocation2 + $0x198] sm:$0xff]
      %v2624 = vld [vmem:[#allocation2 + $0x1a0] sm:$0xff]
      %v2625 = vld [vmem:[#allocation2 + $0x1a8] sm:$0xff]
      %v2626 = vld [vmem:[#allocation2 + $0x1b0] sm:$0xff]
      %v2627 = vld [vmem:[#allocation2 + $0x1b8] sm:$0xff]
      %v2628 = vld [vmem:[#allocation2 + $0x1c0] sm:$0xff]
      %v2629 = vld [vmem:[#allocation2 + $0x1c8] sm:$0xff]
      %v2630 = vld [vmem:[#allocation2 + $0x1d0] sm:$0xff]
      %v2631 = vld [vmem:[#allocation2 + $0x1d8] sm:$0xff]
      %v2632 = vld [vmem:[#allocation2 + $0x1e0] sm:$0xff]
      %v2633 = vld [vmem:[#allocation2 + $0x1e8] sm:$0xff]
      %v2634 = vld [vmem:[#allocation2 + $0x1f0] sm:$0xff]
      %v2635 = vld [vmem:[#allocation2 + $0x1f8] sm:$0xff]
      %v2638 = vrot.slane %v2620, 1
      %v2639 = vrot.slane %v2621, 1
      %v2640 = vsel %vm1536, %v2638, %v2639
      %2641 = vrot.lane.b32.xlu0 %v2640, 32
      %v2642 = vpop.permute.xlu0 %2641
      %2643 = vrot.lane.b32.xlu0 %v2639, 32
      %v2644 = vpop.permute.xlu0 %2643
      %2649 = vrot.lane.b32.xlu0 %v2622, 64
      %v2650 = vpop.permute.xlu0 %2649
      %2651 = vrot.lane.b32.xlu0 %v2623, 64
      %v2652 = vpop.permute.xlu0 %2651
      %v2655 = vrot.slane %v2622, 1
      %v2656 = vrot.slane %v2623, 1
      %v2657 = vsel %vm1536, %v2655, %v2656
      %2658 = vrot.lane.b32.xlu0 %v2657, 96
      %v2659 = vpop.permute.xlu0 %2658
      %2660 = vrot.lane.b32.xlu0 %v2656, 96
      %v2661 = vpop.permute.xlu0 %2660
      %v2666 = vrot.slane %v2624, 1
      %v2667 = vrot.slane %v2625, 1
      %v2668 = vsel %vm1536, %v2666, %v2667
      %2669 = vrot.lane.b32.xlu0 %v2668, 32
      %v2670 = vpop.permute.xlu0 %2669
      %2671 = vrot.lane.b32.xlu0 %v2667, 32
      %v2672 = vpop.permute.xlu0 %2671
      %2677 = vrot.lane.b32.xlu0 %v2626, 64
      %v2678 = vpop.permute.xlu0 %2677
      %2679 = vrot.lane.b32.xlu0 %v2627, 64
      %v2680 = vpop.permute.xlu0 %2679
      %v2683 = vrot.slane %v2626, 1
      %v2684 = vrot.slane %v2627, 1
      %v2685 = vsel %vm1536, %v2683, %v2684
      %2686 = vrot.lane.b32.xlu0 %v2685, 96
      %v2687 = vpop.permute.xlu0 %2686
      %2688 = vrot.lane.b32.xlu0 %v2684, 96
      %v2689 = vpop.permute.xlu0 %2688
      %v2694 = vrot.slane %v2628, 1
      %v2695 = vrot.slane %v2629, 1
      %v2696 = vsel %vm1536, %v2694, %v2695
      %2697 = vrot.lane.b32.xlu0 %v2696, 32
      %v2698 = vpop.permute.xlu0 %2697
      %2699 = vrot.lane.b32.xlu0 %v2695, 32
      %v2700 = vpop.permute.xlu0 %2699
      %2705 = vrot.lane.b32.xlu0 %v2630, 64
      %v2706 = vpop.permute.xlu0 %2705
      %2707 = vrot.lane.b32.xlu0 %v2631, 64
      %v2708 = vpop.permute.xlu0 %2707
      %v2711 = vrot.slane %v2630, 1
      %v2712 = vrot.slane %v2631, 1
      %v2713 = vsel %vm1536, %v2711, %v2712
      %2714 = vrot.lane.b32.xlu0 %v2713, 96
      %v2715 = vpop.permute.xlu0 %2714
      %2716 = vrot.lane.b32.xlu0 %v2712, 96
      %v2717 = vpop.permute.xlu0 %2716
      %v2722 = vrot.slane %v2632, 1
      %v2723 = vrot.slane %v2633, 1
      %v2724 = vsel %vm1536, %v2722, %v2723
      %2725 = vrot.lane.b32.xlu0 %v2724, 32
      %v2726 = vpop.permute.xlu0 %2725
      %2727 = vrot.lane.b32.xlu0 %v2723, 32
      %v2728 = vpop.permute.xlu0 %2727
      %2733 = vrot.lane.b32.xlu0 %v2634, 64
      %v2734 = vpop.permute.xlu0 %2733
      %2735 = vrot.lane.b32.xlu0 %v2635, 64
      %v2736 = vpop.permute.xlu0 %2735
      %v2739 = vrot.slane %v2634, 1
      %v2740 = vrot.slane %v2635, 1
      %v2741 = vsel %vm1536, %v2739, %v2740
      %2742 = vrot.lane.b32.xlu0 %v2741, 96
      %v2743 = vpop.permute.xlu0 %2742
      %2744 = vrot.lane.b32.xlu0 %v2740, 96
      %v2745 = vpop.permute.xlu0 %2744
      %v2748 = vsel %vm1393, %v2620, %v2642
      %v2749 = vsel %vm1393, %v2621, %v2644
      %v2750 = vsel %vm1649, %v2748, %v2650
      %v2751 = vsel %vm1649, %v2749, %v2652
      %v2752 = vsel %vm1652, %v2750, %v2659
      %v2753 = vsel %vm1652, %v2751, %v2661
      %v2754 = vsel %vm1393, %v2624, %v2670
      %v2755 = vsel %vm1393, %v2625, %v2672
      %v2756 = vsel %vm1649, %v2754, %v2678
      %v2757 = vsel %vm1649, %v2755, %v2680
      %v2758 = vsel %vm1652, %v2756, %v2687
      %v2759 = vsel %vm1652, %v2757, %v2689
      %v2760 = vsel %vm1393, %v2628, %v2698
      %v2761 = vsel %vm1393, %v2629, %v2700
      %v2762 = vsel %vm1649, %v2760, %v2706
      %v2763 = vsel %vm1649, %v2761, %v2708
      %v2764 = vsel %vm1652, %v2762, %v2715
      %v2765 = vsel %vm1652, %v2763, %v2717
      %v2766 = vsel %vm1393, %v2632, %v2726
      %v2767 = vsel %vm1393, %v2633, %v2728
      %v2768 = vsel %vm1649, %v2766, %v2734
      %v2769 = vsel %vm1649, %v2767, %v2736
      %v2770 = vsel %vm1652, %v2768, %v2743
      %v2771 = vsel %vm1652, %v2769, %v2745
      %v2780 = vrot.slane %v2752, 4
      %v2781 = vrot.slane %v2758, 4
      %v2782 = vrot.slane %v2764, 4
      %v2783 = vrot.slane %v2770, 4
      %v2784 = vrot.slane %v2753, 4
      %v2785 = vsel %vm2038, %v2780, %v2784
      %v2786 = vrot.slane %v2759, 4
      %v2787 = vsel %vm2038, %v2781, %v2786
      %v2788 = vrot.slane %v2765, 4
      %v2789 = vsel %vm2038, %v2782, %v2788
      %v2790 = vrot.slane %v2771, 4
      %v2791 = vsel %vm2038, %v2783, %v2790
      %2804 = vst [vmem:[#allocation5 + $0x140] sm:$0xf0] %v2780
      %2805 = vst [vmem:[#allocation5 + $0x148] sm:$0xf0] %v2781
      %2806 = vst [vmem:[#allocation5 + $0x150] sm:$0xf0] %v2782
      %2807 = vst [vmem:[#allocation5 + $0x158] sm:$0xf0] %v2783
      %2808 = vst [vmem:[#allocation5 + $0x160] sm:$0xff] %v2785
      %2809 = vst [vmem:[#allocation5 + $0x168] sm:$0xff] %v2787
      %2810 = vst [vmem:[#allocation5 + $0x170] sm:$0xff] %v2789
      %2811 = vst [vmem:[#allocation5 + $0x178] sm:$0xff] %v2791
      %2812 = vst [vmem:[#allocation5 + $0x180] sm:$0x3] %v2784
      %2813 = vst [vmem:[#allocation5 + $0x188] sm:$0x3] %v2786
      %2814 = vst [vmem:[#allocation5 + $0x190] sm:$0x3] %v2788
      %2815 = vst [vmem:[#allocation5 + $0x198] sm:$0x3] %v2790
      %v2816 = vld [vmem:[#allocation2 + $0x1c0] sm:$0xff]
      %v2817 = vld [vmem:[#allocation2 + $0x1c8] sm:$0xff]
      %v2818 = vld [vmem:[#allocation2 + $0x1d0] sm:$0xff]
      %v2819 = vld [vmem:[#allocation2 + $0x1d8] sm:$0xff]
      %v2820 = vld [vmem:[#allocation2 + $0x1e0] sm:$0xff]
      %v2821 = vld [vmem:[#allocation2 + $0x1e8] sm:$0xff]
      %v2822 = vld [vmem:[#allocation2 + $0x1f0] sm:$0xff]
      %v2823 = vld [vmem:[#allocation2 + $0x1f8] sm:$0xff]
      %v2824 = vld [vmem:[#allocation2 + $0x200] sm:$0xff]
      %v2825 = vld [vmem:[#allocation2 + $0x208] sm:$0xff]
      %v2826 = vld [vmem:[#allocation2 + $0x210] sm:$0xff]
      %v2827 = vld [vmem:[#allocation2 + $0x218] sm:$0xff]
      %v2828 = vld [vmem:[#allocation2 + $0x220] sm:$0xff]
      %v2829 = vld [vmem:[#allocation2 + $0x228] sm:$0xff]
      %v2830 = vld [vmem:[#allocation2 + $0x230] sm:$0xff]
      %v2831 = vld [vmem:[#allocation2 + $0x238] sm:$0xff]
      %v2834 = vrot.slane %v2816, 1
      %v2835 = vrot.slane %v2817, 1
      %v2836 = vsel %vm1536, %v2834, %v2835
      %2837 = vrot.lane.b32.xlu0 %v2836, 32
      %v2838 = vpop.permute.xlu0 %2837
      %2839 = vrot.lane.b32.xlu0 %v2835, 32
      %v2840 = vpop.permute.xlu0 %2839
      %2845 = vrot.lane.b32.xlu0 %v2818, 64
      %v2846 = vpop.permute.xlu0 %2845
      %2847 = vrot.lane.b32.xlu0 %v2819, 64
      %v2848 = vpop.permute.xlu0 %2847
      %v2851 = vrot.slane %v2818, 1
      %v2852 = vrot.slane %v2819, 1
      %v2853 = vsel %vm1536, %v2851, %v2852
      %2854 = vrot.lane.b32.xlu0 %v2853, 96
      %v2855 = vpop.permute.xlu0 %2854
      %2856 = vrot.lane.b32.xlu0 %v2852, 96
      %v2857 = vpop.permute.xlu0 %2856
      %v2862 = vrot.slane %v2820, 1
      %v2863 = vrot.slane %v2821, 1
      %v2864 = vsel %vm1536, %v2862, %v2863
      %2865 = vrot.lane.b32.xlu0 %v2864, 32
      %v2866 = vpop.permute.xlu0 %2865
      %2867 = vrot.lane.b32.xlu0 %v2863, 32
      %v2868 = vpop.permute.xlu0 %2867
      %2873 = vrot.lane.b32.xlu0 %v2822, 64
      %v2874 = vpop.permute.xlu0 %2873
      %2875 = vrot.lane.b32.xlu0 %v2823, 64
      %v2876 = vpop.permute.xlu0 %2875
      %v2879 = vrot.slane %v2822, 1
      %v2880 = vrot.slane %v2823, 1
      %v2881 = vsel %vm1536, %v2879, %v2880
      %2882 = vrot.lane.b32.xlu0 %v2881, 96
      %v2883 = vpop.permute.xlu0 %2882
      %2884 = vrot.lane.b32.xlu0 %v2880, 96
      %v2885 = vpop.permute.xlu0 %2884
      %v2890 = vrot.slane %v2824, 1
      %v2891 = vrot.slane %v2825, 1
      %v2892 = vsel %vm1536, %v2890, %v2891
      %2893 = vrot.lane.b32.xlu0 %v2892, 32
      %v2894 = vpop.permute.xlu0 %2893
      %2895 = vrot.lane.b32.xlu0 %v2891, 32
      %v2896 = vpop.permute.xlu0 %2895
      %2901 = vrot.lane.b32.xlu0 %v2826, 64
      %v2902 = vpop.permute.xlu0 %2901
      %2903 = vrot.lane.b32.xlu0 %v2827, 64
      %v2904 = vpop.permute.xlu0 %2903
      %v2907 = vrot.slane %v2826, 1
      %v2908 = vrot.slane %v2827, 1
      %v2909 = vsel %vm1536, %v2907, %v2908
      %2910 = vrot.lane.b32.xlu0 %v2909, 96
      %v2911 = vpop.permute.xlu0 %2910
      %2912 = vrot.lane.b32.xlu0 %v2908, 96
      %v2913 = vpop.permute.xlu0 %2912
      %v2918 = vrot.slane %v2828, 1
      %v2919 = vrot.slane %v2829, 1
      %v2920 = vsel %vm1536, %v2918, %v2919
      %2921 = vrot.lane.b32.xlu0 %v2920, 32
      %v2922 = vpop.permute.xlu0 %2921
      %2923 = vrot.lane.b32.xlu0 %v2919, 32
      %v2924 = vpop.permute.xlu0 %2923
      %2929 = vrot.lane.b32.xlu0 %v2830, 64
      %v2930 = vpop.permute.xlu0 %2929
      %2931 = vrot.lane.b32.xlu0 %v2831, 64
      %v2932 = vpop.permute.xlu0 %2931
      %v2935 = vrot.slane %v2830, 1
      %v2936 = vrot.slane %v2831, 1
      %v2937 = vsel %vm1536, %v2935, %v2936
      %2938 = vrot.lane.b32.xlu0 %v2937, 96
      %v2939 = vpop.permute.xlu0 %2938
      %2940 = vrot.lane.b32.xlu0 %v2936, 96
      %v2941 = vpop.permute.xlu0 %2940
      %v2944 = vsel %vm1393, %v2816, %v2838
      %v2945 = vsel %vm1393, %v2817, %v2840
      %v2946 = vsel %vm1649, %v2944, %v2846
      %v2947 = vsel %vm1649, %v2945, %v2848
      %v2948 = vsel %vm1652, %v2946, %v2855
      %v2949 = vsel %vm1652, %v2947, %v2857
      %v2950 = vsel %vm1393, %v2820, %v2866
      %v2951 = vsel %vm1393, %v2821, %v2868
      %v2952 = vsel %vm1649, %v2950, %v2874
      %v2953 = vsel %vm1649, %v2951, %v2876
      %v2954 = vsel %vm1652, %v2952, %v2883
      %v2955 = vsel %vm1652, %v2953, %v2885
      %v2956 = vsel %vm1393, %v2824, %v2894
      %v2957 = vsel %vm1393, %v2825, %v2896
      %v2958 = vsel %vm1649, %v2956, %v2902
      %v2959 = vsel %vm1649, %v2957, %v2904
      %v2960 = vsel %vm1652, %v2958, %v2911
      %v2961 = vsel %vm1652, %v2959, %v2913
      %v2962 = vsel %vm1393, %v2828, %v2922
      %v2963 = vsel %vm1393, %v2829, %v2924
      %v2964 = vsel %vm1649, %v2962, %v2930
      %v2965 = vsel %vm1649, %v2963, %v2932
      %v2966 = vsel %vm1652, %v2964, %v2939
      %v2967 = vsel %vm1652, %v2965, %v2941
      %v2976 = vrot.slane %v2948, 6
      %v2977 = vrot.slane %v2954, 6
      %v2978 = vrot.slane %v2960, 6
      %v2979 = vrot.slane %v2966, 6
      %v2980 = vrot.slane %v2949, 6
      %v2981 = vsel %vm2235, %v2976, %v2980
      %v2982 = vrot.slane %v2955, 6
      %v2983 = vsel %vm2235, %v2977, %v2982
      %v2984 = vrot.slane %v2961, 6
      %v2985 = vsel %vm2235, %v2978, %v2984
      %v2986 = vrot.slane %v2967, 6
      %v2987 = vsel %vm2235, %v2979, %v2986
      %2996 = vst [vmem:[#allocation5 + $0x180] sm:$0xfc] %v2976
      %2997 = vst [vmem:[#allocation5 + $0x188] sm:$0xfc] %v2977
      %2998 = vst [vmem:[#allocation5 + $0x190] sm:$0xfc] %v2978
      %2999 = vst [vmem:[#allocation5 + $0x198] sm:$0xfc] %v2979
      %3000 = vst [vmem:[#allocation5 + $0x1a0] sm:$0xff] %v2981
      %3001 = vst [vmem:[#allocation5 + $0x1a8] sm:$0xff] %v2983
      %3002 = vst [vmem:[#allocation5 + $0x1b0] sm:$0xff] %v2985
      %3003 = vst [vmem:[#allocation5 + $0x1b8] sm:$0xff] %v2987
      %v3004 = vld [vmem:[#allocation2 + $0x200] sm:$0xff]
      %v3005 = vld [vmem:[#allocation2 + $0x208] sm:$0xff]
      %v3006 = vld [vmem:[#allocation2 + $0x210] sm:$0xff]
      %v3007 = vld [vmem:[#allocation2 + $0x218] sm:$0xff]
      %v3008 = vld [vmem:[#allocation2 + $0x220] sm:$0xff]
      %v3009 = vld [vmem:[#allocation2 + $0x228] sm:$0xff]
      %v3010 = vld [vmem:[#allocation2 + $0x230] sm:$0xff]
      %v3011 = vld [vmem:[#allocation2 + $0x238] sm:$0xff]
      %v3012 = vld [vmem:[#allocation2 + $0x240] sm:$0xff]
      %v3013 = vld [vmem:[#allocation2 + $0x248] sm:$0xff]
      %v3014 = vld [vmem:[#allocation2 + $0x250] sm:$0xff]
      %v3015 = vld [vmem:[#allocation2 + $0x258] sm:$0xff]
      %v3016 = vld [vmem:[#allocation2 + $0x260] sm:$0xff]
      %v3017 = vld [vmem:[#allocation2 + $0x268] sm:$0xff]
      %v3018 = vld [vmem:[#allocation2 + $0x270] sm:$0xff]
      %v3019 = vld [vmem:[#allocation2 + $0x278] sm:$0xff]
      %v3022 = vrot.slane %v3004, 1
      %v3023 = vrot.slane %v3005, 1
      %v3024 = vsel %vm1536, %v3022, %v3023
      %3025 = vrot.lane.b32.xlu0 %v3024, 32
      %v3026 = vpop.permute.xlu0 %3025
      %3027 = vrot.lane.b32.xlu0 %v3023, 32
      %v3028 = vpop.permute.xlu0 %3027
      %3033 = vrot.lane.b32.xlu0 %v3006, 64
      %v3034 = vpop.permute.xlu0 %3033
      %3035 = vrot.lane.b32.xlu0 %v3007, 64
      %v3036 = vpop.permute.xlu0 %3035
      %v3039 = vrot.slane %v3006, 1
      %v3040 = vrot.slane %v3007, 1
      %v3041 = vsel %vm1536, %v3039, %v3040
      %3042 = vrot.lane.b32.xlu0 %v3041, 96
      %v3043 = vpop.permute.xlu0 %3042
      %3044 = vrot.lane.b32.xlu0 %v3040, 96
      %v3045 = vpop.permute.xlu0 %3044
      %v3050 = vrot.slane %v3008, 1
      %v3051 = vrot.slane %v3009, 1
      %v3052 = vsel %vm1536, %v3050, %v3051
      %3053 = vrot.lane.b32.xlu0 %v3052, 32
      %v3054 = vpop.permute.xlu0 %3053
      %3055 = vrot.lane.b32.xlu0 %v3051, 32
      %v3056 = vpop.permute.xlu0 %3055
      %3061 = vrot.lane.b32.xlu0 %v3010, 64
      %v3062 = vpop.permute.xlu0 %3061
      %3063 = vrot.lane.b32.xlu0 %v3011, 64
      %v3064 = vpop.permute.xlu0 %3063
      %v3067 = vrot.slane %v3010, 1
      %v3068 = vrot.slane %v3011, 1
      %v3069 = vsel %vm1536, %v3067, %v3068
      %3070 = vrot.lane.b32.xlu0 %v3069, 96
      %v3071 = vpop.permute.xlu0 %3070
      %3072 = vrot.lane.b32.xlu0 %v3068, 96
      %v3073 = vpop.permute.xlu0 %3072
      %v3078 = vrot.slane %v3012, 1
      %v3079 = vrot.slane %v3013, 1
      %v3080 = vsel %vm1536, %v3078, %v3079
      %3081 = vrot.lane.b32.xlu0 %v3080, 32
      %v3082 = vpop.permute.xlu0 %3081
      %3083 = vrot.lane.b32.xlu0 %v3079, 32
      %v3084 = vpop.permute.xlu0 %3083
      %3089 = vrot.lane.b32.xlu0 %v3014, 64
      %v3090 = vpop.permute.xlu0 %3089
      %3091 = vrot.lane.b32.xlu0 %v3015, 64
      %v3092 = vpop.permute.xlu0 %3091
      %v3095 = vrot.slane %v3014, 1
      %v3096 = vrot.slane %v3015, 1
      %v3097 = vsel %vm1536, %v3095, %v3096
      %3098 = vrot.lane.b32.xlu0 %v3097, 96
      %v3099 = vpop.permute.xlu0 %3098
      %3100 = vrot.lane.b32.xlu0 %v3096, 96
      %v3101 = vpop.permute.xlu0 %3100
      %v3106 = vrot.slane %v3016, 1
      %v3107 = vrot.slane %v3017, 1
      %v3108 = vsel %vm1536, %v3106, %v3107
      %3109 = vrot.lane.b32.xlu0 %v3108, 32
      %v3110 = vpop.permute.xlu0 %3109
      %3111 = vrot.lane.b32.xlu0 %v3107, 32
      %v3112 = vpop.permute.xlu0 %3111
      %3117 = vrot.lane.b32.xlu0 %v3018, 64
      %v3118 = vpop.permute.xlu0 %3117
      %3119 = vrot.lane.b32.xlu0 %v3019, 64
      %v3120 = vpop.permute.xlu0 %3119
      %v3123 = vrot.slane %v3018, 1
      %v3124 = vrot.slane %v3019, 1
      %v3125 = vsel %vm1536, %v3123, %v3124
      %3126 = vrot.lane.b32.xlu0 %v3125, 96
      %v3127 = vpop.permute.xlu0 %3126
      %3128 = vrot.lane.b32.xlu0 %v3124, 96
      %v3129 = vpop.permute.xlu0 %3128
      %v3132 = vsel %vm1393, %v3004, %v3026
      %v3133 = vsel %vm1393, %v3005, %v3028
      %v3134 = vsel %vm1649, %v3132, %v3034
      %v3135 = vsel %vm1649, %v3133, %v3036
      %v3136 = vsel %vm1652, %v3134, %v3043
      %v3137 = vsel %vm1652, %v3135, %v3045
      %v3138 = vsel %vm1393, %v3008, %v3054
      %v3139 = vsel %vm1393, %v3009, %v3056
      %v3140 = vsel %vm1649, %v3138, %v3062
      %v3141 = vsel %vm1649, %v3139, %v3064
      %v3142 = vsel %vm1652, %v3140, %v3071
      %v3143 = vsel %vm1652, %v3141, %v3073
      %v3144 = vsel %vm1393, %v3012, %v3082
      %v3145 = vsel %vm1393, %v3013, %v3084
      %v3146 = vsel %vm1649, %v3144, %v3090
      %v3147 = vsel %vm1649, %v3145, %v3092
      %v3148 = vsel %vm1652, %v3146, %v3099
      %v3149 = vsel %vm1652, %v3147, %v3101
      %v3150 = vsel %vm1393, %v3016, %v3110
      %v3151 = vsel %vm1393, %v3017, %v3112
      %v3152 = vsel %vm1649, %v3150, %v3118
      %v3153 = vsel %vm1649, %v3151, %v3120
      %v3154 = vsel %vm1652, %v3152, %v3127
      %v3155 = vsel %vm1652, %v3153, %v3129
      %3156 = vst [vmem:[#allocation5 + $0x1c0] sm:$0xff] %v3136
      %3157 = vst [vmem:[#allocation5 + $0x1c8] sm:$0xff] %v3142
      %3158 = vst [vmem:[#allocation5 + $0x1d0] sm:$0xff] %v3148
      %3159 = vst [vmem:[#allocation5 + $0x1d8] sm:$0xff] %v3154
      %3160 = vst [vmem:[#allocation5 + $0x1e0] sm:$0x3f] %v3137
      %3161 = vst [vmem:[#allocation5 + $0x1e8] sm:$0x3f] %v3143
      %3162 = vst [vmem:[#allocation5 + $0x1f0] sm:$0x3f] %v3149
      %3163 = vst [vmem:[#allocation5 + $0x1f8] sm:$0x3f] %v3155
      %v3164 = vld [vmem:[#allocation2 + $0x240] sm:$0xff]
      %v3165 = vld [vmem:[#allocation2 + $0x248] sm:$0xff]
      %v3166 = vld [vmem:[#allocation2 + $0x250] sm:$0xff]
      %v3167 = vld [vmem:[#allocation2 + $0x258] sm:$0xff]
      %v3168 = vld [vmem:[#allocation2 + $0x260] sm:$0xff]
      %v3169 = vld [vmem:[#allocation2 + $0x268] sm:$0xff]
      %v3170 = vld [vmem:[#allocation2 + $0x270] sm:$0xff]
      %v3171 = vld [vmem:[#allocation2 + $0x278] sm:$0xff]
      %v3172 = vld [vmem:[#allocation2 + $0x280] sm:$0xff]
      %v3173 = vld [vmem:[#allocation2 + $0x288] sm:$0xff]
      %v3174 = vld [vmem:[#allocation2 + $0x290] sm:$0xff]
      %v3175 = vld [vmem:[#allocation2 + $0x298] sm:$0xff]
      %v3176 = vld [vmem:[#allocation2 + $0x2a0] sm:$0xff]
      %v3177 = vld [vmem:[#allocation2 + $0x2a8] sm:$0xff]
      %v3178 = vld [vmem:[#allocation2 + $0x2b0] sm:$0xff]
      %v3179 = vld [vmem:[#allocation2 + $0x2b8] sm:$0xff]
      %v3182 = vrot.slane %v3164, 1
      %v3183 = vrot.slane %v3165, 1
      %v3184 = vsel %vm1536, %v3182, %v3183
      %3185 = vrot.lane.b32.xlu0 %v3184, 32
      %v3186 = vpop.permute.xlu0 %3185
      %3187 = vrot.lane.b32.xlu0 %v3183, 32
      %v3188 = vpop.permute.xlu0 %3187
      %3193 = vrot.lane.b32.xlu0 %v3166, 64
      %v3194 = vpop.permute.xlu0 %3193
      %3195 = vrot.lane.b32.xlu0 %v3167, 64
      %v3196 = vpop.permute.xlu0 %3195
      %v3199 = vrot.slane %v3166, 1
      %v3200 = vrot.slane %v3167, 1
      %v3201 = vsel %vm1536, %v3199, %v3200
      %3202 = vrot.lane.b32.xlu0 %v3201, 96
      %v3203 = vpop.permute.xlu0 %3202
      %3204 = vrot.lane.b32.xlu0 %v3200, 96
      %v3205 = vpop.permute.xlu0 %3204
      %v3210 = vrot.slane %v3168, 1
      %v3211 = vrot.slane %v3169, 1
      %v3212 = vsel %vm1536, %v3210, %v3211
      %3213 = vrot.lane.b32.xlu0 %v3212, 32
      %v3214 = vpop.permute.xlu0 %3213
      %3215 = vrot.lane.b32.xlu0 %v3211, 32
      %v3216 = vpop.permute.xlu0 %3215
      %3221 = vrot.lane.b32.xlu0 %v3170, 64
      %v3222 = vpop.permute.xlu0 %3221
      %3223 = vrot.lane.b32.xlu0 %v3171, 64
      %v3224 = vpop.permute.xlu0 %3223
      %v3227 = vrot.slane %v3170, 1
      %v3228 = vrot.slane %v3171, 1
      %v3229 = vsel %vm1536, %v3227, %v3228
      %3230 = vrot.lane.b32.xlu0 %v3229, 96
      %v3231 = vpop.permute.xlu0 %3230
      %3232 = vrot.lane.b32.xlu0 %v3228, 96
      %v3233 = vpop.permute.xlu0 %3232
      %v3238 = vrot.slane %v3172, 1
      %v3239 = vrot.slane %v3173, 1
      %v3240 = vsel %vm1536, %v3238, %v3239
      %3241 = vrot.lane.b32.xlu0 %v3240, 32
      %v3242 = vpop.permute.xlu0 %3241
      %3243 = vrot.lane.b32.xlu0 %v3239, 32
      %v3244 = vpop.permute.xlu0 %3243
      %3249 = vrot.lane.b32.xlu0 %v3174, 64
      %v3250 = vpop.permute.xlu0 %3249
      %3251 = vrot.lane.b32.xlu0 %v3175, 64
      %v3252 = vpop.permute.xlu0 %3251
      %v3255 = vrot.slane %v3174, 1
      %v3256 = vrot.slane %v3175, 1
      %v3257 = vsel %vm1536, %v3255, %v3256
      %3258 = vrot.lane.b32.xlu0 %v3257, 96
      %v3259 = vpop.permute.xlu0 %3258
      %3260 = vrot.lane.b32.xlu0 %v3256, 96
      %v3261 = vpop.permute.xlu0 %3260
      %v3266 = vrot.slane %v3176, 1
      %v3267 = vrot.slane %v3177, 1
      %v3268 = vsel %vm1536, %v3266, %v3267
      %3269 = vrot.lane.b32.xlu0 %v3268, 32
      %v3270 = vpop.permute.xlu0 %3269
      %3271 = vrot.lane.b32.xlu0 %v3267, 32
      %v3272 = vpop.permute.xlu0 %3271
      %3277 = vrot.lane.b32.xlu0 %v3178, 64
      %v3278 = vpop.permute.xlu0 %3277
      %3279 = vrot.lane.b32.xlu0 %v3179, 64
      %v3280 = vpop.permute.xlu0 %3279
      %v3283 = vrot.slane %v3178, 1
      %v3284 = vrot.slane %v3179, 1
      %v3285 = vsel %vm1536, %v3283, %v3284
      %3286 = vrot.lane.b32.xlu0 %v3285, 96
      %v3287 = vpop.permute.xlu0 %3286
      %3288 = vrot.lane.b32.xlu0 %v3284, 96
      %v3289 = vpop.permute.xlu0 %3288
      %v3292 = vsel %vm1393, %v3164, %v3186
      %v3293 = vsel %vm1393, %v3165, %v3188
      %v3294 = vsel %vm1649, %v3292, %v3194
      %v3295 = vsel %vm1649, %v3293, %v3196
      %v3296 = vsel %vm1652, %v3294, %v3203
      %v3297 = vsel %vm1652, %v3295, %v3205
      %v3298 = vsel %vm1393, %v3168, %v3214
      %v3299 = vsel %vm1393, %v3169, %v3216
      %v3300 = vsel %vm1649, %v3298, %v3222
      %v3301 = vsel %vm1649, %v3299, %v3224
      %v3302 = vsel %vm1652, %v3300, %v3231
      %v3303 = vsel %vm1652, %v3301, %v3233
      %v3304 = vsel %vm1393, %v3172, %v3242
      %v3305 = vsel %vm1393, %v3173, %v3244
      %v3306 = vsel %vm1649, %v3304, %v3250
      %v3307 = vsel %vm1649, %v3305, %v3252
      %v3308 = vsel %vm1652, %v3306, %v3259
      %v3309 = vsel %vm1652, %v3307, %v3261
      %v3310 = vsel %vm1393, %v3176, %v3270
      %v3311 = vsel %vm1393, %v3177, %v3272
      %v3312 = vsel %vm1649, %v3310, %v3278
      %v3313 = vsel %vm1649, %v3311, %v3280
      %v3314 = vsel %vm1652, %v3312, %v3287
      %v3315 = vsel %vm1652, %v3313, %v3289
      %v3324 = vrot.slane %v3296, 2
      %v3325 = vrot.slane %v3302, 2
      %v3326 = vrot.slane %v3308, 2
      %v3327 = vrot.slane %v3314, 2
      %v3328 = vrot.slane %v3297, 2
      %v3329 = vsel %vm1841, %v3324, %v3328
      %v3330 = vrot.slane %v3303, 2
      %v3331 = vsel %vm1841, %v3325, %v3330
      %v3332 = vrot.slane %v3309, 2
      %v3333 = vsel %vm1841, %v3326, %v3332
      %v3334 = vrot.slane %v3315, 2
      %v3335 = vsel %vm1841, %v3327, %v3334
      %3348 = vst [vmem:[#allocation5 + $0x1e0] sm:$0xc0] %v3324
      %3349 = vst [vmem:[#allocation5 + $0x1e8] sm:$0xc0] %v3325
      %3350 = vst [vmem:[#allocation5 + $0x1f0] sm:$0xc0] %v3326
      %3351 = vst [vmem:[#allocation5 + $0x1f8] sm:$0xc0] %v3327
      %3352 = vst [vmem:[#allocation5 + $0x200] sm:$0xff] %v3329
      %3353 = vst [vmem:[#allocation5 + $0x208] sm:$0xff] %v3331
      %3354 = vst [vmem:[#allocation5 + $0x210] sm:$0xff] %v3333
      %3355 = vst [vmem:[#allocation5 + $0x218] sm:$0xff] %v3335
      %3356 = vst [vmem:[#allocation5 + $0x220] sm:$0xf] %v3328
      %3357 = vst [vmem:[#allocation5 + $0x228] sm:$0xf] %v3330
      %3358 = vst [vmem:[#allocation5 + $0x230] sm:$0xf] %v3332
      %3359 = vst [vmem:[#allocation5 + $0x238] sm:$0xf] %v3334
      %v3360 = vld [vmem:[#allocation2 + $0x280] sm:$0xff]
      %v3361 = vld [vmem:[#allocation2 + $0x288] sm:$0xff]
      %v3362 = vld [vmem:[#allocation2 + $0x290] sm:$0xff]
      %v3363 = vld [vmem:[#allocation2 + $0x298] sm:$0xff]
      %v3364 = vld [vmem:[#allocation2 + $0x2a0] sm:$0xff]
      %v3365 = vld [vmem:[#allocation2 + $0x2a8] sm:$0xff]
      %v3366 = vld [vmem:[#allocation2 + $0x2b0] sm:$0xff]
      %v3367 = vld [vmem:[#allocation2 + $0x2b8] sm:$0xff]
      %v3368 = vld [vmem:[#allocation2 + $0x2c0] sm:$0xff]
      %v3369 = vld [vmem:[#allocation2 + $0x2c8] sm:$0xff]
      %v3370 = vld [vmem:[#allocation2 + $0x2d0] sm:$0xff]
      %v3371 = vld [vmem:[#allocation2 + $0x2d8] sm:$0xff]
      %v3372 = vld [vmem:[#allocation2 + $0x2e0] sm:$0xff]
      %v3373 = vld [vmem:[#allocation2 + $0x2e8] sm:$0xff]
      %v3374 = vld [vmem:[#allocation2 + $0x2f0] sm:$0xff]
      %v3375 = vld [vmem:[#allocation2 + $0x2f8] sm:$0xff]
      %v3378 = vrot.slane %v3360, 1
      %v3379 = vrot.slane %v3361, 1
      %v3380 = vsel %vm1536, %v3378, %v3379
      %3381 = vrot.lane.b32.xlu0 %v3380, 32
      %v3382 = vpop.permute.xlu0 %3381
      %3383 = vrot.lane.b32.xlu0 %v3379, 32
      %v3384 = vpop.permute.xlu0 %3383
      %3389 = vrot.lane.b32.xlu0 %v3362, 64
      %v3390 = vpop.permute.xlu0 %3389
      %3391 = vrot.lane.b32.xlu0 %v3363, 64
      %v3392 = vpop.permute.xlu0 %3391
      %v3395 = vrot.slane %v3362, 1
      %v3396 = vrot.slane %v3363, 1
      %v3397 = vsel %vm1536, %v3395, %v3396
      %3398 = vrot.lane.b32.xlu0 %v3397, 96
      %v3399 = vpop.permute.xlu0 %3398
      %3400 = vrot.lane.b32.xlu0 %v3396, 96
      %v3401 = vpop.permute.xlu0 %3400
      %v3406 = vrot.slane %v3364, 1
      %v3407 = vrot.slane %v3365, 1
      %v3408 = vsel %vm1536, %v3406, %v3407
      %3409 = vrot.lane.b32.xlu0 %v3408, 32
      %v3410 = vpop.permute.xlu0 %3409
      %3411 = vrot.lane.b32.xlu0 %v3407, 32
      %v3412 = vpop.permute.xlu0 %3411
      %3417 = vrot.lane.b32.xlu0 %v3366, 64
      %v3418 = vpop.permute.xlu0 %3417
      %3419 = vrot.lane.b32.xlu0 %v3367, 64
      %v3420 = vpop.permute.xlu0 %3419
      %v3423 = vrot.slane %v3366, 1
      %v3424 = vrot.slane %v3367, 1
      %v3425 = vsel %vm1536, %v3423, %v3424
      %3426 = vrot.lane.b32.xlu0 %v3425, 96
      %v3427 = vpop.permute.xlu0 %3426
      %3428 = vrot.lane.b32.xlu0 %v3424, 96
      %v3429 = vpop.permute.xlu0 %3428
      %v3434 = vrot.slane %v3368, 1
      %v3435 = vrot.slane %v3369, 1
      %v3436 = vsel %vm1536, %v3434, %v3435
      %3437 = vrot.lane.b32.xlu0 %v3436, 32
      %v3438 = vpop.permute.xlu0 %3437
      %3439 = vrot.lane.b32.xlu0 %v3435, 32
      %v3440 = vpop.permute.xlu0 %3439
      %3445 = vrot.lane.b32.xlu0 %v3370, 64
      %v3446 = vpop.permute.xlu0 %3445
      %3447 = vrot.lane.b32.xlu0 %v3371, 64
      %v3448 = vpop.permute.xlu0 %3447
      %v3451 = vrot.slane %v3370, 1
      %v3452 = vrot.slane %v3371, 1
      %v3453 = vsel %vm1536, %v3451, %v3452
      %3454 = vrot.lane.b32.xlu0 %v3453, 96
      %v3455 = vpop.permute.xlu0 %3454
      %3456 = vrot.lane.b32.xlu0 %v3452, 96
      %v3457 = vpop.permute.xlu0 %3456
      %v3462 = vrot.slane %v3372, 1
      %v3463 = vrot.slane %v3373, 1
      %v3464 = vsel %vm1536, %v3462, %v3463
      %3465 = vrot.lane.b32.xlu0 %v3464, 32
      %v3466 = vpop.permute.xlu0 %3465
      %3467 = vrot.lane.b32.xlu0 %v3463, 32
      %v3468 = vpop.permute.xlu0 %3467
      %3473 = vrot.lane.b32.xlu0 %v3374, 64
      %v3474 = vpop.permute.xlu0 %3473
      %3475 = vrot.lane.b32.xlu0 %v3375, 64
      %v3476 = vpop.permute.xlu0 %3475
      %v3479 = vrot.slane %v3374, 1
      %v3480 = vrot.slane %v3375, 1
      %v3481 = vsel %vm1536, %v3479, %v3480
      %3482 = vrot.lane.b32.xlu0 %v3481, 96
      %v3483 = vpop.permute.xlu0 %3482
      %3484 = vrot.lane.b32.xlu0 %v3480, 96
      %v3485 = vpop.permute.xlu0 %3484
      %v3488 = vsel %vm1393, %v3360, %v3382
      %v3489 = vsel %vm1393, %v3361, %v3384
      %v3490 = vsel %vm1649, %v3488, %v3390
      %v3491 = vsel %vm1649, %v3489, %v3392
      %v3492 = vsel %vm1652, %v3490, %v3399
      %v3493 = vsel %vm1652, %v3491, %v3401
      %v3494 = vsel %vm1393, %v3364, %v3410
      %v3495 = vsel %vm1393, %v3365, %v3412
      %v3496 = vsel %vm1649, %v3494, %v3418
      %v3497 = vsel %vm1649, %v3495, %v3420
      %v3498 = vsel %vm1652, %v3496, %v3427
      %v3499 = vsel %vm1652, %v3497, %v3429
      %v3500 = vsel %vm1393, %v3368, %v3438
      %v3501 = vsel %vm1393, %v3369, %v3440
      %v3502 = vsel %vm1649, %v3500, %v3446
      %v3503 = vsel %vm1649, %v3501, %v3448
      %v3504 = vsel %vm1652, %v3502, %v3455
      %v3505 = vsel %vm1652, %v3503, %v3457
      %v3506 = vsel %vm1393, %v3372, %v3466
      %v3507 = vsel %vm1393, %v3373, %v3468
      %v3508 = vsel %vm1649, %v3506, %v3474
      %v3509 = vsel %vm1649, %v3507, %v3476
      %v3510 = vsel %vm1652, %v3508, %v3483
      %v3511 = vsel %vm1652, %v3509, %v3485
      %v3520 = vrot.slane %v3492, 4
      %v3521 = vrot.slane %v3498, 4
      %v3522 = vrot.slane %v3504, 4
      %v3523 = vrot.slane %v3510, 4
      %v3524 = vrot.slane %v3493, 4
      %v3525 = vsel %vm2038, %v3520, %v3524
      %v3526 = vrot.slane %v3499, 4
      %v3527 = vsel %vm2038, %v3521, %v3526
      %v3528 = vrot.slane %v3505, 4
      %v3529 = vsel %vm2038, %v3522, %v3528
      %v3530 = vrot.slane %v3511, 4
      %v3531 = vsel %vm2038, %v3523, %v3530
      %3544 = vst [vmem:[#allocation5 + $0x220] sm:$0xf0] %v3520
      %3545 = vst [vmem:[#allocation5 + $0x228] sm:$0xf0] %v3521
      %3546 = vst [vmem:[#allocation5 + $0x230] sm:$0xf0] %v3522
      %3547 = vst [vmem:[#allocation5 + $0x238] sm:$0xf0] %v3523
      %3548 = vst [vmem:[#allocation5 + $0x240] sm:$0xff] %v3525
      %3549 = vst [vmem:[#allocation5 + $0x248] sm:$0xff] %v3527
      %3550 = vst [vmem:[#allocation5 + $0x250] sm:$0xff] %v3529
      %3551 = vst [vmem:[#allocation5 + $0x258] sm:$0xff] %v3531
      %3552 = vst [vmem:[#allocation5 + $0x260] sm:$0x3] %v3524
      %3553 = vst [vmem:[#allocation5 + $0x268] sm:$0x3] %v3526
      %3554 = vst [vmem:[#allocation5 + $0x270] sm:$0x3] %v3528
      %3555 = vst [vmem:[#allocation5 + $0x278] sm:$0x3] %v3530
      %v3556 = vld [vmem:[#allocation2 + $0x2c0] sm:$0xff]
      %v3557 = vld [vmem:[#allocation2 + $0x2c8] sm:$0xff]
      %v3558 = vld [vmem:[#allocation2 + $0x2d0] sm:$0xff]
      %v3559 = vld [vmem:[#allocation2 + $0x2d8] sm:$0xff]
      %v3560 = vld [vmem:[#allocation2 + $0x2e0] sm:$0xff]
      %v3561 = vld [vmem:[#allocation2 + $0x2e8] sm:$0xff]
      %v3562 = vld [vmem:[#allocation2 + $0x2f0] sm:$0xff]
      %v3563 = vld [vmem:[#allocation2 + $0x2f8] sm:$0xff]
      %v3564 = vld [vmem:[#allocation2 + $0x300] sm:$0xff]
      %v3565 = vld [vmem:[#allocation2 + $0x308] sm:$0xff]
      %v3566 = vld [vmem:[#allocation2 + $0x310] sm:$0xff]
      %v3567 = vld [vmem:[#allocation2 + $0x318] sm:$0xff]
      %v3568 = vld [vmem:[#allocation2 + $0x320] sm:$0xff]
      %v3569 = vld [vmem:[#allocation2 + $0x328] sm:$0xff]
      %v3570 = vld [vmem:[#allocation2 + $0x330] sm:$0xff]
      %v3571 = vld [vmem:[#allocation2 + $0x338] sm:$0xff]
      %v3574 = vrot.slane %v3556, 1
      %v3575 = vrot.slane %v3557, 1
      %v3576 = vsel %vm1536, %v3574, %v3575
      %3577 = vrot.lane.b32.xlu0 %v3576, 32
      %v3578 = vpop.permute.xlu0 %3577
      %3579 = vrot.lane.b32.xlu0 %v3575, 32
      %v3580 = vpop.permute.xlu0 %3579
      %3585 = vrot.lane.b32.xlu0 %v3558, 64
      %v3586 = vpop.permute.xlu0 %3585
      %3587 = vrot.lane.b32.xlu0 %v3559, 64
      %v3588 = vpop.permute.xlu0 %3587
      %v3591 = vrot.slane %v3558, 1
      %v3592 = vrot.slane %v3559, 1
      %v3593 = vsel %vm1536, %v3591, %v3592
      %3594 = vrot.lane.b32.xlu0 %v3593, 96
      %v3595 = vpop.permute.xlu0 %3594
      %3596 = vrot.lane.b32.xlu0 %v3592, 96
      %v3597 = vpop.permute.xlu0 %3596
      %v3602 = vrot.slane %v3560, 1
      %v3603 = vrot.slane %v3561, 1
      %v3604 = vsel %vm1536, %v3602, %v3603
      %3605 = vrot.lane.b32.xlu0 %v3604, 32
      %v3606 = vpop.permute.xlu0 %3605
      %3607 = vrot.lane.b32.xlu0 %v3603, 32
      %v3608 = vpop.permute.xlu0 %3607
      %3613 = vrot.lane.b32.xlu0 %v3562, 64
      %v3614 = vpop.permute.xlu0 %3613
      %3615 = vrot.lane.b32.xlu0 %v3563, 64
      %v3616 = vpop.permute.xlu0 %3615
      %v3619 = vrot.slane %v3562, 1
      %v3620 = vrot.slane %v3563, 1
      %v3621 = vsel %vm1536, %v3619, %v3620
      %3622 = vrot.lane.b32.xlu0 %v3621, 96
      %v3623 = vpop.permute.xlu0 %3622
      %3624 = vrot.lane.b32.xlu0 %v3620, 96
      %v3625 = vpop.permute.xlu0 %3624
      %v3630 = vrot.slane %v3564, 1
      %v3631 = vrot.slane %v3565, 1
      %v3632 = vsel %vm1536, %v3630, %v3631
      %3633 = vrot.lane.b32.xlu0 %v3632, 32
      %v3634 = vpop.permute.xlu0 %3633
      %3635 = vrot.lane.b32.xlu0 %v3631, 32
      %v3636 = vpop.permute.xlu0 %3635
      %3641 = vrot.lane.b32.xlu0 %v3566, 64
      %v3642 = vpop.permute.xlu0 %3641
      %3643 = vrot.lane.b32.xlu0 %v3567, 64
      %v3644 = vpop.permute.xlu0 %3643
      %v3647 = vrot.slane %v3566, 1
      %v3648 = vrot.slane %v3567, 1
      %v3649 = vsel %vm1536, %v3647, %v3648
      %3650 = vrot.lane.b32.xlu0 %v3649, 96
      %v3651 = vpop.permute.xlu0 %3650
      %3652 = vrot.lane.b32.xlu0 %v3648, 96
      %v3653 = vpop.permute.xlu0 %3652
      %v3658 = vrot.slane %v3568, 1
      %v3659 = vrot.slane %v3569, 1
      %v3660 = vsel %vm1536, %v3658, %v3659
      %3661 = vrot.lane.b32.xlu0 %v3660, 32
      %v3662 = vpop.permute.xlu0 %3661
      %3663 = vrot.lane.b32.xlu0 %v3659, 32
      %v3664 = vpop.permute.xlu0 %3663
      %3669 = vrot.lane.b32.xlu0 %v3570, 64
      %v3670 = vpop.permute.xlu0 %3669
      %3671 = vrot.lane.b32.xlu0 %v3571, 64
      %v3672 = vpop.permute.xlu0 %3671
      %v3675 = vrot.slane %v3570, 1
      %v3676 = vrot.slane %v3571, 1
      %v3677 = vsel %vm1536, %v3675, %v3676
      %3678 = vrot.lane.b32.xlu0 %v3677, 96
      %v3679 = vpop.permute.xlu0 %3678
      %3680 = vrot.lane.b32.xlu0 %v3676, 96
      %v3681 = vpop.permute.xlu0 %3680
      %v3684 = vsel %vm1393, %v3556, %v3578
      %v3685 = vsel %vm1393, %v3557, %v3580
      %v3686 = vsel %vm1649, %v3684, %v3586
      %v3687 = vsel %vm1649, %v3685, %v3588
      %v3688 = vsel %vm1652, %v3686, %v3595
      %v3689 = vsel %vm1652, %v3687, %v3597
      %v3690 = vsel %vm1393, %v3560, %v3606
      %v3691 = vsel %vm1393, %v3561, %v3608
      %v3692 = vsel %vm1649, %v3690, %v3614
      %v3693 = vsel %vm1649, %v3691, %v3616
      %v3694 = vsel %vm1652, %v3692, %v3623
      %v3695 = vsel %vm1652, %v3693, %v3625
      %v3696 = vsel %vm1393, %v3564, %v3634
      %v3697 = vsel %vm1393, %v3565, %v3636
      %v3698 = vsel %vm1649, %v3696, %v3642
      %v3699 = vsel %vm1649, %v3697, %v3644
      %v3700 = vsel %vm1652, %v3698, %v3651
      %v3701 = vsel %vm1652, %v3699, %v3653
      %v3702 = vsel %vm1393, %v3568, %v3662
      %v3703 = vsel %vm1393, %v3569, %v3664
      %v3704 = vsel %vm1649, %v3702, %v3670
      %v3705 = vsel %vm1649, %v3703, %v3672
      %v3706 = vsel %vm1652, %v3704, %v3679
      %v3707 = vsel %vm1652, %v3705, %v3681
      %v3716 = vrot.slane %v3688, 6
      %v3717 = vrot.slane %v3694, 6
      %v3718 = vrot.slane %v3700, 6
      %v3719 = vrot.slane %v3706, 6
      %v3720 = vrot.slane %v3689, 6
      %v3721 = vsel %vm2235, %v3716, %v3720
      %v3722 = vrot.slane %v3695, 6
      %v3723 = vsel %vm2235, %v3717, %v3722
      %v3724 = vrot.slane %v3701, 6
      %v3725 = vsel %vm2235, %v3718, %v3724
      %v3726 = vrot.slane %v3707, 6
      %v3727 = vsel %vm2235, %v3719, %v3726
      %3736 = vst [vmem:[#allocation5 + $0x260] sm:$0xfc] %v3716
      %3737 = vst [vmem:[#allocation5 + $0x268] sm:$0xfc] %v3717
      %3738 = vst [vmem:[#allocation5 + $0x270] sm:$0xfc] %v3718
      %3739 = vst [vmem:[#allocation5 + $0x278] sm:$0xfc] %v3719
      %3740 = vst [vmem:[#allocation5 + $0x280] sm:$0xff] %v3721
      %3741 = vst [vmem:[#allocation5 + $0x288] sm:$0xff] %v3723
      %3742 = vst [vmem:[#allocation5 + $0x290] sm:$0xff] %v3725
      %3743 = vst [vmem:[#allocation5 + $0x298] sm:$0xff] %v3727
      %v3744 = vld [vmem:[#allocation2 + $0x300] sm:$0xff]
      %v3745 = vld [vmem:[#allocation2 + $0x308] sm:$0xff]
      %v3746 = vld [vmem:[#allocation2 + $0x310] sm:$0xff]
      %v3747 = vld [vmem:[#allocation2 + $0x318] sm:$0xff]
      %v3748 = vld [vmem:[#allocation2 + $0x320] sm:$0xff]
      %v3749 = vld [vmem:[#allocation2 + $0x328] sm:$0xff]
      %v3750 = vld [vmem:[#allocation2 + $0x330] sm:$0xff]
      %v3751 = vld [vmem:[#allocation2 + $0x338] sm:$0xff]
      %v3752 = vld [vmem:[#allocation2 + $0x340] sm:$0xff]
      %v3753 = vld [vmem:[#allocation2 + $0x348] sm:$0xff]
      %v3754 = vld [vmem:[#allocation2 + $0x350] sm:$0xff]
      %v3755 = vld [vmem:[#allocation2 + $0x358] sm:$0xff]
      %v3756 = vld [vmem:[#allocation2 + $0x360] sm:$0xff]
      %v3757 = vld [vmem:[#allocation2 + $0x368] sm:$0xff]
      %v3758 = vld [vmem:[#allocation2 + $0x370] sm:$0xff]
      %v3759 = vld [vmem:[#allocation2 + $0x378] sm:$0xff]
      %v3762 = vrot.slane %v3744, 1
      %v3763 = vrot.slane %v3745, 1
      %v3764 = vsel %vm1536, %v3762, %v3763
      %3765 = vrot.lane.b32.xlu0 %v3764, 32
      %v3766 = vpop.permute.xlu0 %3765
      %3767 = vrot.lane.b32.xlu0 %v3763, 32
      %v3768 = vpop.permute.xlu0 %3767
      %3773 = vrot.lane.b32.xlu0 %v3746, 64
      %v3774 = vpop.permute.xlu0 %3773
      %3775 = vrot.lane.b32.xlu0 %v3747, 64
      %v3776 = vpop.permute.xlu0 %3775
      %v3779 = vrot.slane %v3746, 1
      %v3780 = vrot.slane %v3747, 1
      %v3781 = vsel %vm1536, %v3779, %v3780
      %3782 = vrot.lane.b32.xlu0 %v3781, 96
      %v3783 = vpop.permute.xlu0 %3782
      %3784 = vrot.lane.b32.xlu0 %v3780, 96
      %v3785 = vpop.permute.xlu0 %3784
      %v3790 = vrot.slane %v3748, 1
      %v3791 = vrot.slane %v3749, 1
      %v3792 = vsel %vm1536, %v3790, %v3791
      %3793 = vrot.lane.b32.xlu0 %v3792, 32
      %v3794 = vpop.permute.xlu0 %3793
      %3795 = vrot.lane.b32.xlu0 %v3791, 32
      %v3796 = vpop.permute.xlu0 %3795
      %3801 = vrot.lane.b32.xlu0 %v3750, 64
      %v3802 = vpop.permute.xlu0 %3801
      %3803 = vrot.lane.b32.xlu0 %v3751, 64
      %v3804 = vpop.permute.xlu0 %3803
      %v3807 = vrot.slane %v3750, 1
      %v3808 = vrot.slane %v3751, 1
      %v3809 = vsel %vm1536, %v3807, %v3808
      %3810 = vrot.lane.b32.xlu0 %v3809, 96
      %v3811 = vpop.permute.xlu0 %3810
      %3812 = vrot.lane.b32.xlu0 %v3808, 96
      %v3813 = vpop.permute.xlu0 %3812
      %v3818 = vrot.slane %v3752, 1
      %v3819 = vrot.slane %v3753, 1
      %v3820 = vsel %vm1536, %v3818, %v3819
      %3821 = vrot.lane.b32.xlu0 %v3820, 32
      %v3822 = vpop.permute.xlu0 %3821
      %3823 = vrot.lane.b32.xlu0 %v3819, 32
      %v3824 = vpop.permute.xlu0 %3823
      %3829 = vrot.lane.b32.xlu0 %v3754, 64
      %v3830 = vpop.permute.xlu0 %3829
      %3831 = vrot.lane.b32.xlu0 %v3755, 64
      %v3832 = vpop.permute.xlu0 %3831
      %v3835 = vrot.slane %v3754, 1
      %v3836 = vrot.slane %v3755, 1
      %v3837 = vsel %vm1536, %v3835, %v3836
      %3838 = vrot.lane.b32.xlu0 %v3837, 96
      %v3839 = vpop.permute.xlu0 %3838
      %3840 = vrot.lane.b32.xlu0 %v3836, 96
      %v3841 = vpop.permute.xlu0 %3840
      %v3846 = vrot.slane %v3756, 1
      %v3847 = vrot.slane %v3757, 1
      %v3848 = vsel %vm1536, %v3846, %v3847
      %3849 = vrot.lane.b32.xlu0 %v3848, 32
      %v3850 = vpop.permute.xlu0 %3849
      %3851 = vrot.lane.b32.xlu0 %v3847, 32
      %v3852 = vpop.permute.xlu0 %3851
      %3857 = vrot.lane.b32.xlu0 %v3758, 64
      %v3858 = vpop.permute.xlu0 %3857
      %3859 = vrot.lane.b32.xlu0 %v3759, 64
      %v3860 = vpop.permute.xlu0 %3859
      %v3863 = vrot.slane %v3758, 1
      %v3864 = vrot.slane %v3759, 1
      %v3865 = vsel %vm1536, %v3863, %v3864
      %3866 = vrot.lane.b32.xlu0 %v3865, 96
      %v3867 = vpop.permute.xlu0 %3866
      %3868 = vrot.lane.b32.xlu0 %v3864, 96
      %v3869 = vpop.permute.xlu0 %3868
      %v3872 = vsel %vm1393, %v3744, %v3766
      %v3873 = vsel %vm1393, %v3745, %v3768
      %v3874 = vsel %vm1649, %v3872, %v3774
      %v3875 = vsel %vm1649, %v3873, %v3776
      %v3876 = vsel %vm1652, %v3874, %v3783
      %v3877 = vsel %vm1652, %v3875, %v3785
      %v3878 = vsel %vm1393, %v3748, %v3794
      %v3879 = vsel %vm1393, %v3749, %v3796
      %v3880 = vsel %vm1649, %v3878, %v3802
      %v3881 = vsel %vm1649, %v3879, %v3804
      %v3882 = vsel %vm1652, %v3880, %v3811
      %v3883 = vsel %vm1652, %v3881, %v3813
      %v3884 = vsel %vm1393, %v3752, %v3822
      %v3885 = vsel %vm1393, %v3753, %v3824
      %v3886 = vsel %vm1649, %v3884, %v3830
      %v3887 = vsel %vm1649, %v3885, %v3832
      %v3888 = vsel %vm1652, %v3886, %v3839
      %v3889 = vsel %vm1652, %v3887, %v3841
      %v3890 = vsel %vm1393, %v3756, %v3850
      %v3891 = vsel %vm1393, %v3757, %v3852
      %v3892 = vsel %vm1649, %v3890, %v3858
      %v3893 = vsel %vm1649, %v3891, %v3860
      %v3894 = vsel %vm1652, %v3892, %v3867
      %v3895 = vsel %vm1652, %v3893, %v3869
      %3896 = vst [vmem:[#allocation5 + $0x2a0] sm:$0xff] %v3876
      %3897 = vst [vmem:[#allocation5 + $0x2a8] sm:$0xff] %v3882
      %3898 = vst [vmem:[#allocation5 + $0x2b0] sm:$0xff] %v3888
      %3899 = vst [vmem:[#allocation5 + $0x2b8] sm:$0xff] %v3894
      %3900 = vst [vmem:[#allocation5 + $0x2c0] sm:$0x3f] %v3877
      %3901 = vst [vmem:[#allocation5 + $0x2c8] sm:$0x3f] %v3883
      %3902 = vst [vmem:[#allocation5 + $0x2d0] sm:$0x3f] %v3889
      %3903 = vst [vmem:[#allocation5 + $0x2d8] sm:$0x3f] %v3895
      %v3904 = vld [vmem:[#allocation2 + $0x340] sm:$0xff]
      %v3905 = vld [vmem:[#allocation2 + $0x348] sm:$0xff]
      %v3906 = vld [vmem:[#allocation2 + $0x350] sm:$0xff]
      %v3907 = vld [vmem:[#allocation2 + $0x358] sm:$0xff]
      %v3908 = vld [vmem:[#allocation2 + $0x360] sm:$0xff]
      %v3909 = vld [vmem:[#allocation2 + $0x368] sm:$0xff]
      %v3910 = vld [vmem:[#allocation2 + $0x370] sm:$0xff]
      %v3911 = vld [vmem:[#allocation2 + $0x378] sm:$0xff]
      %v3912 = vld [vmem:[#allocation2 + $0x380] sm:$0xff]
      %v3913 = vld [vmem:[#allocation2 + $0x388] sm:$0xff]
      %v3914 = vld [vmem:[#allocation2 + $0x390] sm:$0xff]
      %v3915 = vld [vmem:[#allocation2 + $0x398] sm:$0xff]
      %v3916 = vld [vmem:[#allocation2 + $0x3a0] sm:$0xff]
      %v3917 = vld [vmem:[#allocation2 + $0x3a8] sm:$0xff]
      %v3918 = vld [vmem:[#allocation2 + $0x3b0] sm:$0xff]
      %v3919 = vld [vmem:[#allocation2 + $0x3b8] sm:$0xff]
      %v3922 = vrot.slane %v3904, 1
      %v3923 = vrot.slane %v3905, 1
      %v3924 = vsel %vm1536, %v3922, %v3923
      %3925 = vrot.lane.b32.xlu0 %v3924, 32
      %v3926 = vpop.permute.xlu0 %3925
      %3927 = vrot.lane.b32.xlu0 %v3923, 32
      %v3928 = vpop.permute.xlu0 %3927
      %3933 = vrot.lane.b32.xlu0 %v3906, 64
      %v3934 = vpop.permute.xlu0 %3933
      %3935 = vrot.lane.b32.xlu0 %v3907, 64
      %v3936 = vpop.permute.xlu0 %3935
      %v3939 = vrot.slane %v3906, 1
      %v3940 = vrot.slane %v3907, 1
      %v3941 = vsel %vm1536, %v3939, %v3940
      %3942 = vrot.lane.b32.xlu0 %v3941, 96
      %v3943 = vpop.permute.xlu0 %3942
      %3944 = vrot.lane.b32.xlu0 %v3940, 96
      %v3945 = vpop.permute.xlu0 %3944
      %v3950 = vrot.slane %v3908, 1
      %v3951 = vrot.slane %v3909, 1
      %v3952 = vsel %vm1536, %v3950, %v3951
      %3953 = vrot.lane.b32.xlu0 %v3952, 32
      %v3954 = vpop.permute.xlu0 %3953
      %3955 = vrot.lane.b32.xlu0 %v3951, 32
      %v3956 = vpop.permute.xlu0 %3955
      %3961 = vrot.lane.b32.xlu0 %v3910, 64
      %v3962 = vpop.permute.xlu0 %3961
      %3963 = vrot.lane.b32.xlu0 %v3911, 64
      %v3964 = vpop.permute.xlu0 %3963
      %v3967 = vrot.slane %v3910, 1
      %v3968 = vrot.slane %v3911, 1
      %v3969 = vsel %vm1536, %v3967, %v3968
      %3970 = vrot.lane.b32.xlu0 %v3969, 96
      %v3971 = vpop.permute.xlu0 %3970
      %3972 = vrot.lane.b32.xlu0 %v3968, 96
      %v3973 = vpop.permute.xlu0 %3972
      %v3978 = vrot.slane %v3912, 1
      %v3979 = vrot.slane %v3913, 1
      %v3980 = vsel %vm1536, %v3978, %v3979
      %3981 = vrot.lane.b32.xlu0 %v3980, 32
      %v3982 = vpop.permute.xlu0 %3981
      %3983 = vrot.lane.b32.xlu0 %v3979, 32
      %v3984 = vpop.permute.xlu0 %3983
      %3989 = vrot.lane.b32.xlu0 %v3914, 64
      %v3990 = vpop.permute.xlu0 %3989
      %3991 = vrot.lane.b32.xlu0 %v3915, 64
      %v3992 = vpop.permute.xlu0 %3991
      %v3995 = vrot.slane %v3914, 1
      %v3996 = vrot.slane %v3915, 1
      %v3997 = vsel %vm1536, %v3995, %v3996
      %3998 = vrot.lane.b32.xlu0 %v3997, 96
      %v3999 = vpop.permute.xlu0 %3998
      %4000 = vrot.lane.b32.xlu0 %v3996, 96
      %v4001 = vpop.permute.xlu0 %4000
      %v4006 = vrot.slane %v3916, 1
      %v4007 = vrot.slane %v3917, 1
      %v4008 = vsel %vm1536, %v4006, %v4007
      %4009 = vrot.lane.b32.xlu0 %v4008, 32
      %v4010 = vpop.permute.xlu0 %4009
      %4011 = vrot.lane.b32.xlu0 %v4007, 32
      %v4012 = vpop.permute.xlu0 %4011
      %4017 = vrot.lane.b32.xlu0 %v3918, 64
      %v4018 = vpop.permute.xlu0 %4017
      %4019 = vrot.lane.b32.xlu0 %v3919, 64
      %v4020 = vpop.permute.xlu0 %4019
      %v4023 = vrot.slane %v3918, 1
      %v4024 = vrot.slane %v3919, 1
      %v4025 = vsel %vm1536, %v4023, %v4024
      %4026 = vrot.lane.b32.xlu0 %v4025, 96
      %v4027 = vpop.permute.xlu0 %4026
      %4028 = vrot.lane.b32.xlu0 %v4024, 96
      %v4029 = vpop.permute.xlu0 %4028
      %v4032 = vsel %vm1393, %v3904, %v3926
      %v4033 = vsel %vm1393, %v3905, %v3928
      %v4034 = vsel %vm1649, %v4032, %v3934
      %v4035 = vsel %vm1649, %v4033, %v3936
      %v4036 = vsel %vm1652, %v4034, %v3943
      %v4037 = vsel %vm1652, %v4035, %v3945
      %v4038 = vsel %vm1393, %v3908, %v3954
      %v4039 = vsel %vm1393, %v3909, %v3956
      %v4040 = vsel %vm1649, %v4038, %v3962
      %v4041 = vsel %vm1649, %v4039, %v3964
      %v4042 = vsel %vm1652, %v4040, %v3971
      %v4043 = vsel %vm1652, %v4041, %v3973
      %v4044 = vsel %vm1393, %v3912, %v3982
      %v4045 = vsel %vm1393, %v3913, %v3984
      %v4046 = vsel %vm1649, %v4044, %v3990
      %v4047 = vsel %vm1649, %v4045, %v3992
      %v4048 = vsel %vm1652, %v4046, %v3999
      %v4049 = vsel %vm1652, %v4047, %v4001
      %v4050 = vsel %vm1393, %v3916, %v4010
      %v4051 = vsel %vm1393, %v3917, %v4012
      %v4052 = vsel %vm1649, %v4050, %v4018
      %v4053 = vsel %vm1649, %v4051, %v4020
      %v4054 = vsel %vm1652, %v4052, %v4027
      %v4055 = vsel %vm1652, %v4053, %v4029
      %v4064 = vrot.slane %v4036, 2
      %v4065 = vrot.slane %v4042, 2
      %v4066 = vrot.slane %v4048, 2
      %v4067 = vrot.slane %v4054, 2
      %v4068 = vrot.slane %v4037, 2
      %v4069 = vsel %vm1841, %v4064, %v4068
      %v4070 = vrot.slane %v4043, 2
      %v4071 = vsel %vm1841, %v4065, %v4070
      %v4072 = vrot.slane %v4049, 2
      %v4073 = vsel %vm1841, %v4066, %v4072
      %v4074 = vrot.slane %v4055, 2
      %v4075 = vsel %vm1841, %v4067, %v4074
      %4088 = vst [vmem:[#allocation5 + $0x2c0] sm:$0xc0] %v4064
      %4089 = vst [vmem:[#allocation5 + $0x2c8] sm:$0xc0] %v4065
      %4090 = vst [vmem:[#allocation5 + $0x2d0] sm:$0xc0] %v4066
      %4091 = vst [vmem:[#allocation5 + $0x2d8] sm:$0xc0] %v4067
      %4092 = vst [vmem:[#allocation5 + $0x2e0] sm:$0xff] %v4069
      %4093 = vst [vmem:[#allocation5 + $0x2e8] sm:$0xff] %v4071
      %4094 = vst [vmem:[#allocation5 + $0x2f0] sm:$0xff] %v4073
      %4095 = vst [vmem:[#allocation5 + $0x2f8] sm:$0xff] %v4075
      %4096 = vst [vmem:[#allocation5 + $0x300] sm:$0xf] %v4068
      %4097 = vst [vmem:[#allocation5 + $0x308] sm:$0xf] %v4070
      %4098 = vst [vmem:[#allocation5 + $0x310] sm:$0xf] %v4072
      %4099 = vst [vmem:[#allocation5 + $0x318] sm:$0xf] %v4074
      %v4100 = vld [vmem:[%s5] sm:$0xff]
      %v4101 = vld [vmem:[%s5 + $0x8] sm:$0xff]
      %v4102 = vld [vmem:[%s5 + $0x10] sm:$0xff]
      %v4103 = vld [vmem:[%s5 + $0x18] sm:$0xff]
      %v4104 = vld [vmem:[%s5 + $0x20] sm:$0xff]
      %v4105 = vld [vmem:[%s5 + $0x28] sm:$0xff]
      %v4106 = vld [vmem:[%s5 + $0x30] sm:$0xff]
      %v4107 = vld [vmem:[%s5 + $0x38] sm:$0xff]
      %v4108 = vld [vmem:[%s5 + $0x40] sm:$0xff]
      %v4109 = vld [vmem:[%s5 + $0x48] sm:$0xff]
      %v4110 = vld [vmem:[%s5 + $0x50] sm:$0xff]
      %v4111 = vld [vmem:[%s5 + $0x58] sm:$0xff]
      %v4112 = vld [vmem:[%s5 + $0x60] sm:$0xff]
      %v4113 = vld [vmem:[%s5 + $0x68] sm:$0xff]
      %v4114 = vld [vmem:[%s5 + $0x70] sm:$0xff]
      %v4115 = vld [vmem:[%s5 + $0x78] sm:$0xff]
      %v4116 = vld [vmem:[%s5 + $0x80] sm:$0xff]
      %v4117 = vld [vmem:[%s5 + $0x88] sm:$0xff]
      %v4118 = vld [vmem:[%s5 + $0x90] sm:$0xff]
      %v4119 = vld [vmem:[%s5 + $0x98] sm:$0xff]
      %v4120 = vld [vmem:[%s5 + $0xa0] sm:$0xff]
      %v4121 = vld [vmem:[%s5 + $0xa8] sm:$0xff]
      %v4122 = vld [vmem:[%s5 + $0xb0] sm:$0xff]
      %v4123 = vld [vmem:[%s5 + $0xb8] sm:$0xff]
      %v4124 = vld [vmem:[%s5 + $0xc0] sm:$0xff]
      %v4125 = vld [vmem:[%s5 + $0xc8] sm:$0xff]
      %v4126 = vld [vmem:[%s5 + $0xd0] sm:$0xff]
      %v4127 = vld [vmem:[%s5 + $0xd8] sm:$0xff]
      %v4128 = vld [vmem:[%s5 + $0xe0] sm:$0xff]
      %v4129 = vld [vmem:[%s5 + $0xe8] sm:$0xff]
      %v4130 = vld [vmem:[%s5 + $0xf0] sm:$0xff]
      %v4131 = vld [vmem:[%s5 + $0xf8] sm:$0xff]
      %v4132 = vld [vmem:[%s5 + $0x100] sm:$0xff]
      %v4133 = vld [vmem:[%s5 + $0x108] sm:$0xff]
      %v4134 = vld [vmem:[%s5 + $0x110] sm:$0xff]
      %v4135 = vld [vmem:[%s5 + $0x118] sm:$0xff]
      %v4136 = vld [vmem:[%s5 + $0x120] sm:$0xff]
      %v4137 = vld [vmem:[%s5 + $0x128] sm:$0xff]
      %v4138 = vld [vmem:[%s5 + $0x130] sm:$0xff]
      %v4139 = vld [vmem:[%s5 + $0x138] sm:$0xff]
      %v4140 = vld [vmem:[%s5 + $0x140] sm:$0xff]
      %v4141 = vld [vmem:[%s5 + $0x148] sm:$0xff]
      %v4142 = vld [vmem:[%s5 + $0x150] sm:$0xff]
      %v4143 = vld [vmem:[%s5 + $0x158] sm:$0xff]
      %v4144 = vld [vmem:[%s5 + $0x160] sm:$0xff]
      %v4145 = vld [vmem:[%s5 + $0x168] sm:$0xff]
      %v4146 = vld [vmem:[%s5 + $0x170] sm:$0xff]
      %v4147 = vld [vmem:[%s5 + $0x178] sm:$0xff]
      %v4148 = vld [vmem:[%s5 + $0x180] sm:$0xf]
      %v4149 = vld [vmem:[%s5 + $0x188] sm:$0xf]
      %v4150 = vld [vmem:[#allocation5] sm:$0xff]
      %v4151 = vld [vmem:[#allocation5 + $0x8] sm:$0xff]
      %v4152 = vld [vmem:[#allocation5 + $0x10] sm:$0xff]
      %v4153 = vld [vmem:[#allocation5 + $0x18] sm:$0xff]
      %v4154 = vld [vmem:[#allocation5 + $0x20] sm:$0xff]
      %v4155 = vld [vmem:[#allocation5 + $0x28] sm:$0xff]
      %v4156 = vld [vmem:[#allocation5 + $0x30] sm:$0xff]
      %v4157 = vld [vmem:[#allocation5 + $0x38] sm:$0xff]
      %v4158 = vld [vmem:[#allocation5 + $0x40] sm:$0xff]
      %v4159 = vld [vmem:[#allocation5 + $0x48] sm:$0xff]
      %v4160 = vld [vmem:[#allocation5 + $0x50] sm:$0xff]
      %v4161 = vld [vmem:[#allocation5 + $0x58] sm:$0xff]
      %v4162 = vld [vmem:[#allocation5 + $0x60] sm:$0xff]
      %v4163 = vld [vmem:[#allocation5 + $0x68] sm:$0xff]
      %v4164 = vld [vmem:[#allocation5 + $0x70] sm:$0xff]
      %v4165 = vld [vmem:[#allocation5 + $0x78] sm:$0xff]
      %v4166 = vld [vmem:[#allocation5 + $0x80] sm:$0xff]
      %v4167 = vld [vmem:[#allocation5 + $0x88] sm:$0xff]
      %v4168 = vld [vmem:[#allocation5 + $0x90] sm:$0xff]
      %v4169 = vld [vmem:[#allocation5 + $0x98] sm:$0xff]
      %v4170 = vld [vmem:[#allocation5 + $0xa0] sm:$0xff]
      %v4171 = vld [vmem:[#allocation5 + $0xa8] sm:$0xff]
      %v4172 = vld [vmem:[#allocation5 + $0xb0] sm:$0xff]
      %v4173 = vld [vmem:[#allocation5 + $0xb8] sm:$0xff]
      %v4174 = vld [vmem:[#allocation5 + $0xc0] sm:$0xff]
      %v4175 = vld [vmem:[#allocation5 + $0xc8] sm:$0xff]
      %v4176 = vld [vmem:[#allocation5 + $0xd0] sm:$0xff]
      %v4177 = vld [vmem:[#allocation5 + $0xd8] sm:$0xff]
      %v4178 = vld [vmem:[#allocation5 + $0xe0] sm:$0xff]
      %v4179 = vld [vmem:[#allocation5 + $0xe8] sm:$0xff]
      %v4180 = vld [vmem:[#allocation5 + $0xf0] sm:$0xff]
      %v4181 = vld [vmem:[#allocation5 + $0xf8] sm:$0xff]
      %v4182 = vld [vmem:[#allocation5 + $0x100] sm:$0xff]
      %v4183 = vld [vmem:[#allocation5 + $0x108] sm:$0xff]
      %v4184 = vld [vmem:[#allocation5 + $0x110] sm:$0xff]
      %v4185 = vld [vmem:[#allocation5 + $0x118] sm:$0xff]
      %v4186 = vld [vmem:[#allocation5 + $0x120] sm:$0xff]
      %v4187 = vld [vmem:[#allocation5 + $0x128] sm:$0xff]
      %v4188 = vld [vmem:[#allocation5 + $0x130] sm:$0xff]
      %v4189 = vld [vmem:[#allocation5 + $0x138] sm:$0xff]
      %v4190 = vld [vmem:[#allocation5 + $0x140] sm:$0xff]
      %v4191 = vld [vmem:[#allocation5 + $0x148] sm:$0xff]
      %v4192 = vld [vmem:[#allocation5 + $0x150] sm:$0xff]
      %v4193 = vld [vmem:[#allocation5 + $0x158] sm:$0xff]
      %v4194 = vld [vmem:[#allocation5 + $0x160] sm:$0xff]
      %v4195 = vld [vmem:[#allocation5 + $0x168] sm:$0xff]
      %v4196 = vld [vmem:[#allocation5 + $0x170] sm:$0xff]
      %v4197 = vld [vmem:[#allocation5 + $0x178] sm:$0xff]
      %v4198 = vld [vmem:[#allocation5 + $0x180] sm:$0xff]
      %v4199 = vld [vmem:[#allocation5 + $0x188] sm:$0xff]
      %v4200 = vld [vmem:[#allocation5 + $0x190] sm:$0xff]
      %v4201 = vld [vmem:[#allocation5 + $0x198] sm:$0xff]
      %v4202 = vld [vmem:[#allocation5 + $0x1a0] sm:$0xff]
      %v4203 = vld [vmem:[#allocation5 + $0x1a8] sm:$0xff]
      %v4204 = vld [vmem:[#allocation5 + $0x1b0] sm:$0xff]
      %v4205 = vld [vmem:[#allocation5 + $0x1b8] sm:$0xff]
      %v4206 = vld [vmem:[#allocation5 + $0x1c0] sm:$0xff]
      %v4207 = vld [vmem:[#allocation5 + $0x1c8] sm:$0xff]
      %v4208 = vld [vmem:[#allocation5 + $0x1d0] sm:$0xff]
      %v4209 = vld [vmem:[#allocation5 + $0x1d8] sm:$0xff]
      %v4210 = vld [vmem:[#allocation5 + $0x1e0] sm:$0xff]
      %v4211 = vld [vmem:[#allocation5 + $0x1e8] sm:$0xff]
      %v4212 = vld [vmem:[#allocation5 + $0x1f0] sm:$0xff]
      %v4213 = vld [vmem:[#allocation5 + $0x1f8] sm:$0xff]
      %v4214 = vld [vmem:[#allocation5 + $0x200] sm:$0xff]
      %v4215 = vld [vmem:[#allocation5 + $0x208] sm:$0xff]
      %v4216 = vld [vmem:[#allocation5 + $0x210] sm:$0xff]
      %v4217 = vld [vmem:[#allocation5 + $0x218] sm:$0xff]
      %v4218 = vld [vmem:[#allocation5 + $0x220] sm:$0xff]
      %v4219 = vld [vmem:[#allocation5 + $0x228] sm:$0xff]
      %v4220 = vld [vmem:[#allocation5 + $0x230] sm:$0xff]
      %v4221 = vld [vmem:[#allocation5 + $0x238] sm:$0xff]
      %v4222 = vld [vmem:[#allocation5 + $0x240] sm:$0xff]
      %v4223 = vld [vmem:[#allocation5 + $0x248] sm:$0xff]
      %v4224 = vld [vmem:[#allocation5 + $0x250] sm:$0xff]
      %v4225 = vld [vmem:[#allocation5 + $0x258] sm:$0xff]
      %v4226 = vld [vmem:[#allocation5 + $0x260] sm:$0xff]
      %v4227 = vld [vmem:[#allocation5 + $0x268] sm:$0xff]
      %v4228 = vld [vmem:[#allocation5 + $0x270] sm:$0xff]
      %v4229 = vld [vmem:[#allocation5 + $0x278] sm:$0xff]
      %v4230 = vld [vmem:[#allocation5 + $0x280] sm:$0xff]
      %v4231 = vld [vmem:[#allocation5 + $0x288] sm:$0xff]
      %v4232 = vld [vmem:[#allocation5 + $0x290] sm:$0xff]
      %v4233 = vld [vmem:[#allocation5 + $0x298] sm:$0xff]
      %v4234 = vld [vmem:[#allocation5 + $0x2a0] sm:$0xff]
      %v4235 = vld [vmem:[#allocation5 + $0x2a8] sm:$0xff]
      %v4236 = vld [vmem:[#allocation5 + $0x2b0] sm:$0xff]
      %v4237 = vld [vmem:[#allocation5 + $0x2b8] sm:$0xff]
      %v4238 = vld [vmem:[#allocation5 + $0x2c0] sm:$0xff]
      %v4239 = vld [vmem:[#allocation5 + $0x2c8] sm:$0xff]
      %v4240 = vld [vmem:[#allocation5 + $0x2d0] sm:$0xff]
      %v4241 = vld [vmem:[#allocation5 + $0x2d8] sm:$0xff]
      %v4242 = vld [vmem:[#allocation5 + $0x2e0] sm:$0xff]
      %v4243 = vld [vmem:[#allocation5 + $0x2e8] sm:$0xff]
      %v4244 = vld [vmem:[#allocation5 + $0x2f0] sm:$0xff]
      %v4245 = vld [vmem:[#allocation5 + $0x2f8] sm:$0xff]
      %v4246 = vld [vmem:[#allocation5 + $0x300] sm:$0xf]
      %v4247 = vld [vmem:[#allocation5 + $0x308] sm:$0xf]
      %v4248 = vld [vmem:[#allocation5 + $0x310] sm:$0xf]
      %v4249 = vld [vmem:[#allocation5 + $0x318] sm:$0xf]
      %v4250 = vld [vmem:[%s3] sm:$0xff]
      %v4251 = vld [vmem:[%s3 + $0x8] sm:$0xff]
      %v4252 = vld [vmem:[%s3 + $0x10] sm:$0xff]
      %v4253 = vld [vmem:[%s3 + $0x18] sm:$0xff]
      %v4254 = vld [vmem:[%s3 + $0x20] sm:$0xff]
      %v4255 = vld [vmem:[%s3 + $0x28] sm:$0xff]
      %v4256 = vld [vmem:[%s3 + $0x30] sm:$0xff]
      %v4257 = vld [vmem:[%s3 + $0x38] sm:$0xff]
      %v4258 = vld [vmem:[%s3 + $0x40] sm:$0xff]
      %v4259 = vld [vmem:[%s3 + $0x48] sm:$0xff]
      %v4260 = vld [vmem:[%s3 + $0x50] sm:$0xff]
      %v4261 = vld [vmem:[%s3 + $0x58] sm:$0xff]
      %v4262 = vld [vmem:[%s3 + $0x60] sm:$0xff]
      %v4263 = vld [vmem:[%s3 + $0x68] sm:$0xff]
      %v4264 = vld [vmem:[%s3 + $0x70] sm:$0xff]
      %v4265 = vld [vmem:[%s3 + $0x78] sm:$0xff]
      %v4266 = vld [vmem:[%s3 + $0x80] sm:$0xff]
      %v4267 = vld [vmem:[%s3 + $0x88] sm:$0xff]
      %v4268 = vld [vmem:[%s3 + $0x90] sm:$0xff]
      %v4269 = vld [vmem:[%s3 + $0x98] sm:$0xff]
      %v4270 = vld [vmem:[%s3 + $0xa0] sm:$0xff]
      %v4271 = vld [vmem:[%s3 + $0xa8] sm:$0xff]
      %v4272 = vld [vmem:[%s3 + $0xb0] sm:$0xff]
      %v4273 = vld [vmem:[%s3 + $0xb8] sm:$0xff]
      %v4274 = vld [vmem:[%s3 + $0xc0] sm:$0xff]
      %v4275 = vld [vmem:[%s3 + $0xc8] sm:$0xff]
      %v4276 = vld [vmem:[%s3 + $0xd0] sm:$0xff]
      %v4277 = vld [vmem:[%s3 + $0xd8] sm:$0xff]
      %v4278 = vld [vmem:[%s3 + $0xe0] sm:$0xff]
      %v4279 = vld [vmem:[%s3 + $0xe8] sm:$0xff]
      %v4280 = vld [vmem:[%s3 + $0xf0] sm:$0xff]
      %v4281 = vld [vmem:[%s3 + $0xf8] sm:$0xff]
      %v4282 = vld [vmem:[%s3 + $0x100] sm:$0xff]
      %v4283 = vld [vmem:[%s3 + $0x108] sm:$0xff]
      %v4284 = vld [vmem:[%s3 + $0x110] sm:$0xff]
      %v4285 = vld [vmem:[%s3 + $0x118] sm:$0xff]
      %v4286 = vld [vmem:[%s3 + $0x120] sm:$0xff]
      %v4287 = vld [vmem:[%s3 + $0x128] sm:$0xff]
      %v4288 = vld [vmem:[%s3 + $0x130] sm:$0xff]
      %v4289 = vld [vmem:[%s3 + $0x138] sm:$0xff]
      %v4290 = vld [vmem:[%s3 + $0x140] sm:$0xff]
      %v4291 = vld [vmem:[%s3 + $0x148] sm:$0xff]
      %v4292 = vld [vmem:[%s3 + $0x150] sm:$0xff]
      %v4293 = vld [vmem:[%s3 + $0x158] sm:$0xff]
      %v4294 = vld [vmem:[%s3 + $0x160] sm:$0xff]
      %v4295 = vld [vmem:[%s3 + $0x168] sm:$0xff]
      %v4296 = vld [vmem:[%s3 + $0x170] sm:$0xff]
      %v4297 = vld [vmem:[%s3 + $0x178] sm:$0xff]
      %v4298 = vld [vmem:[%s3 + $0x180] sm:$0xff]
      %v4299 = vld [vmem:[%s3 + $0x188] sm:$0xff]
      %v4300 = vld [vmem:[%s3 + $0x190] sm:$0xff]
      %v4301 = vld [vmem:[%s3 + $0x198] sm:$0xff]
      %v4302 = vld [vmem:[%s3 + $0x1a0] sm:$0xff]
      %v4303 = vld [vmem:[%s3 + $0x1a8] sm:$0xff]
      %v4304 = vld [vmem:[%s3 + $0x1b0] sm:$0xff]
      %v4305 = vld [vmem:[%s3 + $0x1b8] sm:$0xff]
      %v4306 = vld [vmem:[%s3 + $0x1c0] sm:$0xff]
      %v4307 = vld [vmem:[%s3 + $0x1c8] sm:$0xff]
      %v4308 = vld [vmem:[%s3 + $0x1d0] sm:$0xff]
      %v4309 = vld [vmem:[%s3 + $0x1d8] sm:$0xff]
      %v4310 = vld [vmem:[%s3 + $0x1e0] sm:$0xff]
      %v4311 = vld [vmem:[%s3 + $0x1e8] sm:$0xff]
      %v4312 = vld [vmem:[%s3 + $0x1f0] sm:$0xff]
      %v4313 = vld [vmem:[%s3 + $0x1f8] sm:$0xff]
      %v4314 = vld [vmem:[%s4] sm:$0x1]
      %v4316 = vlaneseq
      %v4317 = vshrl.u32 %v4316, 7
      %v4318 = vsub.s32 0, %v4317
      %v4319 = vrot.slane %v4314, %v4318
      %4321 = vmatprep.subr.mxu0 0.0
      %4322 = vmatpush1.msra.mxu0 %v4250
      %4323 = vmatprep.subr.mxu0 0.0
      %4324 = vmatpush1.msra.mxu0 %v4251
      %4325 = vmatprep.subr.mxu0 0.0
      %4326 = vmatpush1.msra.mxu0 %v4252
      %4327 = vmatprep.subr.mxu0 0.0
      %4328 = vmatpush1.msra.mxu0 %v4253
      %4329 = vmatprep.subr.mxu0 0.0
      %4330 = vmatpush1.msra.mxu0 %v4254
      %4331 = vmatprep.subr.mxu0 0.0
      %4332 = vmatpush1.msra.mxu0 %v4255
      %4333 = vmatprep.subr.mxu0 0.0
      %4334 = vmatpush1.msra.mxu0 %v4256
      %4335 = vmatprep.subr.mxu0 0.0
      %4336 = vmatpush1.msra.mxu0 %v4257
      %4337 = vmatprep.subr.mxu0 0.0
      %4338 = vmatpush1.msra.mxu0 %v4258
      %4339 = vmatprep.subr.mxu0 0.0
      %4340 = vmatpush1.msra.mxu0 %v4259
      %4341 = vmatprep.subr.mxu0 0.0
      %4342 = vmatpush1.msra.mxu0 %v4260
      %4343 = vmatprep.subr.mxu0 0.0
      %4344 = vmatpush1.msra.mxu0 %v4261
      %4345 = vmatprep.subr.mxu0 0.0
      %4346 = vmatpush1.msra.mxu0 %v4262
      %4347 = vmatprep.subr.mxu0 0.0
      %4348 = vmatpush1.msra.mxu0 %v4263
      %4349 = vmatprep.subr.mxu0 0.0
      %4350 = vmatpush1.msra.mxu0 %v4264
      %4351 = vmatprep.subr.mxu0 0.0
      %4352 = vmatpush1.msra.mxu0 %v4265
      %4353 = vmatprep.subr.mxu0 0.0
      %4354 = vmatpush1.msra.mxu0 %v4266
      %4355 = vmatprep.subr.mxu0 0.0
      %4356 = vmatpush1.msra.mxu0 %v4267
      %4357 = vmatprep.subr.mxu0 0.0
      %4358 = vmatpush1.msra.mxu0 %v4268
      %4359 = vmatprep.subr.mxu0 0.0
      %4360 = vmatpush1.msra.mxu0 %v4269
      %4361 = vmatprep.subr.mxu0 0.0
      %4362 = vmatpush1.msra.mxu0 %v4270
      %4363 = vmatprep.subr.mxu0 0.0
      %4364 = vmatpush1.msra.mxu0 %v4271
      %4365 = vmatprep.subr.mxu0 0.0
      %4366 = vmatpush1.msra.mxu0 %v4272
      %4367 = vmatprep.subr.mxu0 0.0
      %4368 = vmatpush1.msra.mxu0 %v4273
      %4369 = vmatprep.subr.mxu0 0.0
      %4370 = vmatpush1.msra.mxu0 %v4274
      %4371 = vmatprep.subr.mxu0 0.0
      %4372 = vmatpush1.msra.mxu0 %v4275
      %4373 = vmatprep.subr.mxu0 0.0
      %4374 = vmatpush1.msra.mxu0 %v4276
      %4375 = vmatprep.subr.mxu0 0.0
      %4376 = vmatpush1.msra.mxu0 %v4277
      %4377 = vmatprep.subr.mxu0 0.0
      %4378 = vmatpush1.msra.mxu0 %v4278
      %4379 = vmatprep.subr.mxu0 0.0
      %4380 = vmatpush1.msra.mxu0 %v4279
      %4381 = vmatprep.subr.mxu0 0.0
      %4382 = vmatpush1.msra.mxu0 %v4280
      %4383 = vmatprep.subr.mxu0 0.0
      %4384 = vmatpush1.msra.mxu0 %v4281
      %4385 = vmatprep.mubr.f32.mxu0 %v4151
      %4386 = vmatmul.mubr.f32.gmra.mrb[0].mxu0 %v4150
      %v4387 = vpop.f32.mrb[0].mxu0
      %v4388 = vadd.f32 %v4319, %v4387
      %v4389 = vpop.f32.mrb[0].mxu0
      %4390 = vmatprep.mubr.f32.mxu0 %v4155
      %4391 = vmatmul.mubr.f32.gmra.mrb[0].mxu0 %v4154
      %v4392 = vpop.f32.mrb[0].mxu0
      %v4393 = vadd.f32 %v4319, %v4392
      %v4394 = vpop.f32.mrb[0].mxu0
      %4395 = vmatprep.mubr.f32.mxu0 %v4159
      %4396 = vmatmul.mubr.f32.gmra.mrb[0].mxu0 %v4158
      %v4397 = vpop.f32.mrb[0].mxu0
      %v4398 = vadd.f32 %v4319, %v4397
      %v4399 = vpop.f32.mrb[0].mxu0
      %4400 = vmatprep.mubr.f32.mxu0 %v4163
      %4401 = vmatmul.mubr.f32.gmra.mrb[0].mxu0 %v4162
      %v4402 = vpop.f32.mrb[0].mxu0
      %v4403 = vadd.f32 %v4319, %v4402
      %v4404 = vpop.f32.mrb[0].mxu0
      %4405 = vmatprep.mubr.f32.mxu0 %v4167
      %4406 = vmatmul.mubr.f32.gmra.mrb[0].mxu0 %v4166
      %v4407 = vpop.f32.mrb[0].mxu0
      %v4408 = vadd.f32 %v4319, %v4407
      %v4409 = vpop.f32.mrb[0].mxu0
      %4410 = vmatprep.mubr.f32.mxu0 %v4171
      %4411 = vmatmul.mubr.f32.gmra.mrb[0].mxu0 %v4170
      %v4412 = vpop.f32.mrb[0].mxu0
      %v4413 = vadd.f32 %v4319, %v4412
      %v4414 = vpop.f32.mrb[0].mxu0
      %4415 = vmatprep.mubr.f32.mxu0 %v4175
      %4416 = vmatmul.mubr.f32.gmra.mrb[0].mxu0 %v4174
      %v4417 = vpop.f32.mrb[0].mxu0
      %v4418 = vadd.f32 %v4319, %v4417
      %v4419 = vpop.f32.mrb[0].mxu0
      %4420 = vmatprep.mubr.f32.mxu0 %v4179
      %4421 = vmatmul.mubr.f32.gmra.mrb[0].mxu0 %v4178
      %v4422 = vpop.f32.mrb[0].mxu0
      %v4423 = vadd.f32 %v4319, %v4422
      %v4424 = vpop.f32.mrb[0].mxu0
      %4425 = vmatprep.mubr.f32.mxu0 %v4183
      %4426 = vmatmul.mubr.f32.gmra.mrb[0].mxu0 %v4182
      %v4427 = vpop.f32.mrb[0].mxu0
      %v4428 = vadd.f32 %v4319, %v4427
      %v4429 = vpop.f32.mrb[0].mxu0
      %4430 = vmatprep.mubr.f32.mxu0 %v4187
      %4431 = vmatmul.mubr.f32.gmra.mrb[0].mxu0 %v4186
      %v4432 = vpop.f32.mrb[0].mxu0
      %v4433 = vadd.f32 %v4319, %v4432
      %v4434 = vpop.f32.mrb[0].mxu0
      %4435 = vmatprep.mubr.f32.mxu0 %v4191
      %4436 = vmatmul.mubr.f32.gmra.mrb[0].mxu0 %v4190
      %v4437 = vpop.f32.mrb[0].mxu0
      %v4438 = vadd.f32 %v4319, %v4437
      %v4439 = vpop.f32.mrb[0].mxu0
      %4440 = vmatprep.mubr.f32.mxu0 %v4195
      %4441 = vmatmul.mubr.f32.gmra.mrb[0].mxu0 %v4194
      %v4442 = vpop.f32.mrb[0].mxu0
      %v4443 = vadd.f32 %v4319, %v4442
      %v4444 = vpop.f32.mrb[0].mxu0
      %4445 = vmatprep.mubr.f32.mxu0 %v4199
      %4446 = vmatmul.mubr.f32.gmra.mrb[0].mxu0 %v4198
      %v4447 = vpop.f32.mrb[0].mxu0
      %v4448 = vadd.f32 %v4319, %v4447
      %v4449 = vpop.f32.mrb[0].mxu0
      %4450 = vmatprep.mubr.f32.mxu0 %v4203
      %4451 = vmatmul.mubr.f32.gmra.mrb[0].mxu0 %v4202
      %v4452 = vpop.f32.mrb[0].mxu0
      %v4453 = vadd.f32 %v4319, %v4452
      %v4454 = vpop.f32.mrb[0].mxu0
      %4455 = vmatprep.mubr.f32.mxu0 %v4207
      %4456 = vmatmul.mubr.f32.gmra.mrb[0].mxu0 %v4206
      %v4457 = vpop.f32.mrb[0].mxu0
      %v4458 = vadd.f32 %v4319, %v4457
      %v4459 = vpop.f32.mrb[0].mxu0
      %4460 = vmatprep.mubr.f32.mxu0 %v4211
      %4461 = vmatmul.mubr.f32.gmra.mrb[0].mxu0 %v4210
      %v4462 = vpop.f32.mrb[0].mxu0
      %v4463 = vadd.f32 %v4319, %v4462
      %v4464 = vpop.f32.mrb[0].mxu0
      %4465 = vmatprep.mubr.f32.mxu0 %v4215
      %4466 = vmatmul.mubr.f32.gmra.mrb[0].mxu0 %v4214
      %v4467 = vpop.f32.mrb[0].mxu0
      %v4468 = vadd.f32 %v4319, %v4467
      %v4469 = vpop.f32.mrb[0].mxu0
      %4470 = vmatprep.mubr.f32.mxu0 %v4219
      %4471 = vmatmul.mubr.f32.gmra.mrb[0].mxu0 %v4218
      %v4472 = vpop.f32.mrb[0].mxu0
      %v4473 = vadd.f32 %v4319, %v4472
      %v4474 = vpop.f32.mrb[0].mxu0
      %4475 = vmatprep.mubr.f32.mxu0 %v4223
      %4476 = vmatmul.mubr.f32.gmra.mrb[0].mxu0 %v4222
      %v4477 = vpop.f32.mrb[0].mxu0
      %v4478 = vadd.f32 %v4319, %v4477
      %v4479 = vpop.f32.mrb[0].mxu0
      %4480 = vmatprep.mubr.f32.mxu0 %v4227
      %4481 = vmatmul.mubr.f32.gmra.mrb[0].mxu0 %v4226
      %v4482 = vpop.f32.mrb[0].mxu0
      %v4483 = vadd.f32 %v4319, %v4482
      %v4484 = vpop.f32.mrb[0].mxu0
      %4485 = vmatprep.mubr.f32.mxu0 %v4231
      %4486 = vmatmul.mubr.f32.gmra.mrb[0].mxu0 %v4230
      %v4487 = vpop.f32.mrb[0].mxu0
      %v4488 = vadd.f32 %v4319, %v4487
      %v4489 = vpop.f32.mrb[0].mxu0
      %4490 = vmatprep.mubr.f32.mxu0 %v4235
      %4491 = vmatmul.mubr.f32.gmra.mrb[0].mxu0 %v4234
      %v4492 = vpop.f32.mrb[0].mxu0
      %v4493 = vadd.f32 %v4319, %v4492
      %v4494 = vpop.f32.mrb[0].mxu0
      %4495 = vmatprep.mubr.f32.mxu0 %v4239
      %4496 = vmatmul.mubr.f32.gmra.mrb[0].mxu0 %v4238
      %v4497 = vpop.f32.mrb[0].mxu0
      %v4498 = vadd.f32 %v4319, %v4497
      %v4499 = vpop.f32.mrb[0].mxu0
      %4500 = vmatprep.mubr.f32.mxu0 %v4243
      %4501 = vmatmul.mubr.f32.gmra.mrb[0].mxu0 %v4242
      %v4502 = vpop.f32.mrb[0].mxu0
      %v4503 = vadd.f32 %v4319, %v4502
      %v4504 = vpop.f32.mrb[0].mxu0
      %4505 = vmatprep.mubr.f32.mxu0 %v4247
      %4506 = vmatmul.mubr.f32.gmra.mrb[0].mxu0 %v4246
      %v4507 = vpop.f32.mrb[0].mxu0
      %v4508 = vadd.f32 %v4319, %v4507
      %v4509 = vpop.f32.mrb[0].mxu0
      %4510 = vdwg.mxu0
      %4511 = vmatprep.subr.mxu0 0.0
      %4512 = vmatpush1.msra.mxu0 %v4282
      %4513 = vmatprep.subr.mxu0 0.0
      %4514 = vmatpush1.msra.mxu0 %v4283
      %4515 = vmatprep.subr.mxu0 0.0
      %4516 = vmatpush1.msra.mxu0 %v4284
      %4517 = vmatprep.subr.mxu0 0.0
      %4518 = vmatpush1.msra.mxu0 %v4285
      %4519 = vmatprep.subr.mxu0 0.0
      %4520 = vmatpush1.msra.mxu0 %v4286
      %4521 = vmatprep.subr.mxu0 0.0
      %4522 = vmatpush1.msra.mxu0 %v4287
      %4523 = vmatprep.subr.mxu0 0.0
      %4524 = vmatpush1.msra.mxu0 %v4288
      %4525 = vmatprep.subr.mxu0 0.0
      %4526 = vmatpush1.msra.mxu0 %v4289
      %4527 = vmatprep.subr.mxu0 0.0
      %4528 = vmatpush1.msra.mxu0 %v4290
      %4529 = vmatprep.subr.mxu0 0.0
      %4530 = vmatpush1.msra.mxu0 %v4291
      %4531 = vmatprep.subr.mxu0 0.0
      %4532 = vmatpush1.msra.mxu0 %v4292
      %4533 = vmatprep.subr.mxu0 0.0
      %4534 = vmatpush1.msra.mxu0 %v4293
      %4535 = vmatprep.subr.mxu0 0.0
      %4536 = vmatpush1.msra.mxu0 %v4294
      %4537 = vmatprep.subr.mxu0 0.0
      %4538 = vmatpush1.msra.mxu0 %v4295
      %4539 = vmatprep.subr.mxu0 0.0
      %4540 = vmatpush1.msra.mxu0 %v4296
      %4541 = vmatprep.subr.mxu0 0.0
      %4542 = vmatpush1.msra.mxu0 %v4297
      %4543 = vmatprep.subr.mxu0 0.0
      %4544 = vmatpush1.msra.mxu0 %v4298
      %4545 = vmatprep.subr.mxu0 0.0
      %4546 = vmatpush1.msra.mxu0 %v4299
      %4547 = vmatprep.subr.mxu0 0.0
      %4548 = vmatpush1.msra.mxu0 %v4300
      %4549 = vmatprep.subr.mxu0 0.0
      %4550 = vmatpush1.msra.mxu0 %v4301
      %4551 = vmatprep.subr.mxu0 0.0
      %4552 = vmatpush1.msra.mxu0 %v4302
      %4553 = vmatprep.subr.mxu0 0.0
      %4554 = vmatpush1.msra.mxu0 %v4303
      %4555 = vmatprep.subr.mxu0 0.0
      %4556 = vmatpush1.msra.mxu0 %v4304
      %4557 = vmatprep.subr.mxu0 0.0
      %4558 = vmatpush1.msra.mxu0 %v4305
      %4559 = vmatprep.subr.mxu0 0.0
      %4560 = vmatpush1.msra.mxu0 %v4306
      %4561 = vmatprep.subr.mxu0 0.0
      %4562 = vmatpush1.msra.mxu0 %v4307
      %4563 = vmatprep.subr.mxu0 0.0
      %4564 = vmatpush1.msra.mxu0 %v4308
      %4565 = vmatprep.subr.mxu0 0.0
      %4566 = vmatpush1.msra.mxu0 %v4309
      %4567 = vmatprep.subr.mxu0 0.0
      %4568 = vmatpush1.msra.mxu0 %v4310
      %4569 = vmatprep.subr.mxu0 0.0
      %4570 = vmatpush1.msra.mxu0 %v4311
      %4571 = vmatprep.subr.mxu0 0.0
      %4572 = vmatpush1.msra.mxu0 %v4312
      %4573 = vmatprep.subr.mxu0 0.0
      %4574 = vmatpush1.msra.mxu0 %v4313
      %4575 = vmatprep.mubr.f32.mxu0 %v4153
      %4576 = vmatmul.mubr.f32.gmra.mrb[0].mxu0 %v4152
      %v4577 = vpop.f32.mrb[0].mxu0
      %v4578 = vadd.f32 %v4388, %v4577
      %v4579 = vpop.f32.mrb[0].mxu0
      %4580 = vmatprep.mubr.f32.mxu0 %v4157
      %4581 = vmatmul.mubr.f32.gmra.mrb[0].mxu0 %v4156
      %v4582 = vpop.f32.mrb[0].mxu0
      %v4583 = vadd.f32 %v4393, %v4582
      %v4584 = vpop.f32.mrb[0].mxu0
      %4585 = vmatprep.mubr.f32.mxu0 %v4161
      %4586 = vmatmul.mubr.f32.gmra.mrb[0].mxu0 %v4160
      %v4587 = vpop.f32.mrb[0].mxu0
      %v4588 = vadd.f32 %v4398, %v4587
      %v4589 = vpop.f32.mrb[0].mxu0
      %4590 = vmatprep.mubr.f32.mxu0 %v4165
      %4591 = vmatmul.mubr.f32.gmra.mrb[0].mxu0 %v4164
      %v4592 = vpop.f32.mrb[0].mxu0
      %v4593 = vadd.f32 %v4403, %v4592
      %v4594 = vpop.f32.mrb[0].mxu0
      %4595 = vmatprep.mubr.f32.mxu0 %v4169
      %4596 = vmatmul.mubr.f32.gmra.mrb[0].mxu0 %v4168
      %v4597 = vpop.f32.mrb[0].mxu0
      %v4598 = vadd.f32 %v4408, %v4597
      %v4599 = vpop.f32.mrb[0].mxu0
      %4600 = vmatprep.mubr.f32.mxu0 %v4173
      %4601 = vmatmul.mubr.f32.gmra.mrb[0].mxu0 %v4172
      %v4602 = vpop.f32.mrb[0].mxu0
      %v4603 = vadd.f32 %v4413, %v4602
      %v4604 = vpop.f32.mrb[0].mxu0
      %4605 = vmatprep.mubr.f32.mxu0 %v4177
      %4606 = vmatmul.mubr.f32.gmra.mrb[0].mxu0 %v4176
      %v4607 = vpop.f32.mrb[0].mxu0
      %v4608 = vadd.f32 %v4418, %v4607
      %v4609 = vpop.f32.mrb[0].mxu0
      %4610 = vmatprep.mubr.f32.mxu0 %v4181
      %4611 = vmatmul.mubr.f32.gmra.mrb[0].mxu0 %v4180
      %v4612 = vpop.f32.mrb[0].mxu0
      %v4613 = vadd.f32 %v4423, %v4612
      %v4614 = vpop.f32.mrb[0].mxu0
      %4615 = vmatprep.mubr.f32.mxu0 %v4185
      %4616 = vmatmul.mubr.f32.gmra.mrb[0].mxu0 %v4184
      %v4617 = vpop.f32.mrb[0].mxu0
      %v4618 = vadd.f32 %v4428, %v4617
      %v4619 = vpop.f32.mrb[0].mxu0
      %4620 = vmatprep.mubr.f32.mxu0 %v4189
      %4621 = vmatmul.mubr.f32.gmra.mrb[0].mxu0 %v4188
      %v4622 = vpop.f32.mrb[0].mxu0
      %v4623 = vadd.f32 %v4433, %v4622
      %v4624 = vpop.f32.mrb[0].mxu0
      %4625 = vmatprep.mubr.f32.mxu0 %v4193
      %4626 = vmatmul.mubr.f32.gmra.mrb[0].mxu0 %v4192
      %v4627 = vpop.f32.mrb[0].mxu0
      %v4628 = vadd.f32 %v4438, %v4627
      %v4629 = vpop.f32.mrb[0].mxu0
      %4630 = vmatprep.mubr.f32.mxu0 %v4197
      %4631 = vmatmul.mubr.f32.gmra.mrb[0].mxu0 %v4196
      %v4632 = vpop.f32.mrb[0].mxu0
      %v4633 = vadd.f32 %v4443, %v4632
      %v4634 = vpop.f32.mrb[0].mxu0
      %4635 = vmatprep.mubr.f32.mxu0 %v4201
      %4636 = vmatmul.mubr.f32.gmra.mrb[0].mxu0 %v4200
      %v4637 = vpop.f32.mrb[0].mxu0
      %v4638 = vadd.f32 %v4448, %v4637
      %v4639 = vpop.f32.mrb[0].mxu0
      %4640 = vmatprep.mubr.f32.mxu0 %v4205
      %4641 = vmatmul.mubr.f32.gmra.mrb[0].mxu0 %v4204
      %v4642 = vpop.f32.mrb[0].mxu0
      %v4643 = vadd.f32 %v4453, %v4642
      %v4644 = vpop.f32.mrb[0].mxu0
      %4645 = vmatprep.mubr.f32.mxu0 %v4209
      %4646 = vmatmul.mubr.f32.gmra.mrb[0].mxu0 %v4208
      %v4647 = vpop.f32.mrb[0].mxu0
      %v4648 = vadd.f32 %v4458, %v4647
      %v4649 = vpop.f32.mrb[0].mxu0
      %4650 = vmatprep.mubr.f32.mxu0 %v4213
      %4651 = vmatmul.mubr.f32.gmra.mrb[0].mxu0 %v4212
      %v4652 = vpop.f32.mrb[0].mxu0
      %v4653 = vadd.f32 %v4463, %v4652
      %v4654 = vpop.f32.mrb[0].mxu0
      %4655 = vmatprep.mubr.f32.mxu0 %v4217
      %4656 = vmatmul.mubr.f32.gmra.mrb[0].mxu0 %v4216
      %v4657 = vpop.f32.mrb[0].mxu0
      %v4658 = vadd.f32 %v4468, %v4657
      %v4659 = vpop.f32.mrb[0].mxu0
      %4660 = vmatprep.mubr.f32.mxu0 %v4221
      %4661 = vmatmul.mubr.f32.gmra.mrb[0].mxu0 %v4220
      %v4662 = vpop.f32.mrb[0].mxu0
      %v4663 = vadd.f32 %v4473, %v4662
      %v4664 = vpop.f32.mrb[0].mxu0
      %4665 = vmatprep.mubr.f32.mxu0 %v4225
      %4666 = vmatmul.mubr.f32.gmra.mrb[0].mxu0 %v4224
      %v4667 = vpop.f32.mrb[0].mxu0
      %v4668 = vadd.f32 %v4478, %v4667
      %v4669 = vpop.f32.mrb[0].mxu0
      %4670 = vmatprep.mubr.f32.mxu0 %v4229
      %4671 = vmatmul.mubr.f32.gmra.mrb[0].mxu0 %v4228
      %v4672 = vpop.f32.mrb[0].mxu0
      %v4673 = vadd.f32 %v4483, %v4672
      %v4674 = vpop.f32.mrb[0].mxu0
      %4675 = vmatprep.mubr.f32.mxu0 %v4233
      %4676 = vmatmul.mubr.f32.gmra.mrb[0].mxu0 %v4232
      %v4677 = vpop.f32.mrb[0].mxu0
      %v4678 = vadd.f32 %v4488, %v4677
      %v4679 = vpop.f32.mrb[0].mxu0
      %4680 = vmatprep.mubr.f32.mxu0 %v4237
      %4681 = vmatmul.mubr.f32.gmra.mrb[0].mxu0 %v4236
      %v4682 = vpop.f32.mrb[0].mxu0
      %v4683 = vadd.f32 %v4493, %v4682
      %v4684 = vpop.f32.mrb[0].mxu0
      %4685 = vmatprep.mubr.f32.mxu0 %v4241
      %4686 = vmatmul.mubr.f32.gmra.mrb[0].mxu0 %v4240
      %v4687 = vpop.f32.mrb[0].mxu0
      %v4688 = vadd.f32 %v4498, %v4687
      %v4689 = vpop.f32.mrb[0].mxu0
      %4690 = vmatprep.mubr.f32.mxu0 %v4245
      %4691 = vmatmul.mubr.f32.gmra.mrb[0].mxu0 %v4244
      %v4692 = vpop.f32.mrb[0].mxu0
      %v4693 = vadd.f32 %v4503, %v4692
      %v4694 = vpop.f32.mrb[0].mxu0
      %4695 = vmatprep.mubr.f32.mxu0 %v4249
      %4696 = vmatmul.mubr.f32.gmra.mrb[0].mxu0 %v4248
      %v4697 = vpop.f32.mrb[0].mxu0
      %v4698 = vadd.f32 %v4508, %v4697
      %v4699 = vpop.f32.mrb[0].mxu0
      %4700 = vdwg.mxu0
      %v4701 = vmax.f32 %v4578, 0.0
      %v4702 = vmax.f32 %v4583, 0.0
      %v4703 = vmax.f32 %v4588, 0.0
      %v4704 = vmax.f32 %v4593, 0.0
      %v4705 = vmax.f32 %v4598, 0.0
      %v4706 = vmax.f32 %v4603, 0.0
      %v4707 = vmax.f32 %v4608, 0.0
      %v4708 = vmax.f32 %v4613, 0.0
      %v4709 = vmax.f32 %v4618, 0.0
      %v4710 = vmax.f32 %v4623, 0.0
      %v4711 = vmax.f32 %v4628, 0.0
      %v4712 = vmax.f32 %v4633, 0.0
      %v4713 = vmax.f32 %v4638, 0.0
      %v4714 = vmax.f32 %v4643, 0.0
      %v4715 = vmax.f32 %v4648, 0.0
      %v4716 = vmax.f32 %v4653, 0.0
      %v4717 = vmax.f32 %v4658, 0.0
      %v4718 = vmax.f32 %v4663, 0.0
      %v4719 = vmax.f32 %v4668, 0.0
      %v4720 = vmax.f32 %v4673, 0.0
      %v4721 = vmax.f32 %v4678, 0.0
      %v4722 = vmax.f32 %v4683, 0.0
      %v4723 = vmax.f32 %v4688, 0.0
      %v4724 = vmax.f32 %v4693, 0.0
      %v4725 = vmax.f32 %v4698, 0.0
      %vm4726 = vcmask 556032
      %v4728 = vsel %vm4726, %v4101, 0
      %v4731 = vsel %vm4726, %v4103, 0
      %v4734 = vsel %vm4726, %v4105, 0
      %v4737 = vsel %vm4726, %v4107, 0
      %v4740 = vsel %vm4726, %v4109, 0
      %v4743 = vsel %vm4726, %v4111, 0
      %v4746 = vsel %vm4726, %v4113, 0
      %v4749 = vsel %vm4726, %v4115, 0
      %v4752 = vsel %vm4726, %v4117, 0
      %v4755 = vsel %vm4726, %v4119, 0
      %v4758 = vsel %vm4726, %v4121, 0
      %v4761 = vsel %vm4726, %v4123, 0
      %v4764 = vsel %vm4726, %v4125, 0
      %v4767 = vsel %vm4726, %v4127, 0
      %v4770 = vsel %vm4726, %v4129, 0
      %v4773 = vsel %vm4726, %v4131, 0
      %v4776 = vsel %vm4726, %v4133, 0
      %v4779 = vsel %vm4726, %v4135, 0
      %v4782 = vsel %vm4726, %v4137, 0
      %v4785 = vsel %vm4726, %v4139, 0
      %v4788 = vsel %vm4726, %v4141, 0
      %v4791 = vsel %vm4726, %v4143, 0
      %v4794 = vsel %vm4726, %v4145, 0
      %v4797 = vsel %vm4726, %v4147, 0
      %v4800 = vsel %vm4726, %v4149, 0
      %v4803 = vsel %vm2038, %v4725, 0
      %4805 = vmatprep.subr.mxu0 0.0
      %4806 = vmatpush1.msra.mxu0 %v4701
      %4807 = vmatprep.subr.mxu0 0.0
      %4808 = vmatpush1.msra.mxu0 %v4702
      %4809 = vmatprep.subr.mxu0 0.0
      %4810 = vmatpush1.msra.mxu0 %v4703
      %4811 = vmatprep.subr.mxu0 0.0
      %4812 = vmatpush1.msra.mxu0 %v4704
      %4813 = vmatprep.subr.mxu0 0.0
      %4814 = vmatpush1.msra.mxu0 %v4705
      %4815 = vmatprep.subr.mxu0 0.0
      %4816 = vmatpush1.msra.mxu0 %v4706
      %4817 = vmatprep.subr.mxu0 0.0
      %4818 = vmatpush1.msra.mxu0 %v4707
      %4819 = vmatprep.subr.mxu0 0.0
      %4820 = vmatpush1.msra.mxu0 %v4708
      %4821 = vmatprep.subr.mxu0 0.0
      %4822 = vmatpush1.msra.mxu0 %v4709
      %4823 = vmatprep.subr.mxu0 0.0
      %4824 = vmatpush1.msra.mxu0 %v4710
      %4825 = vmatprep.subr.mxu0 0.0
      %4826 = vmatpush1.msra.mxu0 %v4711
      %4827 = vmatprep.subr.mxu0 0.0
      %4828 = vmatpush1.msra.mxu0 %v4712
      %4829 = vmatprep.subr.mxu0 0.0
      %4830 = vmatpush1.msra.mxu0 %v4713
      %4831 = vmatprep.subr.mxu0 0.0
      %4832 = vmatpush1.msra.mxu0 %v4714
      %4833 = vmatprep.subr.mxu0 0.0
      %4834 = vmatpush1.msra.mxu0 %v4715
      %4835 = vmatprep.subr.mxu0 0.0
      %4836 = vmatpush1.msra.mxu0 %v4716
      %4837 = vmatprep.subr.mxu0 0.0
      %4838 = vmatpush1.msra.mxu0 %v4717
      %4839 = vmatprep.subr.mxu0 0.0
      %4840 = vmatpush1.msra.mxu0 %v4718
      %4841 = vmatprep.subr.mxu0 0.0
      %4842 = vmatpush1.msra.mxu0 %v4719
      %4843 = vmatprep.subr.mxu0 0.0
      %4844 = vmatpush1.msra.mxu0 %v4720
      %4845 = vmatprep.subr.mxu0 0.0
      %4846 = vmatpush1.msra.mxu0 %v4721
      %4847 = vmatprep.subr.mxu0 0.0
      %4848 = vmatpush1.msra.mxu0 %v4722
      %4849 = vmatprep.subr.mxu0 0.0
      %4850 = vmatpush1.msra.mxu0 %v4723
      %4851 = vmatprep.subr.mxu0 0.0
      %4852 = vmatpush1.msra.mxu0 %v4724
      %4853 = vmatprep.subr.mxu0 0.0
      %4854 = vmatpush1.msra.mxu0 %v4803
      %4855 = vmatprep.subr.mxu0 0.0
      %4856 = vmatpush1.msra.mxu0 0.0
      %4857 = vmatprep.subr.mxu0 0.0
      %4858 = vmatpush1.msra.mxu0 0.0
      %4859 = vmatprep.subr.mxu0 0.0
      %4860 = vmatpush1.msra.mxu0 0.0
      %4861 = vmatprep.subr.mxu0 0.0
      %4862 = vmatpush1.msra.mxu0 0.0
      %4863 = vmatprep.subr.mxu0 0.0
      %4864 = vmatpush1.msra.mxu0 0.0
      %4865 = vmatprep.subr.mxu0 0.0
      %4866 = vmatpush1.msra.mxu0 0.0
      %4867 = vmatprep.subr.mxu0 0.0
      %4868 = vmatpush1.msra.mxu0 0.0
      %4869 = vmatprep.mubr.f32.mxu0 %v4728
      %4870 = vmatmul.mubr.f32.gmra.mrb[0].mxu0 %v4100
      %v4871 = vpop.f32.mrb[0].mxu0
      %v4872 = vadd.f32 0.0, %v4871
      %v4873 = vpop.f32.mrb[0].mxu0
      %4874 = vmatprep.mubr.f32.mxu0 %v4731
      %4875 = vmatmul.mubr.f32.gmra.mrb[0].mxu0 %v4102
      %v4876 = vpop.f32.mrb[0].mxu0
      %v4877 = vadd.f32 0.0, %v4876
      %v4878 = vpop.f32.mrb[0].mxu0
      %4879 = vmatprep.mubr.f32.mxu0 %v4734
      %4880 = vmatmul.mubr.f32.gmra.mrb[0].mxu0 %v4104
      %v4881 = vpop.f32.mrb[0].mxu0
      %v4882 = vadd.f32 0.0, %v4881
      %v4883 = vpop.f32.mrb[0].mxu0
      %4884 = vmatprep.mubr.f32.mxu0 %v4737
      %4885 = vmatmul.mubr.f32.gmra.mrb[0].mxu0 %v4106
      %v4886 = vpop.f32.mrb[0].mxu0
      %v4887 = vadd.f32 0.0, %v4886
      %v4888 = vpop.f32.mrb[0].mxu0
      %4889 = vmatprep.mubr.f32.mxu0 %v4740
      %4890 = vmatmul.mubr.f32.gmra.mrb[0].mxu0 %v4108
      %v4891 = vpop.f32.mrb[0].mxu0
      %v4892 = vadd.f32 0.0, %v4891
      %v4893 = vpop.f32.mrb[0].mxu0
      %4894 = vmatprep.mubr.f32.mxu0 %v4743
      %4895 = vmatmul.mubr.f32.gmra.mrb[0].mxu0 %v4110
      %v4896 = vpop.f32.mrb[0].mxu0
      %v4897 = vadd.f32 0.0, %v4896
      %v4898 = vpop.f32.mrb[0].mxu0
      %4899 = vmatprep.mubr.f32.mxu0 %v4746
      %4900 = vmatmul.mubr.f32.gmra.mrb[0].mxu0 %v4112
      %v4901 = vpop.f32.mrb[0].mxu0
      %v4902 = vadd.f32 0.0, %v4901
      %v4903 = vpop.f32.mrb[0].mxu0
      %4904 = vmatprep.mubr.f32.mxu0 %v4749
      %4905 = vmatmul.mubr.f32.gmra.mrb[0].mxu0 %v4114
      %v4906 = vpop.f32.mrb[0].mxu0
      %v4907 = vadd.f32 0.0, %v4906
      %v4908 = vpop.f32.mrb[0].mxu0
      %4909 = vmatprep.mubr.f32.mxu0 %v4752
      %4910 = vmatmul.mubr.f32.gmra.mrb[0].mxu0 %v4116
      %v4911 = vpop.f32.mrb[0].mxu0
      %v4912 = vadd.f32 0.0, %v4911
      %v4913 = vpop.f32.mrb[0].mxu0
      %4914 = vmatprep.mubr.f32.mxu0 %v4755
      %4915 = vmatmul.mubr.f32.gmra.mrb[0].mxu0 %v4118
      %v4916 = vpop.f32.mrb[0].mxu0
      %v4917 = vadd.f32 0.0, %v4916
      %v4918 = vpop.f32.mrb[0].mxu0
      %4919 = vmatprep.mubr.f32.mxu0 %v4758
      %4920 = vmatmul.mubr.f32.gmra.mrb[0].mxu0 %v4120
      %v4921 = vpop.f32.mrb[0].mxu0
      %v4922 = vadd.f32 0.0, %v4921
      %v4923 = vpop.f32.mrb[0].mxu0
      %4924 = vmatprep.mubr.f32.mxu0 %v4761
      %4925 = vmatmul.mubr.f32.gmra.mrb[0].mxu0 %v4122
      %v4926 = vpop.f32.mrb[0].mxu0
      %v4927 = vadd.f32 0.0, %v4926
      %v4928 = vpop.f32.mrb[0].mxu0
      %4929 = vmatprep.mubr.f32.mxu0 %v4764
      %4930 = vmatmul.mubr.f32.gmra.mrb[0].mxu0 %v4124
      %v4931 = vpop.f32.mrb[0].mxu0
      %v4932 = vadd.f32 0.0, %v4931
      %v4933 = vpop.f32.mrb[0].mxu0
      %4934 = vmatprep.mubr.f32.mxu0 %v4767
      %4935 = vmatmul.mubr.f32.gmra.mrb[0].mxu0 %v4126
      %v4936 = vpop.f32.mrb[0].mxu0
      %v4937 = vadd.f32 0.0, %v4936
      %v4938 = vpop.f32.mrb[0].mxu0
      %4939 = vmatprep.mubr.f32.mxu0 %v4770
      %4940 = vmatmul.mubr.f32.gmra.mrb[0].mxu0 %v4128
      %v4941 = vpop.f32.mrb[0].mxu0
      %v4942 = vadd.f32 0.0, %v4941
      %v4943 = vpop.f32.mrb[0].mxu0
      %4944 = vmatprep.mubr.f32.mxu0 %v4773
      %4945 = vmatmul.mubr.f32.gmra.mrb[0].mxu0 %v4130
      %v4946 = vpop.f32.mrb[0].mxu0
      %v4947 = vadd.f32 0.0, %v4946
      %v4948 = vpop.f32.mrb[0].mxu0
      %4949 = vmatprep.mubr.f32.mxu0 %v4776
      %4950 = vmatmul.mubr.f32.gmra.mrb[0].mxu0 %v4132
      %v4951 = vpop.f32.mrb[0].mxu0
      %v4952 = vadd.f32 0.0, %v4951
      %v4953 = vpop.f32.mrb[0].mxu0
      %4954 = vmatprep.mubr.f32.mxu0 %v4779
      %4955 = vmatmul.mubr.f32.gmra.mrb[0].mxu0 %v4134
      %v4956 = vpop.f32.mrb[0].mxu0
      %v4957 = vadd.f32 0.0, %v4956
      %v4958 = vpop.f32.mrb[0].mxu0
      %4959 = vmatprep.mubr.f32.mxu0 %v4782
      %4960 = vmatmul.mubr.f32.gmra.mrb[0].mxu0 %v4136
      %v4961 = vpop.f32.mrb[0].mxu0
      %v4962 = vadd.f32 0.0, %v4961
      %v4963 = vpop.f32.mrb[0].mxu0
      %4964 = vmatprep.mubr.f32.mxu0 %v4785
      %4965 = vmatmul.mubr.f32.gmra.mrb[0].mxu0 %v4138
      %v4966 = vpop.f32.mrb[0].mxu0
      %v4967 = vadd.f32 0.0, %v4966
      %v4968 = vpop.f32.mrb[0].mxu0
      %4969 = vmatprep.mubr.f32.mxu0 %v4788
      %4970 = vmatmul.mubr.f32.gmra.mrb[0].mxu0 %v4140
      %v4971 = vpop.f32.mrb[0].mxu0
      %v4972 = vadd.f32 0.0, %v4971
      %v4973 = vpop.f32.mrb[0].mxu0
      %4974 = vmatprep.mubr.f32.mxu0 %v4791
      %4975 = vmatmul.mubr.f32.gmra.mrb[0].mxu0 %v4142
      %v4976 = vpop.f32.mrb[0].mxu0
      %v4977 = vadd.f32 0.0, %v4976
      %v4978 = vpop.f32.mrb[0].mxu0
      %4979 = vmatprep.mubr.f32.mxu0 %v4794
      %4980 = vmatmul.mubr.f32.gmra.mrb[0].mxu0 %v4144
      %v4981 = vpop.f32.mrb[0].mxu0
      %v4982 = vadd.f32 0.0, %v4981
      %v4983 = vpop.f32.mrb[0].mxu0
      %4984 = vmatprep.mubr.f32.mxu0 %v4797
      %4985 = vmatmul.mubr.f32.gmra.mrb[0].mxu0 %v4146
      %v4986 = vpop.f32.mrb[0].mxu0
      %v4987 = vadd.f32 0.0, %v4986
      %v4988 = vpop.f32.mrb[0].mxu0
      %4989 = vmatprep.mubr.f32.mxu0 %v4800
      %4990 = vmatmul.mubr.f32.gmra.mrb[0].mxu0 %v4148
      %v4991 = vpop.f32.mrb[0].mxu0
      %v4992 = vadd.f32 0.0, %v4991
      %v4993 = vpop.f32.mrb[0].mxu0
      %4994 = vdwg.mxu0
      %4995 = vst.msk [vmem:[#allocation3] sm:$0xff] %vm1649, %v4872
      %4996 = vst.msk [vmem:[#allocation3 + $0x8] sm:$0xff] %vm1649, %v4877
      %4997 = vst.msk [vmem:[#allocation3 + $0x10] sm:$0xff] %vm1649, %v4882
      %4998 = vst.msk [vmem:[#allocation3 + $0x18] sm:$0xff] %vm1649, %v4887
      %4999 = vst.msk [vmem:[#allocation3 + $0x20] sm:$0xff] %vm1649, %v4892
      %5000 = vst.msk [vmem:[#allocation3 + $0x28] sm:$0xff] %vm1649, %v4897
      %5001 = vst.msk [vmem:[#allocation3 + $0x30] sm:$0xff] %vm1649, %v4902
      %5002 = vst.msk [vmem:[#allocation3 + $0x38] sm:$0xff] %vm1649, %v4907
      %5003 = vst.msk [vmem:[#allocation3 + $0x40] sm:$0xff] %vm1649, %v4912
      %5004 = vst.msk [vmem:[#allocation3 + $0x48] sm:$0xff] %vm1649, %v4917
      %5005 = vst.msk [vmem:[#allocation3 + $0x50] sm:$0xff] %vm1649, %v4922
      %5006 = vst.msk [vmem:[#allocation3 + $0x58] sm:$0xff] %vm1649, %v4927
      %5007 = vst.msk [vmem:[#allocation3 + $0x60] sm:$0xff] %vm1649, %v4932
      %5008 = vst.msk [vmem:[#allocation3 + $0x68] sm:$0xff] %vm1649, %v4937
      %5009 = vst.msk [vmem:[#allocation3 + $0x70] sm:$0xff] %vm1649, %v4942
      %5010 = vst.msk [vmem:[#allocation3 + $0x78] sm:$0xff] %vm1649, %v4947
      %5011 = vst.msk [vmem:[#allocation3 + $0x80] sm:$0xff] %vm1649, %v4952
      %5012 = vst.msk [vmem:[#allocation3 + $0x88] sm:$0xff] %vm1649, %v4957
      %5013 = vst.msk [vmem:[#allocation3 + $0x90] sm:$0xff] %vm1649, %v4962
      %5014 = vst.msk [vmem:[#allocation3 + $0x98] sm:$0xff] %vm1649, %v4967
      %5015 = vst.msk [vmem:[#allocation3 + $0xa0] sm:$0xff] %vm1649, %v4972
      %5016 = vst.msk [vmem:[#allocation3 + $0xa8] sm:$0xff] %vm1649, %v4977
      %5017 = vst.msk [vmem:[#allocation3 + $0xb0] sm:$0xff] %vm1649, %v4982
      %5018 = vst.msk [vmem:[#allocation3 + $0xb8] sm:$0xff] %vm1649, %v4987
      %vm5019 = vcmask 519168
      %5020 = vst.msk [vmem:[#allocation3 + $0xc0] sm:$0xf] %vm5019, %v4992
      %v5021 = vld [vmem:[#allocation3] sm:$0xff]
      %v5022 = vld [vmem:[#allocation3 + $0x8] sm:$0x3f]
      %v5023 = vld [vmem:[#allocation3 + $0xe] sm:$0xff]
      %v5024 = vld [vmem:[#allocation3 + $0x16] sm:$0x3f]
      %v5025 = vld [vmem:[#allocation3 + $0x1c] sm:$0xff]
      %v5026 = vld [vmem:[#allocation3 + $0x24] sm:$0x3f]
      %v5027 = vld [vmem:[#allocation3 + $0x2a] sm:$0xff]
      %v5028 = vld [vmem:[#allocation3 + $0x32] sm:$0x3f]
      %v5030 = vrot.slane %v5021, 1
      %5031 = vrot.lane.b32.xlu0 %v5030, 64
      %v5032 = vpop.permute.xlu0 %5031
      %vm5035 = vcmask 1040384
      %v5036 = vrot.slane %v5021, 7
      %v5037 = vrot.slane %v5022, 7
      %v5038 = vsel %vm5035, %v5036, %v5037
      %5040 = vrot.lane.b32.xlu0 %v5022, 64
      %v5041 = vpop.permute.xlu0 %5040
      %v5044 = vrot.slane %v5023, 1
      %5045 = vrot.lane.b32.xlu0 %v5044, 64
      %v5046 = vpop.permute.xlu0 %5045
      %v5049 = vrot.slane %v5023, 7
      %v5050 = vrot.slane %v5024, 7
      %v5051 = vsel %vm5035, %v5049, %v5050
      %5053 = vrot.lane.b32.xlu0 %v5024, 64
      %v5054 = vpop.permute.xlu0 %5053
      %v5057 = vrot.slane %v5025, 1
      %5058 = vrot.lane.b32.xlu0 %v5057, 64
      %v5059 = vpop.permute.xlu0 %5058
      %v5062 = vrot.slane %v5025, 7
      %v5063 = vrot.slane %v5026, 7
      %v5064 = vsel %vm5035, %v5062, %v5063
      %5066 = vrot.lane.b32.xlu0 %v5026, 64
      %v5067 = vpop.permute.xlu0 %5066
      %v5070 = vrot.slane %v5027, 1
      %5071 = vrot.lane.b32.xlu0 %v5070, 64
      %v5072 = vpop.permute.xlu0 %5071
      %v5075 = vrot.slane %v5027, 7
      %v5076 = vrot.slane %v5028, 7
      %v5077 = vsel %vm5035, %v5075, %v5076
      %5079 = vrot.lane.b32.xlu0 %v5028, 64
      %v5080 = vpop.permute.xlu0 %5079
      %v5082 = vsel %vm1649, %v5021, %v5032
      %v5083 = vsel %vm1649, %v5038, %v5041
      %v5084 = vsel %vm1649, %v5023, %v5046
      %v5085 = vsel %vm1649, %v5051, %v5054
      %v5086 = vsel %vm1649, %v5025, %v5059
      %v5087 = vsel %vm1649, %v5064, %v5067
      %v5088 = vsel %vm1649, %v5027, %v5072
      %v5089 = vsel %vm1649, %v5077, %v5080
      %5090 = vst [vmem:[#allocation6] sm:$0x3f] %v5082
      %5091 = vst [vmem:[#allocation6 + $0x8] sm:$0x3f] %v5083
      %5092 = vst [vmem:[#allocation6 + $0x10] sm:$0x3f] %v5084
      %5093 = vst [vmem:[#allocation6 + $0x18] sm:$0x3f] %v5085
      %5094 = vst [vmem:[#allocation6 + $0x20] sm:$0x3f] %v5086
      %5095 = vst [vmem:[#allocation6 + $0x28] sm:$0x3f] %v5087
      %5096 = vst [vmem:[#allocation6 + $0x30] sm:$0x3f] %v5088
      %5097 = vst [vmem:[#allocation6 + $0x38] sm:$0x3f] %v5089
      %v5098 = vld [vmem:[#allocation3 + $0x1c] sm:$0xff]
      %v5099 = vld [vmem:[#allocation3 + $0x24] sm:$0x3f]
      %v5100 = vld [vmem:[#allocation3 + $0x2a] sm:$0xff]
      %v5101 = vld [vmem:[#allocation3 + $0x32] sm:$0x3f]
      %v5102 = vld [vmem:[#allocation3 + $0x38] sm:$0xff]
      %v5103 = vld [vmem:[#allocation3 + $0x40] sm:$0x3f]
      %v5104 = vld [vmem:[#allocation3 + $0x46] sm:$0xff]
      %v5105 = vld [vmem:[#allocation3 + $0x4e] sm:$0x3f]
      %v5107 = vrot.slane %v5098, 1
      %5108 = vrot.lane.b32.xlu0 %v5107, 64
      %v5109 = vpop.permute.xlu0 %5108
      %v5112 = vrot.slane %v5098, 7
      %v5113 = vrot.slane %v5099, 7
      %v5114 = vsel %vm5035, %v5112, %v5113
      %5116 = vrot.lane.b32.xlu0 %v5099, 64
      %v5117 = vpop.permute.xlu0 %5116
      %v5120 = vrot.slane %v5100, 1
      %5121 = vrot.lane.b32.xlu0 %v5120, 64
      %v5122 = vpop.permute.xlu0 %5121
      %v5125 = vrot.slane %v5100, 7
      %v5126 = vrot.slane %v5101, 7
      %v5127 = vsel %vm5035, %v5125, %v5126
      %5129 = vrot.lane.b32.xlu0 %v5101, 64
      %v5130 = vpop.permute.xlu0 %5129
      %v5133 = vrot.slane %v5102, 1
      %5134 = vrot.lane.b32.xlu0 %v5133, 64
      %v5135 = vpop.permute.xlu0 %5134
      %v5138 = vrot.slane %v5102, 7
      %v5139 = vrot.slane %v5103, 7
      %v5140 = vsel %vm5035, %v5138, %v5139
      %5142 = vrot.lane.b32.xlu0 %v5103, 64
      %v5143 = vpop.permute.xlu0 %5142
      %v5146 = vrot.slane %v5104, 1
      %5147 = vrot.lane.b32.xlu0 %v5146, 64
      %v5148 = vpop.permute.xlu0 %5147
      %v5151 = vrot.slane %v5104, 7
      %v5152 = vrot.slane %v5105, 7
      %v5153 = vsel %vm5035, %v5151, %v5152
      %5155 = vrot.lane.b32.xlu0 %v5105, 64
      %v5156 = vpop.permute.xlu0 %5155
      %v5158 = vsel %vm1649, %v5098, %v5109
      %v5159 = vsel %vm1649, %v5114, %v5117
      %v5160 = vsel %vm1649, %v5100, %v5122
      %v5161 = vsel %vm1649, %v5127, %v5130
      %v5162 = vsel %vm1649, %v5102, %v5135
      %v5163 = vsel %vm1649, %v5140, %v5143
      %v5164 = vsel %vm1649, %v5104, %v5148
      %v5165 = vsel %vm1649, %v5153, %v5156
      %v5174 = vrot.slane %v5158, 2
      %v5175 = vrot.slane %v5159, 2
      %v5176 = vrot.slane %v5160, 2
      %v5177 = vrot.slane %v5161, 2
      %v5178 = vrot.slane %v5162, 2
      %v5179 = vrot.slane %v5163, 2
      %v5180 = vrot.slane %v5164, 2
      %v5181 = vrot.slane %v5165, 2
      %5190 = vst [vmem:[#allocation6] sm:$0xc0] %v5174
      %5191 = vst [vmem:[#allocation6 + $0x8] sm:$0xc0] %v5175
      %5192 = vst [vmem:[#allocation6 + $0x10] sm:$0xc0] %v5176
      %5193 = vst [vmem:[#allocation6 + $0x18] sm:$0xc0] %v5177
      %5194 = vst [vmem:[#allocation6 + $0x20] sm:$0xc0] %v5178
      %5195 = vst [vmem:[#allocation6 + $0x28] sm:$0xc0] %v5179
      %5196 = vst [vmem:[#allocation6 + $0x30] sm:$0xc0] %v5180
      %5197 = vst [vmem:[#allocation6 + $0x38] sm:$0xc0] %v5181
      %5198 = vst [vmem:[#allocation6 + $0x40] sm:$0xf] %v5174
      %5199 = vst [vmem:[#allocation6 + $0x48] sm:$0xf] %v5175
      %5200 = vst [vmem:[#allocation6 + $0x50] sm:$0xf] %v5176
      %5201 = vst [vmem:[#allocation6 + $0x58] sm:$0xf] %v5177
      %5202 = vst [vmem:[#allocation6 + $0x60] sm:$0xf] %v5178
      %5203 = vst [vmem:[#allocation6 + $0x68] sm:$0xf] %v5179
      %5204 = vst [vmem:[#allocation6 + $0x70] sm:$0xf] %v5180
      %5205 = vst [vmem:[#allocation6 + $0x78] sm:$0xf] %v5181
      %v5206 = vld [vmem:[#allocation3 + $0x38] sm:$0xff]
      %v5207 = vld [vmem:[#allocation3 + $0x40] sm:$0x3f]
      %v5208 = vld [vmem:[#allocation3 + $0x46] sm:$0xff]
      %v5209 = vld [vmem:[#allocation3 + $0x4e] sm:$0x3f]
      %v5210 = vld [vmem:[#allocation3 + $0x54] sm:$0xff]
      %v5211 = vld [vmem:[#allocation3 + $0x5c] sm:$0x3f]
      %v5212 = vld [vmem:[#allocation3 + $0x62] sm:$0xff]
      %v5213 = vld [vmem:[#allocation3 + $0x6a] sm:$0x3f]
      %v5215 = vrot.slane %v5206, 1
      %5216 = vrot.lane.b32.xlu0 %v5215, 64
      %v5217 = vpop.permute.xlu0 %5216
      %v5220 = vrot.slane %v5206, 7
      %v5221 = vrot.slane %v5207, 7
      %v5222 = vsel %vm5035, %v5220, %v5221
      %5224 = vrot.lane.b32.xlu0 %v5207, 64
      %v5225 = vpop.permute.xlu0 %5224
      %v5228 = vrot.slane %v5208, 1
      %5229 = vrot.lane.b32.xlu0 %v5228, 64
      %v5230 = vpop.permute.xlu0 %5229
      %v5233 = vrot.slane %v5208, 7
      %v5234 = vrot.slane %v5209, 7
      %v5235 = vsel %vm5035, %v5233, %v5234
      %5237 = vrot.lane.b32.xlu0 %v5209, 64
      %v5238 = vpop.permute.xlu0 %5237
      %v5241 = vrot.slane %v5210, 1
      %5242 = vrot.lane.b32.xlu0 %v5241, 64
      %v5243 = vpop.permute.xlu0 %5242
      %v5246 = vrot.slane %v5210, 7
      %v5247 = vrot.slane %v5211, 7
      %v5248 = vsel %vm5035, %v5246, %v5247
      %5250 = vrot.lane.b32.xlu0 %v5211, 64
      %v5251 = vpop.permute.xlu0 %5250
      %v5254 = vrot.slane %v5212, 1
      %5255 = vrot.lane.b32.xlu0 %v5254, 64
      %v5256 = vpop.permute.xlu0 %5255
      %v5259 = vrot.slane %v5212, 7
      %v5260 = vrot.slane %v5213, 7
      %v5261 = vsel %vm5035, %v5259, %v5260
      %5263 = vrot.lane.b32.xlu0 %v5213, 64
      %v5264 = vpop.permute.xlu0 %5263
      %v5266 = vsel %vm1649, %v5206, %v5217
      %v5267 = vsel %vm1649, %v5222, %v5225
      %v5268 = vsel %vm1649, %v5208, %v5230
      %v5269 = vsel %vm1649, %v5235, %v5238
      %v5270 = vsel %vm1649, %v5210, %v5243
      %v5271 = vsel %vm1649, %v5248, %v5251
      %v5272 = vsel %vm1649, %v5212, %v5256
      %v5273 = vsel %vm1649, %v5261, %v5264
      %v5282 = vrot.slane %v5266, 4
      %v5283 = vrot.slane %v5267, 4
      %v5284 = vrot.slane %v5268, 4
      %v5285 = vrot.slane %v5269, 4
      %v5286 = vrot.slane %v5270, 4
      %v5287 = vrot.slane %v5271, 4
      %v5288 = vrot.slane %v5272, 4
      %v5289 = vrot.slane %v5273, 4
      %5298 = vst [vmem:[#allocation6 + $0x40] sm:$0xf0] %v5282
      %5299 = vst [vmem:[#allocation6 + $0x48] sm:$0xf0] %v5283
      %5300 = vst [vmem:[#allocation6 + $0x50] sm:$0xf0] %v5284
      %5301 = vst [vmem:[#allocation6 + $0x58] sm:$0xf0] %v5285
      %5302 = vst [vmem:[#allocation6 + $0x60] sm:$0xf0] %v5286
      %5303 = vst [vmem:[#allocation6 + $0x68] sm:$0xf0] %v5287
      %5304 = vst [vmem:[#allocation6 + $0x70] sm:$0xf0] %v5288
      %5305 = vst [vmem:[#allocation6 + $0x78] sm:$0xf0] %v5289
      %5306 = vst [vmem:[#allocation6 + $0x80] sm:$0x3] %v5282
      %5307 = vst [vmem:[#allocation6 + $0x88] sm:$0x3] %v5283
      %5308 = vst [vmem:[#allocation6 + $0x90] sm:$0x3] %v5284
      %5309 = vst [vmem:[#allocation6 + $0x98] sm:$0x3] %v5285
      %5310 = vst [vmem:[#allocation6 + $0xa0] sm:$0x3] %v5286
      %5311 = vst [vmem:[#allocation6 + $0xa8] sm:$0x3] %v5287
      %5312 = vst [vmem:[#allocation6 + $0xb0] sm:$0x3] %v5288
      %5313 = vst [vmem:[#allocation6 + $0xb8] sm:$0x3] %v5289
      %v5314 = vld [vmem:[#allocation3 + $0x54] sm:$0xff]
      %v5315 = vld [vmem:[#allocation3 + $0x5c] sm:$0x3f]
      %v5316 = vld [vmem:[#allocation3 + $0x62] sm:$0xff]
      %v5317 = vld [vmem:[#allocation3 + $0x6a] sm:$0x3f]
      %v5318 = vld [vmem:[#allocation3 + $0x70] sm:$0xff]
      %v5319 = vld [vmem:[#allocation3 + $0x78] sm:$0x3f]
      %v5320 = vld [vmem:[#allocation3 + $0x7e] sm:$0xff]
      %v5321 = vld [vmem:[#allocation3 + $0x86] sm:$0x3f]
      %v5323 = vrot.slane %v5314, 1
      %5324 = vrot.lane.b32.xlu0 %v5323, 64
      %v5325 = vpop.permute.xlu0 %5324
      %v5328 = vrot.slane %v5314, 7
      %v5329 = vrot.slane %v5315, 7
      %v5330 = vsel %vm5035, %v5328, %v5329
      %5332 = vrot.lane.b32.xlu0 %v5315, 64
      %v5333 = vpop.permute.xlu0 %5332
      %v5336 = vrot.slane %v5316, 1
      %5337 = vrot.lane.b32.xlu0 %v5336, 64
      %v5338 = vpop.permute.xlu0 %5337
      %v5341 = vrot.slane %v5316, 7
      %v5342 = vrot.slane %v5317, 7
      %v5343 = vsel %vm5035, %v5341, %v5342
      %5345 = vrot.lane.b32.xlu0 %v5317, 64
      %v5346 = vpop.permute.xlu0 %5345
      %v5349 = vrot.slane %v5318, 1
      %5350 = vrot.lane.b32.xlu0 %v5349, 64
      %v5351 = vpop.permute.xlu0 %5350
      %v5354 = vrot.slane %v5318, 7
      %v5355 = vrot.slane %v5319, 7
      %v5356 = vsel %vm5035, %v5354, %v5355
      %5358 = vrot.lane.b32.xlu0 %v5319, 64
      %v5359 = vpop.permute.xlu0 %5358
      %v5362 = vrot.slane %v5320, 1
      %5363 = vrot.lane.b32.xlu0 %v5362, 64
      %v5364 = vpop.permute.xlu0 %5363
      %v5367 = vrot.slane %v5320, 7
      %v5368 = vrot.slane %v5321, 7
      %v5369 = vsel %vm5035, %v5367, %v5368
      %5371 = vrot.lane.b32.xlu0 %v5321, 64
      %v5372 = vpop.permute.xlu0 %5371
      %v5374 = vsel %vm1649, %v5314, %v5325
      %v5375 = vsel %vm1649, %v5330, %v5333
      %v5376 = vsel %vm1649, %v5316, %v5338
      %v5377 = vsel %vm1649, %v5343, %v5346
      %v5378 = vsel %vm1649, %v5318, %v5351
      %v5379 = vsel %vm1649, %v5356, %v5359
      %v5380 = vsel %vm1649, %v5320, %v5364
      %v5381 = vsel %vm1649, %v5369, %v5372
      %v5390 = vrot.slane %v5374, 6
      %v5391 = vrot.slane %v5375, 6
      %v5392 = vrot.slane %v5376, 6
      %v5393 = vrot.slane %v5377, 6
      %v5394 = vrot.slane %v5378, 6
      %v5395 = vrot.slane %v5379, 6
      %v5396 = vrot.slane %v5380, 6
      %v5397 = vrot.slane %v5381, 6
      %5406 = vst [vmem:[#allocation6 + $0x80] sm:$0xfc] %v5390
      %5407 = vst [vmem:[#allocation6 + $0x88] sm:$0xfc] %v5391
      %5408 = vst [vmem:[#allocation6 + $0x90] sm:$0xfc] %v5392
      %5409 = vst [vmem:[#allocation6 + $0x98] sm:$0xfc] %v5393
      %5410 = vst [vmem:[#allocation6 + $0xa0] sm:$0xfc] %v5394
      %5411 = vst [vmem:[#allocation6 + $0xa8] sm:$0xfc] %v5395
      %5412 = vst [vmem:[#allocation6 + $0xb0] sm:$0xfc] %v5396
      %5413 = vst [vmem:[#allocation6 + $0xb8] sm:$0xfc] %v5397
      %v5414 = vld [vmem:[#allocation3 + $0x70] sm:$0xff]
      %v5415 = vld [vmem:[#allocation3 + $0x78] sm:$0x3f]
      %v5416 = vld [vmem:[#allocation3 + $0x7e] sm:$0xff]
      %v5417 = vld [vmem:[#allocation3 + $0x86] sm:$0x3f]
      %v5418 = vld [vmem:[#allocation3 + $0x8c] sm:$0xff]
      %v5419 = vld [vmem:[#allocation3 + $0x94] sm:$0x3f]
      %v5420 = vld [vmem:[#allocation3 + $0x9a] sm:$0xff]
      %v5421 = vld [vmem:[#allocation3 + $0xa2] sm:$0x3f]
      %v5423 = vrot.slane %v5414, 1
      %5424 = vrot.lane.b32.xlu0 %v5423, 64
      %v5425 = vpop.permute.xlu0 %5424
      %v5428 = vrot.slane %v5414, 7
      %v5429 = vrot.slane %v5415, 7
      %v5430 = vsel %vm5035, %v5428, %v5429
      %5432 = vrot.lane.b32.xlu0 %v5415, 64
      %v5433 = vpop.permute.xlu0 %5432
      %v5436 = vrot.slane %v5416, 1
      %5437 = vrot.lane.b32.xlu0 %v5436, 64
      %v5438 = vpop.permute.xlu0 %5437
      %v5441 = vrot.slane %v5416, 7
      %v5442 = vrot.slane %v5417, 7
      %v5443 = vsel %vm5035, %v5441, %v5442
      %5445 = vrot.lane.b32.xlu0 %v5417, 64
      %v5446 = vpop.permute.xlu0 %5445
      %v5449 = vrot.slane %v5418, 1
      %5450 = vrot.lane.b32.xlu0 %v5449, 64
      %v5451 = vpop.permute.xlu0 %5450
      %v5454 = vrot.slane %v5418, 7
      %v5455 = vrot.slane %v5419, 7
      %v5456 = vsel %vm5035, %v5454, %v5455
      %5458 = vrot.lane.b32.xlu0 %v5419, 64
      %v5459 = vpop.permute.xlu0 %5458
      %v5462 = vrot.slane %v5420, 1
      %5463 = vrot.lane.b32.xlu0 %v5462, 64
      %v5464 = vpop.permute.xlu0 %5463
      %v5467 = vrot.slane %v5420, 7
      %v5468 = vrot.slane %v5421, 7
      %v5469 = vsel %vm5035, %v5467, %v5468
      %5471 = vrot.lane.b32.xlu0 %v5421, 64
      %v5472 = vpop.permute.xlu0 %5471
      %v5474 = vsel %vm1649, %v5414, %v5425
      %v5475 = vsel %vm1649, %v5430, %v5433
      %v5476 = vsel %vm1649, %v5416, %v5438
      %v5477 = vsel %vm1649, %v5443, %v5446
      %v5478 = vsel %vm1649, %v5418, %v5451
      %v5479 = vsel %vm1649, %v5456, %v5459
      %v5480 = vsel %vm1649, %v5420, %v5464
      %v5481 = vsel %vm1649, %v5469, %v5472
      %5482 = vst [vmem:[#allocation6 + $0xc0] sm:$0x3f] %v5474
      %5483 = vst [vmem:[#allocation6 + $0xc8] sm:$0x3f] %v5475
      %5484 = vst [vmem:[#allocation6 + $0xd0] sm:$0x3f] %v5476
      %5485 = vst [vmem:[#allocation6 + $0xd8] sm:$0x3f] %v5477
      %5486 = vst [vmem:[#allocation6 + $0xe0] sm:$0x3f] %v5478
      %5487 = vst [vmem:[#allocation6 + $0xe8] sm:$0x3f] %v5479
      %5488 = vst [vmem:[#allocation6 + $0xf0] sm:$0x3f] %v5480
      %5489 = vst [vmem:[#allocation6 + $0xf8] sm:$0x3f] %v5481
      %v5490 = vld [vmem:[#allocation3 + $0x8c] sm:$0xff]
      %v5491 = vld [vmem:[#allocation3 + $0x94] sm:$0x3f]
      %v5492 = vld [vmem:[#allocation3 + $0x9a] sm:$0xff]
      %v5493 = vld [vmem:[#allocation3 + $0xa2] sm:$0x3f]
      %v5494 = vld [vmem:[#allocation3 + $0xa8] sm:$0xff]
      %v5495 = vld [vmem:[#allocation3 + $0xb0] sm:$0x3f]
      %v5496 = vld [vmem:[#allocation3 + $0xb6] sm:$0xff]
      %v5497 = vld [vmem:[#allocation3 + $0xbe] sm:$0x3f]
      %v5499 = vrot.slane %v5490, 1
      %5500 = vrot.lane.b32.xlu0 %v5499, 64
      %v5501 = vpop.permute.xlu0 %5500
      %v5504 = vrot.slane %v5490, 7
      %v5505 = vrot.slane %v5491, 7
      %v5506 = vsel %vm5035, %v5504, %v5505
      %5508 = vrot.lane.b32.xlu0 %v5491, 64
      %v5509 = vpop.permute.xlu0 %5508
      %v5512 = vrot.slane %v5492, 1
      %5513 = vrot.lane.b32.xlu0 %v5512, 64
      %v5514 = vpop.permute.xlu0 %5513
      %v5517 = vrot.slane %v5492, 7
      %v5518 = vrot.slane %v5493, 7
      %v5519 = vsel %vm5035, %v5517, %v5518
      %5521 = vrot.lane.b32.xlu0 %v5493, 64
      %v5522 = vpop.permute.xlu0 %5521
      %v5525 = vrot.slane %v5494, 1
      %5526 = vrot.lane.b32.xlu0 %v5525, 64
      %v5527 = vpop.permute.xlu0 %5526
      %v5530 = vrot.slane %v5494, 7
      %v5531 = vrot.slane %v5495, 7
      %v5532 = vsel %vm5035, %v5530, %v5531
      %5534 = vrot.lane.b32.xlu0 %v5495, 64
      %v5535 = vpop.permute.xlu0 %5534
      %v5538 = vrot.slane %v5496, 1
      %5539 = vrot.lane.b32.xlu0 %v5538, 64
      %v5540 = vpop.permute.xlu0 %5539
      %v5543 = vrot.slane %v5496, 7
      %v5544 = vrot.slane %v5497, 7
      %v5545 = vsel %vm5035, %v5543, %v5544
      %5547 = vrot.lane.b32.xlu0 %v5497, 64
      %v5548 = vpop.permute.xlu0 %5547
      %v5550 = vsel %vm1649, %v5490, %v5501
      %v5551 = vsel %vm1649, %v5506, %v5509
      %v5552 = vsel %vm1649, %v5492, %v5514
      %v5553 = vsel %vm1649, %v5519, %v5522
      %v5554 = vsel %vm1649, %v5494, %v5527
      %v5555 = vsel %vm1649, %v5532, %v5535
      %v5556 = vsel %vm1649, %v5496, %v5540
      %v5557 = vsel %vm1649, %v5545, %v5548
      %v5566 = vrot.slane %v5550, 2
      %v5567 = vrot.slane %v5551, 2
      %v5568 = vrot.slane %v5552, 2
      %v5569 = vrot.slane %v5553, 2
      %v5570 = vrot.slane %v5554, 2
      %v5571 = vrot.slane %v5555, 2
      %v5572 = vrot.slane %v5556, 2
      %v5573 = vrot.slane %v5557, 2
      %5582 = vst [vmem:[#allocation6 + $0xc0] sm:$0xc0] %v5566
      %5583 = vst [vmem:[#allocation6 + $0xc8] sm:$0xc0] %v5567
      %5584 = vst [vmem:[#allocation6 + $0xd0] sm:$0xc0] %v5568
      %5585 = vst [vmem:[#allocation6 + $0xd8] sm:$0xc0] %v5569
      %5586 = vst [vmem:[#allocation6 + $0xe0] sm:$0xc0] %v5570
      %5587 = vst [vmem:[#allocation6 + $0xe8] sm:$0xc0] %v5571
      %5588 = vst [vmem:[#allocation6 + $0xf0] sm:$0xc0] %v5572
      %5589 = vst [vmem:[#allocation6 + $0xf8] sm:$0xc0] %v5573
      %5590 = vst [vmem:[#allocation6 + $0x100] sm:$0xf] %v5566
      %5591 = vst [vmem:[#allocation6 + $0x108] sm:$0xf] %v5567
      %5592 = vst [vmem:[#allocation6 + $0x110] sm:$0xf] %v5568
      %5593 = vst [vmem:[#allocation6 + $0x118] sm:$0xf] %v5569
      %5594 = vst [vmem:[#allocation6 + $0x120] sm:$0xf] %v5570
      %5595 = vst [vmem:[#allocation6 + $0x128] sm:$0xf] %v5571
      %5596 = vst [vmem:[#allocation6 + $0x130] sm:$0xf] %v5572
      %5597 = vst [vmem:[#allocation6 + $0x138] sm:$0xf] %v5573
      %v5598 = vld [vmem:[%s8] sm:$0xff]
      %v5599 = vld [vmem:[%s8 + $0x8] sm:$0xff]
      %v5600 = vld [vmem:[%s8 + $0x10] sm:$0xff]
      %v5601 = vld [vmem:[%s8 + $0x18] sm:$0xff]
      %v5602 = vld [vmem:[%s8 + $0x20] sm:$0xf]
      %v5603 = vld [vmem:[#allocation6] sm:$0xff]
      %v5604 = vld [vmem:[#allocation6 + $0x8] sm:$0xff]
      %v5605 = vld [vmem:[#allocation6 + $0x10] sm:$0xff]
      %v5606 = vld [vmem:[#allocation6 + $0x18] sm:$0xff]
      %v5607 = vld [vmem:[#allocation6 + $0x20] sm:$0xff]
      %v5608 = vld [vmem:[#allocation6 + $0x28] sm:$0xff]
      %v5609 = vld [vmem:[#allocation6 + $0x30] sm:$0xff]
      %v5610 = vld [vmem:[#allocation6 + $0x38] sm:$0xff]
      %v5611 = vld [vmem:[#allocation6 + $0x40] sm:$0xff]
      %v5612 = vld [vmem:[#allocation6 + $0x48] sm:$0xff]
      %v5613 = vld [vmem:[#allocation6 + $0x50] sm:$0xff]
      %v5614 = vld [vmem:[#allocation6 + $0x58] sm:$0xff]
      %v5615 = vld [vmem:[#allocation6 + $0x60] sm:$0xff]
      %v5616 = vld [vmem:[#allocation6 + $0x68] sm:$0xff]
      %v5617 = vld [vmem:[#allocation6 + $0x70] sm:$0xff]
      %v5618 = vld [vmem:[#allocation6 + $0x78] sm:$0xff]
      %v5619 = vld [vmem:[#allocation6 + $0x80] sm:$0xff]
      %v5620 = vld [vmem:[#allocation6 + $0x88] sm:$0xff]
      %v5621 = vld [vmem:[#allocation6 + $0x90] sm:$0xff]
      %v5622 = vld [vmem:[#allocation6 + $0x98] sm:$0xff]
      %v5623 = vld [vmem:[#allocation6 + $0xa0] sm:$0xff]
      %v5624 = vld [vmem:[#allocation6 + $0xa8] sm:$0xff]
      %v5625 = vld [vmem:[#allocation6 + $0xb0] sm:$0xff]
      %v5626 = vld [vmem:[#allocation6 + $0xb8] sm:$0xff]
      %v5627 = vld [vmem:[#allocation6 + $0xc0] sm:$0xff]
      %v5628 = vld [vmem:[#allocation6 + $0xc8] sm:$0xff]
      %v5629 = vld [vmem:[#allocation6 + $0xd0] sm:$0xff]
      %v5630 = vld [vmem:[#allocation6 + $0xd8] sm:$0xff]
      %v5631 = vld [vmem:[#allocation6 + $0xe0] sm:$0xff]
      %v5632 = vld [vmem:[#allocation6 + $0xe8] sm:$0xff]
      %v5633 = vld [vmem:[#allocation6 + $0xf0] sm:$0xff]
      %v5634 = vld [vmem:[#allocation6 + $0xf8] sm:$0xff]
      %v5635 = vld [vmem:[#allocation6 + $0x100] sm:$0xf]
      %v5636 = vld [vmem:[#allocation6 + $0x108] sm:$0xf]
      %v5637 = vld [vmem:[#allocation6 + $0x110] sm:$0xf]
      %v5638 = vld [vmem:[#allocation6 + $0x118] sm:$0xf]
      %v5639 = vld [vmem:[#allocation6 + $0x120] sm:$0xf]
      %v5640 = vld [vmem:[#allocation6 + $0x128] sm:$0xf]
      %v5641 = vld [vmem:[#allocation6 + $0x130] sm:$0xf]
      %v5642 = vld [vmem:[#allocation6 + $0x138] sm:$0xf]
      %v5643 = vld [vmem:[%s6] sm:$0xff]
      %v5644 = vld [vmem:[%s6 + $0x8] sm:$0xff]
      %v5645 = vld [vmem:[%s6 + $0x10] sm:$0xff]
      %v5646 = vld [vmem:[%s6 + $0x18] sm:$0xff]
      %v5647 = vld [vmem:[%s6 + $0x20] sm:$0xff]
      %v5648 = vld [vmem:[%s6 + $0x28] sm:$0xff]
      %v5649 = vld [vmem:[%s6 + $0x30] sm:$0xff]
      %v5650 = vld [vmem:[%s6 + $0x38] sm:$0xff]
      %v5651 = vld [vmem:[%s6 + $0x40] sm:$0xff]
      %v5652 = vld [vmem:[%s6 + $0x48] sm:$0xff]
      %v5653 = vld [vmem:[%s6 + $0x50] sm:$0xff]
      %v5654 = vld [vmem:[%s6 + $0x58] sm:$0xff]
      %v5655 = vld [vmem:[%s6 + $0x60] sm:$0xff]
      %v5656 = vld [vmem:[%s6 + $0x68] sm:$0xff]
      %v5657 = vld [vmem:[%s6 + $0x70] sm:$0xff]
      %v5658 = vld [vmem:[%s6 + $0x78] sm:$0xff]
      %v5659 = vld [vmem:[%s6 + $0x80] sm:$0xff]
      %v5660 = vld [vmem:[%s6 + $0x88] sm:$0xff]
      %v5661 = vld [vmem:[%s6 + $0x90] sm:$0xff]
      %v5662 = vld [vmem:[%s6 + $0x98] sm:$0xff]
      %v5663 = vld [vmem:[%s6 + $0xa0] sm:$0xff]
      %v5664 = vld [vmem:[%s6 + $0xa8] sm:$0xff]
      %v5665 = vld [vmem:[%s6 + $0xb0] sm:$0xff]
      %v5666 = vld [vmem:[%s6 + $0xb8] sm:$0xff]
      %v5667 = vld [vmem:[%s6 + $0xc0] sm:$0xff]
      %v5668 = vld [vmem:[%s6 + $0xc8] sm:$0xff]
      %v5669 = vld [vmem:[%s6 + $0xd0] sm:$0xff]
      %v5670 = vld [vmem:[%s6 + $0xd8] sm:$0xff]
      %v5671 = vld [vmem:[%s6 + $0xe0] sm:$0xff]
      %v5672 = vld [vmem:[%s6 + $0xe8] sm:$0xff]
      %v5673 = vld [vmem:[%s6 + $0xf0] sm:$0xff]
      %v5674 = vld [vmem:[%s6 + $0xf8] sm:$0xff]
      %v5675 = vld [vmem:[%s6 + $0x100] sm:$0xff]
      %v5676 = vld [vmem:[%s6 + $0x108] sm:$0xff]
      %v5677 = vld [vmem:[%s6 + $0x110] sm:$0xff]
      %v5678 = vld [vmem:[%s6 + $0x118] sm:$0xff]
      %v5679 = vld [vmem:[%s6 + $0x120] sm:$0xff]
      %v5680 = vld [vmem:[%s6 + $0x128] sm:$0xff]
      %v5681 = vld [vmem:[%s6 + $0x130] sm:$0xff]
      %v5682 = vld [vmem:[%s6 + $0x138] sm:$0xff]
      %v5683 = vld [vmem:[%s6 + $0x140] sm:$0xff]
      %v5684 = vld [vmem:[%s6 + $0x148] sm:$0xff]
      %v5685 = vld [vmem:[%s6 + $0x150] sm:$0xff]
      %v5686 = vld [vmem:[%s6 + $0x158] sm:$0xff]
      %v5687 = vld [vmem:[%s6 + $0x160] sm:$0xff]
      %v5688 = vld [vmem:[%s6 + $0x168] sm:$0xff]
      %v5689 = vld [vmem:[%s6 + $0x170] sm:$0xff]
      %v5690 = vld [vmem:[%s6 + $0x178] sm:$0xff]
      %v5691 = vld [vmem:[%s6 + $0x180] sm:$0xff]
      %v5692 = vld [vmem:[%s6 + $0x188] sm:$0xff]
      %v5693 = vld [vmem:[%s6 + $0x190] sm:$0xff]
      %v5694 = vld [vmem:[%s6 + $0x198] sm:$0xff]
      %v5695 = vld [vmem:[%s6 + $0x1a0] sm:$0xff]
      %v5696 = vld [vmem:[%s6 + $0x1a8] sm:$0xff]
      %v5697 = vld [vmem:[%s6 + $0x1b0] sm:$0xff]
      %v5698 = vld [vmem:[%s6 + $0x1b8] sm:$0xff]
      %v5699 = vld [vmem:[%s6 + $0x1c0] sm:$0xff]
      %v5700 = vld [vmem:[%s6 + $0x1c8] sm:$0xff]
      %v5701 = vld [vmem:[%s6 + $0x1d0] sm:$0xff]
      %v5702 = vld [vmem:[%s6 + $0x1d8] sm:$0xff]
      %v5703 = vld [vmem:[%s6 + $0x1e0] sm:$0xff]
      %v5704 = vld [vmem:[%s6 + $0x1e8] sm:$0xff]
      %v5705 = vld [vmem:[%s6 + $0x1f0] sm:$0xff]
      %v5706 = vld [vmem:[%s6 + $0x1f8] sm:$0xff]
      %v5707 = vld [vmem:[%s6 + $0x200] sm:$0xff]
      %v5708 = vld [vmem:[%s6 + $0x208] sm:$0xff]
      %v5709 = vld [vmem:[%s6 + $0x210] sm:$0xff]
      %v5710 = vld [vmem:[%s6 + $0x218] sm:$0xff]
      %v5711 = vld [vmem:[%s6 + $0x220] sm:$0xff]
      %v5712 = vld [vmem:[%s6 + $0x228] sm:$0xff]
      %v5713 = vld [vmem:[%s6 + $0x230] sm:$0xff]
      %v5714 = vld [vmem:[%s6 + $0x238] sm:$0xff]
      %v5715 = vld [vmem:[%s6 + $0x240] sm:$0xff]
      %v5716 = vld [vmem:[%s6 + $0x248] sm:$0xff]
      %v5717 = vld [vmem:[%s6 + $0x250] sm:$0xff]
      %v5718 = vld [vmem:[%s6 + $0x258] sm:$0xff]
      %v5719 = vld [vmem:[%s6 + $0x260] sm:$0xff]
      %v5720 = vld [vmem:[%s6 + $0x268] sm:$0xff]
      %v5721 = vld [vmem:[%s6 + $0x270] sm:$0xff]
      %v5722 = vld [vmem:[%s6 + $0x278] sm:$0xff]
      %v5723 = vld [vmem:[%s6 + $0x280] sm:$0xff]
      %v5724 = vld [vmem:[%s6 + $0x288] sm:$0xff]
      %v5725 = vld [vmem:[%s6 + $0x290] sm:$0xff]
      %v5726 = vld [vmem:[%s6 + $0x298] sm:$0xff]
      %v5727 = vld [vmem:[%s6 + $0x2a0] sm:$0xff]
      %v5728 = vld [vmem:[%s6 + $0x2a8] sm:$0xff]
      %v5729 = vld [vmem:[%s6 + $0x2b0] sm:$0xff]
      %v5730 = vld [vmem:[%s6 + $0x2b8] sm:$0xff]
      %v5731 = vld [vmem:[%s6 + $0x2c0] sm:$0xff]
      %v5732 = vld [vmem:[%s6 + $0x2c8] sm:$0xff]
      %v5733 = vld [vmem:[%s6 + $0x2d0] sm:$0xff]
      %v5734 = vld [vmem:[%s6 + $0x2d8] sm:$0xff]
      %v5735 = vld [vmem:[%s6 + $0x2e0] sm:$0xff]
      %v5736 = vld [vmem:[%s6 + $0x2e8] sm:$0xff]
      %v5737 = vld [vmem:[%s6 + $0x2f0] sm:$0xff]
      %v5738 = vld [vmem:[%s6 + $0x2f8] sm:$0xff]
      %v5739 = vld [vmem:[%s6 + $0x300] sm:$0xff]
      %v5740 = vld [vmem:[%s6 + $0x308] sm:$0xff]
      %v5741 = vld [vmem:[%s6 + $0x310] sm:$0xff]
      %v5742 = vld [vmem:[%s6 + $0x318] sm:$0xff]
      %v5743 = vld [vmem:[%s6 + $0x320] sm:$0xff]
      %v5744 = vld [vmem:[%s6 + $0x328] sm:$0xff]
      %v5745 = vld [vmem:[%s6 + $0x330] sm:$0xff]
      %v5746 = vld [vmem:[%s6 + $0x338] sm:$0xff]
      %v5747 = vld [vmem:[%s6 + $0x340] sm:$0xff]
      %v5748 = vld [vmem:[%s6 + $0x348] sm:$0xff]
      %v5749 = vld [vmem:[%s6 + $0x350] sm:$0xff]
      %v5750 = vld [vmem:[%s6 + $0x358] sm:$0xff]
      %v5751 = vld [vmem:[%s6 + $0x360] sm:$0xff]
      %v5752 = vld [vmem:[%s6 + $0x368] sm:$0xff]
      %v5753 = vld [vmem:[%s6 + $0x370] sm:$0xff]
      %v5754 = vld [vmem:[%s6 + $0x378] sm:$0xff]
      %v5755 = vld [vmem:[%s6 + $0x380] sm:$0xff]
      %v5756 = vld [vmem:[%s6 + $0x388] sm:$0xff]
      %v5757 = vld [vmem:[%s6 + $0x390] sm:$0xff]
      %v5758 = vld [vmem:[%s6 + $0x398] sm:$0xff]
      %v5759 = vld [vmem:[%s6 + $0x3a0] sm:$0xff]
      %v5760 = vld [vmem:[%s6 + $0x3a8] sm:$0xff]
      %v5761 = vld [vmem:[%s6 + $0x3b0] sm:$0xff]
      %v5762 = vld [vmem:[%s6 + $0x3b8] sm:$0xff]
      %v5763 = vld [vmem:[%s6 + $0x3c0] sm:$0xff]
      %v5764 = vld [vmem:[%s6 + $0x3c8] sm:$0xff]
      %v5765 = vld [vmem:[%s6 + $0x3d0] sm:$0xff]
      %v5766 = vld [vmem:[%s6 + $0x3d8] sm:$0xff]
      %v5767 = vld [vmem:[%s6 + $0x3e0] sm:$0xff]
      %v5768 = vld [vmem:[%s6 + $0x3e8] sm:$0xff]
      %v5769 = vld [vmem:[%s6 + $0x3f0] sm:$0xff]
      %v5770 = vld [vmem:[%s6 + $0x3f8] sm:$0xff]
      %v5771 = vld [vmem:[%s7] sm:$0x1]
      %v5773 = vlaneseq
      %v5774 = vshrl.u32 %v5773, 7
      %v5775 = vsub.s32 0, %v5774
      %v5776 = vrot.slane %v5771, %v5775
      %5778 = vmatprep.subr.mxu0 0.0
      %5779 = vmatpush1.msra.mxu0 %v5643
      %5780 = vmatprep.subr.mxu0 0.0
      %5781 = vmatpush1.msra.mxu0 %v5644
      %5782 = vmatprep.subr.mxu0 0.0
      %5783 = vmatpush1.msra.mxu0 %v5645
      %5784 = vmatprep.subr.mxu0 0.0
      %5785 = vmatpush1.msra.mxu0 %v5646
      %5786 = vmatprep.subr.mxu0 0.0
      %5787 = vmatpush1.msra.mxu0 %v5647
      %5788 = vmatprep.subr.mxu0 0.0
      %5789 = vmatpush1.msra.mxu0 %v5648
      %5790 = vmatprep.subr.mxu0 0.0
      %5791 = vmatpush1.msra.mxu0 %v5649
      %5792 = vmatprep.subr.mxu0 0.0
      %5793 = vmatpush1.msra.mxu0 %v5650
      %5794 = vmatprep.subr.mxu0 0.0
      %5795 = vmatpush1.msra.mxu0 %v5651
      %5796 = vmatprep.subr.mxu0 0.0
      %5797 = vmatpush1.msra.mxu0 %v5652
      %5798 = vmatprep.subr.mxu0 0.0
      %5799 = vmatpush1.msra.mxu0 %v5653
      %5800 = vmatprep.subr.mxu0 0.0
      %5801 = vmatpush1.msra.mxu0 %v5654
      %5802 = vmatprep.subr.mxu0 0.0
      %5803 = vmatpush1.msra.mxu0 %v5655
      %5804 = vmatprep.subr.mxu0 0.0
      %5805 = vmatpush1.msra.mxu0 %v5656
      %5806 = vmatprep.subr.mxu0 0.0
      %5807 = vmatpush1.msra.mxu0 %v5657
      %5808 = vmatprep.subr.mxu0 0.0
      %5809 = vmatpush1.msra.mxu0 %v5658
      %5810 = vmatprep.subr.mxu0 0.0
      %5811 = vmatpush1.msra.mxu0 %v5659
      %5812 = vmatprep.subr.mxu0 0.0
      %5813 = vmatpush1.msra.mxu0 %v5660
      %5814 = vmatprep.subr.mxu0 0.0
      %5815 = vmatpush1.msra.mxu0 %v5661
      %5816 = vmatprep.subr.mxu0 0.0
      %5817 = vmatpush1.msra.mxu0 %v5662
      %5818 = vmatprep.subr.mxu0 0.0
      %5819 = vmatpush1.msra.mxu0 %v5663
      %5820 = vmatprep.subr.mxu0 0.0
      %5821 = vmatpush1.msra.mxu0 %v5664
      %5822 = vmatprep.subr.mxu0 0.0
      %5823 = vmatpush1.msra.mxu0 %v5665
      %5824 = vmatprep.subr.mxu0 0.0
      %5825 = vmatpush1.msra.mxu0 %v5666
      %5826 = vmatprep.subr.mxu0 0.0
      %5827 = vmatpush1.msra.mxu0 %v5667
      %5828 = vmatprep.subr.mxu0 0.0
      %5829 = vmatpush1.msra.mxu0 %v5668
      %5830 = vmatprep.subr.mxu0 0.0
      %5831 = vmatpush1.msra.mxu0 %v5669
      %5832 = vmatprep.subr.mxu0 0.0
      %5833 = vmatpush1.msra.mxu0 %v5670
      %5834 = vmatprep.subr.mxu0 0.0
      %5835 = vmatpush1.msra.mxu0 %v5671
      %5836 = vmatprep.subr.mxu0 0.0
      %5837 = vmatpush1.msra.mxu0 %v5672
      %5838 = vmatprep.subr.mxu0 0.0
      %5839 = vmatpush1.msra.mxu0 %v5673
      %5840 = vmatprep.subr.mxu0 0.0
      %5841 = vmatpush1.msra.mxu0 %v5674
      %5842 = vmatprep.mubr.f32.mxu0 %v5604
      %5843 = vmatmul.mubr.f32.gmra.mrb[0].mxu0 %v5603
      %v5844 = vpop.f32.mrb[0].mxu0
      %v5845 = vadd.f32 %v5776, %v5844
      %v5846 = vpop.f32.mrb[0].mxu0
      %5847 = vmatprep.mubr.f32.mxu0 %v5612
      %5848 = vmatmul.mubr.f32.gmra.mrb[0].mxu0 %v5611
      %v5849 = vpop.f32.mrb[0].mxu0
      %v5850 = vadd.f32 %v5776, %v5849
      %v5851 = vpop.f32.mrb[0].mxu0
      %5852 = vmatprep.mubr.f32.mxu0 %v5620
      %5853 = vmatmul.mubr.f32.gmra.mrb[0].mxu0 %v5619
      %v5854 = vpop.f32.mrb[0].mxu0
      %v5855 = vadd.f32 %v5776, %v5854
      %v5856 = vpop.f32.mrb[0].mxu0
      %5857 = vmatprep.mubr.f32.mxu0 %v5628
      %5858 = vmatmul.mubr.f32.gmra.mrb[0].mxu0 %v5627
      %v5859 = vpop.f32.mrb[0].mxu0
      %v5860 = vadd.f32 %v5776, %v5859
      %v5861 = vpop.f32.mrb[0].mxu0
      %5862 = vmatprep.mubr.f32.mxu0 %v5636
      %5863 = vmatmul.mubr.f32.gmra.mrb[0].mxu0 %v5635
      %v5864 = vpop.f32.mrb[0].mxu0
      %v5865 = vadd.f32 %v5776, %v5864
      %v5866 = vpop.f32.mrb[0].mxu0
      %5867 = vdwg.mxu0
      %5868 = vmatprep.subr.mxu0 0.0
      %5869 = vmatpush1.msra.mxu0 %v5675
      %5870 = vmatprep.subr.mxu0 0.0
      %5871 = vmatpush1.msra.mxu0 %v5676
      %5872 = vmatprep.subr.mxu0 0.0
      %5873 = vmatpush1.msra.mxu0 %v5677
      %5874 = vmatprep.subr.mxu0 0.0
      %5875 = vmatpush1.msra.mxu0 %v5678
      %5876 = vmatprep.subr.mxu0 0.0
      %5877 = vmatpush1.msra.mxu0 %v5679
      %5878 = vmatprep.subr.mxu0 0.0
      %5879 = vmatpush1.msra.mxu0 %v5680
      %5880 = vmatprep.subr.mxu0 0.0
      %5881 = vmatpush1.msra.mxu0 %v5681
      %5882 = vmatprep.subr.mxu0 0.0
      %5883 = vmatpush1.msra.mxu0 %v5682
      %5884 = vmatprep.subr.mxu0 0.0
      %5885 = vmatpush1.msra.mxu0 %v5683
      %5886 = vmatprep.subr.mxu0 0.0
      %5887 = vmatpush1.msra.mxu0 %v5684
      %5888 = vmatprep.subr.mxu0 0.0
      %5889 = vmatpush1.msra.mxu0 %v5685
      %5890 = vmatprep.subr.mxu0 0.0
      %5891 = vmatpush1.msra.mxu0 %v5686
      %5892 = vmatprep.subr.mxu0 0.0
      %5893 = vmatpush1.msra.mxu0 %v5687
      %5894 = vmatprep.subr.mxu0 0.0
      %5895 = vmatpush1.msra.mxu0 %v5688
      %5896 = vmatprep.subr.mxu0 0.0
      %5897 = vmatpush1.msra.mxu0 %v5689
      %5898 = vmatprep.subr.mxu0 0.0
      %5899 = vmatpush1.msra.mxu0 %v5690
      %5900 = vmatprep.subr.mxu0 0.0
      %5901 = vmatpush1.msra.mxu0 %v5691
      %5902 = vmatprep.subr.mxu0 0.0
      %5903 = vmatpush1.msra.mxu0 %v5692
      %5904 = vmatprep.subr.mxu0 0.0
      %5905 = vmatpush1.msra.mxu0 %v5693
      %5906 = vmatprep.subr.mxu0 0.0
      %5907 = vmatpush1.msra.mxu0 %v5694
      %5908 = vmatprep.subr.mxu0 0.0
      %5909 = vmatpush1.msra.mxu0 %v5695
      %5910 = vmatprep.subr.mxu0 0.0
      %5911 = vmatpush1.msra.mxu0 %v5696
      %5912 = vmatprep.subr.mxu0 0.0
      %5913 = vmatpush1.msra.mxu0 %v5697
      %5914 = vmatprep.subr.mxu0 0.0
      %5915 = vmatpush1.msra.mxu0 %v5698
      %5916 = vmatprep.subr.mxu0 0.0
      %5917 = vmatpush1.msra.mxu0 %v5699
      %5918 = vmatprep.subr.mxu0 0.0
      %5919 = vmatpush1.msra.mxu0 %v5700
      %5920 = vmatprep.subr.mxu0 0.0
      %5921 = vmatpush1.msra.mxu0 %v5701
      %5922 = vmatprep.subr.mxu0 0.0
      %5923 = vmatpush1.msra.mxu0 %v5702
      %5924 = vmatprep.subr.mxu0 0.0
      %5925 = vmatpush1.msra.mxu0 %v5703
      %5926 = vmatprep.subr.mxu0 0.0
      %5927 = vmatpush1.msra.mxu0 %v5704
      %5928 = vmatprep.subr.mxu0 0.0
      %5929 = vmatpush1.msra.mxu0 %v5705
      %5930 = vmatprep.subr.mxu0 0.0
      %5931 = vmatpush1.msra.mxu0 %v5706
      %5932 = vmatprep.mubr.f32.mxu0 %v5606
      %5933 = vmatmul.mubr.f32.gmra.mrb[0].mxu0 %v5605
      %v5934 = vpop.f32.mrb[0].mxu0
      %v5935 = vadd.f32 %v5845, %v5934
      %v5936 = vpop.f32.mrb[0].mxu0
      %5937 = vmatprep.mubr.f32.mxu0 %v5614
      %5938 = vmatmul.mubr.f32.gmra.mrb[0].mxu0 %v5613
      %v5939 = vpop.f32.mrb[0].mxu0
      %v5940 = vadd.f32 %v5850, %v5939
      %v5941 = vpop.f32.mrb[0].mxu0
      %5942 = vmatprep.mubr.f32.mxu0 %v5622
      %5943 = vmatmul.mubr.f32.gmra.mrb[0].mxu0 %v5621
      %v5944 = vpop.f32.mrb[0].mxu0
      %v5945 = vadd.f32 %v5855, %v5944
      %v5946 = vpop.f32.mrb[0].mxu0
      %5947 = vmatprep.mubr.f32.mxu0 %v5630
      %5948 = vmatmul.mubr.f32.gmra.mrb[0].mxu0 %v5629
      %v5949 = vpop.f32.mrb[0].mxu0
      %v5950 = vadd.f32 %v5860, %v5949
      %v5951 = vpop.f32.mrb[0].mxu0
      %5952 = vmatprep.mubr.f32.mxu0 %v5638
      %5953 = vmatmul.mubr.f32.gmra.mrb[0].mxu0 %v5637
      %v5954 = vpop.f32.mrb[0].mxu0
      %v5955 = vadd.f32 %v5865, %v5954
      %v5956 = vpop.f32.mrb[0].mxu0
      %5957 = vdwg.mxu0
      %5958 = vmatprep.subr.mxu0 0.0
      %5959 = vmatpush1.msra.mxu0 %v5707
      %5960 = vmatprep.subr.mxu0 0.0
      %5961 = vmatpush1.msra.mxu0 %v5708
      %5962 = vmatprep.subr.mxu0 0.0
      %5963 = vmatpush1.msra.mxu0 %v5709
      %5964 = vmatprep.subr.mxu0 0.0
      %5965 = vmatpush1.msra.mxu0 %v5710
      %5966 = vmatprep.subr.mxu0 0.0
      %5967 = vmatpush1.msra.mxu0 %v5711
      %5968 = vmatprep.subr.mxu0 0.0
      %5969 = vmatpush1.msra.mxu0 %v5712
      %5970 = vmatprep.subr.mxu0 0.0
      %5971 = vmatpush1.msra.mxu0 %v5713
      %5972 = vmatprep.subr.mxu0 0.0
      %5973 = vmatpush1.msra.mxu0 %v5714
      %5974 = vmatprep.subr.mxu0 0.0
      %5975 = vmatpush1.msra.mxu0 %v5715
      %5976 = vmatprep.subr.mxu0 0.0
      %5977 = vmatpush1.msra.mxu0 %v5716
      %5978 = vmatprep.subr.mxu0 0.0
      %5979 = vmatpush1.msra.mxu0 %v5717
      %5980 = vmatprep.subr.mxu0 0.0
      %5981 = vmatpush1.msra.mxu0 %v5718
      %5982 = vmatprep.subr.mxu0 0.0
      %5983 = vmatpush1.msra.mxu0 %v5719
      %5984 = vmatprep.subr.mxu0 0.0
      %5985 = vmatpush1.msra.mxu0 %v5720
      %5986 = vmatprep.subr.mxu0 0.0
      %5987 = vmatpush1.msra.mxu0 %v5721
      %5988 = vmatprep.subr.mxu0 0.0
      %5989 = vmatpush1.msra.mxu0 %v5722
      %5990 = vmatprep.subr.mxu0 0.0
      %5991 = vmatpush1.msra.mxu0 %v5723
      %5992 = vmatprep.subr.mxu0 0.0
      %5993 = vmatpush1.msra.mxu0 %v5724
      %5994 = vmatprep.subr.mxu0 0.0
      %5995 = vmatpush1.msra.mxu0 %v5725
      %5996 = vmatprep.subr.mxu0 0.0
      %5997 = vmatpush1.msra.mxu0 %v5726
      %5998 = vmatprep.subr.mxu0 0.0
      %5999 = vmatpush1.msra.mxu0 %v5727
      %6000 = vmatprep.subr.mxu0 0.0
      %6001 = vmatpush1.msra.mxu0 %v5728
      %6002 = vmatprep.subr.mxu0 0.0
      %6003 = vmatpush1.msra.mxu0 %v5729
      %6004 = vmatprep.subr.mxu0 0.0
      %6005 = vmatpush1.msra.mxu0 %v5730
      %6006 = vmatprep.subr.mxu0 0.0
      %6007 = vmatpush1.msra.mxu0 %v5731
      %6008 = vmatprep.subr.mxu0 0.0
      %6009 = vmatpush1.msra.mxu0 %v5732
      %6010 = vmatprep.subr.mxu0 0.0
      %6011 = vmatpush1.msra.mxu0 %v5733
      %6012 = vmatprep.subr.mxu0 0.0
      %6013 = vmatpush1.msra.mxu0 %v5734
      %6014 = vmatprep.subr.mxu0 0.0
      %6015 = vmatpush1.msra.mxu0 %v5735
      %6016 = vmatprep.subr.mxu0 0.0
      %6017 = vmatpush1.msra.mxu0 %v5736
      %6018 = vmatprep.subr.mxu0 0.0
      %6019 = vmatpush1.msra.mxu0 %v5737
      %6020 = vmatprep.subr.mxu0 0.0
      %6021 = vmatpush1.msra.mxu0 %v5738
      %6022 = vmatprep.mubr.f32.mxu0 %v5608
      %6023 = vmatmul.mubr.f32.gmra.mrb[0].mxu0 %v5607
      %v6024 = vpop.f32.mrb[0].mxu0
      %v6025 = vadd.f32 %v5935, %v6024
      %v6026 = vpop.f32.mrb[0].mxu0
      %6027 = vmatprep.mubr.f32.mxu0 %v5616
      %6028 = vmatmul.mubr.f32.gmra.mrb[0].mxu0 %v5615
      %v6029 = vpop.f32.mrb[0].mxu0
      %v6030 = vadd.f32 %v5940, %v6029
      %v6031 = vpop.f32.mrb[0].mxu0
      %6032 = vmatprep.mubr.f32.mxu0 %v5624
      %6033 = vmatmul.mubr.f32.gmra.mrb[0].mxu0 %v5623
      %v6034 = vpop.f32.mrb[0].mxu0
      %v6035 = vadd.f32 %v5945, %v6034
      %v6036 = vpop.f32.mrb[0].mxu0
      %6037 = vmatprep.mubr.f32.mxu0 %v5632
      %6038 = vmatmul.mubr.f32.gmra.mrb[0].mxu0 %v5631
      %v6039 = vpop.f32.mrb[0].mxu0
      %v6040 = vadd.f32 %v5950, %v6039
      %v6041 = vpop.f32.mrb[0].mxu0
      %6042 = vmatprep.mubr.f32.mxu0 %v5640
      %6043 = vmatmul.mubr.f32.gmra.mrb[0].mxu0 %v5639
      %v6044 = vpop.f32.mrb[0].mxu0
      %v6045 = vadd.f32 %v5955, %v6044
      %v6046 = vpop.f32.mrb[0].mxu0
      %6047 = vdwg.mxu0
      %6048 = vmatprep.subr.mxu0 0.0
      %6049 = vmatpush1.msra.mxu0 %v5739
      %6050 = vmatprep.subr.mxu0 0.0
      %6051 = vmatpush1.msra.mxu0 %v5740
      %6052 = vmatprep.subr.mxu0 0.0
      %6053 = vmatpush1.msra.mxu0 %v5741
      %6054 = vmatprep.subr.mxu0 0.0
      %6055 = vmatpush1.msra.mxu0 %v5742
      %6056 = vmatprep.subr.mxu0 0.0
      %6057 = vmatpush1.msra.mxu0 %v5743
      %6058 = vmatprep.subr.mxu0 0.0
      %6059 = vmatpush1.msra.mxu0 %v5744
      %6060 = vmatprep.subr.mxu0 0.0
      %6061 = vmatpush1.msra.mxu0 %v5745
      %6062 = vmatprep.subr.mxu0 0.0
      %6063 = vmatpush1.msra.mxu0 %v5746
      %6064 = vmatprep.subr.mxu0 0.0
      %6065 = vmatpush1.msra.mxu0 %v5747
      %6066 = vmatprep.subr.mxu0 0.0
      %6067 = vmatpush1.msra.mxu0 %v5748
      %6068 = vmatprep.subr.mxu0 0.0
      %6069 = vmatpush1.msra.mxu0 %v5749
      %6070 = vmatprep.subr.mxu0 0.0
      %6071 = vmatpush1.msra.mxu0 %v5750
      %6072 = vmatprep.subr.mxu0 0.0
      %6073 = vmatpush1.msra.mxu0 %v5751
      %6074 = vmatprep.subr.mxu0 0.0
      %6075 = vmatpush1.msra.mxu0 %v5752
      %6076 = vmatprep.subr.mxu0 0.0
      %6077 = vmatpush1.msra.mxu0 %v5753
      %6078 = vmatprep.subr.mxu0 0.0
      %6079 = vmatpush1.msra.mxu0 %v5754
      %6080 = vmatprep.subr.mxu0 0.0
      %6081 = vmatpush1.msra.mxu0 %v5755
      %6082 = vmatprep.subr.mxu0 0.0
      %6083 = vmatpush1.msra.mxu0 %v5756
      %6084 = vmatprep.subr.mxu0 0.0
      %6085 = vmatpush1.msra.mxu0 %v5757
      %6086 = vmatprep.subr.mxu0 0.0
      %6087 = vmatpush1.msra.mxu0 %v5758
      %6088 = vmatprep.subr.mxu0 0.0
      %6089 = vmatpush1.msra.mxu0 %v5759
      %6090 = vmatprep.subr.mxu0 0.0
      %6091 = vmatpush1.msra.mxu0 %v5760
      %6092 = vmatprep.subr.mxu0 0.0
      %6093 = vmatpush1.msra.mxu0 %v5761
      %6094 = vmatprep.subr.mxu0 0.0
      %6095 = vmatpush1.msra.mxu0 %v5762
      %6096 = vmatprep.subr.mxu0 0.0
      %6097 = vmatpush1.msra.mxu0 %v5763
      %6098 = vmatprep.subr.mxu0 0.0
      %6099 = vmatpush1.msra.mxu0 %v5764
      %6100 = vmatprep.subr.mxu0 0.0
      %6101 = vmatpush1.msra.mxu0 %v5765
      %6102 = vmatprep.subr.mxu0 0.0
      %6103 = vmatpush1.msra.mxu0 %v5766
      %6104 = vmatprep.subr.mxu0 0.0
      %6105 = vmatpush1.msra.mxu0 %v5767
      %6106 = vmatprep.subr.mxu0 0.0
      %6107 = vmatpush1.msra.mxu0 %v5768
      %6108 = vmatprep.subr.mxu0 0.0
      %6109 = vmatpush1.msra.mxu0 %v5769
      %6110 = vmatprep.subr.mxu0 0.0
      %6111 = vmatpush1.msra.mxu0 %v5770
      %6112 = vmatprep.mubr.f32.mxu0 %v5610
      %6113 = vmatmul.mubr.f32.gmra.mrb[0].mxu0 %v5609
      %v6114 = vpop.f32.mrb[0].mxu0
      %v6115 = vadd.f32 %v6025, %v6114
      %v6116 = vpop.f32.mrb[0].mxu0
      %6117 = vmatprep.mubr.f32.mxu0 %v5618
      %6118 = vmatmul.mubr.f32.gmra.mrb[0].mxu0 %v5617
      %v6119 = vpop.f32.mrb[0].mxu0
      %v6120 = vadd.f32 %v6030, %v6119
      %v6121 = vpop.f32.mrb[0].mxu0
      %6122 = vmatprep.mubr.f32.mxu0 %v5626
      %6123 = vmatmul.mubr.f32.gmra.mrb[0].mxu0 %v5625
      %v6124 = vpop.f32.mrb[0].mxu0
      %v6125 = vadd.f32 %v6035, %v6124
      %v6126 = vpop.f32.mrb[0].mxu0
      %6127 = vmatprep.mubr.f32.mxu0 %v5634
      %6128 = vmatmul.mubr.f32.gmra.mrb[0].mxu0 %v5633
      %v6129 = vpop.f32.mrb[0].mxu0
      %v6130 = vadd.f32 %v6040, %v6129
      %v6131 = vpop.f32.mrb[0].mxu0
      %6132 = vmatprep.mubr.f32.mxu0 %v5642
      %6133 = vmatmul.mubr.f32.gmra.mrb[0].mxu0 %v5641
      %v6134 = vpop.f32.mrb[0].mxu0
      %v6135 = vadd.f32 %v6045, %v6134
      %v6136 = vpop.f32.mrb[0].mxu0
      %6137 = vdwg.mxu0
      %v6138 = vmax.f32 %v6115, 0.0
      %v6139 = vmax.f32 %v6120, 0.0
      %v6140 = vmax.f32 %v6125, 0.0
      %v6141 = vmax.f32 %v6130, 0.0
      %v6142 = vmax.f32 %v6135, 0.0
      %vm6143 = vcmask 293888
      %v6145 = vsel %vm6143, %v5598, 0
      %v6148 = vsel %vm6143, %v5599, 0
      %v6151 = vsel %vm6143, %v5600, 0
      %v6154 = vsel %vm6143, %v5601, 0
      %v6157 = vsel %vm6143, %v5602, 0
      %v6160 = vsel %vm2038, %v6142, 0
      %6162 = vmatprep.subr.mxu0 0.0
      %6163 = vmatpush1.msra.mxu0 %v6138
      %6164 = vmatprep.subr.mxu0 0.0
      %6165 = vmatpush1.msra.mxu0 %v6139
      %6166 = vmatprep.subr.mxu0 0.0
      %6167 = vmatpush1.msra.mxu0 %v6140
      %6168 = vmatprep.subr.mxu0 0.0
      %6169 = vmatpush1.msra.mxu0 %v6141
      %6170 = vmatprep.subr.mxu0 0.0
      %6171 = vmatpush1.msra.mxu0 %v6160
      %6172 = vmatprep.subr.mxu0 0.0
      %6173 = vmatpush1.msra.mxu0 0.0
      %6174 = vmatprep.subr.mxu0 0.0
      %6175 = vmatpush1.msra.mxu0 0.0
      %6176 = vmatprep.subr.mxu0 0.0
      %6177 = vmatpush1.msra.mxu0 0.0
      %6178 = vmatprep.subr.mxu0 0.0
      %6179 = vmatpush1.msra.mxu0 0.0
      %6180 = vmatprep.subr.mxu0 0.0
      %6181 = vmatpush1.msra.mxu0 0.0
      %6182 = vmatprep.subr.mxu0 0.0
      %6183 = vmatpush1.msra.mxu0 0.0
      %6184 = vmatprep.subr.mxu0 0.0
      %6185 = vmatpush1.msra.mxu0 0.0
      %6186 = vmatprep.subr.mxu0 0.0
      %6187 = vmatpush1.msra.mxu0 0.0
      %6188 = vmatprep.subr.mxu0 0.0
      %6189 = vmatpush1.msra.mxu0 0.0
      %6190 = vmatprep.subr.mxu0 0.0
      %6191 = vmatpush1.msra.mxu0 0.0
      %6192 = vmatprep.subr.mxu0 0.0
      %6193 = vmatpush1.msra.mxu0 0.0
      %6194 = vmatprep.subr.mxu0 0.0
      %6195 = vmatpush1.msra.mxu0 0.0
      %6196 = vmatprep.subr.mxu0 0.0
      %6197 = vmatpush1.msra.mxu0 0.0
      %6198 = vmatprep.subr.mxu0 0.0
      %6199 = vmatpush1.msra.mxu0 0.0
      %6200 = vmatprep.subr.mxu0 0.0
      %6201 = vmatpush1.msra.mxu0 0.0
      %6202 = vmatprep.subr.mxu0 0.0
      %6203 = vmatpush1.msra.mxu0 0.0
      %6204 = vmatprep.subr.mxu0 0.0
      %6205 = vmatpush1.msra.mxu0 0.0
      %6206 = vmatprep.subr.mxu0 0.0
      %6207 = vmatpush1.msra.mxu0 0.0
      %6208 = vmatprep.subr.mxu0 0.0
      %6209 = vmatpush1.msra.mxu0 0.0
      %6210 = vmatprep.subr.mxu0 0.0
      %6211 = vmatpush1.msra.mxu0 0.0
      %6212 = vmatprep.subr.mxu0 0.0
      %6213 = vmatpush1.msra.mxu0 0.0
      %6214 = vmatprep.subr.mxu0 0.0
      %6215 = vmatpush1.msra.mxu0 0.0
      %6216 = vmatprep.subr.mxu0 0.0
      %6217 = vmatpush1.msra.mxu0 0.0
      %6218 = vmatprep.subr.mxu0 0.0
      %6219 = vmatpush1.msra.mxu0 0.0
      %6220 = vmatprep.subr.mxu0 0.0
      %6221 = vmatpush1.msra.mxu0 0.0
      %6222 = vmatprep.subr.mxu0 0.0
      %6223 = vmatpush1.msra.mxu0 0.0
      %6224 = vmatprep.subr.mxu0 0.0
      %6225 = vmatpush1.msra.mxu0 0.0
      %6226 = vmatprep.mubr.f32.mxu0 0.0
      %6227 = vmatmul.mubr.f32.gmra.mrb[0].mxu0 %v6145
      %v6228 = vpop.f32.mrb[0].mxu0
      %v6229 = vadd.f32 0.0, %v6228
      %v6230 = vpop.f32.mrb[0].mxu0
      %6231 = vmatprep.mubr.f32.mxu0 0.0
      %6232 = vmatmul.mubr.f32.gmra.mrb[0].mxu0 %v6148
      %v6233 = vpop.f32.mrb[0].mxu0
      %v6234 = vadd.f32 0.0, %v6233
      %v6235 = vpop.f32.mrb[0].mxu0
      %6236 = vmatprep.mubr.f32.mxu0 0.0
      %6237 = vmatmul.mubr.f32.gmra.mrb[0].mxu0 %v6151
      %v6238 = vpop.f32.mrb[0].mxu0
      %v6239 = vadd.f32 0.0, %v6238
      %v6240 = vpop.f32.mrb[0].mxu0
      %6241 = vmatprep.mubr.f32.mxu0 0.0
      %6242 = vmatmul.mubr.f32.gmra.mrb[0].mxu0 %v6154
      %v6243 = vpop.f32.mrb[0].mxu0
      %v6244 = vadd.f32 0.0, %v6243
      %v6245 = vpop.f32.mrb[0].mxu0
      %6246 = vmatprep.mubr.f32.mxu0 0.0
      %6247 = vmatmul.mubr.f32.gmra.mrb[0].mxu0 %v6157
      %v6248 = vpop.f32.mrb[0].mxu0
      %v6249 = vadd.f32 0.0, %v6248
      %v6250 = vpop.f32.mrb[0].mxu0
      %6251 = vdwg.mxu0
      %6252 = vst [vmem:[#allocation4] sm:$0xff] %v6229
      %6253 = vst [vmem:[#allocation4 + $0x8] sm:$0xff] %v6234
      %6254 = vst [vmem:[#allocation4 + $0x10] sm:$0xff] %v6239
      %6255 = vst [vmem:[#allocation4 + $0x18] sm:$0xff] %v6244
      %6256 = vst [vmem:[#allocation4 + $0x20] sm:$0xf] %v6249
      %v6257 = vld [vmem:[#allocation4] sm:$0x3f]
      %v6258 = vld [vmem:[#allocation4 + $0x6] sm:$0x3f]
      %v6259 = vld [vmem:[#allocation4 + $0xc] sm:$0x3f]
      %v6260 = vld [vmem:[#allocation4 + $0x12] sm:$0x3f]
      %v6262 = vrot.slane %v6257, 1
      %v6263 = vrot.slane %v6257, 3
      %v6264 = vrot.slane %v6257, 4
      %v6266 = vrot.slane %v6258, 1
      %v6267 = vrot.slane %v6258, 3
      %v6268 = vrot.slane %v6258, 4
      %v6270 = vrot.slane %v6259, 1
      %v6271 = vrot.slane %v6259, 3
      %v6272 = vrot.slane %v6259, 4
      %v6274 = vrot.slane %v6260, 1
      %v6275 = vrot.slane %v6260, 3
      %v6276 = vrot.slane %v6260, 4
      %v6277 = vcombine.low %v6257, %v6262
      %v6278 = vcombine.low %v6263, %v6264
      %v6279 = vcombine.low %v6258, %v6266
      %v6280 = vcombine.low %v6267, %v6268
      %v6281 = vcombine.low %v6259, %v6270
      %v6282 = vcombine.low %v6271, %v6272
      %v6283 = vcombine.low %v6260, %v6274
      %v6284 = vcombine.low %v6275, %v6276
      %6293 = vst [vmem:[#allocation7] sm:$0x33] %v6277
      %6294 = vst [vmem:[#allocation7 + $0x8] sm:$0x33] %v6278
      %6295 = vst [vmem:[#allocation7 + $0x10] sm:$0x33] %v6279
      %6296 = vst [vmem:[#allocation7 + $0x18] sm:$0x33] %v6280
      %6297 = vst [vmem:[#allocation7 + $0x20] sm:$0x33] %v6281
      %6298 = vst [vmem:[#allocation7 + $0x28] sm:$0x33] %v6282
      %6299 = vst [vmem:[#allocation7 + $0x30] sm:$0x33] %v6283
      %6300 = vst [vmem:[#allocation7 + $0x38] sm:$0x33] %v6284
      %v6301 = vld [vmem:[#allocation4 + $0xc] sm:$0x3f]
      %v6302 = vld [vmem:[#allocation4 + $0x12] sm:$0x3f]
      %v6303 = vld [vmem:[#allocation4 + $0x18] sm:$0x3f]
      %v6304 = vld [vmem:[#allocation4 + $0x1e] sm:$0x3f]
      %v6306 = vrot.slane %v6301, 1
      %v6307 = vrot.slane %v6301, 3
      %v6308 = vrot.slane %v6301, 4
      %v6310 = vrot.slane %v6302, 1
      %v6311 = vrot.slane %v6302, 3
      %v6312 = vrot.slane %v6302, 4
      %v6314 = vrot.slane %v6303, 1
      %v6315 = vrot.slane %v6303, 3
      %v6316 = vrot.slane %v6303, 4
      %v6318 = vrot.slane %v6304, 1
      %v6319 = vrot.slane %v6304, 3
      %v6320 = vrot.slane %v6304, 4
      %v6321 = vcombine.low %v6301, %v6306
      %v6322 = vcombine.low %v6307, %v6308
      %v6323 = vcombine.low %v6302, %v6310
      %v6324 = vcombine.low %v6311, %v6312
      %v6325 = vcombine.low %v6303, %v6314
      %v6326 = vcombine.low %v6315, %v6316
      %v6327 = vcombine.low %v6304, %v6318
      %v6328 = vcombine.low %v6319, %v6320
      %v6329 = vrot.slane %v6321, 6
      %v6330 = vrot.slane %v6322, 6
      %v6331 = vrot.slane %v6323, 6
      %v6332 = vrot.slane %v6324, 6
      %v6333 = vrot.slane %v6325, 6
      %v6334 = vrot.slane %v6326, 6
      %v6335 = vrot.slane %v6327, 6
      %v6336 = vrot.slane %v6328, 6
      %6345 = vst [vmem:[#allocation7] sm:$0xcc] %v6329
      %6346 = vst [vmem:[#allocation7 + $0x8] sm:$0xcc] %v6330
      %6347 = vst [vmem:[#allocation7 + $0x10] sm:$0xcc] %v6331
      %6348 = vst [vmem:[#allocation7 + $0x18] sm:$0xcc] %v6332
      %6349 = vst [vmem:[#allocation7 + $0x20] sm:$0xcc] %v6333
      %6350 = vst [vmem:[#allocation7 + $0x28] sm:$0xcc] %v6334
      %6351 = vst [vmem:[#allocation7 + $0x30] sm:$0xcc] %v6335
      %6352 = vst [vmem:[#allocation7 + $0x38] sm:$0xcc] %v6336
      %v6353 = vld [vmem:[#allocation7] sm:$0xff]
      %v6354 = vld [vmem:[#allocation7 + $0x8] sm:$0xff]
      %v6355 = vld [vmem:[#allocation7 + $0x10] sm:$0xff]
      %v6356 = vld [vmem:[#allocation7 + $0x18] sm:$0xff]
      %v6357 = vld [vmem:[#allocation7 + $0x20] sm:$0xff]
      %v6358 = vld [vmem:[#allocation7 + $0x28] sm:$0xff]
      %v6359 = vld [vmem:[#allocation7 + $0x30] sm:$0xff]
      %v6360 = vld [vmem:[#allocation7 + $0x38] sm:$0xff]
      %v6361 = vld [vmem:[%s9] sm:$0xff]
      %v6362 = vld [vmem:[%s9 + $0x8] sm:$0xff]
      %v6363 = vld [vmem:[%s9 + $0x10] sm:$0xff]
      %v6364 = vld [vmem:[%s9 + $0x18] sm:$0xff]
      %v6365 = vld [vmem:[%s9 + $0x20] sm:$0xff]
      %v6366 = vld [vmem:[%s9 + $0x28] sm:$0xff]
      %v6367 = vld [vmem:[%s9 + $0x30] sm:$0xff]
      %v6368 = vld [vmem:[%s9 + $0x38] sm:$0xff]
      %v6369 = vld [vmem:[%s9 + $0x40] sm:$0xff]
      %v6370 = vld [vmem:[%s9 + $0x48] sm:$0xff]
      %v6371 = vld [vmem:[%s9 + $0x50] sm:$0xff]
      %v6372 = vld [vmem:[%s9 + $0x58] sm:$0xff]
      %v6373 = vld [vmem:[%s9 + $0x60] sm:$0xff]
      %v6374 = vld [vmem:[%s9 + $0x68] sm:$0xff]
      %v6375 = vld [vmem:[%s9 + $0x70] sm:$0xff]
      %v6376 = vld [vmem:[%s9 + $0x78] sm:$0xff]
      %v6377 = vld [vmem:[%s9 + $0x80] sm:$0xff]
      %v6378 = vld [vmem:[%s9 + $0x88] sm:$0xff]
      %v6379 = vld [vmem:[%s9 + $0x90] sm:$0xff]
      %v6380 = vld [vmem:[%s9 + $0x98] sm:$0xff]
      %v6381 = vld [vmem:[%s9 + $0xa0] sm:$0xff]
      %v6382 = vld [vmem:[%s9 + $0xa8] sm:$0xff]
      %v6383 = vld [vmem:[%s9 + $0xb0] sm:$0xff]
      %v6384 = vld [vmem:[%s9 + $0xb8] sm:$0xff]
      %v6385 = vld [vmem:[%s9 + $0xc0] sm:$0xff]
      %v6386 = vld [vmem:[%s9 + $0xc8] sm:$0xff]
      %v6387 = vld [vmem:[%s9 + $0xd0] sm:$0xff]
      %v6388 = vld [vmem:[%s9 + $0xd8] sm:$0xff]
      %v6389 = vld [vmem:[%s9 + $0xe0] sm:$0xff]
      %v6390 = vld [vmem:[%s9 + $0xe8] sm:$0xff]
      %v6391 = vld [vmem:[%s9 + $0xf0] sm:$0xff]
      %v6392 = vld [vmem:[%s9 + $0xf8] sm:$0xff]
      %v6393 = vld [vmem:[%s9 + $0x100] sm:$0xff]
      %v6394 = vld [vmem:[%s9 + $0x108] sm:$0xff]
      %v6395 = vld [vmem:[%s9 + $0x110] sm:$0xff]
      %v6396 = vld [vmem:[%s9 + $0x118] sm:$0xff]
      %v6397 = vld [vmem:[%s9 + $0x120] sm:$0xff]
      %v6398 = vld [vmem:[%s9 + $0x128] sm:$0xff]
      %v6399 = vld [vmem:[%s9 + $0x130] sm:$0xff]
      %v6400 = vld [vmem:[%s9 + $0x138] sm:$0xff]
      %v6401 = vld [vmem:[%s9 + $0x140] sm:$0xff]
      %v6402 = vld [vmem:[%s9 + $0x148] sm:$0xff]
      %v6403 = vld [vmem:[%s9 + $0x150] sm:$0xff]
      %v6404 = vld [vmem:[%s9 + $0x158] sm:$0xff]
      %v6405 = vld [vmem:[%s9 + $0x160] sm:$0xff]
      %v6406 = vld [vmem:[%s9 + $0x168] sm:$0xff]
      %v6407 = vld [vmem:[%s9 + $0x170] sm:$0xff]
      %v6408 = vld [vmem:[%s9 + $0x178] sm:$0xff]
      %v6409 = vld [vmem:[%s9 + $0x180] sm:$0xff]
      %v6410 = vld [vmem:[%s9 + $0x188] sm:$0xff]
      %v6411 = vld [vmem:[%s9 + $0x190] sm:$0xff]
      %v6412 = vld [vmem:[%s9 + $0x198] sm:$0xff]
      %v6413 = vld [vmem:[%s9 + $0x1a0] sm:$0xff]
      %v6414 = vld [vmem:[%s9 + $0x1a8] sm:$0xff]
      %v6415 = vld [vmem:[%s9 + $0x1b0] sm:$0xff]
      %v6416 = vld [vmem:[%s9 + $0x1b8] sm:$0xff]
      %v6417 = vld [vmem:[%s9 + $0x1c0] sm:$0xff]
      %v6418 = vld [vmem:[%s9 + $0x1c8] sm:$0xff]
      %v6419 = vld [vmem:[%s9 + $0x1d0] sm:$0xff]
      %v6420 = vld [vmem:[%s9 + $0x1d8] sm:$0xff]
      %v6421 = vld [vmem:[%s9 + $0x1e0] sm:$0xff]
      %v6422 = vld [vmem:[%s9 + $0x1e8] sm:$0xff]
      %v6423 = vld [vmem:[%s9 + $0x1f0] sm:$0xff]
      %v6424 = vld [vmem:[%s9 + $0x1f8] sm:$0xff]
      %v6425 = vld [vmem:[%s9 + $0x200] sm:$0xff]
      %v6426 = vld [vmem:[%s9 + $0x208] sm:$0xff]
      %v6427 = vld [vmem:[%s9 + $0x210] sm:$0xff]
      %v6428 = vld [vmem:[%s9 + $0x218] sm:$0xff]
      %v6429 = vld [vmem:[%s9 + $0x220] sm:$0xff]
      %v6430 = vld [vmem:[%s9 + $0x228] sm:$0xff]
      %v6431 = vld [vmem:[%s9 + $0x230] sm:$0xff]
      %v6432 = vld [vmem:[%s9 + $0x238] sm:$0xff]
      %v6433 = vld [vmem:[%s9 + $0x240] sm:$0xff]
      %v6434 = vld [vmem:[%s9 + $0x248] sm:$0xff]
      %v6435 = vld [vmem:[%s9 + $0x250] sm:$0xff]
      %v6436 = vld [vmem:[%s9 + $0x258] sm:$0xff]
      %v6437 = vld [vmem:[%s9 + $0x260] sm:$0xff]
      %v6438 = vld [vmem:[%s9 + $0x268] sm:$0xff]
      %v6439 = vld [vmem:[%s9 + $0x270] sm:$0xff]
      %v6440 = vld [vmem:[%s9 + $0x278] sm:$0xff]
      %v6441 = vld [vmem:[%s9 + $0x280] sm:$0xff]
      %v6442 = vld [vmem:[%s9 + $0x288] sm:$0xff]
      %v6443 = vld [vmem:[%s9 + $0x290] sm:$0xff]
      %v6444 = vld [vmem:[%s9 + $0x298] sm:$0xff]
      %v6445 = vld [vmem:[%s9 + $0x2a0] sm:$0xff]
      %v6446 = vld [vmem:[%s9 + $0x2a8] sm:$0xff]
      %v6447 = vld [vmem:[%s9 + $0x2b0] sm:$0xff]
      %v6448 = vld [vmem:[%s9 + $0x2b8] sm:$0xff]
      %v6449 = vld [vmem:[%s9 + $0x2c0] sm:$0xff]
      %v6450 = vld [vmem:[%s9 + $0x2c8] sm:$0xff]
      %v6451 = vld [vmem:[%s9 + $0x2d0] sm:$0xff]
      %v6452 = vld [vmem:[%s9 + $0x2d8] sm:$0xff]
      %v6453 = vld [vmem:[%s9 + $0x2e0] sm:$0xff]
      %v6454 = vld [vmem:[%s9 + $0x2e8] sm:$0xff]
      %v6455 = vld [vmem:[%s9 + $0x2f0] sm:$0xff]
      %v6456 = vld [vmem:[%s9 + $0x2f8] sm:$0xff]
      %v6457 = vld [vmem:[%s9 + $0x300] sm:$0xff]
      %v6458 = vld [vmem:[%s9 + $0x308] sm:$0xff]
      %v6459 = vld [vmem:[%s9 + $0x310] sm:$0xff]
      %v6460 = vld [vmem:[%s9 + $0x318] sm:$0xff]
      %v6461 = vld [vmem:[%s9 + $0x320] sm:$0xff]
      %v6462 = vld [vmem:[%s9 + $0x328] sm:$0xff]
      %v6463 = vld [vmem:[%s9 + $0x330] sm:$0xff]
      %v6464 = vld [vmem:[%s9 + $0x338] sm:$0xff]
      %v6465 = vld [vmem:[%s9 + $0x340] sm:$0xff]
      %v6466 = vld [vmem:[%s9 + $0x348] sm:$0xff]
      %v6467 = vld [vmem:[%s9 + $0x350] sm:$0xff]
      %v6468 = vld [vmem:[%s9 + $0x358] sm:$0xff]
      %v6469 = vld [vmem:[%s9 + $0x360] sm:$0xff]
      %v6470 = vld [vmem:[%s9 + $0x368] sm:$0xff]
      %v6471 = vld [vmem:[%s9 + $0x370] sm:$0xff]
      %v6472 = vld [vmem:[%s9 + $0x378] sm:$0xff]
      %v6473 = vld [vmem:[%s9 + $0x380] sm:$0xff]
      %v6474 = vld [vmem:[%s9 + $0x388] sm:$0xff]
      %v6475 = vld [vmem:[%s9 + $0x390] sm:$0xff]
      %v6476 = vld [vmem:[%s9 + $0x398] sm:$0xff]
      %v6477 = vld [vmem:[%s9 + $0x3a0] sm:$0xff]
      %v6478 = vld [vmem:[%s9 + $0x3a8] sm:$0xff]
      %v6479 = vld [vmem:[%s9 + $0x3b0] sm:$0xff]
      %v6480 = vld [vmem:[%s9 + $0x3b8] sm:$0xff]
      %v6481 = vld [vmem:[%s9 + $0x3c0] sm:$0xff]
      %v6482 = vld [vmem:[%s9 + $0x3c8] sm:$0xff]
      %v6483 = vld [vmem:[%s9 + $0x3d0] sm:$0xff]
      %v6484 = vld [vmem:[%s9 + $0x3d8] sm:$0xff]
      %v6485 = vld [vmem:[%s9 + $0x3e0] sm:$0xff]
      %v6486 = vld [vmem:[%s9 + $0x3e8] sm:$0xff]
      %v6487 = vld [vmem:[%s9 + $0x3f0] sm:$0xff]
      %v6488 = vld [vmem:[%s9 + $0x3f8] sm:$0xff]
      %v6489 = vld [vmem:[%s9 + $0x400] sm:$0xff]
      %v6490 = vld [vmem:[%s9 + $0x408] sm:$0xff]
      %v6491 = vld [vmem:[%s9 + $0x410] sm:$0xff]
      %v6492 = vld [vmem:[%s9 + $0x418] sm:$0xff]
      %v6493 = vld [vmem:[%s9 + $0x420] sm:$0xff]
      %v6494 = vld [vmem:[%s9 + $0x428] sm:$0xff]
      %v6495 = vld [vmem:[%s9 + $0x430] sm:$0xff]
      %v6496 = vld [vmem:[%s9 + $0x438] sm:$0xff]
      %v6497 = vld [vmem:[%s9 + $0x440] sm:$0xff]
      %v6498 = vld [vmem:[%s9 + $0x448] sm:$0xff]
      %v6499 = vld [vmem:[%s9 + $0x450] sm:$0xff]
      %v6500 = vld [vmem:[%s9 + $0x458] sm:$0xff]
      %v6501 = vld [vmem:[%s9 + $0x460] sm:$0xff]
      %v6502 = vld [vmem:[%s9 + $0x468] sm:$0xff]
      %v6503 = vld [vmem:[%s9 + $0x470] sm:$0xff]
      %v6504 = vld [vmem:[%s9 + $0x478] sm:$0xff]
      %v6505 = vld [vmem:[%s9 + $0x480] sm:$0xff]
      %v6506 = vld [vmem:[%s9 + $0x488] sm:$0xff]
      %v6507 = vld [vmem:[%s9 + $0x490] sm:$0xff]
      %v6508 = vld [vmem:[%s9 + $0x498] sm:$0xff]
      %v6509 = vld [vmem:[%s9 + $0x4a0] sm:$0xff]
      %v6510 = vld [vmem:[%s9 + $0x4a8] sm:$0xff]
      %v6511 = vld [vmem:[%s9 + $0x4b0] sm:$0xff]
      %v6512 = vld [vmem:[%s9 + $0x4b8] sm:$0xff]
      %v6513 = vld [vmem:[%s9 + $0x4c0] sm:$0xff]
      %v6514 = vld [vmem:[%s9 + $0x4c8] sm:$0xff]
      %v6515 = vld [vmem:[%s9 + $0x4d0] sm:$0xff]
      %v6516 = vld [vmem:[%s9 + $0x4d8] sm:$0xff]
      %v6517 = vld [vmem:[%s9 + $0x4e0] sm:$0xff]
      %v6518 = vld [vmem:[%s9 + $0x4e8] sm:$0xff]
      %v6519 = vld [vmem:[%s9 + $0x4f0] sm:$0xff]
      %v6520 = vld [vmem:[%s9 + $0x4f8] sm:$0xff]
      %v6521 = vld [vmem:[%s9 + $0x500] sm:$0xff]
      %v6522 = vld [vmem:[%s9 + $0x508] sm:$0xff]
      %v6523 = vld [vmem:[%s9 + $0x510] sm:$0xff]
      %v6524 = vld [vmem:[%s9 + $0x518] sm:$0xff]
      %v6525 = vld [vmem:[%s9 + $0x520] sm:$0xff]
      %v6526 = vld [vmem:[%s9 + $0x528] sm:$0xff]
      %v6527 = vld [vmem:[%s9 + $0x530] sm:$0xff]
      %v6528 = vld [vmem:[%s9 + $0x538] sm:$0xff]
      %v6529 = vld [vmem:[%s9 + $0x540] sm:$0xff]
      %v6530 = vld [vmem:[%s9 + $0x548] sm:$0xff]
      %v6531 = vld [vmem:[%s9 + $0x550] sm:$0xff]
      %v6532 = vld [vmem:[%s9 + $0x558] sm:$0xff]
      %v6533 = vld [vmem:[%s9 + $0x560] sm:$0xff]
      %v6534 = vld [vmem:[%s9 + $0x568] sm:$0xff]
      %v6535 = vld [vmem:[%s9 + $0x570] sm:$0xff]
      %v6536 = vld [vmem:[%s9 + $0x578] sm:$0xff]
      %v6537 = vld [vmem:[%s9 + $0x580] sm:$0xff]
      %v6538 = vld [vmem:[%s9 + $0x588] sm:$0xff]
      %v6539 = vld [vmem:[%s9 + $0x590] sm:$0xff]
      %v6540 = vld [vmem:[%s9 + $0x598] sm:$0xff]
      %v6541 = vld [vmem:[%s9 + $0x5a0] sm:$0xff]
      %v6542 = vld [vmem:[%s9 + $0x5a8] sm:$0xff]
      %v6543 = vld [vmem:[%s9 + $0x5b0] sm:$0xff]
      %v6544 = vld [vmem:[%s9 + $0x5b8] sm:$0xff]
      %v6545 = vld [vmem:[%s9 + $0x5c0] sm:$0xff]
      %v6546 = vld [vmem:[%s9 + $0x5c8] sm:$0xff]
      %v6547 = vld [vmem:[%s9 + $0x5d0] sm:$0xff]
      %v6548 = vld [vmem:[%s9 + $0x5d8] sm:$0xff]
      %v6549 = vld [vmem:[%s9 + $0x5e0] sm:$0xff]
      %v6550 = vld [vmem:[%s9 + $0x5e8] sm:$0xff]
      %v6551 = vld [vmem:[%s9 + $0x5f0] sm:$0xff]
      %v6552 = vld [vmem:[%s9 + $0x5f8] sm:$0xff]
      %v6553 = vld [vmem:[%s9 + $0x600] sm:$0xff]
      %v6554 = vld [vmem:[%s9 + $0x608] sm:$0xff]
      %v6555 = vld [vmem:[%s9 + $0x610] sm:$0xff]
      %v6556 = vld [vmem:[%s9 + $0x618] sm:$0xff]
      %v6557 = vld [vmem:[%s9 + $0x620] sm:$0xff]
      %v6558 = vld [vmem:[%s9 + $0x628] sm:$0xff]
      %v6559 = vld [vmem:[%s9 + $0x630] sm:$0xff]
      %v6560 = vld [vmem:[%s9 + $0x638] sm:$0xff]
      %v6561 = vld [vmem:[%s9 + $0x640] sm:$0xff]
      %v6562 = vld [vmem:[%s9 + $0x648] sm:$0xff]
      %v6563 = vld [vmem:[%s9 + $0x650] sm:$0xff]
      %v6564 = vld [vmem:[%s9 + $0x658] sm:$0xff]
      %v6565 = vld [vmem:[%s9 + $0x660] sm:$0xff]
      %v6566 = vld [vmem:[%s9 + $0x668] sm:$0xff]
      %v6567 = vld [vmem:[%s9 + $0x670] sm:$0xff]
      %v6568 = vld [vmem:[%s9 + $0x678] sm:$0xff]
      %v6569 = vld [vmem:[%s9 + $0x680] sm:$0xff]
      %v6570 = vld [vmem:[%s9 + $0x688] sm:$0xff]
      %v6571 = vld [vmem:[%s9 + $0x690] sm:$0xff]
      %v6572 = vld [vmem:[%s9 + $0x698] sm:$0xff]
      %v6573 = vld [vmem:[%s9 + $0x6a0] sm:$0xff]
      %v6574 = vld [vmem:[%s9 + $0x6a8] sm:$0xff]
      %v6575 = vld [vmem:[%s9 + $0x6b0] sm:$0xff]
      %v6576 = vld [vmem:[%s9 + $0x6b8] sm:$0xff]
      %v6577 = vld [vmem:[%s9 + $0x6c0] sm:$0xff]
      %v6578 = vld [vmem:[%s9 + $0x6c8] sm:$0xff]
      %v6579 = vld [vmem:[%s9 + $0x6d0] sm:$0xff]
      %v6580 = vld [vmem:[%s9 + $0x6d8] sm:$0xff]
      %v6581 = vld [vmem:[%s9 + $0x6e0] sm:$0xff]
      %v6582 = vld [vmem:[%s9 + $0x6e8] sm:$0xff]
      %v6583 = vld [vmem:[%s9 + $0x6f0] sm:$0xff]
      %v6584 = vld [vmem:[%s9 + $0x6f8] sm:$0xff]
      %v6585 = vld [vmem:[%s9 + $0x700] sm:$0xff]
      %v6586 = vld [vmem:[%s9 + $0x708] sm:$0xff]
      %v6587 = vld [vmem:[%s9 + $0x710] sm:$0xff]
      %v6588 = vld [vmem:[%s9 + $0x718] sm:$0xff]
      %v6589 = vld [vmem:[%s9 + $0x720] sm:$0xff]
      %v6590 = vld [vmem:[%s9 + $0x728] sm:$0xff]
      %v6591 = vld [vmem:[%s9 + $0x730] sm:$0xff]
      %v6592 = vld [vmem:[%s9 + $0x738] sm:$0xff]
      %v6593 = vld [vmem:[%s9 + $0x740] sm:$0xff]
      %v6594 = vld [vmem:[%s9 + $0x748] sm:$0xff]
      %v6595 = vld [vmem:[%s9 + $0x750] sm:$0xff]
      %v6596 = vld [vmem:[%s9 + $0x758] sm:$0xff]
      %v6597 = vld [vmem:[%s9 + $0x760] sm:$0xff]
      %v6598 = vld [vmem:[%s9 + $0x768] sm:$0xff]
      %v6599 = vld [vmem:[%s9 + $0x770] sm:$0xff]
      %v6600 = vld [vmem:[%s9 + $0x778] sm:$0xff]
      %v6601 = vld [vmem:[%s9 + $0x780] sm:$0xff]
      %v6602 = vld [vmem:[%s9 + $0x788] sm:$0xff]
      %v6603 = vld [vmem:[%s9 + $0x790] sm:$0xff]
      %v6604 = vld [vmem:[%s9 + $0x798] sm:$0xff]
      %v6605 = vld [vmem:[%s9 + $0x7a0] sm:$0xff]
      %v6606 = vld [vmem:[%s9 + $0x7a8] sm:$0xff]
      %v6607 = vld [vmem:[%s9 + $0x7b0] sm:$0xff]
      %v6608 = vld [vmem:[%s9 + $0x7b8] sm:$0xff]
      %v6609 = vld [vmem:[%s9 + $0x7c0] sm:$0xff]
      %v6610 = vld [vmem:[%s9 + $0x7c8] sm:$0xff]
      %v6611 = vld [vmem:[%s9 + $0x7d0] sm:$0xff]
      %v6612 = vld [vmem:[%s9 + $0x7d8] sm:$0xff]
      %v6613 = vld [vmem:[%s9 + $0x7e0] sm:$0xff]
      %v6614 = vld [vmem:[%s9 + $0x7e8] sm:$0xff]
      %v6615 = vld [vmem:[%s9 + $0x7f0] sm:$0xff]
      %v6616 = vld [vmem:[%s9 + $0x7f8] sm:$0xff]
      %v6617 = vld [vmem:[%s9 + $0x800] sm:$0xff]
      %v6618 = vld [vmem:[%s9 + $0x808] sm:$0xff]
      %v6619 = vld [vmem:[%s9 + $0x810] sm:$0xff]
      %v6620 = vld [vmem:[%s9 + $0x818] sm:$0xff]
      %v6621 = vld [vmem:[%s9 + $0x820] sm:$0xff]
      %v6622 = vld [vmem:[%s9 + $0x828] sm:$0xff]
      %v6623 = vld [vmem:[%s9 + $0x830] sm:$0xff]
      %v6624 = vld [vmem:[%s9 + $0x838] sm:$0xff]
      %v6625 = vld [vmem:[%s9 + $0x840] sm:$0xff]
      %v6626 = vld [vmem:[%s9 + $0x848] sm:$0xff]
      %v6627 = vld [vmem:[%s9 + $0x850] sm:$0xff]
      %v6628 = vld [vmem:[%s9 + $0x858] sm:$0xff]
      %v6629 = vld [vmem:[%s9 + $0x860] sm:$0xff]
      %v6630 = vld [vmem:[%s9 + $0x868] sm:$0xff]
      %v6631 = vld [vmem:[%s9 + $0x870] sm:$0xff]
      %v6632 = vld [vmem:[%s9 + $0x878] sm:$0xff]
      %v6633 = vld [vmem:[%s9 + $0x880] sm:$0xff]
      %v6634 = vld [vmem:[%s9 + $0x888] sm:$0xff]
      %v6635 = vld [vmem:[%s9 + $0x890] sm:$0xff]
      %v6636 = vld [vmem:[%s9 + $0x898] sm:$0xff]
      %v6637 = vld [vmem:[%s9 + $0x8a0] sm:$0xff]
      %v6638 = vld [vmem:[%s9 + $0x8a8] sm:$0xff]
      %v6639 = vld [vmem:[%s9 + $0x8b0] sm:$0xff]
      %v6640 = vld [vmem:[%s9 + $0x8b8] sm:$0xff]
      %v6641 = vld [vmem:[%s9 + $0x8c0] sm:$0xff]
      %v6642 = vld [vmem:[%s9 + $0x8c8] sm:$0xff]
      %v6643 = vld [vmem:[%s9 + $0x8d0] sm:$0xff]
      %v6644 = vld [vmem:[%s9 + $0x8d8] sm:$0xff]
      %v6645 = vld [vmem:[%s9 + $0x8e0] sm:$0xff]
      %v6646 = vld [vmem:[%s9 + $0x8e8] sm:$0xff]
      %v6647 = vld [vmem:[%s9 + $0x8f0] sm:$0xff]
      %v6648 = vld [vmem:[%s9 + $0x8f8] sm:$0xff]
      %v6649 = vld [vmem:[%s9 + $0x900] sm:$0xff]
      %v6650 = vld [vmem:[%s9 + $0x908] sm:$0xff]
      %v6651 = vld [vmem:[%s9 + $0x910] sm:$0xff]
      %v6652 = vld [vmem:[%s9 + $0x918] sm:$0xff]
      %v6653 = vld [vmem:[%s9 + $0x920] sm:$0xff]
      %v6654 = vld [vmem:[%s9 + $0x928] sm:$0xff]
      %v6655 = vld [vmem:[%s9 + $0x930] sm:$0xff]
      %v6656 = vld [vmem:[%s9 + $0x938] sm:$0xff]
      %v6657 = vld [vmem:[%s9 + $0x940] sm:$0xff]
      %v6658 = vld [vmem:[%s9 + $0x948] sm:$0xff]
      %v6659 = vld [vmem:[%s9 + $0x950] sm:$0xff]
      %v6660 = vld [vmem:[%s9 + $0x958] sm:$0xff]
      %v6661 = vld [vmem:[%s9 + $0x960] sm:$0xff]
      %v6662 = vld [vmem:[%s9 + $0x968] sm:$0xff]
      %v6663 = vld [vmem:[%s9 + $0x970] sm:$0xff]
      %v6664 = vld [vmem:[%s9 + $0x978] sm:$0xff]
      %v6665 = vld [vmem:[%s9 + $0x980] sm:$0xff]
      %v6666 = vld [vmem:[%s9 + $0x988] sm:$0xff]
      %v6667 = vld [vmem:[%s9 + $0x990] sm:$0xff]
      %v6668 = vld [vmem:[%s9 + $0x998] sm:$0xff]
      %v6669 = vld [vmem:[%s9 + $0x9a0] sm:$0xff]
      %v6670 = vld [vmem:[%s9 + $0x9a8] sm:$0xff]
      %v6671 = vld [vmem:[%s9 + $0x9b0] sm:$0xff]
      %v6672 = vld [vmem:[%s9 + $0x9b8] sm:$0xff]
      %v6673 = vld [vmem:[%s9 + $0x9c0] sm:$0xff]
      %v6674 = vld [vmem:[%s9 + $0x9c8] sm:$0xff]
      %v6675 = vld [vmem:[%s9 + $0x9d0] sm:$0xff]
      %v6676 = vld [vmem:[%s9 + $0x9d8] sm:$0xff]
      %v6677 = vld [vmem:[%s9 + $0x9e0] sm:$0xff]
      %v6678 = vld [vmem:[%s9 + $0x9e8] sm:$0xff]
      %v6679 = vld [vmem:[%s9 + $0x9f0] sm:$0xff]
      %v6680 = vld [vmem:[%s9 + $0x9f8] sm:$0xff]
      %v6681 = vld [vmem:[%s9 + $0xa00] sm:$0xff]
      %v6682 = vld [vmem:[%s9 + $0xa08] sm:$0xff]
      %v6683 = vld [vmem:[%s9 + $0xa10] sm:$0xff]
      %v6684 = vld [vmem:[%s9 + $0xa18] sm:$0xff]
      %v6685 = vld [vmem:[%s9 + $0xa20] sm:$0xff]
      %v6686 = vld [vmem:[%s9 + $0xa28] sm:$0xff]
      %v6687 = vld [vmem:[%s9 + $0xa30] sm:$0xff]
      %v6688 = vld [vmem:[%s9 + $0xa38] sm:$0xff]
      %v6689 = vld [vmem:[%s9 + $0xa40] sm:$0xff]
      %v6690 = vld [vmem:[%s9 + $0xa48] sm:$0xff]
      %v6691 = vld [vmem:[%s9 + $0xa50] sm:$0xff]
      %v6692 = vld [vmem:[%s9 + $0xa58] sm:$0xff]
      %v6693 = vld [vmem:[%s9 + $0xa60] sm:$0xff]
      %v6694 = vld [vmem:[%s9 + $0xa68] sm:$0xff]
      %v6695 = vld [vmem:[%s9 + $0xa70] sm:$0xff]
      %v6696 = vld [vmem:[%s9 + $0xa78] sm:$0xff]
      %v6697 = vld [vmem:[%s9 + $0xa80] sm:$0xff]
      %v6698 = vld [vmem:[%s9 + $0xa88] sm:$0xff]
      %v6699 = vld [vmem:[%s9 + $0xa90] sm:$0xff]
      %v6700 = vld [vmem:[%s9 + $0xa98] sm:$0xff]
      %v6701 = vld [vmem:[%s9 + $0xaa0] sm:$0xff]
      %v6702 = vld [vmem:[%s9 + $0xaa8] sm:$0xff]
      %v6703 = vld [vmem:[%s9 + $0xab0] sm:$0xff]
      %v6704 = vld [vmem:[%s9 + $0xab8] sm:$0xff]
      %v6705 = vld [vmem:[%s9 + $0xac0] sm:$0xff]
      %v6706 = vld [vmem:[%s9 + $0xac8] sm:$0xff]
      %v6707 = vld [vmem:[%s9 + $0xad0] sm:$0xff]
      %v6708 = vld [vmem:[%s9 + $0xad8] sm:$0xff]
      %v6709 = vld [vmem:[%s9 + $0xae0] sm:$0xff]
      %v6710 = vld [vmem:[%s9 + $0xae8] sm:$0xff]
      %v6711 = vld [vmem:[%s9 + $0xaf0] sm:$0xff]
      %v6712 = vld [vmem:[%s9 + $0xaf8] sm:$0xff]
      %v6713 = vld [vmem:[%s9 + $0xb00] sm:$0xff]
      %v6714 = vld [vmem:[%s9 + $0xb08] sm:$0xff]
      %v6715 = vld [vmem:[%s9 + $0xb10] sm:$0xff]
      %v6716 = vld [vmem:[%s9 + $0xb18] sm:$0xff]
      %v6717 = vld [vmem:[%s9 + $0xb20] sm:$0xff]
      %v6718 = vld [vmem:[%s9 + $0xb28] sm:$0xff]
      %v6719 = vld [vmem:[%s9 + $0xb30] sm:$0xff]
      %v6720 = vld [vmem:[%s9 + $0xb38] sm:$0xff]
      %v6721 = vld [vmem:[%s9 + $0xb40] sm:$0xff]
      %v6722 = vld [vmem:[%s9 + $0xb48] sm:$0xff]
      %v6723 = vld [vmem:[%s9 + $0xb50] sm:$0xff]
      %v6724 = vld [vmem:[%s9 + $0xb58] sm:$0xff]
      %v6725 = vld [vmem:[%s9 + $0xb60] sm:$0xff]
      %v6726 = vld [vmem:[%s9 + $0xb68] sm:$0xff]
      %v6727 = vld [vmem:[%s9 + $0xb70] sm:$0xff]
      %v6728 = vld [vmem:[%s9 + $0xb78] sm:$0xff]
      %v6729 = vld [vmem:[%s9 + $0xb80] sm:$0xff]
      %v6730 = vld [vmem:[%s9 + $0xb88] sm:$0xff]
      %v6731 = vld [vmem:[%s9 + $0xb90] sm:$0xff]
      %v6732 = vld [vmem:[%s9 + $0xb98] sm:$0xff]
      %v6733 = vld [vmem:[%s9 + $0xba0] sm:$0xff]
      %v6734 = vld [vmem:[%s9 + $0xba8] sm:$0xff]
      %v6735 = vld [vmem:[%s9 + $0xbb0] sm:$0xff]
      %v6736 = vld [vmem:[%s9 + $0xbb8] sm:$0xff]
      %v6737 = vld [vmem:[%s9 + $0xbc0] sm:$0xff]
      %v6738 = vld [vmem:[%s9 + $0xbc8] sm:$0xff]
      %v6739 = vld [vmem:[%s9 + $0xbd0] sm:$0xff]
      %v6740 = vld [vmem:[%s9 + $0xbd8] sm:$0xff]
      %v6741 = vld [vmem:[%s9 + $0xbe0] sm:$0xff]
      %v6742 = vld [vmem:[%s9 + $0xbe8] sm:$0xff]
      %v6743 = vld [vmem:[%s9 + $0xbf0] sm:$0xff]
      %v6744 = vld [vmem:[%s9 + $0xbf8] sm:$0xff]
      %v6745 = vld [vmem:[%s9 + $0xc00] sm:$0xff]
      %v6746 = vld [vmem:[%s9 + $0xc08] sm:$0xff]
      %v6747 = vld [vmem:[%s9 + $0xc10] sm:$0xff]
      %v6748 = vld [vmem:[%s9 + $0xc18] sm:$0xff]
      %v6749 = vld [vmem:[%s9 + $0xc20] sm:$0xff]
      %v6750 = vld [vmem:[%s9 + $0xc28] sm:$0xff]
      %v6751 = vld [vmem:[%s9 + $0xc30] sm:$0xff]
      %v6752 = vld [vmem:[%s9 + $0xc38] sm:$0xff]
      %v6753 = vld [vmem:[%s9 + $0xc40] sm:$0xff]
      %v6754 = vld [vmem:[%s9 + $0xc48] sm:$0xff]
      %v6755 = vld [vmem:[%s9 + $0xc50] sm:$0xff]
      %v6756 = vld [vmem:[%s9 + $0xc58] sm:$0xff]
      %v6757 = vld [vmem:[%s9 + $0xc60] sm:$0xff]
      %v6758 = vld [vmem:[%s9 + $0xc68] sm:$0xff]
      %v6759 = vld [vmem:[%s9 + $0xc70] sm:$0xff]
      %v6760 = vld [vmem:[%s9 + $0xc78] sm:$0xff]
      %v6761 = vld [vmem:[%s9 + $0xc80] sm:$0xff]
      %v6762 = vld [vmem:[%s9 + $0xc88] sm:$0xff]
      %v6763 = vld [vmem:[%s9 + $0xc90] sm:$0xff]
      %v6764 = vld [vmem:[%s9 + $0xc98] sm:$0xff]
      %v6765 = vld [vmem:[%s9 + $0xca0] sm:$0xff]
      %v6766 = vld [vmem:[%s9 + $0xca8] sm:$0xff]
      %v6767 = vld [vmem:[%s9 + $0xcb0] sm:$0xff]
      %v6768 = vld [vmem:[%s9 + $0xcb8] sm:$0xff]
      %v6769 = vld [vmem:[%s9 + $0xcc0] sm:$0xff]
      %v6770 = vld [vmem:[%s9 + $0xcc8] sm:$0xff]
      %v6771 = vld [vmem:[%s9 + $0xcd0] sm:$0xff]
      %v6772 = vld [vmem:[%s9 + $0xcd8] sm:$0xff]
      %v6773 = vld [vmem:[%s9 + $0xce0] sm:$0xff]
      %v6774 = vld [vmem:[%s9 + $0xce8] sm:$0xff]
      %v6775 = vld [vmem:[%s9 + $0xcf0] sm:$0xff]
      %v6776 = vld [vmem:[%s9 + $0xcf8] sm:$0xff]
      %v6777 = vld [vmem:[%s9 + $0xd00] sm:$0xff]
      %v6778 = vld [vmem:[%s9 + $0xd08] sm:$0xff]
      %v6779 = vld [vmem:[%s9 + $0xd10] sm:$0xff]
      %v6780 = vld [vmem:[%s9 + $0xd18] sm:$0xff]
      %v6781 = vld [vmem:[%s9 + $0xd20] sm:$0xff]
      %v6782 = vld [vmem:[%s9 + $0xd28] sm:$0xff]
      %v6783 = vld [vmem:[%s9 + $0xd30] sm:$0xff]
      %v6784 = vld [vmem:[%s9 + $0xd38] sm:$0xff]
      %v6785 = vld [vmem:[%s9 + $0xd40] sm:$0xff]
      %v6786 = vld [vmem:[%s9 + $0xd48] sm:$0xff]
      %v6787 = vld [vmem:[%s9 + $0xd50] sm:$0xff]
      %v6788 = vld [vmem:[%s9 + $0xd58] sm:$0xff]
      %v6789 = vld [vmem:[%s9 + $0xd60] sm:$0xff]
      %v6790 = vld [vmem:[%s9 + $0xd68] sm:$0xff]
      %v6791 = vld [vmem:[%s9 + $0xd70] sm:$0xff]
      %v6792 = vld [vmem:[%s9 + $0xd78] sm:$0xff]
      %v6793 = vld [vmem:[%s9 + $0xd80] sm:$0xff]
      %v6794 = vld [vmem:[%s9 + $0xd88] sm:$0xff]
      %v6795 = vld [vmem:[%s9 + $0xd90] sm:$0xff]
      %v6796 = vld [vmem:[%s9 + $0xd98] sm:$0xff]
      %v6797 = vld [vmem:[%s9 + $0xda0] sm:$0xff]
      %v6798 = vld [vmem:[%s9 + $0xda8] sm:$0xff]
      %v6799 = vld [vmem:[%s9 + $0xdb0] sm:$0xff]
      %v6800 = vld [vmem:[%s9 + $0xdb8] sm:$0xff]
      %v6801 = vld [vmem:[%s9 + $0xdc0] sm:$0xff]
      %v6802 = vld [vmem:[%s9 + $0xdc8] sm:$0xff]
      %v6803 = vld [vmem:[%s9 + $0xdd0] sm:$0xff]
      %v6804 = vld [vmem:[%s9 + $0xdd8] sm:$0xff]
      %v6805 = vld [vmem:[%s9 + $0xde0] sm:$0xff]
      %v6806 = vld [vmem:[%s9 + $0xde8] sm:$0xff]
      %v6807 = vld [vmem:[%s9 + $0xdf0] sm:$0xff]
      %v6808 = vld [vmem:[%s9 + $0xdf8] sm:$0xff]
      %v6809 = vld [vmem:[%s9 + $0xe00] sm:$0xff]
      %v6810 = vld [vmem:[%s9 + $0xe08] sm:$0xff]
      %v6811 = vld [vmem:[%s9 + $0xe10] sm:$0xff]
      %v6812 = vld [vmem:[%s9 + $0xe18] sm:$0xff]
      %v6813 = vld [vmem:[%s9 + $0xe20] sm:$0xff]
      %v6814 = vld [vmem:[%s9 + $0xe28] sm:$0xff]
      %v6815 = vld [vmem:[%s9 + $0xe30] sm:$0xff]
      %v6816 = vld [vmem:[%s9 + $0xe38] sm:$0xff]
      %v6817 = vld [vmem:[%s9 + $0xe40] sm:$0xff]
      %v6818 = vld [vmem:[%s9 + $0xe48] sm:$0xff]
      %v6819 = vld [vmem:[%s9 + $0xe50] sm:$0xff]
      %v6820 = vld [vmem:[%s9 + $0xe58] sm:$0xff]
      %v6821 = vld [vmem:[%s9 + $0xe60] sm:$0xff]
      %v6822 = vld [vmem:[%s9 + $0xe68] sm:$0xff]
      %v6823 = vld [vmem:[%s9 + $0xe70] sm:$0xff]
      %v6824 = vld [vmem:[%s9 + $0xe78] sm:$0xff]
      %v6825 = vld [vmem:[%s9 + $0xe80] sm:$0xff]
      %v6826 = vld [vmem:[%s9 + $0xe88] sm:$0xff]
      %v6827 = vld [vmem:[%s9 + $0xe90] sm:$0xff]
      %v6828 = vld [vmem:[%s9 + $0xe98] sm:$0xff]
      %v6829 = vld [vmem:[%s9 + $0xea0] sm:$0xff]
      %v6830 = vld [vmem:[%s9 + $0xea8] sm:$0xff]
      %v6831 = vld [vmem:[%s9 + $0xeb0] sm:$0xff]
      %v6832 = vld [vmem:[%s9 + $0xeb8] sm:$0xff]
      %v6833 = vld [vmem:[%s9 + $0xec0] sm:$0xff]
      %v6834 = vld [vmem:[%s9 + $0xec8] sm:$0xff]
      %v6835 = vld [vmem:[%s9 + $0xed0] sm:$0xff]
      %v6836 = vld [vmem:[%s9 + $0xed8] sm:$0xff]
      %v6837 = vld [vmem:[%s9 + $0xee0] sm:$0xff]
      %v6838 = vld [vmem:[%s9 + $0xee8] sm:$0xff]
      %v6839 = vld [vmem:[%s9 + $0xef0] sm:$0xff]
      %v6840 = vld [vmem:[%s9 + $0xef8] sm:$0xff]
      %v6841 = vld [vmem:[%s9 + $0xf00] sm:$0xff]
      %v6842 = vld [vmem:[%s9 + $0xf08] sm:$0xff]
      %v6843 = vld [vmem:[%s9 + $0xf10] sm:$0xff]
      %v6844 = vld [vmem:[%s9 + $0xf18] sm:$0xff]
      %v6845 = vld [vmem:[%s9 + $0xf20] sm:$0xff]
      %v6846 = vld [vmem:[%s9 + $0xf28] sm:$0xff]
      %v6847 = vld [vmem:[%s9 + $0xf30] sm:$0xff]
      %v6848 = vld [vmem:[%s9 + $0xf38] sm:$0xff]
      %v6849 = vld [vmem:[%s9 + $0xf40] sm:$0xff]
      %v6850 = vld [vmem:[%s9 + $0xf48] sm:$0xff]
      %v6851 = vld [vmem:[%s9 + $0xf50] sm:$0xff]
      %v6852 = vld [vmem:[%s9 + $0xf58] sm:$0xff]
      %v6853 = vld [vmem:[%s9 + $0xf60] sm:$0xff]
      %v6854 = vld [vmem:[%s9 + $0xf68] sm:$0xff]
      %v6855 = vld [vmem:[%s9 + $0xf70] sm:$0xff]
      %v6856 = vld [vmem:[%s9 + $0xf78] sm:$0xff]
      %v6857 = vld [vmem:[%s9 + $0xf80] sm:$0xff]
      %v6858 = vld [vmem:[%s9 + $0xf88] sm:$0xff]
      %v6859 = vld [vmem:[%s9 + $0xf90] sm:$0xff]
      %v6860 = vld [vmem:[%s9 + $0xf98] sm:$0xff]
      %v6861 = vld [vmem:[%s9 + $0xfa0] sm:$0xff]
      %v6862 = vld [vmem:[%s9 + $0xfa8] sm:$0xff]
      %v6863 = vld [vmem:[%s9 + $0xfb0] sm:$0xff]
      %v6864 = vld [vmem:[%s9 + $0xfb8] sm:$0xff]
      %v6865 = vld [vmem:[%s9 + $0xfc0] sm:$0xff]
      %v6866 = vld [vmem:[%s9 + $0xfc8] sm:$0xff]
      %v6867 = vld [vmem:[%s9 + $0xfd0] sm:$0xff]
      %v6868 = vld [vmem:[%s9 + $0xfd8] sm:$0xff]
      %v6869 = vld [vmem:[%s9 + $0xfe0] sm:$0xff]
      %v6870 = vld [vmem:[%s9 + $0xfe8] sm:$0xff]
      %v6871 = vld [vmem:[%s9 + $0xff0] sm:$0xff]
      %v6872 = vld [vmem:[%s9 + $0xff8] sm:$0xff]
      %v6873 = vld [vmem:[%s10] sm:$0x3]
      %v6875 = vlaneseq
      %v6876 = vshrl.u32 %v6875, 7
      %v6877 = vsub.s32 0, %v6876
      %v6878 = vrot.slane %v6873, %v6877
      %v6879 = vlaneseq
      %v6880 = vshrl.u32 %v6879, 7
      %v6881 = vsub.s32 1, %v6880
      %v6882 = vrot.slane %v6873, %v6881
      %v6893 = vcombine.high %v6353, %v6353
      %v6894 = vcombine.high %v6354, %v6354
      %v6895 = vcombine.high %v6355, %v6355
      %v6896 = vcombine.high %v6356, %v6356
      %v6897 = vcombine.high %v6357, %v6357
      %v6898 = vcombine.high %v6358, %v6358
      %v6899 = vcombine.high %v6359, %v6359
      %v6900 = vcombine.high %v6360, %v6360
      %6909 = vmatprep.subr.mxu0 %v6362
      %6910 = vmatpush1.msra.mxu0 %v6361
      %6911 = vmatprep.subr.mxu0 %v6364
      %6912 = vmatpush1.msra.mxu0 %v6363
      %6913 = vmatprep.subr.mxu0 %v6366
      %6914 = vmatpush1.msra.mxu0 %v6365
      %6915 = vmatprep.subr.mxu0 %v6368
      %6916 = vmatpush1.msra.mxu0 %v6367
      %6917 = vmatprep.subr.mxu0 %v6370
      %6918 = vmatpush1.msra.mxu0 %v6369
      %6919 = vmatprep.subr.mxu0 %v6372
      %6920 = vmatpush1.msra.mxu0 %v6371
      %6921 = vmatprep.subr.mxu0 %v6374
      %6922 = vmatpush1.msra.mxu0 %v6373
      %6923 = vmatprep.subr.mxu0 %v6376
      %6924 = vmatpush1.msra.mxu0 %v6375
      %6925 = vmatprep.subr.mxu0 %v6378
      %6926 = vmatpush1.msra.mxu0 %v6377
      %6927 = vmatprep.subr.mxu0 %v6380
      %6928 = vmatpush1.msra.mxu0 %v6379
      %6929 = vmatprep.subr.mxu0 %v6382
      %6930 = vmatpush1.msra.mxu0 %v6381
      %6931 = vmatprep.subr.mxu0 %v6384
      %6932 = vmatpush1.msra.mxu0 %v6383
      %6933 = vmatprep.subr.mxu0 %v6386
      %6934 = vmatpush1.msra.mxu0 %v6385
      %6935 = vmatprep.subr.mxu0 %v6388
      %6936 = vmatpush1.msra.mxu0 %v6387
      %6937 = vmatprep.subr.mxu0 %v6390
      %6938 = vmatpush1.msra.mxu0 %v6389
      %6939 = vmatprep.subr.mxu0 %v6392
      %6940 = vmatpush1.msra.mxu0 %v6391
      %6941 = vmatprep.subr.mxu0 %v6394
      %6942 = vmatpush1.msra.mxu0 %v6393
      %6943 = vmatprep.subr.mxu0 %v6396
      %6944 = vmatpush1.msra.mxu0 %v6395
      %6945 = vmatprep.subr.mxu0 %v6398
      %6946 = vmatpush1.msra.mxu0 %v6397
      %6947 = vmatprep.subr.mxu0 %v6400
      %6948 = vmatpush1.msra.mxu0 %v6399
      %6949 = vmatprep.subr.mxu0 %v6402
      %6950 = vmatpush1.msra.mxu0 %v6401
      %6951 = vmatprep.subr.mxu0 %v6404
      %6952 = vmatpush1.msra.mxu0 %v6403
      %6953 = vmatprep.subr.mxu0 %v6406
      %6954 = vmatpush1.msra.mxu0 %v6405
      %6955 = vmatprep.subr.mxu0 %v6408
      %6956 = vmatpush1.msra.mxu0 %v6407
      %6957 = vmatprep.subr.mxu0 %v6410
      %6958 = vmatpush1.msra.mxu0 %v6409
      %6959 = vmatprep.subr.mxu0 %v6412
      %6960 = vmatpush1.msra.mxu0 %v6411
      %6961 = vmatprep.subr.mxu0 %v6414
      %6962 = vmatpush1.msra.mxu0 %v6413
      %6963 = vmatprep.subr.mxu0 %v6416
      %6964 = vmatpush1.msra.mxu0 %v6415
      %6965 = vmatprep.subr.mxu0 %v6418
      %6966 = vmatpush1.msra.mxu0 %v6417
      %6967 = vmatprep.subr.mxu0 %v6420
      %6968 = vmatpush1.msra.mxu0 %v6419
      %6969 = vmatprep.subr.mxu0 %v6422
      %6970 = vmatpush1.msra.mxu0 %v6421
      %6971 = vmatprep.subr.mxu0 %v6424
      %6972 = vmatpush1.msra.mxu0 %v6423
      %6973 = vmatprep.mubr.f32.mxu0 %v6893
      %6974 = vmatmul.mubr.f32.gmra.mrb[0].mxu0 %v6353
      %v6975 = vpop.f32.mrb[0].mxu0
      %v6976 = vadd.f32 %v6878, %v6975
      %v6977 = vpop.f32.mrb[0].mxu0
      %v6978 = vadd.f32 %v6882, %v6977
      %6979 = vdwg.mxu0
      %6980 = vmatprep.subr.mxu0 %v6426
      %6981 = vmatpush1.msra.mxu0 %v6425
      %6982 = vmatprep.subr.mxu0 %v6428
      %6983 = vmatpush1.msra.mxu0 %v6427
      %6984 = vmatprep.subr.mxu0 %v6430
      %6985 = vmatpush1.msra.mxu0 %v6429
      %6986 = vmatprep.subr.mxu0 %v6432
      %6987 = vmatpush1.msra.mxu0 %v6431
      %6988 = vmatprep.subr.mxu0 %v6434
      %6989 = vmatpush1.msra.mxu0 %v6433
      %6990 = vmatprep.subr.mxu0 %v6436
      %6991 = vmatpush1.msra.mxu0 %v6435
      %6992 = vmatprep.subr.mxu0 %v6438
      %6993 = vmatpush1.msra.mxu0 %v6437
      %6994 = vmatprep.subr.mxu0 %v6440
      %6995 = vmatpush1.msra.mxu0 %v6439
      %6996 = vmatprep.subr.mxu0 %v6442
      %6997 = vmatpush1.msra.mxu0 %v6441
      %6998 = vmatprep.subr.mxu0 %v6444
      %6999 = vmatpush1.msra.mxu0 %v6443
      %7000 = vmatprep.subr.mxu0 %v6446
      %7001 = vmatpush1.msra.mxu0 %v6445
      %7002 = vmatprep.subr.mxu0 %v6448
      %7003 = vmatpush1.msra.mxu0 %v6447
      %7004 = vmatprep.subr.mxu0 %v6450
      %7005 = vmatpush1.msra.mxu0 %v6449
      %7006 = vmatprep.subr.mxu0 %v6452
      %7007 = vmatpush1.msra.mxu0 %v6451
      %7008 = vmatprep.subr.mxu0 %v6454
      %7009 = vmatpush1.msra.mxu0 %v6453
      %7010 = vmatprep.subr.mxu0 %v6456
      %7011 = vmatpush1.msra.mxu0 %v6455
      %7012 = vmatprep.subr.mxu0 %v6458
      %7013 = vmatpush1.msra.mxu0 %v6457
      %7014 = vmatprep.subr.mxu0 %v6460
      %7015 = vmatpush1.msra.mxu0 %v6459
      %7016 = vmatprep.subr.mxu0 %v6462
      %7017 = vmatpush1.msra.mxu0 %v6461
      %7018 = vmatprep.subr.mxu0 %v6464
      %7019 = vmatpush1.msra.mxu0 %v6463
      %7020 = vmatprep.subr.mxu0 %v6466
      %7021 = vmatpush1.msra.mxu0 %v6465
      %7022 = vmatprep.subr.mxu0 %v6468
      %7023 = vmatpush1.msra.mxu0 %v6467
      %7024 = vmatprep.subr.mxu0 %v6470
      %7025 = vmatpush1.msra.mxu0 %v6469
      %7026 = vmatprep.subr.mxu0 %v6472
      %7027 = vmatpush1.msra.mxu0 %v6471
      %7028 = vmatprep.subr.mxu0 %v6474
      %7029 = vmatpush1.msra.mxu0 %v6473
      %7030 = vmatprep.subr.mxu0 %v6476
      %7031 = vmatpush1.msra.mxu0 %v6475
      %7032 = vmatprep.subr.mxu0 %v6478
      %7033 = vmatpush1.msra.mxu0 %v6477
      %7034 = vmatprep.subr.mxu0 %v6480
      %7035 = vmatpush1.msra.mxu0 %v6479
      %7036 = vmatprep.subr.mxu0 %v6482
      %7037 = vmatpush1.msra.mxu0 %v6481
      %7038 = vmatprep.subr.mxu0 %v6484
      %7039 = vmatpush1.msra.mxu0 %v6483
      %7040 = vmatprep.subr.mxu0 %v6486
      %7041 = vmatpush1.msra.mxu0 %v6485
      %7042 = vmatprep.subr.mxu0 %v6488
      %7043 = vmatpush1.msra.mxu0 %v6487
      %7044 = vmatprep.mubr.f32.mxu0 %v6894
      %7045 = vmatmul.mubr.f32.gmra.mrb[0].mxu0 %v6354
      %v7046 = vpop.f32.mrb[0].mxu0
      %v7047 = vadd.f32 %v6976, %v7046
      %v7048 = vpop.f32.mrb[0].mxu0
      %v7049 = vadd.f32 %v6978, %v7048
      %7050 = vdwg.mxu0
      %7051 = vmatprep.subr.mxu0 %v6490
      %7052 = vmatpush1.msra.mxu0 %v6489
      %7053 = vmatprep.subr.mxu0 %v6492
      %7054 = vmatpush1.msra.mxu0 %v6491
      %7055 = vmatprep.subr.mxu0 %v6494
      %7056 = vmatpush1.msra.mxu0 %v6493
      %7057 = vmatprep.subr.mxu0 %v6496
      %7058 = vmatpush1.msra.mxu0 %v6495
      %7059 = vmatprep.subr.mxu0 %v6498
      %7060 = vmatpush1.msra.mxu0 %v6497
      %7061 = vmatprep.subr.mxu0 %v6500
      %7062 = vmatpush1.msra.mxu0 %v6499
      %7063 = vmatprep.subr.mxu0 %v6502
      %7064 = vmatpush1.msra.mxu0 %v6501
      %7065 = vmatprep.subr.mxu0 %v6504
      %7066 = vmatpush1.msra.mxu0 %v6503
      %7067 = vmatprep.subr.mxu0 %v6506
      %7068 = vmatpush1.msra.mxu0 %v6505
      %7069 = vmatprep.subr.mxu0 %v6508
      %7070 = vmatpush1.msra.mxu0 %v6507
      %7071 = vmatprep.subr.mxu0 %v6510
      %7072 = vmatpush1.msra.mxu0 %v6509
      %7073 = vmatprep.subr.mxu0 %v6512
      %7074 = vmatpush1.msra.mxu0 %v6511
      %7075 = vmatprep.subr.mxu0 %v6514
      %7076 = vmatpush1.msra.mxu0 %v6513
      %7077 = vmatprep.subr.mxu0 %v6516
      %7078 = vmatpush1.msra.mxu0 %v6515
      %7079 = vmatprep.subr.mxu0 %v6518
      %7080 = vmatpush1.msra.mxu0 %v6517
      %7081 = vmatprep.subr.mxu0 %v6520
      %7082 = vmatpush1.msra.mxu0 %v6519
      %7083 = vmatprep.subr.mxu0 %v6522
      %7084 = vmatpush1.msra.mxu0 %v6521
      %7085 = vmatprep.subr.mxu0 %v6524
      %7086 = vmatpush1.msra.mxu0 %v6523
      %7087 = vmatprep.subr.mxu0 %v6526
      %7088 = vmatpush1.msra.mxu0 %v6525
      %7089 = vmatprep.subr.mxu0 %v6528
      %7090 = vmatpush1.msra.mxu0 %v6527
      %7091 = vmatprep.subr.mxu0 %v6530
      %7092 = vmatpush1.msra.mxu0 %v6529
      %7093 = vmatprep.subr.mxu0 %v6532
      %7094 = vmatpush1.msra.mxu0 %v6531
      %7095 = vmatprep.subr.mxu0 %v6534
      %7096 = vmatpush1.msra.mxu0 %v6533
      %7097 = vmatprep.subr.mxu0 %v6536
      %7098 = vmatpush1.msra.mxu0 %v6535
      %7099 = vmatprep.subr.mxu0 %v6538
      %7100 = vmatpush1.msra.mxu0 %v6537
      %7101 = vmatprep.subr.mxu0 %v6540
      %7102 = vmatpush1.msra.mxu0 %v6539
      %7103 = vmatprep.subr.mxu0 %v6542
      %7104 = vmatpush1.msra.mxu0 %v6541
      %7105 = vmatprep.subr.mxu0 %v6544
      %7106 = vmatpush1.msra.mxu0 %v6543
      %7107 = vmatprep.subr.mxu0 %v6546
      %7108 = vmatpush1.msra.mxu0 %v6545
      %7109 = vmatprep.subr.mxu0 %v6548
      %7110 = vmatpush1.msra.mxu0 %v6547
      %7111 = vmatprep.subr.mxu0 %v6550
      %7112 = vmatpush1.msra.mxu0 %v6549
      %7113 = vmatprep.subr.mxu0 %v6552
      %7114 = vmatpush1.msra.mxu0 %v6551
      %7115 = vmatprep.mubr.f32.mxu0 %v6895
      %7116 = vmatmul.mubr.f32.gmra.mrb[0].mxu0 %v6355
      %v7117 = vpop.f32.mrb[0].mxu0
      %v7118 = vadd.f32 %v7047, %v7117
      %v7119 = vpop.f32.mrb[0].mxu0
      %v7120 = vadd.f32 %v7049, %v7119
      %7121 = vdwg.mxu0
      %7122 = vmatprep.subr.mxu0 %v6554
      %7123 = vmatpush1.msra.mxu0 %v6553
      %7124 = vmatprep.subr.mxu0 %v6556
      %7125 = vmatpush1.msra.mxu0 %v6555
      %7126 = vmatprep.subr.mxu0 %v6558
      %7127 = vmatpush1.msra.mxu0 %v6557
      %7128 = vmatprep.subr.mxu0 %v6560
      %7129 = vmatpush1.msra.mxu0 %v6559
      %7130 = vmatprep.subr.mxu0 %v6562
      %7131 = vmatpush1.msra.mxu0 %v6561
      %7132 = vmatprep.subr.mxu0 %v6564
      %7133 = vmatpush1.msra.mxu0 %v6563
      %7134 = vmatprep.subr.mxu0 %v6566
      %7135 = vmatpush1.msra.mxu0 %v6565
      %7136 = vmatprep.subr.mxu0 %v6568
      %7137 = vmatpush1.msra.mxu0 %v6567
      %7138 = vmatprep.subr.mxu0 %v6570
      %7139 = vmatpush1.msra.mxu0 %v6569
      %7140 = vmatprep.subr.mxu0 %v6572
      %7141 = vmatpush1.msra.mxu0 %v6571
      %7142 = vmatprep.subr.mxu0 %v6574
      %7143 = vmatpush1.msra.mxu0 %v6573
      %7144 = vmatprep.subr.mxu0 %v6576
      %7145 = vmatpush1.msra.mxu0 %v6575
      %7146 = vmatprep.subr.mxu0 %v6578
      %7147 = vmatpush1.msra.mxu0 %v6577
      %7148 = vmatprep.subr.mxu0 %v6580
      %7149 = vmatpush1.msra.mxu0 %v6579
      %7150 = vmatprep.subr.mxu0 %v6582
      %7151 = vmatpush1.msra.mxu0 %v6581
      %7152 = vmatprep.subr.mxu0 %v6584
      %7153 = vmatpush1.msra.mxu0 %v6583
      %7154 = vmatprep.subr.mxu0 %v6586
      %7155 = vmatpush1.msra.mxu0 %v6585
      %7156 = vmatprep.subr.mxu0 %v6588
      %7157 = vmatpush1.msra.mxu0 %v6587
      %7158 = vmatprep.subr.mxu0 %v6590
      %7159 = vmatpush1.msra.mxu0 %v6589
      %7160 = vmatprep.subr.mxu0 %v6592
      %7161 = vmatpush1.msra.mxu0 %v6591
      %7162 = vmatprep.subr.mxu0 %v6594
      %7163 = vmatpush1.msra.mxu0 %v6593
      %7164 = vmatprep.subr.mxu0 %v6596
      %7165 = vmatpush1.msra.mxu0 %v6595
      %7166 = vmatprep.subr.mxu0 %v6598
      %7167 = vmatpush1.msra.mxu0 %v6597
      %7168 = vmatprep.subr.mxu0 %v6600
      %7169 = vmatpush1.msra.mxu0 %v6599
      %7170 = vmatprep.subr.mxu0 %v6602
      %7171 = vmatpush1.msra.mxu0 %v6601
      %7172 = vmatprep.subr.mxu0 %v6604
      %7173 = vmatpush1.msra.mxu0 %v6603
      %7174 = vmatprep.subr.mxu0 %v6606
      %7175 = vmatpush1.msra.mxu0 %v6605
      %7176 = vmatprep.subr.mxu0 %v6608
      %7177 = vmatpush1.msra.mxu0 %v6607
      %7178 = vmatprep.subr.mxu0 %v6610
      %7179 = vmatpush1.msra.mxu0 %v6609
      %7180 = vmatprep.subr.mxu0 %v6612
      %7181 = vmatpush1.msra.mxu0 %v6611
      %7182 = vmatprep.subr.mxu0 %v6614
      %7183 = vmatpush1.msra.mxu0 %v6613
      %7184 = vmatprep.subr.mxu0 %v6616
      %7185 = vmatpush1.msra.mxu0 %v6615
      %7186 = vmatprep.mubr.f32.mxu0 %v6896
      %7187 = vmatmul.mubr.f32.gmra.mrb[0].mxu0 %v6356
      %v7188 = vpop.f32.mrb[0].mxu0
      %v7189 = vadd.f32 %v7118, %v7188
      %v7190 = vpop.f32.mrb[0].mxu0
      %v7191 = vadd.f32 %v7120, %v7190
      %7192 = vdwg.mxu0
      %7193 = vmatprep.subr.mxu0 %v6618
      %7194 = vmatpush1.msra.mxu0 %v6617
      %7195 = vmatprep.subr.mxu0 %v6620
      %7196 = vmatpush1.msra.mxu0 %v6619
      %7197 = vmatprep.subr.mxu0 %v6622
      %7198 = vmatpush1.msra.mxu0 %v6621
      %7199 = vmatprep.subr.mxu0 %v6624
      %7200 = vmatpush1.msra.mxu0 %v6623
      %7201 = vmatprep.subr.mxu0 %v6626
      %7202 = vmatpush1.msra.mxu0 %v6625
      %7203 = vmatprep.subr.mxu0 %v6628
      %7204 = vmatpush1.msra.mxu0 %v6627
      %7205 = vmatprep.subr.mxu0 %v6630
      %7206 = vmatpush1.msra.mxu0 %v6629
      %7207 = vmatprep.subr.mxu0 %v6632
      %7208 = vmatpush1.msra.mxu0 %v6631
      %7209 = vmatprep.subr.mxu0 %v6634
      %7210 = vmatpush1.msra.mxu0 %v6633
      %7211 = vmatprep.subr.mxu0 %v6636
      %7212 = vmatpush1.msra.mxu0 %v6635
      %7213 = vmatprep.subr.mxu0 %v6638
      %7214 = vmatpush1.msra.mxu0 %v6637
      %7215 = vmatprep.subr.mxu0 %v6640
      %7216 = vmatpush1.msra.mxu0 %v6639
      %7217 = vmatprep.subr.mxu0 %v6642
      %7218 = vmatpush1.msra.mxu0 %v6641
      %7219 = vmatprep.subr.mxu0 %v6644
      %7220 = vmatpush1.msra.mxu0 %v6643
      %7221 = vmatprep.subr.mxu0 %v6646
      %7222 = vmatpush1.msra.mxu0 %v6645
      %7223 = vmatprep.subr.mxu0 %v6648
      %7224 = vmatpush1.msra.mxu0 %v6647
      %7225 = vmatprep.subr.mxu0 %v6650
      %7226 = vmatpush1.msra.mxu0 %v6649
      %7227 = vmatprep.subr.mxu0 %v6652
      %7228 = vmatpush1.msra.mxu0 %v6651
      %7229 = vmatprep.subr.mxu0 %v6654
      %7230 = vmatpush1.msra.mxu0 %v6653
      %7231 = vmatprep.subr.mxu0 %v6656
      %7232 = vmatpush1.msra.mxu0 %v6655
      %7233 = vmatprep.subr.mxu0 %v6658
      %7234 = vmatpush1.msra.mxu0 %v6657
      %7235 = vmatprep.subr.mxu0 %v6660
      %7236 = vmatpush1.msra.mxu0 %v6659
      %7237 = vmatprep.subr.mxu0 %v6662
      %7238 = vmatpush1.msra.mxu0 %v6661
      %7239 = vmatprep.subr.mxu0 %v6664
      %7240 = vmatpush1.msra.mxu0 %v6663
      %7241 = vmatprep.subr.mxu0 %v6666
      %7242 = vmatpush1.msra.mxu0 %v6665
      %7243 = vmatprep.subr.mxu0 %v6668
      %7244 = vmatpush1.msra.mxu0 %v6667
      %7245 = vmatprep.subr.mxu0 %v6670
      %7246 = vmatpush1.msra.mxu0 %v6669
      %7247 = vmatprep.subr.mxu0 %v6672
      %7248 = vmatpush1.msra.mxu0 %v6671
      %7249 = vmatprep.subr.mxu0 %v6674
      %7250 = vmatpush1.msra.mxu0 %v6673
      %7251 = vmatprep.subr.mxu0 %v6676
      %7252 = vmatpush1.msra.mxu0 %v6675
      %7253 = vmatprep.subr.mxu0 %v6678
      %7254 = vmatpush1.msra.mxu0 %v6677
      %7255 = vmatprep.subr.mxu0 %v6680
      %7256 = vmatpush1.msra.mxu0 %v6679
      %7257 = vmatprep.mubr.f32.mxu0 %v6897
      %7258 = vmatmul.mubr.f32.gmra.mrb[0].mxu0 %v6357
      %v7259 = vpop.f32.mrb[0].mxu0
      %v7260 = vadd.f32 %v7189, %v7259
      %v7261 = vpop.f32.mrb[0].mxu0
      %v7262 = vadd.f32 %v7191, %v7261
      %7263 = vdwg.mxu0
      %7264 = vmatprep.subr.mxu0 %v6682
      %7265 = vmatpush1.msra.mxu0 %v6681
      %7266 = vmatprep.subr.mxu0 %v6684
      %7267 = vmatpush1.msra.mxu0 %v6683
      %7268 = vmatprep.subr.mxu0 %v6686
      %7269 = vmatpush1.msra.mxu0 %v6685
      %7270 = vmatprep.subr.mxu0 %v6688
      %7271 = vmatpush1.msra.mxu0 %v6687
      %7272 = vmatprep.subr.mxu0 %v6690
      %7273 = vmatpush1.msra.mxu0 %v6689
      %7274 = vmatprep.subr.mxu0 %v6692
      %7275 = vmatpush1.msra.mxu0 %v6691
      %7276 = vmatprep.subr.mxu0 %v6694
      %7277 = vmatpush1.msra.mxu0 %v6693
      %7278 = vmatprep.subr.mxu0 %v6696
      %7279 = vmatpush1.msra.mxu0 %v6695
      %7280 = vmatprep.subr.mxu0 %v6698
      %7281 = vmatpush1.msra.mxu0 %v6697
      %7282 = vmatprep.subr.mxu0 %v6700
      %7283 = vmatpush1.msra.mxu0 %v6699
      %7284 = vmatprep.subr.mxu0 %v6702
      %7285 = vmatpush1.msra.mxu0 %v6701
      %7286 = vmatprep.subr.mxu0 %v6704
      %7287 = vmatpush1.msra.mxu0 %v6703
      %7288 = vmatprep.subr.mxu0 %v6706
      %7289 = vmatpush1.msra.mxu0 %v6705
      %7290 = vmatprep.subr.mxu0 %v6708
      %7291 = vmatpush1.msra.mxu0 %v6707
      %7292 = vmatprep.subr.mxu0 %v6710
      %7293 = vmatpush1.msra.mxu0 %v6709
      %7294 = vmatprep.subr.mxu0 %v6712
      %7295 = vmatpush1.msra.mxu0 %v6711
      %7296 = vmatprep.subr.mxu0 %v6714
      %7297 = vmatpush1.msra.mxu0 %v6713
      %7298 = vmatprep.subr.mxu0 %v6716
      %7299 = vmatpush1.msra.mxu0 %v6715
      %7300 = vmatprep.subr.mxu0 %v6718
      %7301 = vmatpush1.msra.mxu0 %v6717
      %7302 = vmatprep.subr.mxu0 %v6720
      %7303 = vmatpush1.msra.mxu0 %v6719
      %7304 = vmatprep.subr.mxu0 %v6722
      %7305 = vmatpush1.msra.mxu0 %v6721
      %7306 = vmatprep.subr.mxu0 %v6724
      %7307 = vmatpush1.msra.mxu0 %v6723
      %7308 = vmatprep.subr.mxu0 %v6726
      %7309 = vmatpush1.msra.mxu0 %v6725
      %7310 = vmatprep.subr.mxu0 %v6728
      %7311 = vmatpush1.msra.mxu0 %v6727
      %7312 = vmatprep.subr.mxu0 %v6730
      %7313 = vmatpush1.msra.mxu0 %v6729
      %7314 = vmatprep.subr.mxu0 %v6732
      %7315 = vmatpush1.msra.mxu0 %v6731
      %7316 = vmatprep.subr.mxu0 %v6734
      %7317 = vmatpush1.msra.mxu0 %v6733
      %7318 = vmatprep.subr.mxu0 %v6736
      %7319 = vmatpush1.msra.mxu0 %v6735
      %7320 = vmatprep.subr.mxu0 %v6738
      %7321 = vmatpush1.msra.mxu0 %v6737
      %7322 = vmatprep.subr.mxu0 %v6740
      %7323 = vmatpush1.msra.mxu0 %v6739
      %7324 = vmatprep.subr.mxu0 %v6742
      %7325 = vmatpush1.msra.mxu0 %v6741
      %7326 = vmatprep.subr.mxu0 %v6744
      %7327 = vmatpush1.msra.mxu0 %v6743
      %7328 = vmatprep.mubr.f32.mxu0 %v6898
      %7329 = vmatmul.mubr.f32.gmra.mrb[0].mxu0 %v6358
      %v7330 = vpop.f32.mrb[0].mxu0
      %v7331 = vadd.f32 %v7260, %v7330
      %v7332 = vpop.f32.mrb[0].mxu0
      %v7333 = vadd.f32 %v7262, %v7332
      %7334 = vdwg.mxu0
      %7335 = vmatprep.subr.mxu0 %v6746
      %7336 = vmatpush1.msra.mxu0 %v6745
      %7337 = vmatprep.subr.mxu0 %v6748
      %7338 = vmatpush1.msra.mxu0 %v6747
      %7339 = vmatprep.subr.mxu0 %v6750
      %7340 = vmatpush1.msra.mxu0 %v6749
      %7341 = vmatprep.subr.mxu0 %v6752
      %7342 = vmatpush1.msra.mxu0 %v6751
      %7343 = vmatprep.subr.mxu0 %v6754
      %7344 = vmatpush1.msra.mxu0 %v6753
      %7345 = vmatprep.subr.mxu0 %v6756
      %7346 = vmatpush1.msra.mxu0 %v6755
      %7347 = vmatprep.subr.mxu0 %v6758
      %7348 = vmatpush1.msra.mxu0 %v6757
      %7349 = vmatprep.subr.mxu0 %v6760
      %7350 = vmatpush1.msra.mxu0 %v6759
      %7351 = vmatprep.subr.mxu0 %v6762
      %7352 = vmatpush1.msra.mxu0 %v6761
      %7353 = vmatprep.subr.mxu0 %v6764
      %7354 = vmatpush1.msra.mxu0 %v6763
      %7355 = vmatprep.subr.mxu0 %v6766
      %7356 = vmatpush1.msra.mxu0 %v6765
      %7357 = vmatprep.subr.mxu0 %v6768
      %7358 = vmatpush1.msra.mxu0 %v6767
      %7359 = vmatprep.subr.mxu0 %v6770
      %7360 = vmatpush1.msra.mxu0 %v6769
      %7361 = vmatprep.subr.mxu0 %v6772
      %7362 = vmatpush1.msra.mxu0 %v6771
      %7363 = vmatprep.subr.mxu0 %v6774
      %7364 = vmatpush1.msra.mxu0 %v6773
      %7365 = vmatprep.subr.mxu0 %v6776
      %7366 = vmatpush1.msra.mxu0 %v6775
      %7367 = vmatprep.subr.mxu0 %v6778
      %7368 = vmatpush1.msra.mxu0 %v6777
      %7369 = vmatprep.subr.mxu0 %v6780
      %7370 = vmatpush1.msra.mxu0 %v6779
      %7371 = vmatprep.subr.mxu0 %v6782
      %7372 = vmatpush1.msra.mxu0 %v6781
      %7373 = vmatprep.subr.mxu0 %v6784
      %7374 = vmatpush1.msra.mxu0 %v6783
      %7375 = vmatprep.subr.mxu0 %v6786
      %7376 = vmatpush1.msra.mxu0 %v6785
      %7377 = vmatprep.subr.mxu0 %v6788
      %7378 = vmatpush1.msra.mxu0 %v6787
      %7379 = vmatprep.subr.mxu0 %v6790
      %7380 = vmatpush1.msra.mxu0 %v6789
      %7381 = vmatprep.subr.mxu0 %v6792
      %7382 = vmatpush1.msra.mxu0 %v6791
      %7383 = vmatprep.subr.mxu0 %v6794
      %7384 = vmatpush1.msra.mxu0 %v6793
      %7385 = vmatprep.subr.mxu0 %v6796
      %7386 = vmatpush1.msra.mxu0 %v6795
      %7387 = vmatprep.subr.mxu0 %v6798
      %7388 = vmatpush1.msra.mxu0 %v6797
      %7389 = vmatprep.subr.mxu0 %v6800
      %7390 = vmatpush1.msra.mxu0 %v6799
      %7391 = vmatprep.subr.mxu0 %v6802
      %7392 = vmatpush1.msra.mxu0 %v6801
      %7393 = vmatprep.subr.mxu0 %v6804
      %7394 = vmatpush1.msra.mxu0 %v6803
      %7395 = vmatprep.subr.mxu0 %v6806
      %7396 = vmatpush1.msra.mxu0 %v6805
      %7397 = vmatprep.subr.mxu0 %v6808
      %7398 = vmatpush1.msra.mxu0 %v6807
      %7399 = vmatprep.mubr.f32.mxu0 %v6899
      %7400 = vmatmul.mubr.f32.gmra.mrb[0].mxu0 %v6359
      %v7401 = vpop.f32.mrb[0].mxu0
      %v7402 = vadd.f32 %v7331, %v7401
      %v7403 = vpop.f32.mrb[0].mxu0
      %v7404 = vadd.f32 %v7333, %v7403
      %7405 = vdwg.mxu0
      %7406 = vmatprep.subr.mxu0 %v6810
      %7407 = vmatpush1.msra.mxu0 %v6809
      %7408 = vmatprep.subr.mxu0 %v6812
      %7409 = vmatpush1.msra.mxu0 %v6811
      %7410 = vmatprep.subr.mxu0 %v6814
      %7411 = vmatpush1.msra.mxu0 %v6813
      %7412 = vmatprep.subr.mxu0 %v6816
      %7413 = vmatpush1.msra.mxu0 %v6815
      %7414 = vmatprep.subr.mxu0 %v6818
      %7415 = vmatpush1.msra.mxu0 %v6817
      %7416 = vmatprep.subr.mxu0 %v6820
      %7417 = vmatpush1.msra.mxu0 %v6819
      %7418 = vmatprep.subr.mxu0 %v6822
      %7419 = vmatpush1.msra.mxu0 %v6821
      %7420 = vmatprep.subr.mxu0 %v6824
      %7421 = vmatpush1.msra.mxu0 %v6823
      %7422 = vmatprep.subr.mxu0 %v6826
      %7423 = vmatpush1.msra.mxu0 %v6825
      %7424 = vmatprep.subr.mxu0 %v6828
      %7425 = vmatpush1.msra.mxu0 %v6827
      %7426 = vmatprep.subr.mxu0 %v6830
      %7427 = vmatpush1.msra.mxu0 %v6829
      %7428 = vmatprep.subr.mxu0 %v6832
      %7429 = vmatpush1.msra.mxu0 %v6831
      %7430 = vmatprep.subr.mxu0 %v6834
      %7431 = vmatpush1.msra.mxu0 %v6833
      %7432 = vmatprep.subr.mxu0 %v6836
      %7433 = vmatpush1.msra.mxu0 %v6835
      %7434 = vmatprep.subr.mxu0 %v6838
      %7435 = vmatpush1.msra.mxu0 %v6837
      %7436 = vmatprep.subr.mxu0 %v6840
      %7437 = vmatpush1.msra.mxu0 %v6839
      %7438 = vmatprep.subr.mxu0 %v6842
      %7439 = vmatpush1.msra.mxu0 %v6841
      %7440 = vmatprep.subr.mxu0 %v6844
      %7441 = vmatpush1.msra.mxu0 %v6843
      %7442 = vmatprep.subr.mxu0 %v6846
      %7443 = vmatpush1.msra.mxu0 %v6845
      %7444 = vmatprep.subr.mxu0 %v6848
      %7445 = vmatpush1.msra.mxu0 %v6847
      %7446 = vmatprep.subr.mxu0 %v6850
      %7447 = vmatpush1.msra.mxu0 %v6849
      %7448 = vmatprep.subr.mxu0 %v6852
      %7449 = vmatpush1.msra.mxu0 %v6851
      %7450 = vmatprep.subr.mxu0 %v6854
      %7451 = vmatpush1.msra.mxu0 %v6853
      %7452 = vmatprep.subr.mxu0 %v6856
      %7453 = vmatpush1.msra.mxu0 %v6855
      %7454 = vmatprep.subr.mxu0 %v6858
      %7455 = vmatpush1.msra.mxu0 %v6857
      %7456 = vmatprep.subr.mxu0 %v6860
      %7457 = vmatpush1.msra.mxu0 %v6859
      %7458 = vmatprep.subr.mxu0 %v6862
      %7459 = vmatpush1.msra.mxu0 %v6861
      %7460 = vmatprep.subr.mxu0 %v6864
      %7461 = vmatpush1.msra.mxu0 %v6863
      %7462 = vmatprep.subr.mxu0 %v6866
      %7463 = vmatpush1.msra.mxu0 %v6865
      %7464 = vmatprep.subr.mxu0 %v6868
      %7465 = vmatpush1.msra.mxu0 %v6867
      %7466 = vmatprep.subr.mxu0 %v6870
      %7467 = vmatpush1.msra.mxu0 %v6869
      %7468 = vmatprep.subr.mxu0 %v6872
      %7469 = vmatpush1.msra.mxu0 %v6871
      %7470 = vmatprep.mubr.f32.mxu0 %v6900
      %7471 = vmatmul.mubr.f32.gmra.mrb[0].mxu0 %v6360
      %v7472 = vpop.f32.mrb[0].mxu0
      %v7473 = vadd.f32 %v7402, %v7472
      %v7474 = vpop.f32.mrb[0].mxu0
      %v7475 = vadd.f32 %v7404, %v7474
      %7476 = vdwg.mxu0
      %v7477 = vmax.f32 %v7473, 0.0
      %v7478 = vmax.f32 %v7475, 0.0
      %v7479 = vld [vmem:[%s12] sm:$0x1]
      %v7480 = vld [vmem:[%s11] sm:$0xff]
      %v7481 = vld [vmem:[%s11 + $0x8] sm:$0xff]
      %v7482 = vld [vmem:[%s11 + $0x10] sm:$0xff]
      %v7483 = vld [vmem:[%s11 + $0x18] sm:$0xff]
      %v7484 = vld [vmem:[%s11 + $0x20] sm:$0xff]
      %v7485 = vld [vmem:[%s11 + $0x28] sm:$0xff]
      %v7486 = vld [vmem:[%s11 + $0x30] sm:$0xff]
      %v7487 = vld [vmem:[%s11 + $0x38] sm:$0xff]
      %v7488 = vld [vmem:[%s11 + $0x40] sm:$0xff]
      %v7489 = vld [vmem:[%s11 + $0x48] sm:$0xff]
      %v7490 = vld [vmem:[%s11 + $0x50] sm:$0xff]
      %v7491 = vld [vmem:[%s11 + $0x58] sm:$0xff]
      %v7492 = vld [vmem:[%s11 + $0x60] sm:$0xff]
      %v7493 = vld [vmem:[%s11 + $0x68] sm:$0xff]
      %v7494 = vld [vmem:[%s11 + $0x70] sm:$0xff]
      %v7495 = vld [vmem:[%s11 + $0x78] sm:$0xff]
      %v7496 = vld [vmem:[%s11 + $0x80] sm:$0xff]
      %v7497 = vld [vmem:[%s11 + $0x88] sm:$0xff]
      %v7498 = vld [vmem:[%s11 + $0x90] sm:$0xff]
      %v7499 = vld [vmem:[%s11 + $0x98] sm:$0xff]
      %v7500 = vld [vmem:[%s11 + $0xa0] sm:$0xff]
      %v7501 = vld [vmem:[%s11 + $0xa8] sm:$0xff]
      %v7502 = vld [vmem:[%s11 + $0xb0] sm:$0xff]
      %v7503 = vld [vmem:[%s11 + $0xb8] sm:$0xff]
      %v7504 = vld [vmem:[%s11 + $0xc0] sm:$0xff]
      %v7505 = vld [vmem:[%s11 + $0xc8] sm:$0xff]
      %v7506 = vld [vmem:[%s11 + $0xd0] sm:$0xff]
      %v7507 = vld [vmem:[%s11 + $0xd8] sm:$0xff]
      %v7508 = vld [vmem:[%s11 + $0xe0] sm:$0xff]
      %v7509 = vld [vmem:[%s11 + $0xe8] sm:$0xff]
      %v7510 = vld [vmem:[%s11 + $0xf0] sm:$0xff]
      %v7511 = vld [vmem:[%s11 + $0xf8] sm:$0xff]
      %7512 = vmatprep.subr.mxu0 0.0
      %7513 = vmatpush1.msra.mxu0 %v7480
      %7514 = vmatprep.subr.mxu0 0.0
      %7515 = vmatpush1.msra.mxu0 %v7481
      %7516 = vmatprep.subr.mxu0 0.0
      %7517 = vmatpush1.msra.mxu0 %v7482
      %7518 = vmatprep.subr.mxu0 0.0
      %7519 = vmatpush1.msra.mxu0 %v7483
      %7520 = vmatprep.subr.mxu0 0.0
      %7521 = vmatpush1.msra.mxu0 %v7484
      %7522 = vmatprep.subr.mxu0 0.0
      %7523 = vmatpush1.msra.mxu0 %v7485
      %7524 = vmatprep.subr.mxu0 0.0
      %7525 = vmatpush1.msra.mxu0 %v7486
      %7526 = vmatprep.subr.mxu0 0.0
      %7527 = vmatpush1.msra.mxu0 %v7487
      %7528 = vmatprep.subr.mxu0 0.0
      %7529 = vmatpush1.msra.mxu0 %v7488
      %7530 = vmatprep.subr.mxu0 0.0
      %7531 = vmatpush1.msra.mxu0 %v7489
      %7532 = vmatprep.subr.mxu0 0.0
      %7533 = vmatpush1.msra.mxu0 %v7490
      %7534 = vmatprep.subr.mxu0 0.0
      %7535 = vmatpush1.msra.mxu0 %v7491
      %7536 = vmatprep.subr.mxu0 0.0
      %7537 = vmatpush1.msra.mxu0 %v7492
      %7538 = vmatprep.subr.mxu0 0.0
      %7539 = vmatpush1.msra.mxu0 %v7493
      %7540 = vmatprep.subr.mxu0 0.0
      %7541 = vmatpush1.msra.mxu0 %v7494
      %7542 = vmatprep.subr.mxu0 0.0
      %7543 = vmatpush1.msra.mxu0 %v7495
      %7544 = vmatprep.subr.mxu0 0.0
      %7545 = vmatpush1.msra.mxu0 %v7496
      %7546 = vmatprep.subr.mxu0 0.0
      %7547 = vmatpush1.msra.mxu0 %v7497
      %7548 = vmatprep.subr.mxu0 0.0
      %7549 = vmatpush1.msra.mxu0 %v7498
      %7550 = vmatprep.subr.mxu0 0.0
      %7551 = vmatpush1.msra.mxu0 %v7499
      %7552 = vmatprep.subr.mxu0 0.0
      %7553 = vmatpush1.msra.mxu0 %v7500
      %7554 = vmatprep.subr.mxu0 0.0
      %7555 = vmatpush1.msra.mxu0 %v7501
      %7556 = vmatprep.subr.mxu0 0.0
      %7557 = vmatpush1.msra.mxu0 %v7502
      %7558 = vmatprep.subr.mxu0 0.0
      %7559 = vmatpush1.msra.mxu0 %v7503
      %7560 = vmatprep.subr.mxu0 0.0
      %7561 = vmatpush1.msra.mxu0 %v7504
      %7562 = vmatprep.subr.mxu0 0.0
      %7563 = vmatpush1.msra.mxu0 %v7505
      %7564 = vmatprep.subr.mxu0 0.0
      %7565 = vmatpush1.msra.mxu0 %v7506
      %7566 = vmatprep.subr.mxu0 0.0
      %7567 = vmatpush1.msra.mxu0 %v7507
      %7568 = vmatprep.subr.mxu0 0.0
      %7569 = vmatpush1.msra.mxu0 %v7508
      %7570 = vmatprep.subr.mxu0 0.0
      %7571 = vmatpush1.msra.mxu0 %v7509
      %7572 = vmatprep.subr.mxu0 0.0
      %7573 = vmatpush1.msra.mxu0 %v7510
      %7574 = vmatprep.subr.mxu0 0.0
      %7575 = vmatpush1.msra.mxu0 %v7511
      %7576 = vmatprep.mubr.f32.mxu0 %v7478
      %7577 = vmatmul.mubr.f32.gmra.mrb[0].mxu0 %v7477
      %v7578 = vpop.f32.mrb[0].mxu0
      %v7579 = vadd.f32 0.0, %v7578
      %v7580 = vpop.f32.mrb[0].mxu0
      %7581 = vdwg.mxu0
      %v7582 = vadd.f32 %v7479, %v7579
      %s7583 = scalar_lea.vmem %s11, 256
      %v7584 = vld [vmem:[%s7583] sm:$0xff]
      %v7585 = vld [vmem:[%s7583 + $0x8] sm:$0xff]
      %v7586 = vld [vmem:[%s7583 + $0x10] sm:$0xff]
      %v7587 = vld [vmem:[%s7583 + $0x18] sm:$0xff]
      %v7588 = vld [vmem:[%s7583 + $0x20] sm:$0xff]
      %v7589 = vld [vmem:[%s7583 + $0x28] sm:$0xff]
      %v7590 = vld [vmem:[%s7583 + $0x30] sm:$0xff]
      %v7591 = vld [vmem:[%s7583 + $0x38] sm:$0xff]
      %v7592 = vld [vmem:[%s7583 + $0x40] sm:$0xff]
      %v7593 = vld [vmem:[%s7583 + $0x48] sm:$0xff]
      %v7594 = vld [vmem:[%s7583 + $0x50] sm:$0xff]
      %v7595 = vld [vmem:[%s7583 + $0x58] sm:$0xff]
      %v7596 = vld [vmem:[%s7583 + $0x60] sm:$0xff]
      %v7597 = vld [vmem:[%s7583 + $0x68] sm:$0xff]
      %v7598 = vld [vmem:[%s7583 + $0x70] sm:$0xff]
      %v7599 = vld [vmem:[%s7583 + $0x78] sm:$0xff]
      %v7600 = vld [vmem:[%s7583 + $0x80] sm:$0xff]
      %v7601 = vld [vmem:[%s7583 + $0x88] sm:$0xff]
      %v7602 = vld [vmem:[%s7583 + $0x90] sm:$0xff]
      %v7603 = vld [vmem:[%s7583 + $0x98] sm:$0xff]
      %v7604 = vld [vmem:[%s7583 + $0xa0] sm:$0xff]
      %v7605 = vld [vmem:[%s7583 + $0xa8] sm:$0xff]
      %v7606 = vld [vmem:[%s7583 + $0xb0] sm:$0xff]
      %v7607 = vld [vmem:[%s7583 + $0xb8] sm:$0xff]
      %v7608 = vld [vmem:[%s7583 + $0xc0] sm:$0xff]
      %v7609 = vld [vmem:[%s7583 + $0xc8] sm:$0xff]
      %v7610 = vld [vmem:[%s7583 + $0xd0] sm:$0xff]
      %v7611 = vld [vmem:[%s7583 + $0xd8] sm:$0xff]
      %v7612 = vld [vmem:[%s7583 + $0xe0] sm:$0xff]
      %v7613 = vld [vmem:[%s7583 + $0xe8] sm:$0xff]
      %v7614 = vld [vmem:[%s7583 + $0xf0] sm:$0xff]
      %v7615 = vld [vmem:[%s7583 + $0xf8] sm:$0xff]
      %v7618 = vrot.slane %v7477, 1
      %v7619 = vrot.slane %v7478, 1
      %7622 = vmatprep.subr.mxu0 0.0
      %7623 = vmatpush1.msra.mxu0 %v7584
      %7624 = vmatprep.subr.mxu0 0.0
      %7625 = vmatpush1.msra.mxu0 %v7585
      %7626 = vmatprep.subr.mxu0 0.0
      %7627 = vmatpush1.msra.mxu0 %v7586
      %7628 = vmatprep.subr.mxu0 0.0
      %7629 = vmatpush1.msra.mxu0 %v7587
      %7630 = vmatprep.subr.mxu0 0.0
      %7631 = vmatpush1.msra.mxu0 %v7588
      %7632 = vmatprep.subr.mxu0 0.0
      %7633 = vmatpush1.msra.mxu0 %v7589
      %7634 = vmatprep.subr.mxu0 0.0
      %7635 = vmatpush1.msra.mxu0 %v7590
      %7636 = vmatprep.subr.mxu0 0.0
      %7637 = vmatpush1.msra.mxu0 %v7591
      %7638 = vmatprep.subr.mxu0 0.0
      %7639 = vmatpush1.msra.mxu0 %v7592
      %7640 = vmatprep.subr.mxu0 0.0
      %7641 = vmatpush1.msra.mxu0 %v7593
      %7642 = vmatprep.subr.mxu0 0.0
      %7643 = vmatpush1.msra.mxu0 %v7594
      %7644 = vmatprep.subr.mxu0 0.0
      %7645 = vmatpush1.msra.mxu0 %v7595
      %7646 = vmatprep.subr.mxu0 0.0
      %7647 = vmatpush1.msra.mxu0 %v7596
      %7648 = vmatprep.subr.mxu0 0.0
      %7649 = vmatpush1.msra.mxu0 %v7597
      %7650 = vmatprep.subr.mxu0 0.0
      %7651 = vmatpush1.msra.mxu0 %v7598
      %7652 = vmatprep.subr.mxu0 0.0
      %7653 = vmatpush1.msra.mxu0 %v7599
      %7654 = vmatprep.subr.mxu0 0.0
      %7655 = vmatpush1.msra.mxu0 %v7600
      %7656 = vmatprep.subr.mxu0 0.0
      %7657 = vmatpush1.msra.mxu0 %v7601
      %7658 = vmatprep.subr.mxu0 0.0
      %7659 = vmatpush1.msra.mxu0 %v7602
      %7660 = vmatprep.subr.mxu0 0.0
      %7661 = vmatpush1.msra.mxu0 %v7603
      %7662 = vmatprep.subr.mxu0 0.0
      %7663 = vmatpush1.msra.mxu0 %v7604
      %7664 = vmatprep.subr.mxu0 0.0
      %7665 = vmatpush1.msra.mxu0 %v7605
      %7666 = vmatprep.subr.mxu0 0.0
      %7667 = vmatpush1.msra.mxu0 %v7606
      %7668 = vmatprep.subr.mxu0 0.0
      %7669 = vmatpush1.msra.mxu0 %v7607
      %7670 = vmatprep.subr.mxu0 0.0
      %7671 = vmatpush1.msra.mxu0 %v7608
      %7672 = vmatprep.subr.mxu0 0.0
      %7673 = vmatpush1.msra.mxu0 %v7609
      %7674 = vmatprep.subr.mxu0 0.0
      %7675 = vmatpush1.msra.mxu0 %v7610
      %7676 = vmatprep.subr.mxu0 0.0
      %7677 = vmatpush1.msra.mxu0 %v7611
      %7678 = vmatprep.subr.mxu0 0.0
      %7679 = vmatpush1.msra.mxu0 %v7612
      %7680 = vmatprep.subr.mxu0 0.0
      %7681 = vmatpush1.msra.mxu0 %v7613
      %7682 = vmatprep.subr.mxu0 0.0
      %7683 = vmatpush1.msra.mxu0 %v7614
      %7684 = vmatprep.subr.mxu0 0.0
      %7685 = vmatpush1.msra.mxu0 %v7615
      %7686 = vmatprep.mubr.f32.mxu0 %v7619
      %7687 = vmatmul.mubr.f32.gmra.mrb[0].mxu0 %v7618
      %v7688 = vpop.f32.mrb[0].mxu0
      %v7689 = vadd.f32 0.0, %v7688
      %v7690 = vpop.f32.mrb[0].mxu0
      %7691 = vdwg.mxu0
      %v7692 = vadd.f32 %v7582, %v7689
      %s7693 = scalar_lea.vmem %s11, 512
      %v7694 = vld [vmem:[%s7693] sm:$0xff]
      %v7695 = vld [vmem:[%s7693 + $0x8] sm:$0xff]
      %v7696 = vld [vmem:[%s7693 + $0x10] sm:$0xff]
      %v7697 = vld [vmem:[%s7693 + $0x18] sm:$0xff]
      %v7698 = vld [vmem:[%s7693 + $0x20] sm:$0xff]
      %v7699 = vld [vmem:[%s7693 + $0x28] sm:$0xff]
      %v7700 = vld [vmem:[%s7693 + $0x30] sm:$0xff]
      %v7701 = vld [vmem:[%s7693 + $0x38] sm:$0xff]
      %v7702 = vld [vmem:[%s7693 + $0x40] sm:$0xff]
      %v7703 = vld [vmem:[%s7693 + $0x48] sm:$0xff]
      %v7704 = vld [vmem:[%s7693 + $0x50] sm:$0xff]
      %v7705 = vld [vmem:[%s7693 + $0x58] sm:$0xff]
      %v7706 = vld [vmem:[%s7693 + $0x60] sm:$0xff]
      %v7707 = vld [vmem:[%s7693 + $0x68] sm:$0xff]
      %v7708 = vld [vmem:[%s7693 + $0x70] sm:$0xff]
      %v7709 = vld [vmem:[%s7693 + $0x78] sm:$0xff]
      %v7710 = vld [vmem:[%s7693 + $0x80] sm:$0xff]
      %v7711 = vld [vmem:[%s7693 + $0x88] sm:$0xff]
      %v7712 = vld [vmem:[%s7693 + $0x90] sm:$0xff]
      %v7713 = vld [vmem:[%s7693 + $0x98] sm:$0xff]
      %v7714 = vld [vmem:[%s7693 + $0xa0] sm:$0xff]
      %v7715 = vld [vmem:[%s7693 + $0xa8] sm:$0xff]
      %v7716 = vld [vmem:[%s7693 + $0xb0] sm:$0xff]
      %v7717 = vld [vmem:[%s7693 + $0xb8] sm:$0xff]
      %v7718 = vld [vmem:[%s7693 + $0xc0] sm:$0xff]
      %v7719 = vld [vmem:[%s7693 + $0xc8] sm:$0xff]
      %v7720 = vld [vmem:[%s7693 + $0xd0] sm:$0xff]
      %v7721 = vld [vmem:[%s7693 + $0xd8] sm:$0xff]
      %v7722 = vld [vmem:[%s7693 + $0xe0] sm:$0xff]
      %v7723 = vld [vmem:[%s7693 + $0xe8] sm:$0xff]
      %v7724 = vld [vmem:[%s7693 + $0xf0] sm:$0xff]
      %v7725 = vld [vmem:[%s7693 + $0xf8] sm:$0xff]
      %v7726 = vrot.slane %v7477, 2
      %v7727 = vrot.slane %v7478, 2
      %7730 = vmatprep.subr.mxu0 0.0
      %7731 = vmatpush1.msra.mxu0 %v7694
      %7732 = vmatprep.subr.mxu0 0.0
      %7733 = vmatpush1.msra.mxu0 %v7695
      %7734 = vmatprep.subr.mxu0 0.0
      %7735 = vmatpush1.msra.mxu0 %v7696
      %7736 = vmatprep.subr.mxu0 0.0
      %7737 = vmatpush1.msra.mxu0 %v7697
      %7738 = vmatprep.subr.mxu0 0.0
      %7739 = vmatpush1.msra.mxu0 %v7698
      %7740 = vmatprep.subr.mxu0 0.0
      %7741 = vmatpush1.msra.mxu0 %v7699
      %7742 = vmatprep.subr.mxu0 0.0
      %7743 = vmatpush1.msra.mxu0 %v7700
      %7744 = vmatprep.subr.mxu0 0.0
      %7745 = vmatpush1.msra.mxu0 %v7701
      %7746 = vmatprep.subr.mxu0 0.0
      %7747 = vmatpush1.msra.mxu0 %v7702
      %7748 = vmatprep.subr.mxu0 0.0
      %7749 = vmatpush1.msra.mxu0 %v7703
      %7750 = vmatprep.subr.mxu0 0.0
      %7751 = vmatpush1.msra.mxu0 %v7704
      %7752 = vmatprep.subr.mxu0 0.0
      %7753 = vmatpush1.msra.mxu0 %v7705
      %7754 = vmatprep.subr.mxu0 0.0
      %7755 = vmatpush1.msra.mxu0 %v7706
      %7756 = vmatprep.subr.mxu0 0.0
      %7757 = vmatpush1.msra.mxu0 %v7707
      %7758 = vmatprep.subr.mxu0 0.0
      %7759 = vmatpush1.msra.mxu0 %v7708
      %7760 = vmatprep.subr.mxu0 0.0
      %7761 = vmatpush1.msra.mxu0 %v7709
      %7762 = vmatprep.subr.mxu0 0.0
      %7763 = vmatpush1.msra.mxu0 %v7710
      %7764 = vmatprep.subr.mxu0 0.0
      %7765 = vmatpush1.msra.mxu0 %v7711
      %7766 = vmatprep.subr.mxu0 0.0
      %7767 = vmatpush1.msra.mxu0 %v7712
      %7768 = vmatprep.subr.mxu0 0.0
      %7769 = vmatpush1.msra.mxu0 %v7713
      %7770 = vmatprep.subr.mxu0 0.0
      %7771 = vmatpush1.msra.mxu0 %v7714
      %7772 = vmatprep.subr.mxu0 0.0
      %7773 = vmatpush1.msra.mxu0 %v7715
      %7774 = vmatprep.subr.mxu0 0.0
      %7775 = vmatpush1.msra.mxu0 %v7716
      %7776 = vmatprep.subr.mxu0 0.0
      %7777 = vmatpush1.msra.mxu0 %v7717
      %7778 = vmatprep.subr.mxu0 0.0
      %7779 = vmatpush1.msra.mxu0 %v7718
      %7780 = vmatprep.subr.mxu0 0.0
      %7781 = vmatpush1.msra.mxu0 %v7719
      %7782 = vmatprep.subr.mxu0 0.0
      %7783 = vmatpush1.msra.mxu0 %v7720
      %7784 = vmatprep.subr.mxu0 0.0
      %7785 = vmatpush1.msra.mxu0 %v7721
      %7786 = vmatprep.subr.mxu0 0.0
      %7787 = vmatpush1.msra.mxu0 %v7722
      %7788 = vmatprep.subr.mxu0 0.0
      %7789 = vmatpush1.msra.mxu0 %v7723
      %7790 = vmatprep.subr.mxu0 0.0
      %7791 = vmatpush1.msra.mxu0 %v7724
      %7792 = vmatprep.subr.mxu0 0.0
      %7793 = vmatpush1.msra.mxu0 %v7725
      %7794 = vmatprep.mubr.f32.mxu0 %v7727
      %7795 = vmatmul.mubr.f32.gmra.mrb[0].mxu0 %v7726
      %v7796 = vpop.f32.mrb[0].mxu0
      %v7797 = vadd.f32 0.0, %v7796
      %v7798 = vpop.f32.mrb[0].mxu0
      %7799 = vdwg.mxu0
      %v7800 = vadd.f32 %v7692, %v7797
      %s7801 = scalar_lea.vmem %s11, 768
      %v7802 = vld [vmem:[%s7801] sm:$0xff]
      %v7803 = vld [vmem:[%s7801 + $0x8] sm:$0xff]
      %v7804 = vld [vmem:[%s7801 + $0x10] sm:$0xff]
      %v7805 = vld [vmem:[%s7801 + $0x18] sm:$0xff]
      %v7806 = vld [vmem:[%s7801 + $0x20] sm:$0xff]
      %v7807 = vld [vmem:[%s7801 + $0x28] sm:$0xff]
      %v7808 = vld [vmem:[%s7801 + $0x30] sm:$0xff]
      %v7809 = vld [vmem:[%s7801 + $0x38] sm:$0xff]
      %v7810 = vld [vmem:[%s7801 + $0x40] sm:$0xff]
      %v7811 = vld [vmem:[%s7801 + $0x48] sm:$0xff]
      %v7812 = vld [vmem:[%s7801 + $0x50] sm:$0xff]
      %v7813 = vld [vmem:[%s7801 + $0x58] sm:$0xff]
      %v7814 = vld [vmem:[%s7801 + $0x60] sm:$0xff]
      %v7815 = vld [vmem:[%s7801 + $0x68] sm:$0xff]
      %v7816 = vld [vmem:[%s7801 + $0x70] sm:$0xff]
      %v7817 = vld [vmem:[%s7801 + $0x78] sm:$0xff]
      %v7818 = vld [vmem:[%s7801 + $0x80] sm:$0xff]
      %v7819 = vld [vmem:[%s7801 + $0x88] sm:$0xff]
      %v7820 = vld [vmem:[%s7801 + $0x90] sm:$0xff]
      %v7821 = vld [vmem:[%s7801 + $0x98] sm:$0xff]
      %v7822 = vld [vmem:[%s7801 + $0xa0] sm:$0xff]
      %v7823 = vld [vmem:[%s7801 + $0xa8] sm:$0xff]
      %v7824 = vld [vmem:[%s7801 + $0xb0] sm:$0xff]
      %v7825 = vld [vmem:[%s7801 + $0xb8] sm:$0xff]
      %v7826 = vld [vmem:[%s7801 + $0xc0] sm:$0xff]
      %v7827 = vld [vmem:[%s7801 + $0xc8] sm:$0xff]
      %v7828 = vld [vmem:[%s7801 + $0xd0] sm:$0xff]
      %v7829 = vld [vmem:[%s7801 + $0xd8] sm:$0xff]
      %v7830 = vld [vmem:[%s7801 + $0xe0] sm:$0xff]
      %v7831 = vld [vmem:[%s7801 + $0xe8] sm:$0xff]
      %v7832 = vld [vmem:[%s7801 + $0xf0] sm:$0xff]
      %v7833 = vld [vmem:[%s7801 + $0xf8] sm:$0xff]
      %v7834 = vrot.slane %v7477, 3
      %v7835 = vrot.slane %v7478, 3
      %7838 = vmatprep.subr.mxu0 0.0
      %7839 = vmatpush1.msra.mxu0 %v7802
      %7840 = vmatprep.subr.mxu0 0.0
      %7841 = vmatpush1.msra.mxu0 %v7803
      %7842 = vmatprep.subr.mxu0 0.0
      %7843 = vmatpush1.msra.mxu0 %v7804
      %7844 = vmatprep.subr.mxu0 0.0
      %7845 = vmatpush1.msra.mxu0 %v7805
      %7846 = vmatprep.subr.mxu0 0.0
      %7847 = vmatpush1.msra.mxu0 %v7806
      %7848 = vmatprep.subr.mxu0 0.0
      %7849 = vmatpush1.msra.mxu0 %v7807
      %7850 = vmatprep.subr.mxu0 0.0
      %7851 = vmatpush1.msra.mxu0 %v7808
      %7852 = vmatprep.subr.mxu0 0.0
      %7853 = vmatpush1.msra.mxu0 %v7809
      %7854 = vmatprep.subr.mxu0 0.0
      %7855 = vmatpush1.msra.mxu0 %v7810
      %7856 = vmatprep.subr.mxu0 0.0
      %7857 = vmatpush1.msra.mxu0 %v7811
      %7858 = vmatprep.subr.mxu0 0.0
      %7859 = vmatpush1.msra.mxu0 %v7812
      %7860 = vmatprep.subr.mxu0 0.0
      %7861 = vmatpush1.msra.mxu0 %v7813
      %7862 = vmatprep.subr.mxu0 0.0
      %7863 = vmatpush1.msra.mxu0 %v7814
      %7864 = vmatprep.subr.mxu0 0.0
      %7865 = vmatpush1.msra.mxu0 %v7815
      %7866 = vmatprep.subr.mxu0 0.0
      %7867 = vmatpush1.msra.mxu0 %v7816
      %7868 = vmatprep.subr.mxu0 0.0
      %7869 = vmatpush1.msra.mxu0 %v7817
      %7870 = vmatprep.subr.mxu0 0.0
      %7871 = vmatpush1.msra.mxu0 %v7818
      %7872 = vmatprep.subr.mxu0 0.0
      %7873 = vmatpush1.msra.mxu0 %v7819
      %7874 = vmatprep.subr.mxu0 0.0
      %7875 = vmatpush1.msra.mxu0 %v7820
      %7876 = vmatprep.subr.mxu0 0.0
      %7877 = vmatpush1.msra.mxu0 %v7821
      %7878 = vmatprep.subr.mxu0 0.0
      %7879 = vmatpush1.msra.mxu0 %v7822
      %7880 = vmatprep.subr.mxu0 0.0
      %7881 = vmatpush1.msra.mxu0 %v7823
      %7882 = vmatprep.subr.mxu0 0.0
      %7883 = vmatpush1.msra.mxu0 %v7824
      %7884 = vmatprep.subr.mxu0 0.0
      %7885 = vmatpush1.msra.mxu0 %v7825
      %7886 = vmatprep.subr.mxu0 0.0
      %7887 = vmatpush1.msra.mxu0 %v7826
      %7888 = vmatprep.subr.mxu0 0.0
      %7889 = vmatpush1.msra.mxu0 %v7827
      %7890 = vmatprep.subr.mxu0 0.0
      %7891 = vmatpush1.msra.mxu0 %v7828
      %7892 = vmatprep.subr.mxu0 0.0
      %7893 = vmatpush1.msra.mxu0 %v7829
      %7894 = vmatprep.subr.mxu0 0.0
      %7895 = vmatpush1.msra.mxu0 %v7830
      %7896 = vmatprep.subr.mxu0 0.0
      %7897 = vmatpush1.msra.mxu0 %v7831
      %7898 = vmatprep.subr.mxu0 0.0
      %7899 = vmatpush1.msra.mxu0 %v7832
      %7900 = vmatprep.subr.mxu0 0.0
      %7901 = vmatpush1.msra.mxu0 %v7833
      %7902 = vmatprep.mubr.f32.mxu0 %v7835
      %7903 = vmatmul.mubr.f32.gmra.mrb[0].mxu0 %v7834
      %v7904 = vpop.f32.mrb[0].mxu0
      %v7905 = vadd.f32 0.0, %v7904
      %v7906 = vpop.f32.mrb[0].mxu0
      %7907 = vdwg.mxu0
      %v7908 = vadd.f32 %v7800, %v7905
      %7909 = vst [vmem:[%s436] sm:$0x1] %v7908
      %p7910 = scmp.lt.s32.totalorder %s24, 1
      %s7911 = scalar_select %p7910, %s24, 1
      %s7912 = scalar_lea.vmem %s13, %s7911
      // Predicated region
      $region73: #{encoder_forward.1} parent=71 // pred_check
        %p7913 = pneg %p320
      $region74: #{encoder_forward.1} parent=71 // pred_check_branch
        %7915 = sbr.rel (%p7913) target = $region76
      $region75: #{encoder_forward.1} parent=71 // pred_region
        _
      $region76: #{encoder_forward.1} parent=71 // pred_fallthru
        _
    $region72: #{encoder_forward.1} parent=5 // pred_fallthru
      _
    %p7916 = scmp.le.s32.totalorder 2, %s19
    // Predicated region
    $region77: #{encoder_forward.1} parent=5 // pred_check
      %p7917 = pneg %p7916
    $region78: #{encoder_forward.1} parent=5 // pred_check_branch
      %7919 = sbr.rel (%p7917) target = $region80
    $region79: #{encoder_forward.1} parent=5 // pred_region
      %s7920 = ssub.s32 %s19, 2
      // Predicated region
      $region81: #{encoder_forward.1} parent=79 // pred_check
        %p7921 = pneg %p326
      $region82: #{encoder_forward.1} parent=79 // pred_check_branch
        %7923 = sbr.rel (%p7921) target = $region84
      $region83: #{encoder_forward.1} parent=79 // pred_region
        %p7924 = scmp.lt.s32.totalorder %s25, 1
        %s7925 = scalar_select %p7924, %s25, 1
        %s7926 = scalar_lea.vmem %s13, %s7925
      $region84: #{encoder_forward.1} parent=79 // pred_fallthru
        _
    $region80: #{encoder_forward.1} parent=5 // pred_fallthru
      _
  $region6: #{encoder_forward.1} parent=0 // loop_footer
    %s23 = sadd.s32 1, %s19
  $region7: #{encoder_forward.1} parent=0 // loop_footer_branch
    %18 = sbr.rel target = $region3
  $region8: #{encoder_forward.1} parent=0 // loop_exit
    _

</llo_original>
